<compile_context>
chip_gen: v7x
topology: tpu7x:2x2x1
jax: 0.10.0
libtpu: 0.0.40
codegen_flags: <defaults>
</compile_context>

<pallas_src>
import numpy as np

import jax
import jax.numpy as jnp
from jax.experimental import pallas as pl
from jax.experimental.pallas import tpu as pltpu

# ---------------- configuration (small, consistent with the module __init__) -----------
N_NODES = 64        # num_nodes
IN_CH = 16          # in_channels
HIDDEN = 32         # hidden_channels
OUT_CH = 8          # out_channels
N_HEAD = 4          # n_head
HEAD_DIM = HIDDEN // N_HEAD
LAYERS = 2          # transformer layers
FFN = 2 * HIDDEN    # FFN inner dim
N_EDGES = 256

_VMEM = pl.BlockSpec(memory_space=pltpu.MemorySpace.VMEM)
_BF16 = jnp.bfloat16


# --------------------------------- in-kernel helpers ------------------------------------
def _layer_norm(h, gamma, beta):
    # single-pass mean / mean-of-squares (one set of cross-lane reductions instead of two)
    mu = jnp.mean(h, axis=-1, keepdims=True)
    msq = jnp.mean(h * h, axis=-1, keepdims=True)
    var = msq - mu * mu
    return (h - mu) * jax.lax.rsqrt(var + 1e-5) * gamma + beta


# ------------------------------- fused CoBFormer kernel ---------------------------------
def _cobformer_kernel(a_ref, x_ref,
                      gw1_ref, gb1_ref, gw2_ref, gb2_ref,
                      win_ref, bin_ref,
                      wq_ref, wk_ref, wv_ref, wo_ref,
                      ln1g_ref, ln1b_ref,
                      wf1_ref, bf1_ref, wf2_ref, bf2_ref,
                      ln2g_ref, ln2b_ref,
                      wout_ref, bout_ref,
                      out_ref):
    f32 = jnp.float32
    x_bf = x_ref[...].astype(_BF16)
    a_bf = a_ref[...]                                    # adjacency already bf16

    # ---------------- GCN branch: z1 = A @ relu(A @ (X W1) + b1) @ W2 + b2 --------------
    h = jnp.dot(x_bf, gw1_ref[...], preferred_element_type=f32)
    h = jnp.dot(a_bf, h.astype(_BF16), preferred_element_type=f32) + gb1_ref[...]
    h = jnp.maximum(h, 0.0)                              # activation = ReLU; dropout id (eval)
    h = jnp.dot(h.astype(_BF16), gw2_ref[...], preferred_element_type=f32)
    z1 = jnp.dot(a_bf, h.astype(_BF16), preferred_element_type=f32) + gb2_ref[...]

    # ---------------- SPDECT branch (global multi-head self-attention encoder) ----------
    h = jnp.dot(x_bf, win_ref[...], preferred_element_type=f32) + bin_ref[...]

    for l in range(LAYERS):                              # static unroll over layers
        h_bf = h.astype(_BF16)
        hb = jnp.broadcast_to(h_bf, (N_HEAD, N_NODES, HIDDEN))   # head-leading batch axis

        # Q/K/V projections, head axis leading (no lane slicing, no lane concat).
        # 1/sqrt(head_dim) is pre-folded into wq on the host.
        q = jnp.einsum('hnc,hcd->hnd', hb, wq_ref[l], preferred_element_type=f32)
        k = jnp.einsum('hnc,hcd->hnd', hb, wk_ref[l], preferred_element_type=f32)
        v = jnp.einsum('hnc,hcd->hnd', hb, wv_ref[l], preferred_element_type=f32)

        s = jnp.einsum('hqd,hkd->hqk', q.astype(_BF16), k.astype(_BF16),
                       preferred_element_type=f32)
        m = jnp.max(s, axis=-1, keepdims=True)
        p = jnp.exp(s - m)
        denom = jnp.sum(p, axis=-1, keepdims=True)
        p = p * pl.reciprocal(denom, approx=True)        # divide -> EUP slot

        ctx = jnp.einsum('hqk,hkd->hqd', p.astype(_BF16), v.astype(_BF16),
                         preferred_element_type=f32)
        o = jnp.einsum('hqd,hdc->hqc', ctx.astype(_BF16), wo_ref[l],
                       preferred_element_type=f32)
        attn_out = jnp.sum(o, axis=0)                    # sum over heads == concat + Wo

        h = h + attn_out                                 # dropout identity (eval)
        h = _layer_norm(h, ln1g_ref[l], ln1b_ref[l])

        f = jnp.dot(h.astype(_BF16), wf1_ref[l], preferred_element_type=f32) + bf1_ref[l]
        f = jnp.maximum(f, 0.0)
        f = jnp.dot(f.astype(_BF16), wf2_ref[l], preferred_element_type=f32) + bf2_ref[l]
        h = h + f
        h = _layer_norm(h, ln2g_ref[l], ln2b_ref[l])

    z2 = jnp.dot(h.astype(_BF16), wout_ref[...], preferred_element_type=f32) + bout_ref[...]

    # single store: [z1 | z2] -> (N, 2*OUT_CH)
    out_ref[...] = jnp.concatenate([z1, z2], axis=1)


# ----------------------------------- glue / wrapper -------------------------------------
def build_norm_adj(edge_index, n):
    """Dense symmetric-normalized adjacency with self-loops: D^-1/2 (A+I) D^-1/2.

    Duplicate edges collapse to 1 (.set), existing self-loops are not doubled (max with I).
    Hoisted out of the per-forward path: call once per graph.
    """
    src, dst = edge_index[0], edge_index[1]
    a = jnp.zeros((n, n), jnp.float32).at[src, dst].set(1.0)
    a = jnp.maximum(a, a.T)                              # symmetrize
    a = jnp.maximum(a, jnp.eye(n, dtype=jnp.float32))    # self loops, no doubling
    deg = jnp.sum(a, axis=1)
    dinv = jax.lax.rsqrt(deg)
    return a * dinv[:, None] * dinv[None, :]


def init_params(key):
    def lin(k, fan_in, fan_out):
        return jax.random.normal(k, (fan_in, fan_out), jnp.float32) / jnp.sqrt(fan_in)

    ks = jax.random.split(key, 16)
    p = {}
    # GCN
    p["gcn_w1"] = lin(ks[0], IN_CH, HIDDEN)
    p["gcn_b1"] = jnp.zeros((1, HIDDEN), jnp.float32)
    p["gcn_w2"] = lin(ks[1], HIDDEN, OUT_CH)
    p["gcn_b2"] = jnp.zeros((1, OUT_CH), jnp.float32)
    # SPDECT
    p["win"] = lin(ks[2], IN_CH, HIDDEN)
    p["bin"] = jnp.zeros((1, HIDDEN), jnp.float32)
    p["wq"] = jnp.stack([lin(k, HIDDEN, HIDDEN) for k in jax.random.split(ks[3], LAYERS)])
    p["wk"] = jnp.stack([lin(k, HIDDEN, HIDDEN) for k in jax.random.split(ks[4], LAYERS)])
    p["wv"] = jnp.stack([lin(k, HIDDEN, HIDDEN) for k in jax.random.split(ks[5], LAYERS)])
    p["wo"] = jnp.stack([lin(k, HIDDEN, HIDDEN) for k in jax.random.split(ks[6], LAYERS)])
    p["ln1g"] = jnp.ones((LAYERS, 1, HIDDEN), jnp.float32)
    p["ln1b"] = jnp.zeros((LAYERS, 1, HIDDEN), jnp.float32)
    p["wf1"] = jnp.stack([lin(k, HIDDEN, FFN) for k in jax.random.split(ks[7], LAYERS)])
    p["bf1"] = jnp.zeros((LAYERS, 1, FFN), jnp.float32)
    p["wf2"] = jnp.stack([lin(k, FFN, HIDDEN) for k in jax.random.split(ks[8], LAYERS)])
    p["bf2"] = jnp.zeros((LAYERS, 1, HIDDEN), jnp.float32)
    p["ln2g"] = jnp.ones((LAYERS, 1, HIDDEN), jnp.float32)
    p["ln2b"] = jnp.zeros((LAYERS, 1, HIDDEN), jnp.float32)
    p["wout"] = lin(ks[9], HIDDEN, OUT_CH)
    p["bout"] = jnp.zeros((1, OUT_CH), jnp.float32)
    return p


def prepare_params(p):
    """One-time host-side prep: head-major attention weights + bf16 MXU operands.

    Also folds the 1/sqrt(head_dim) attention scale into Wq so the kernel never
    applies it (one fewer in-kernel vector multiply per layer).
    """
    def heads_out(w):   # (L, C, C): split OUTPUT dim into heads -> (L, H, C, D)
        return w.reshape(LAYERS, HIDDEN, N_HEAD, HEAD_DIM).transpose(0, 2, 1, 3).astype(_BF16)

    scale = np.float32(1.0 / np.sqrt(HEAD_DIM))
    q = dict(p)
    q["gcn_w1"] = p["gcn_w1"].astype(_BF16)
    q["gcn_w2"] = p["gcn_w2"].astype(_BF16)
    q["win"] = p["win"].astype(_BF16)
    q["wq"] = heads_out(p["wq"] * scale)                 # scale pre-folded (one-time)
    q["wk"] = heads_out(p["wk"])
    q["wv"] = heads_out(p["wv"])
    # Wo input dim is the concatenated head dims -> (L, H, D, C)
    q["wo"] = p["wo"].reshape(LAYERS, N_HEAD, HEAD_DIM, HIDDEN).astype(_BF16)
    q["wf1"] = p["wf1"].astype(_BF16)
    q["wf2"] = p["wf2"].astype(_BF16)
    q["wout"] = p["wout"].astype(_BF16)
    # biases / LayerNorm params stay f32 (added to f32 accumulators)
    return q


def _cost_estimate(bytes_accessed):
    mm = lambda m, k, n: 2 * m * k * n
    flops = (mm(N_NODES, IN_CH, HIDDEN) + mm(N_NODES, N_NODES, HIDDEN)
             + mm(N_NODES, HIDDEN, OUT_CH) + mm(N_NODES, N_NODES, OUT_CH))      # GCN
    flops += mm(N_NODES, IN_CH, HIDDEN)                                          # input proj
    per_layer = (3 * N_HEAD * mm(N_NODES, HIDDEN, HEAD_DIM)
                 + N_HEAD * mm(N_NODES, HEAD_DIM, N_NODES)
                 + N_HEAD * mm(N_NODES, N_NODES, HEAD_DIM)
                 + N_HEAD * mm(N_NODES, HEAD_DIM, HIDDEN)
                 + mm(N_NODES, HIDDEN, FFN) + mm(N_NODES, FFN, HIDDEN))
    flops += LAYERS * per_layer
    flops += mm(N_NODES, HIDDEN, OUT_CH)                                         # output proj
    transcendentals = LAYERS * (N_HEAD * N_NODES * N_NODES    # exp
                                + N_HEAD * N_NODES            # softmax recip
                                + 2 * N_NODES)                # LN rsqrt
    return pl.CostEstimate(flops=flops, transcendentals=transcendentals,
                           bytes_accessed=bytes_accessed)


@jax.jit
def cobformer_forward(x, a_hat_bf16, params):
    args = (a_hat_bf16, x,
            params["gcn_w1"], params["gcn_b1"], params["gcn_w2"], params["gcn_b2"],
            params["win"], params["bin"],
            params["wq"], params["wk"], params["wv"], params["wo"],
            params["ln1g"], params["ln1b"],
            params["wf1"], params["bf1"], params["wf2"], params["bf2"],
            params["ln2g"], params["ln2b"],
            params["wout"], params["bout"])

    out_nbytes = N_NODES * 2 * OUT_CH * 4
    in_nbytes = sum(int(np.prod(a.shape)) * jnp.dtype(a.dtype).itemsize for a in args)

    fused = pl.pallas_call(
        _cobformer_kernel,
        out_shape=jax.ShapeDtypeStruct((N_NODES, 2 * OUT_CH), jnp.float32),
        in_specs=[_VMEM] * len(args),
        out_specs=_VMEM,
        cost_estimate=_cost_estimate(in_nbytes + out_nbytes),
    )
    out = fused(*args)
    return out[:, :OUT_CH], out[:, OUT_CH:]


if __name__ == "__main__":
    key = jax.random.PRNGKey(0)
    k_x, k_e, k_p = jax.random.split(key, 3)

    x = jax.random.normal(k_x, (N_NODES, IN_CH), jnp.float32)
    edge_index = jax.random.randint(k_e, (2, N_EDGES), 0, N_NODES, jnp.int32)
    params = prepare_params(init_params(k_p))

    # adjacency build hoisted out of the jitted per-forward path (per-graph constant)
    a_hat = build_norm_adj(edge_index, N_NODES).astype(_BF16)

    z1, z2 = cobformer_forward(x, a_hat, params)
    jax.block_until_ready((z1, z2))

    assert z1.shape == (N_NODES, OUT_CH) and z2.shape == (N_NODES, OUT_CH)
    assert jnp.all(jnp.isfinite(z1)) and jnp.all(jnp.isfinite(z2))
    print("KERNEL_OK")
</pallas_src>

<mosaic_0001>
module attributes {stable_mosaic.version = 11 : i64} {
  func.func @_cobformer_kernel(%arg0: memref<64x64xbf16, #tpu.memory_space<vmem>>, %arg1: memref<64x16xf32, #tpu.memory_space<vmem>>, %arg2: memref<16x32xbf16, #tpu.memory_space<vmem>>, %arg3: memref<1x32xf32, #tpu.memory_space<vmem>>, %arg4: memref<32x8xbf16, #tpu.memory_space<vmem>>, %arg5: memref<1x8xf32, #tpu.memory_space<vmem>>, %arg6: memref<16x32xbf16, #tpu.memory_space<vmem>>, %arg7: memref<1x32xf32, #tpu.memory_space<vmem>>, %arg8: memref<2x4x32x8xbf16, #tpu.memory_space<vmem>>, %arg9: memref<2x4x32x8xbf16, #tpu.memory_space<vmem>>, %arg10: memref<2x4x32x8xbf16, #tpu.memory_space<vmem>>, %arg11: memref<2x4x8x32xbf16, #tpu.memory_space<vmem>>, %arg12: memref<2x1x32xf32, #tpu.memory_space<vmem>>, %arg13: memref<2x1x32xf32, #tpu.memory_space<vmem>>, %arg14: memref<2x32x64xbf16, #tpu.memory_space<vmem>>, %arg15: memref<2x1x64xf32, #tpu.memory_space<vmem>>, %arg16: memref<2x64x32xbf16, #tpu.memory_space<vmem>>, %arg17: memref<2x1x32xf32, #tpu.memory_space<vmem>>, %arg18: memref<2x1x32xf32, #tpu.memory_space<vmem>>, %arg19: memref<2x1x32xf32, #tpu.memory_space<vmem>>, %arg20: memref<32x8xbf16, #tpu.memory_space<vmem>>, %arg21: memref<1x8xf32, #tpu.memory_space<vmem>>, %arg22: memref<64x16xf32, #tpu.memory_space<vmem>>) attributes {dimension_semantics = [], scalar_prefetch = 0 : i64, scratch_operands = 0 : i64, tpu.core_type = #tpu.core_type<tc>} {
    %c0 = arith.constant 0 : index
    %c0_0 = arith.constant 0 : index
    %0 = vector.load %arg1[%c0, %c0_0] : memref<64x16xf32, #tpu.memory_space<vmem>>, vector<64x16xf32>
    %1 = arith.truncf %0 : vector<64x16xf32> to vector<64x16xbf16>
    %c0_1 = arith.constant 0 : index
    %c0_2 = arith.constant 0 : index
    %2 = vector.load %arg0[%c0_1, %c0_2] : memref<64x64xbf16, #tpu.memory_space<vmem>>, vector<64x64xbf16>
    %c0_3 = arith.constant 0 : index
    %c0_4 = arith.constant 0 : index
    %3 = vector.load %arg2[%c0_3, %c0_4] : memref<16x32xbf16, #tpu.memory_space<vmem>>, vector<16x32xbf16>
    %cst = arith.constant dense<0.000000e+00> : vector<64x32xf32>
    %4 = tpu.matmul %1, %3, %cst {dimension_numbers = #tpu.dot_dimension_numbers<[1], [0], [0], [1], [0, 0, 1, 1], [], []>} : vector<64x16xbf16>, vector<16x32xbf16>, vector<64x32xf32> -> vector<64x32xf32>
    %5 = arith.truncf %4 : vector<64x32xf32> to vector<64x32xbf16>
    %cst_5 = arith.constant dense<0.000000e+00> : vector<64x32xf32>
    %6 = tpu.matmul %2, %5, %cst_5 {dimension_numbers = #tpu.dot_dimension_numbers<[1], [0], [0], [1], [0, 0, 1, 1], [], []>} : vector<64x64xbf16>, vector<64x32xbf16>, vector<64x32xf32> -> vector<64x32xf32>
    %c0_6 = arith.constant 0 : index
    %c0_7 = arith.constant 0 : index
    %7 = vector.load %arg3[%c0_6, %c0_7] : memref<1x32xf32, #tpu.memory_space<vmem>>, vector<1x32xf32>
    %8 = vector.broadcast %7 : vector<1x32xf32> to vector<64x32xf32>
    %9 = arith.addf %6, %8 : vector<64x32xf32>
    %cst_8 = arith.constant 0.000000e+00 : f32
    %10 = vector.broadcast %cst_8 : f32 to vector<64x32xf32>
    %11 = arith.maximumf %9, %10 : vector<64x32xf32>
    %12 = arith.truncf %11 : vector<64x32xf32> to vector<64x32xbf16>
    %c0_9 = arith.constant 0 : index
    %c0_10 = arith.constant 0 : index
    %13 = vector.load %arg4[%c0_9, %c0_10] : memref<32x8xbf16, #tpu.memory_space<vmem>>, vector<32x8xbf16>
    %cst_11 = arith.constant dense<0.000000e+00> : vector<64x8xf32>
    %14 = tpu.matmul %12, %13, %cst_11 {dimension_numbers = #tpu.dot_dimension_numbers<[1], [0], [0], [1], [0, 0, 1, 1], [], []>} : vector<64x32xbf16>, vector<32x8xbf16>, vector<64x8xf32> -> vector<64x8xf32>
    %15 = arith.truncf %14 : vector<64x8xf32> to vector<64x8xbf16>
    %cst_12 = arith.constant dense<0.000000e+00> : vector<64x8xf32>
    %16 = tpu.matmul %2, %15, %cst_12 {dimension_numbers = #tpu.dot_dimension_numbers<[1], [0], [0], [1], [0, 0, 1, 1], [], []>} : vector<64x64xbf16>, vector<64x8xbf16>, vector<64x8xf32> -> vector<64x8xf32>
    %c0_13 = arith.constant 0 : index
    %c0_14 = arith.constant 0 : index
    %17 = vector.load %arg5[%c0_13, %c0_14] : memref<1x8xf32, #tpu.memory_space<vmem>>, vector<1x8xf32>
    %18 = vector.broadcast %17 : vector<1x8xf32> to vector<64x8xf32>
    %19 = arith.addf %16, %18 : vector<64x8xf32>
    %c0_15 = arith.constant 0 : index
    %c0_16 = arith.constant 0 : index
    %20 = vector.load %arg6[%c0_15, %c0_16] : memref<16x32xbf16, #tpu.memory_space<vmem>>, vector<16x32xbf16>
    %cst_17 = arith.constant dense<0.000000e+00> : vector<64x32xf32>
    %21 = tpu.matmul %1, %20, %cst_17 {dimension_numbers = #tpu.dot_dimension_numbers<[1], [0], [0], [1], [0, 0, 1, 1], [], []>} : vector<64x16xbf16>, vector<16x32xbf16>, vector<64x32xf32> -> vector<64x32xf32>
    %c0_18 = arith.constant 0 : index
    %c0_19 = arith.constant 0 : index
    %22 = vector.load %arg7[%c0_18, %c0_19] : memref<1x32xf32, #tpu.memory_space<vmem>>, vector<1x32xf32>
    %23 = vector.broadcast %22 : vector<1x32xf32> to vector<64x32xf32>
    %24 = arith.addf %21, %23 : vector<64x32xf32>
    %25 = arith.truncf %24 : vector<64x32xf32> to vector<64x32xbf16>
    %26 = vector.shape_cast %25 : vector<64x32xbf16> to vector<1x64x32xbf16>
    %27 = vector.broadcast %26 : vector<1x64x32xbf16> to vector<4x64x32xbf16>
    %c0_20 = arith.constant 0 : index
    %c0_21 = arith.constant 0 : index
    %c0_22 = arith.constant 0 : index
    %c0_23 = arith.constant 0 : index
    %28 = vector.load %arg8[%c0_20, %c0_21, %c0_22, %c0_23] : memref<2x4x32x8xbf16, #tpu.memory_space<vmem>>, vector<1x4x32x8xbf16>
    %29 = vector.shape_cast %28 : vector<1x4x32x8xbf16> to vector<4x32x8xbf16>
    "tpu.trace_start"() <{level = 10 : i32, message = "hnc,hcd->hnd"}> : () -> ()
    %cst_24 = arith.constant dense<0.000000e+00> : vector<4x64x8xf32>
    %30 = tpu.matmul %27, %29, %cst_24 {dimension_numbers = #tpu.dot_dimension_numbers<[2], [1], [1], [2], [0, 0, 0, 1, 1, 2], [0], [0]>} : vector<4x64x32xbf16>, vector<4x32x8xbf16>, vector<4x64x8xf32> -> vector<4x64x8xf32>
    "tpu.trace_stop"() : () -> ()
    %c0_25 = arith.constant 0 : index
    %c0_26 = arith.constant 0 : index
    %c0_27 = arith.constant 0 : index
    %c0_28 = arith.constant 0 : index
    %31 = vector.load %arg9[%c0_25, %c0_26, %c0_27, %c0_28] : memref<2x4x32x8xbf16, #tpu.memory_space<vmem>>, vector<1x4x32x8xbf16>
    %32 = vector.shape_cast %31 : vector<1x4x32x8xbf16> to vector<4x32x8xbf16>
    "tpu.trace_start"() <{level = 10 : i32, message = "hnc,hcd->hnd"}> : () -> ()
    %cst_29 = arith.constant dense<0.000000e+00> : vector<4x64x8xf32>
    %33 = tpu.matmul %27, %32, %cst_29 {dimension_numbers = #tpu.dot_dimension_numbers<[2], [1], [1], [2], [0, 0, 0, 1, 1, 2], [0], [0]>} : vector<4x64x32xbf16>, vector<4x32x8xbf16>, vector<4x64x8xf32> -> vector<4x64x8xf32>
    "tpu.trace_stop"() : () -> ()
    %c0_30 = arith.constant 0 : index
    %c0_31 = arith.constant 0 : index
    %c0_32 = arith.constant 0 : index
    %c0_33 = arith.constant 0 : index
    %34 = vector.load %arg10[%c0_30, %c0_31, %c0_32, %c0_33] : memref<2x4x32x8xbf16, #tpu.memory_space<vmem>>, vector<1x4x32x8xbf16>
    %35 = vector.shape_cast %34 : vector<1x4x32x8xbf16> to vector<4x32x8xbf16>
    "tpu.trace_start"() <{level = 10 : i32, message = "hnc,hcd->hnd"}> : () -> ()
    %cst_34 = arith.constant dense<0.000000e+00> : vector<4x64x8xf32>
    %36 = tpu.matmul %27, %35, %cst_34 {dimension_numbers = #tpu.dot_dimension_numbers<[2], [1], [1], [2], [0, 0, 0, 1, 1, 2], [0], [0]>} : vector<4x64x32xbf16>, vector<4x32x8xbf16>, vector<4x64x8xf32> -> vector<4x64x8xf32>
    "tpu.trace_stop"() : () -> ()
    %37 = arith.truncf %30 : vector<4x64x8xf32> to vector<4x64x8xbf16>
    %38 = arith.truncf %33 : vector<4x64x8xf32> to vector<4x64x8xbf16>
    "tpu.trace_start"() <{level = 10 : i32, message = "hqd,hkd->hqk"}> : () -> ()
    %cst_35 = arith.constant dense<0.000000e+00> : vector<4x64x64xf32>
    %39 = tpu.matmul %37, %38, %cst_35 {dimension_numbers = #tpu.dot_dimension_numbers<[2], [2], [1], [1], [0, 0, 0, 1, 1, 1], [0], [0]>} : vector<4x64x8xbf16>, vector<4x64x8xbf16>, vector<4x64x64xf32> -> vector<4x64x64xf32>
    "tpu.trace_stop"() : () -> ()
    %cst_36 = arith.constant dense<0xFF800000> : vector<4x64xf32>
    %40 = vector.multi_reduction <maximumf>, %39, %cst_36 [2] : vector<4x64x64xf32> to vector<4x64xf32>
    %41 = vector.shape_cast %40 : vector<4x64xf32> to vector<4x64x1xf32>
    %42 = vector.broadcast %41 : vector<4x64x1xf32> to vector<4x64x64xf32>
    %43 = arith.subf %39, %42 : vector<4x64x64xf32>
    %44 = math.exp %43 : vector<4x64x64xf32>
    %cst_37 = arith.constant dense<0.000000e+00> : vector<4x64xf32>
    %45 = vector.multi_reduction <add>, %44, %cst_37 [2] : vector<4x64x64xf32> to vector<4x64xf32>
    %46 = vector.shape_cast %45 : vector<4x64xf32> to vector<4x64x1xf32>
    %47 = tpu.reciprocal %46 {approx = true} : vector<4x64x1xf32> -> vector<4x64x1xf32>
    %48 = vector.broadcast %47 : vector<4x64x1xf32> to vector<4x64x64xf32>
    %49 = arith.mulf %44, %48 : vector<4x64x64xf32>
    %50 = arith.truncf %49 : vector<4x64x64xf32> to vector<4x64x64xbf16>
    %51 = arith.truncf %36 : vector<4x64x8xf32> to vector<4x64x8xbf16>
    "tpu.trace_start"() <{level = 10 : i32, message = "hqk,hkd->hqd"}> : () -> ()
    %cst_38 = arith.constant dense<0.000000e+00> : vector<4x64x8xf32>
    %52 = tpu.matmul %50, %51, %cst_38 {dimension_numbers = #tpu.dot_dimension_numbers<[2], [1], [1], [2], [0, 0, 0, 1, 1, 2], [0], [0]>} : vector<4x64x64xbf16>, vector<4x64x8xbf16>, vector<4x64x8xf32> -> vector<4x64x8xf32>
    "tpu.trace_stop"() : () -> ()
    %53 = arith.truncf %52 : vector<4x64x8xf32> to vector<4x64x8xbf16>
    %c0_39 = arith.constant 0 : index
    %c0_40 = arith.constant 0 : index
    %c0_41 = arith.constant 0 : index
    %c0_42 = arith.constant 0 : index
    %54 = vector.load %arg11[%c0_39, %c0_40, %c0_41, %c0_42] : memref<2x4x8x32xbf16, #tpu.memory_space<vmem>>, vector<1x4x8x32xbf16>
    %55 = vector.shape_cast %54 : vector<1x4x8x32xbf16> to vector<4x8x32xbf16>
    "tpu.trace_start"() <{level = 10 : i32, message = "hqd,hdc->hqc"}> : () -> ()
    %cst_43 = arith.constant dense<0.000000e+00> : vector<4x64x32xf32>
    %56 = tpu.matmul %53, %55, %cst_43 {dimension_numbers = #tpu.dot_dimension_numbers<[2], [1], [1], [2], [0, 0, 0, 1, 1, 2], [0], [0]>} : vector<4x64x8xbf16>, vector<4x8x32xbf16>, vector<4x64x32xf32> -> vector<4x64x32xf32>
    "tpu.trace_stop"() : () -> ()
    %cst_44 = arith.constant dense<0.000000e+00> : vector<64x32xf32>
    %57 = vector.multi_reduction <add>, %56, %cst_44 [0] : vector<4x64x32xf32> to vector<64x32xf32>
    %58 = arith.addf %24, %57 : vector<64x32xf32>
    %c0_45 = arith.constant 0 : index
    %c0_46 = arith.constant 0 : index
    %c0_47 = arith.constant 0 : index
    %59 = vector.load %arg12[%c0_45, %c0_46, %c0_47] : memref<2x1x32xf32, #tpu.memory_space<vmem>>, vector<1x1x32xf32>
    %60 = vector.shape_cast %59 : vector<1x1x32xf32> to vector<1x32xf32>
    %c0_48 = arith.constant 0 : index
    %c0_49 = arith.constant 0 : index
    %c0_50 = arith.constant 0 : index
    %61 = vector.load %arg13[%c0_48, %c0_49, %c0_50] : memref<2x1x32xf32, #tpu.memory_space<vmem>>, vector<1x1x32xf32>
    %62 = vector.shape_cast %61 : vector<1x1x32xf32> to vector<1x32xf32>
    %cst_51 = arith.constant dense<0.000000e+00> : vector<64xf32>
    %63 = vector.multi_reduction <add>, %58, %cst_51 [1] : vector<64x32xf32> to vector<64xf32>
    %64 = vector.shape_cast %63 : vector<64xf32> to vector<64x1xf32>
    %cst_52 = arith.constant 3.200000e+01 : f32
    %65 = vector.broadcast %cst_52 : f32 to vector<64x1xf32>
    %66 = arith.divf %64, %65 : vector<64x1xf32>
    %67 = arith.mulf %58, %58 : vector<64x32xf32>
    %cst_53 = arith.constant dense<0.000000e+00> : vector<64xf32>
    %68 = vector.multi_reduction <add>, %67, %cst_53 [1] : vector<64x32xf32> to vector<64xf32>
    %69 = vector.shape_cast %68 : vector<64xf32> to vector<64x1xf32>
    %cst_54 = arith.constant 3.200000e+01 : f32
    %70 = vector.broadcast %cst_54 : f32 to vector<64x1xf32>
    %71 = arith.divf %69, %70 : vector<64x1xf32>
    %72 = arith.mulf %66, %66 : vector<64x1xf32>
    %73 = arith.subf %71, %72 : vector<64x1xf32>
    %74 = vector.broadcast %66 : vector<64x1xf32> to vector<64x32xf32>
    %75 = arith.subf %58, %74 : vector<64x32xf32>
    %cst_55 = arith.constant 9.99999974E-6 : f32
    %76 = vector.broadcast %cst_55 : f32 to vector<64x1xf32>
    %77 = arith.addf %73, %76 : vector<64x1xf32>
    %78 = math.rsqrt %77 : vector<64x1xf32>
    %79 = vector.broadcast %78 : vector<64x1xf32> to vector<64x32xf32>
    %80 = arith.mulf %75, %79 : vector<64x32xf32>
    %81 = vector.broadcast %60 : vector<1x32xf32> to vector<64x32xf32>
    %82 = arith.mulf %80, %81 : vector<64x32xf32>
    %83 = vector.broadcast %62 : vector<1x32xf32> to vector<64x32xf32>
    %84 = arith.addf %82, %83 : vector<64x32xf32>
    %85 = arith.truncf %84 : vector<64x32xf32> to vector<64x32xbf16>
    %c0_56 = arith.constant 0 : index
    %c0_57 = arith.constant 0 : index
    %c0_58 = arith.constant 0 : index
    %86 = vector.load %arg14[%c0_56, %c0_57, %c0_58] : memref<2x32x64xbf16, #tpu.memory_space<vmem>>, vector<1x32x64xbf16>
    %87 = vector.shape_cast %86 : vector<1x32x64xbf16> to vector<32x64xbf16>
    %cst_59 = arith.constant dense<0.000000e+00> : vector<64x64xf32>
    %88 = tpu.matmul %85, %87, %cst_59 {dimension_numbers = #tpu.dot_dimension_numbers<[1], [0], [0], [1], [0, 0, 1, 1], [], []>} : vector<64x32xbf16>, vector<32x64xbf16>, vector<64x64xf32> -> vector<64x64xf32>
    %c0_60 = arith.constant 0 : index
    %c0_61 = arith.constant 0 : index
    %c0_62 = arith.constant 0 : index
    %89 = vector.load %arg15[%c0_60, %c0_61, %c0_62] : memref<2x1x64xf32, #tpu.memory_space<vmem>>, vector<1x1x64xf32>
    %90 = vector.shape_cast %89 : vector<1x1x64xf32> to vector<1x64xf32>
    %91 = vector.broadcast %90 : vector<1x64xf32> to vector<64x64xf32>
    %92 = arith.addf %88, %91 : vector<64x64xf32>
    %cst_63 = arith.constant 0.000000e+00 : f32
    %93 = vector.broadcast %cst_63 : f32 to vector<64x64xf32>
    %94 = arith.maximumf %92, %93 : vector<64x64xf32>
    %95 = arith.truncf %94 : vector<64x64xf32> to vector<64x64xbf16>
    %c0_64 = arith.constant 0 : index
    %c0_65 = arith.constant 0 : index
    %c0_66 = arith.constant 0 : index
    %96 = vector.load %arg16[%c0_64, %c0_65, %c0_66] : memref<2x64x32xbf16, #tpu.memory_space<vmem>>, vector<1x64x32xbf16>
    %97 = vector.shape_cast %96 : vector<1x64x32xbf16> to vector<64x32xbf16>
    %cst_67 = arith.constant dense<0.000000e+00> : vector<64x32xf32>
    %98 = tpu.matmul %95, %97, %cst_67 {dimension_numbers = #tpu.dot_dimension_numbers<[1], [0], [0], [1], [0, 0, 1, 1], [], []>} : vector<64x64xbf16>, vector<64x32xbf16>, vector<64x32xf32> -> vector<64x32xf32>
    %c0_68 = arith.constant 0 : index
    %c0_69 = arith.constant 0 : index
    %c0_70 = arith.constant 0 : index
    %99 = vector.load %arg17[%c0_68, %c0_69, %c0_70] : memref<2x1x32xf32, #tpu.memory_space<vmem>>, vector<1x1x32xf32>
    %100 = vector.shape_cast %99 : vector<1x1x32xf32> to vector<1x32xf32>
    %101 = vector.broadcast %100 : vector<1x32xf32> to vector<64x32xf32>
    %102 = arith.addf %98, %101 : vector<64x32xf32>
    %103 = arith.addf %84, %102 : vector<64x32xf32>
    %c0_71 = arith.constant 0 : index
    %c0_72 = arith.constant 0 : index
    %c0_73 = arith.constant 0 : index
    %104 = vector.load %arg18[%c0_71, %c0_72, %c0_73] : memref<2x1x32xf32, #tpu.memory_space<vmem>>, vector<1x1x32xf32>
    %105 = vector.shape_cast %104 : vector<1x1x32xf32> to vector<1x32xf32>
    %c0_74 = arith.constant 0 : index
    %c0_75 = arith.constant 0 : index
    %c0_76 = arith.constant 0 : index
    %106 = vector.load %arg19[%c0_74, %c0_75, %c0_76] : memref<2x1x32xf32, #tpu.memory_space<vmem>>, vector<1x1x32xf32>
    %107 = vector.shape_cast %106 : vector<1x1x32xf32> to vector<1x32xf32>
    %cst_77 = arith.constant dense<0.000000e+00> : vector<64xf32>
    %108 = vector.multi_reduction <add>, %103, %cst_77 [1] : vector<64x32xf32> to vector<64xf32>
    %109 = vector.shape_cast %108 : vector<64xf32> to vector<64x1xf32>
    %cst_78 = arith.constant 3.200000e+01 : f32
    %110 = vector.broadcast %cst_78 : f32 to vector<64x1xf32>
    %111 = arith.divf %109, %110 : vector<64x1xf32>
    %112 = arith.mulf %103, %103 : vector<64x32xf32>
    %cst_79 = arith.constant dense<0.000000e+00> : vector<64xf32>
    %113 = vector.multi_reduction <add>, %112, %cst_79 [1] : vector<64x32xf32> to vector<64xf32>
    %114 = vector.shape_cast %113 : vector<64xf32> to vector<64x1xf32>
    %cst_80 = arith.constant 3.200000e+01 : f32
    %115 = vector.broadcast %cst_80 : f32 to vector<64x1xf32>
    %116 = arith.divf %114, %115 : vector<64x1xf32>
    %117 = arith.mulf %111, %111 : vector<64x1xf32>
    %118 = arith.subf %116, %117 : vector<64x1xf32>
    %119 = vector.broadcast %111 : vector<64x1xf32> to vector<64x32xf32>
    %120 = arith.subf %103, %119 : vector<64x32xf32>
    %cst_81 = arith.constant 9.99999974E-6 : f32
    %121 = vector.broadcast %cst_81 : f32 to vector<64x1xf32>
    %122 = arith.addf %118, %121 : vector<64x1xf32>
    %123 = math.rsqrt %122 : vector<64x1xf32>
    %124 = vector.broadcast %123 : vector<64x1xf32> to vector<64x32xf32>
    %125 = arith.mulf %120, %124 : vector<64x32xf32>
    %126 = vector.broadcast %105 : vector<1x32xf32> to vector<64x32xf32>
    %127 = arith.mulf %125, %126 : vector<64x32xf32>
    %128 = vector.broadcast %107 : vector<1x32xf32> to vector<64x32xf32>
    %129 = arith.addf %127, %128 : vector<64x32xf32>
    %130 = arith.truncf %129 : vector<64x32xf32> to vector<64x32xbf16>
    %131 = vector.shape_cast %130 : vector<64x32xbf16> to vector<1x64x32xbf16>
    %132 = vector.broadcast %131 : vector<1x64x32xbf16> to vector<4x64x32xbf16>
    %c1 = arith.constant 1 : index
    %c0_82 = arith.constant 0 : index
    %c0_83 = arith.constant 0 : index
    %c0_84 = arith.constant 0 : index
    %133 = vector.load %arg8[%c1, %c0_82, %c0_83, %c0_84] : memref<2x4x32x8xbf16, #tpu.memory_space<vmem>>, vector<1x4x32x8xbf16>
    %134 = vector.shape_cast %133 : vector<1x4x32x8xbf16> to vector<4x32x8xbf16>
    "tpu.trace_start"() <{level = 10 : i32, message = "hnc,hcd->hnd"}> : () -> ()
    %cst_85 = arith.constant dense<0.000000e+00> : vector<4x64x8xf32>
    %135 = tpu.matmul %132, %134, %cst_85 {dimension_numbers = #tpu.dot_dimension_numbers<[2], [1], [1], [2], [0, 0, 0, 1, 1, 2], [0], [0]>} : vector<4x64x32xbf16>, vector<4x32x8xbf16>, vector<4x64x8xf32> -> vector<4x64x8xf32>
    "tpu.trace_stop"() : () -> ()
    %c1_86 = arith.constant 1 : index
    %c0_87 = arith.constant 0 : index
    %c0_88 = arith.constant 0 : index
    %c0_89 = arith.constant 0 : index
    %136 = vector.load %arg9[%c1_86, %c0_87, %c0_88, %c0_89] : memref<2x4x32x8xbf16, #tpu.memory_space<vmem>>, vector<1x4x32x8xbf16>
    %137 = vector.shape_cast %136 : vector<1x4x32x8xbf16> to vector<4x32x8xbf16>
    "tpu.trace_start"() <{level = 10 : i32, message = "hnc,hcd->hnd"}> : () -> ()
    %cst_90 = arith.constant dense<0.000000e+00> : vector<4x64x8xf32>
    %138 = tpu.matmul %132, %137, %cst_90 {dimension_numbers = #tpu.dot_dimension_numbers<[2], [1], [1], [2], [0, 0, 0, 1, 1, 2], [0], [0]>} : vector<4x64x32xbf16>, vector<4x32x8xbf16>, vector<4x64x8xf32> -> vector<4x64x8xf32>
    "tpu.trace_stop"() : () -> ()
    %c1_91 = arith.constant 1 : index
    %c0_92 = arith.constant 0 : index
    %c0_93 = arith.constant 0 : index
    %c0_94 = arith.constant 0 : index
    %139 = vector.load %arg10[%c1_91, %c0_92, %c0_93, %c0_94] : memref<2x4x32x8xbf16, #tpu.memory_space<vmem>>, vector<1x4x32x8xbf16>
    %140 = vector.shape_cast %139 : vector<1x4x32x8xbf16> to vector<4x32x8xbf16>
    "tpu.trace_start"() <{level = 10 : i32, message = "hnc,hcd->hnd"}> : () -> ()
    %cst_95 = arith.constant dense<0.000000e+00> : vector<4x64x8xf32>
    %141 = tpu.matmul %132, %140, %cst_95 {dimension_numbers = #tpu.dot_dimension_numbers<[2], [1], [1], [2], [0, 0, 0, 1, 1, 2], [0], [0]>} : vector<4x64x32xbf16>, vector<4x32x8xbf16>, vector<4x64x8xf32> -> vector<4x64x8xf32>
    "tpu.trace_stop"() : () -> ()
    %142 = arith.truncf %135 : vector<4x64x8xf32> to vector<4x64x8xbf16>
    %143 = arith.truncf %138 : vector<4x64x8xf32> to vector<4x64x8xbf16>
    "tpu.trace_start"() <{level = 10 : i32, message = "hqd,hkd->hqk"}> : () -> ()
    %cst_96 = arith.constant dense<0.000000e+00> : vector<4x64x64xf32>
    %144 = tpu.matmul %142, %143, %cst_96 {dimension_numbers = #tpu.dot_dimension_numbers<[2], [2], [1], [1], [0, 0, 0, 1, 1, 1], [0], [0]>} : vector<4x64x8xbf16>, vector<4x64x8xbf16>, vector<4x64x64xf32> -> vector<4x64x64xf32>
    "tpu.trace_stop"() : () -> ()
    %cst_97 = arith.constant dense<0xFF800000> : vector<4x64xf32>
    %145 = vector.multi_reduction <maximumf>, %144, %cst_97 [2] : vector<4x64x64xf32> to vector<4x64xf32>
    %146 = vector.shape_cast %145 : vector<4x64xf32> to vector<4x64x1xf32>
    %147 = vector.broadcast %146 : vector<4x64x1xf32> to vector<4x64x64xf32>
    %148 = arith.subf %144, %147 : vector<4x64x64xf32>
    %149 = math.exp %148 : vector<4x64x64xf32>
    %cst_98 = arith.constant dense<0.000000e+00> : vector<4x64xf32>
    %150 = vector.multi_reduction <add>, %149, %cst_98 [2] : vector<4x64x64xf32> to vector<4x64xf32>
    %151 = vector.shape_cast %150 : vector<4x64xf32> to vector<4x64x1xf32>
    %152 = tpu.reciprocal %151 {approx = true} : vector<4x64x1xf32> -> vector<4x64x1xf32>
    %153 = vector.broadcast %152 : vector<4x64x1xf32> to vector<4x64x64xf32>
    %154 = arith.mulf %149, %153 : vector<4x64x64xf32>
    %155 = arith.truncf %154 : vector<4x64x64xf32> to vector<4x64x64xbf16>
    %156 = arith.truncf %141 : vector<4x64x8xf32> to vector<4x64x8xbf16>
    "tpu.trace_start"() <{level = 10 : i32, message = "hqk,hkd->hqd"}> : () -> ()
    %cst_99 = arith.constant dense<0.000000e+00> : vector<4x64x8xf32>
    %157 = tpu.matmul %155, %156, %cst_99 {dimension_numbers = #tpu.dot_dimension_numbers<[2], [1], [1], [2], [0, 0, 0, 1, 1, 2], [0], [0]>} : vector<4x64x64xbf16>, vector<4x64x8xbf16>, vector<4x64x8xf32> -> vector<4x64x8xf32>
    "tpu.trace_stop"() : () -> ()
    %158 = arith.truncf %157 : vector<4x64x8xf32> to vector<4x64x8xbf16>
    %c1_100 = arith.constant 1 : index
    %c0_101 = arith.constant 0 : index
    %c0_102 = arith.constant 0 : index
    %c0_103 = arith.constant 0 : index
    %159 = vector.load %arg11[%c1_100, %c0_101, %c0_102, %c0_103] : memref<2x4x8x32xbf16, #tpu.memory_space<vmem>>, vector<1x4x8x32xbf16>
    %160 = vector.shape_cast %159 : vector<1x4x8x32xbf16> to vector<4x8x32xbf16>
    "tpu.trace_start"() <{level = 10 : i32, message = "hqd,hdc->hqc"}> : () -> ()
    %cst_104 = arith.constant dense<0.000000e+00> : vector<4x64x32xf32>
    %161 = tpu.matmul %158, %160, %cst_104 {dimension_numbers = #tpu.dot_dimension_numbers<[2], [1], [1], [2], [0, 0, 0, 1, 1, 2], [0], [0]>} : vector<4x64x8xbf16>, vector<4x8x32xbf16>, vector<4x64x32xf32> -> vector<4x64x32xf32>
    "tpu.trace_stop"() : () -> ()
    %cst_105 = arith.constant dense<0.000000e+00> : vector<64x32xf32>
    %162 = vector.multi_reduction <add>, %161, %cst_105 [0] : vector<4x64x32xf32> to vector<64x32xf32>
    %163 = arith.addf %129, %162 : vector<64x32xf32>
    %c1_106 = arith.constant 1 : index
    %c0_107 = arith.constant 0 : index
    %c0_108 = arith.constant 0 : index
    %164 = vector.load %arg12[%c1_106, %c0_107, %c0_108] : memref<2x1x32xf32, #tpu.memory_space<vmem>>, vector<1x1x32xf32>
    %165 = vector.shape_cast %164 : vector<1x1x32xf32> to vector<1x32xf32>
    %c1_109 = arith.constant 1 : index
    %c0_110 = arith.constant 0 : index
    %c0_111 = arith.constant 0 : index
    %166 = vector.load %arg13[%c1_109, %c0_110, %c0_111] : memref<2x1x32xf32, #tpu.memory_space<vmem>>, vector<1x1x32xf32>
    %167 = vector.shape_cast %166 : vector<1x1x32xf32> to vector<1x32xf32>
    %cst_112 = arith.constant dense<0.000000e+00> : vector<64xf32>
    %168 = vector.multi_reduction <add>, %163, %cst_112 [1] : vector<64x32xf32> to vector<64xf32>
    %169 = vector.shape_cast %168 : vector<64xf32> to vector<64x1xf32>
    %cst_113 = arith.constant 3.200000e+01 : f32
    %170 = vector.broadcast %cst_113 : f32 to vector<64x1xf32>
    %171 = arith.divf %169, %170 : vector<64x1xf32>
    %172 = arith.mulf %163, %163 : vector<64x32xf32>
    %cst_114 = arith.constant dense<0.000000e+00> : vector<64xf32>
    %173 = vector.multi_reduction <add>, %172, %cst_114 [1] : vector<64x32xf32> to vector<64xf32>
    %174 = vector.shape_cast %173 : vector<64xf32> to vector<64x1xf32>
    %cst_115 = arith.constant 3.200000e+01 : f32
    %175 = vector.broadcast %cst_115 : f32 to vector<64x1xf32>
    %176 = arith.divf %174, %175 : vector<64x1xf32>
    %177 = arith.mulf %171, %171 : vector<64x1xf32>
    %178 = arith.subf %176, %177 : vector<64x1xf32>
    %179 = vector.broadcast %171 : vector<64x1xf32> to vector<64x32xf32>
    %180 = arith.subf %163, %179 : vector<64x32xf32>
    %cst_116 = arith.constant 9.99999974E-6 : f32
    %181 = vector.broadcast %cst_116 : f32 to vector<64x1xf32>
    %182 = arith.addf %178, %181 : vector<64x1xf32>
    %183 = math.rsqrt %182 : vector<64x1xf32>
    %184 = vector.broadcast %183 : vector<64x1xf32> to vector<64x32xf32>
    %185 = arith.mulf %180, %184 : vector<64x32xf32>
    %186 = vector.broadcast %165 : vector<1x32xf32> to vector<64x32xf32>
    %187 = arith.mulf %185, %186 : vector<64x32xf32>
    %188 = vector.broadcast %167 : vector<1x32xf32> to vector<64x32xf32>
    %189 = arith.addf %187, %188 : vector<64x32xf32>
    %190 = arith.truncf %189 : vector<64x32xf32> to vector<64x32xbf16>
    %c1_117 = arith.constant 1 : index
    %c0_118 = arith.constant 0 : index
    %c0_119 = arith.constant 0 : index
    %191 = vector.load %arg14[%c1_117, %c0_118, %c0_119] : memref<2x32x64xbf16, #tpu.memory_space<vmem>>, vector<1x32x64xbf16>
    %192 = vector.shape_cast %191 : vector<1x32x64xbf16> to vector<32x64xbf16>
    %cst_120 = arith.constant dense<0.000000e+00> : vector<64x64xf32>
    %193 = tpu.matmul %190, %192, %cst_120 {dimension_numbers = #tpu.dot_dimension_numbers<[1], [0], [0], [1], [0, 0, 1, 1], [], []>} : vector<64x32xbf16>, vector<32x64xbf16>, vector<64x64xf32> -> vector<64x64xf32>
    %c1_121 = arith.constant 1 : index
    %c0_122 = arith.constant 0 : index
    %c0_123 = arith.constant 0 : index
    %194 = vector.load %arg15[%c1_121, %c0_122, %c0_123] : memref<2x1x64xf32, #tpu.memory_space<vmem>>, vector<1x1x64xf32>
    %195 = vector.shape_cast %194 : vector<1x1x64xf32> to vector<1x64xf32>
    %196 = vector.broadcast %195 : vector<1x64xf32> to vector<64x64xf32>
    %197 = arith.addf %193, %196 : vector<64x64xf32>
    %cst_124 = arith.constant 0.000000e+00 : f32
    %198 = vector.broadcast %cst_124 : f32 to vector<64x64xf32>
    %199 = arith.maximumf %197, %198 : vector<64x64xf32>
    %200 = arith.truncf %199 : vector<64x64xf32> to vector<64x64xbf16>
    %c1_125 = arith.constant 1 : index
    %c0_126 = arith.constant 0 : index
    %c0_127 = arith.constant 0 : index
    %201 = vector.load %arg16[%c1_125, %c0_126, %c0_127] : memref<2x64x32xbf16, #tpu.memory_space<vmem>>, vector<1x64x32xbf16>
    %202 = vector.shape_cast %201 : vector<1x64x32xbf16> to vector<64x32xbf16>
    %cst_128 = arith.constant dense<0.000000e+00> : vector<64x32xf32>
    %203 = tpu.matmul %200, %202, %cst_128 {dimension_numbers = #tpu.dot_dimension_numbers<[1], [0], [0], [1], [0, 0, 1, 1], [], []>} : vector<64x64xbf16>, vector<64x32xbf16>, vector<64x32xf32> -> vector<64x32xf32>
    %c1_129 = arith.constant 1 : index
    %c0_130 = arith.constant 0 : index
    %c0_131 = arith.constant 0 : index
    %204 = vector.load %arg17[%c1_129, %c0_130, %c0_131] : memref<2x1x32xf32, #tpu.memory_space<vmem>>, vector<1x1x32xf32>
    %205 = vector.shape_cast %204 : vector<1x1x32xf32> to vector<1x32xf32>
    %206 = vector.broadcast %205 : vector<1x32xf32> to vector<64x32xf32>
    %207 = arith.addf %203, %206 : vector<64x32xf32>
    %208 = arith.addf %189, %207 : vector<64x32xf32>
    %c1_132 = arith.constant 1 : index
    %c0_133 = arith.constant 0 : index
    %c0_134 = arith.constant 0 : index
    %209 = vector.load %arg18[%c1_132, %c0_133, %c0_134] : memref<2x1x32xf32, #tpu.memory_space<vmem>>, vector<1x1x32xf32>
    %210 = vector.shape_cast %209 : vector<1x1x32xf32> to vector<1x32xf32>
    %c1_135 = arith.constant 1 : index
    %c0_136 = arith.constant 0 : index
    %c0_137 = arith.constant 0 : index
    %211 = vector.load %arg19[%c1_135, %c0_136, %c0_137] : memref<2x1x32xf32, #tpu.memory_space<vmem>>, vector<1x1x32xf32>
    %212 = vector.shape_cast %211 : vector<1x1x32xf32> to vector<1x32xf32>
    %cst_138 = arith.constant dense<0.000000e+00> : vector<64xf32>
    %213 = vector.multi_reduction <add>, %208, %cst_138 [1] : vector<64x32xf32> to vector<64xf32>
    %214 = vector.shape_cast %213 : vector<64xf32> to vector<64x1xf32>
    %cst_139 = arith.constant 3.200000e+01 : f32
    %215 = vector.broadcast %cst_139 : f32 to vector<64x1xf32>
    %216 = arith.divf %214, %215 : vector<64x1xf32>
    %217 = arith.mulf %208, %208 : vector<64x32xf32>
    %cst_140 = arith.constant dense<0.000000e+00> : vector<64xf32>
    %218 = vector.multi_reduction <add>, %217, %cst_140 [1] : vector<64x32xf32> to vector<64xf32>
    %219 = vector.shape_cast %218 : vector<64xf32> to vector<64x1xf32>
    %cst_141 = arith.constant 3.200000e+01 : f32
    %220 = vector.broadcast %cst_141 : f32 to vector<64x1xf32>
    %221 = arith.divf %219, %220 : vector<64x1xf32>
    %222 = arith.mulf %216, %216 : vector<64x1xf32>
    %223 = arith.subf %221, %222 : vector<64x1xf32>
    %224 = vector.broadcast %216 : vector<64x1xf32> to vector<64x32xf32>
    %225 = arith.subf %208, %224 : vector<64x32xf32>
    %cst_142 = arith.constant 9.99999974E-6 : f32
    %226 = vector.broadcast %cst_142 : f32 to vector<64x1xf32>
    %227 = arith.addf %223, %226 : vector<64x1xf32>
    %228 = math.rsqrt %227 : vector<64x1xf32>
    %229 = vector.broadcast %228 : vector<64x1xf32> to vector<64x32xf32>
    %230 = arith.mulf %225, %229 : vector<64x32xf32>
    %231 = vector.broadcast %210 : vector<1x32xf32> to vector<64x32xf32>
    %232 = arith.mulf %230, %231 : vector<64x32xf32>
    %233 = vector.broadcast %212 : vector<1x32xf32> to vector<64x32xf32>
    %234 = arith.addf %232, %233 : vector<64x32xf32>
    %235 = arith.truncf %234 : vector<64x32xf32> to vector<64x32xbf16>
    %c0_143 = arith.constant 0 : index
    %c0_144 = arith.constant 0 : index
    %236 = vector.load %arg20[%c0_143, %c0_144] : memref<32x8xbf16, #tpu.memory_space<vmem>>, vector<32x8xbf16>
    %cst_145 = arith.constant dense<0.000000e+00> : vector<64x8xf32>
    %237 = tpu.matmul %235, %236, %cst_145 {dimension_numbers = #tpu.dot_dimension_numbers<[1], [0], [0], [1], [0, 0, 1, 1], [], []>} : vector<64x32xbf16>, vector<32x8xbf16>, vector<64x8xf32> -> vector<64x8xf32>
    %c0_146 = arith.constant 0 : index
    %c0_147 = arith.constant 0 : index
    %238 = vector.load %arg21[%c0_146, %c0_147] : memref<1x8xf32, #tpu.memory_space<vmem>>, vector<1x8xf32>
    %239 = vector.broadcast %238 : vector<1x8xf32> to vector<64x8xf32>
    %240 = arith.addf %237, %239 : vector<64x8xf32>
    %241 = tpu.concatenate %19, %240 in 1 : vector<64x8xf32>, vector<64x8xf32> -> vector<64x16xf32>
    %c0_148 = arith.constant 0 : index
    %c0_149 = arith.constant 0 : index
    %242 = vector.load %arg22[%c0_148, %c0_149] : memref<64x16xf32, #tpu.memory_space<vmem>>, vector<64x16xf32>
    tpu.vector_store %arg22[%c0_148, %c0_149], %241 {strides = array<i32>} : memref<64x16xf32, #tpu.memory_space<vmem>>, vector<64x16xf32>,
    return
  }
}

</mosaic_0001>

<llo_original>
// kernel: cobformer_forward.1
$region0: #{cobformer_forward.1}
  #allocation0 [shape = 'u32[]', space=smem, size = 0x4, offset = 0x4, fixed_abs, tag = 'smem constant byte address 0x4 - core index']
  #allocation1 [shape = 'u32[144,128]{1,0:T(1,128)}', space=vmem, size = 0x12000, scoped, tag = 'internal scratch']
  %s0 = inlined_call_operand.vmem [shape: bf16[64,64], index: 0, kind: input, shape index: {}]
  %s1 = inlined_call_operand.vmem [shape: f32[64,16], index: 1, kind: input, shape index: {}]
  %s2 = inlined_call_operand.vmem [shape: bf16[16,32], index: 2, kind: input, shape index: {}]
  %s3 = inlined_call_operand.vmem [shape: f32[1,32], index: 3, kind: input, shape index: {}]
  %s4 = inlined_call_operand.vmem [shape: bf16[32,8], index: 4, kind: input, shape index: {}]
  %s5 = inlined_call_operand.vmem [shape: f32[1,8], index: 5, kind: input, shape index: {}]
  %s6 = inlined_call_operand.vmem [shape: bf16[16,32], index: 6, kind: input, shape index: {}]
  %s7 = inlined_call_operand.vmem [shape: f32[1,32], index: 7, kind: input, shape index: {}]
  %s8 = inlined_call_operand.vmem [shape: bf16[2,4,32,8], index: 8, kind: input, shape index: {}]
  %s9 = inlined_call_operand.vmem [shape: bf16[2,4,32,8], index: 9, kind: input, shape index: {}]
  %s10 = inlined_call_operand.vmem [shape: bf16[2,4,32,8], index: 10, kind: input, shape index: {}]
  %s11 = inlined_call_operand.vmem [shape: bf16[2,4,8,32], index: 11, kind: input, shape index: {}]
  %s12 = inlined_call_operand.vmem [shape: f32[2,1,32], index: 12, kind: input, shape index: {}]
  %s13 = inlined_call_operand.vmem [shape: f32[2,1,32], index: 13, kind: input, shape index: {}]
  %s14 = inlined_call_operand.vmem [shape: bf16[2,32,64], index: 14, kind: input, shape index: {}]
  %s15 = inlined_call_operand.vmem [shape: f32[2,1,64], index: 15, kind: input, shape index: {}]
  %s16 = inlined_call_operand.vmem [shape: bf16[2,64,32], index: 16, kind: input, shape index: {}]
  %s17 = inlined_call_operand.vmem [shape: f32[2,1,32], index: 17, kind: input, shape index: {}]
  %s18 = inlined_call_operand.vmem [shape: f32[2,1,32], index: 18, kind: input, shape index: {}]
  %s19 = inlined_call_operand.vmem [shape: f32[2,1,32], index: 19, kind: input, shape index: {}]
  %s20 = inlined_call_operand.vmem [shape: bf16[32,8], index: 20, kind: input, shape index: {}]
  %s21 = inlined_call_operand.vmem [shape: f32[1,8], index: 21, kind: input, shape index: {}]
  %s22 = inlined_call_operand.vmem [shape: f32[64,16], index: 22, kind: output, shape index: {}]
  %s23 = sld [smem:[#allocation0]]
  $region98: #{cobformer_forward.1} parent=0
    _
  %s25 = ssub.s32 1, %s23
  %s26 = scalar_select 0, %s25, %s23
  // Predicated region
  $region2: #{cobformer_forward.1} parent=0 // pred_check
    _
  $region3: #{cobformer_forward.1} parent=0 // pred_check_branch
    %28 = sbr.rel (0) target = $region5
  $region4: #{cobformer_forward.1} parent=0 // pred_region
    _
  $region5: #{cobformer_forward.1} parent=0 // pred_fallthru
    _
  // Predicated region
  $region6: #{cobformer_forward.1} parent=0 // pred_check
    _
  $region7: #{cobformer_forward.1} parent=0 // pred_check_branch
    %30 = sbr.rel (0) target = $region9
  $region8: #{cobformer_forward.1} parent=0 // pred_region
    _
  $region9: #{cobformer_forward.1} parent=0 // pred_fallthru
    _
  // Predicated region
  $region10: #{cobformer_forward.1} parent=0 // pred_check
    _
  $region11: #{cobformer_forward.1} parent=0 // pred_check_branch
    %32 = sbr.rel (0) target = $region13
  $region12: #{cobformer_forward.1} parent=0 // pred_region
    _
  $region13: #{cobformer_forward.1} parent=0 // pred_fallthru
    _
  // Predicated region
  $region14: #{cobformer_forward.1} parent=0 // pred_check
    _
  $region15: #{cobformer_forward.1} parent=0 // pred_check_branch
    %34 = sbr.rel (0) target = $region17
  $region16: #{cobformer_forward.1} parent=0 // pred_region
    _
  $region17: #{cobformer_forward.1} parent=0 // pred_fallthru
    _
  // Predicated region
  $region18: #{cobformer_forward.1} parent=0 // pred_check
    _
  $region19: #{cobformer_forward.1} parent=0 // pred_check_branch
    %36 = sbr.rel (0) target = $region21
  $region20: #{cobformer_forward.1} parent=0 // pred_region
    _
  $region21: #{cobformer_forward.1} parent=0 // pred_fallthru
    _
  // Predicated region
  $region22: #{cobformer_forward.1} parent=0 // pred_check
    _
  $region23: #{cobformer_forward.1} parent=0 // pred_check_branch
    %38 = sbr.rel (0) target = $region25
  $region24: #{cobformer_forward.1} parent=0 // pred_region
    _
  $region25: #{cobformer_forward.1} parent=0 // pred_fallthru
    _
  // Predicated region
  $region26: #{cobformer_forward.1} parent=0 // pred_check
    _
  $region27: #{cobformer_forward.1} parent=0 // pred_check_branch
    %40 = sbr.rel (0) target = $region29
  $region28: #{cobformer_forward.1} parent=0 // pred_region
    _
  $region29: #{cobformer_forward.1} parent=0 // pred_fallthru
    _
  // Predicated region
  $region30: #{cobformer_forward.1} parent=0 // pred_check
    _
  $region31: #{cobformer_forward.1} parent=0 // pred_check_branch
    %42 = sbr.rel (0) target = $region33
  $region32: #{cobformer_forward.1} parent=0 // pred_region
    _
  $region33: #{cobformer_forward.1} parent=0 // pred_fallthru
    _
  // Predicated region
  $region34: #{cobformer_forward.1} parent=0 // pred_check
    _
  $region35: #{cobformer_forward.1} parent=0 // pred_check_branch
    %44 = sbr.rel (0) target = $region37
  $region36: #{cobformer_forward.1} parent=0 // pred_region
    _
  $region37: #{cobformer_forward.1} parent=0 // pred_fallthru
    _
  // Predicated region
  $region38: #{cobformer_forward.1} parent=0 // pred_check
    _
  $region39: #{cobformer_forward.1} parent=0 // pred_check_branch
    %46 = sbr.rel (0) target = $region41
  $region40: #{cobformer_forward.1} parent=0 // pred_region
    _
  $region41: #{cobformer_forward.1} parent=0 // pred_fallthru
    _
  // Predicated region
  $region42: #{cobformer_forward.1} parent=0 // pred_check
    _
  $region43: #{cobformer_forward.1} parent=0 // pred_check_branch
    %48 = sbr.rel (0) target = $region45
  $region44: #{cobformer_forward.1} parent=0 // pred_region
    _
  $region45: #{cobformer_forward.1} parent=0 // pred_fallthru
    _
  // Predicated region
  $region46: #{cobformer_forward.1} parent=0 // pred_check
    _
  $region47: #{cobformer_forward.1} parent=0 // pred_check_branch
    %50 = sbr.rel (0) target = $region49
  $region48: #{cobformer_forward.1} parent=0 // pred_region
    _
  $region49: #{cobformer_forward.1} parent=0 // pred_fallthru
    _
  // Predicated region
  $region50: #{cobformer_forward.1} parent=0 // pred_check
    _
  $region51: #{cobformer_forward.1} parent=0 // pred_check_branch
    %52 = sbr.rel (0) target = $region53
  $region52: #{cobformer_forward.1} parent=0 // pred_region
    _
  $region53: #{cobformer_forward.1} parent=0 // pred_fallthru
    _
  // Predicated region
  $region54: #{cobformer_forward.1} parent=0 // pred_check
    _
  $region55: #{cobformer_forward.1} parent=0 // pred_check_branch
    %54 = sbr.rel (0) target = $region57
  $region56: #{cobformer_forward.1} parent=0 // pred_region
    _
  $region57: #{cobformer_forward.1} parent=0 // pred_fallthru
    _
  // Predicated region
  $region58: #{cobformer_forward.1} parent=0 // pred_check
    _
  $region59: #{cobformer_forward.1} parent=0 // pred_check_branch
    %56 = sbr.rel (0) target = $region61
  $region60: #{cobformer_forward.1} parent=0 // pred_region
    _
  $region61: #{cobformer_forward.1} parent=0 // pred_fallthru
    _
  // Predicated region
  $region62: #{cobformer_forward.1} parent=0 // pred_check
    _
  $region63: #{cobformer_forward.1} parent=0 // pred_check_branch
    %58 = sbr.rel (0) target = $region65
  $region64: #{cobformer_forward.1} parent=0 // pred_region
    _
  $region65: #{cobformer_forward.1} parent=0 // pred_fallthru
    _
  // Predicated region
  $region66: #{cobformer_forward.1} parent=0 // pred_check
    _
  $region67: #{cobformer_forward.1} parent=0 // pred_check_branch
    %60 = sbr.rel (0) target = $region69
  $region68: #{cobformer_forward.1} parent=0 // pred_region
    _
  $region69: #{cobformer_forward.1} parent=0 // pred_fallthru
    _
  // Predicated region
  $region70: #{cobformer_forward.1} parent=0 // pred_check
    _
  $region71: #{cobformer_forward.1} parent=0 // pred_check_branch
    %62 = sbr.rel (0) target = $region73
  $region72: #{cobformer_forward.1} parent=0 // pred_region
    _
  $region73: #{cobformer_forward.1} parent=0 // pred_fallthru
    _
  // Predicated region
  $region74: #{cobformer_forward.1} parent=0 // pred_check
    _
  $region75: #{cobformer_forward.1} parent=0 // pred_check_branch
    %64 = sbr.rel (0) target = $region77
  $region76: #{cobformer_forward.1} parent=0 // pred_region
    _
  $region77: #{cobformer_forward.1} parent=0 // pred_fallthru
    _
  // Predicated region
  $region78: #{cobformer_forward.1} parent=0 // pred_check
    _
  $region79: #{cobformer_forward.1} parent=0 // pred_check_branch
    %66 = sbr.rel (0) target = $region81
  $region80: #{cobformer_forward.1} parent=0 // pred_region
    _
  $region81: #{cobformer_forward.1} parent=0 // pred_fallthru
    _
  // Predicated region
  $region82: #{cobformer_forward.1} parent=0 // pred_check
    _
  $region83: #{cobformer_forward.1} parent=0 // pred_check_branch
    %68 = sbr.rel (0) target = $region85
  $region84: #{cobformer_forward.1} parent=0 // pred_region
    _
  $region85: #{cobformer_forward.1} parent=0 // pred_fallthru
    _
  // Predicated region
  $region86: #{cobformer_forward.1} parent=0 // pred_check
    _
  $region87: #{cobformer_forward.1} parent=0 // pred_check_branch
    %70 = sbr.rel (0) target = $region89
  $region88: #{cobformer_forward.1} parent=0 // pred_region
    _
  $region89: #{cobformer_forward.1} parent=0 // pred_fallthru
    _
  %v72 = vld [vmem:[%s1] sm:$0xff]
  %v73 = vld [vmem:[%s1 + $0x8] sm:$0xff]
  %v74 = vld [vmem:[%s1 + $0x10] sm:$0xff]
  %v75 = vld [vmem:[%s1 + $0x18] sm:$0xff]
  %v76 = vld [vmem:[%s1 + $0x20] sm:$0xff]
  %v77 = vld [vmem:[%s1 + $0x28] sm:$0xff]
  %v78 = vld [vmem:[%s1 + $0x30] sm:$0xff]
  %v79 = vld [vmem:[%s1 + $0x38] sm:$0xff]
  %v80 = vpack.c.bf16 %v73, %v72
  %v81 = vpack.c.bf16 %v75, %v74
  %v82 = vpack.c.bf16 %v77, %v76
  %v83 = vpack.c.bf16 %v79, %v78
  %v84 = vld [vmem:[%s0] sm:$0xf]
  %v85 = vld [vmem:[%s0 + $0x4] sm:$0xf]
  %v86 = vld [vmem:[%s0 + $0x8] sm:$0xf]
  %v87 = vld [vmem:[%s0 + $0xc] sm:$0xf]
  %v88 = vld [vmem:[%s0 + $0x10] sm:$0xf]
  %v89 = vld [vmem:[%s0 + $0x14] sm:$0xf]
  %v90 = vld [vmem:[%s0 + $0x18] sm:$0xf]
  %v91 = vld [vmem:[%s0 + $0x1c] sm:$0xf]
  %v92 = vld [vmem:[%s2] sm:$0xf]
  %v93 = vld [vmem:[%s2 + $0x4] sm:$0xf]
  %v96 = vunpack.c.l.b16 %v92
  %v97 = vunpack.c.l.b16 %v93
  %v98 = vpack.c.b16 %v97, %v96
  %vm100 = vcmask 130048
  %v102 = vsel %vm100, %v80, 0
  %v105 = vsel %vm100, %v81, 0
  %v108 = vsel %vm100, %v82, 0
  %v111 = vsel %vm100, %v83, 0
  %113 = vmatprep.subr.bf16.mxu0 0
  %114 = vmatpush1.bf16.msra.mxu0 %v98
  %115 = vmatprep.subr.bf16.mxu0 0
  %116 = vmatpush1.bf16.msra.mxu0 0
  %117 = vmatprep.subr.bf16.mxu0 0
  %118 = vmatpush1.bf16.msra.mxu0 0
  %119 = vmatprep.subr.bf16.mxu0 0
  %120 = vmatpush1.bf16.msra.mxu0 0
  %121 = vmatprep.subr.bf16.mxu0 0
  %122 = vmatpush1.bf16.msra.mxu0 0
  %123 = vmatprep.subr.bf16.mxu0 0
  %124 = vmatpush1.bf16.msra.mxu0 0
  %125 = vmatprep.subr.bf16.mxu0 0
  %126 = vmatpush1.bf16.msra.mxu0 0
  %127 = vmatprep.subr.bf16.mxu0 0
  %128 = vmatpush1.bf16.msra.mxu0 0
  %129 = vmatprep.subr.bf16.mxu0 0
  %130 = vmatpush1.bf16.msra.mxu0 0
  %131 = vmatprep.subr.bf16.mxu0 0
  %132 = vmatpush1.bf16.msra.mxu0 0
  %133 = vmatprep.subr.bf16.mxu0 0
  %134 = vmatpush1.bf16.msra.mxu0 0
  %135 = vmatprep.subr.bf16.mxu0 0
  %136 = vmatpush1.bf16.msra.mxu0 0
  %137 = vmatprep.subr.bf16.mxu0 0
  %138 = vmatpush1.bf16.msra.mxu0 0
  %139 = vmatprep.subr.bf16.mxu0 0
  %140 = vmatpush1.bf16.msra.mxu0 0
  %141 = vmatprep.subr.bf16.mxu0 0
  %142 = vmatpush1.bf16.msra.mxu0 0
  %143 = vmatprep.subr.bf16.mxu0 0
  %144 = vmatpush1.bf16.msra.mxu0 0
  %145 = vmatprep.mubr.bf16.mxu0 0
  %146 = vmatmul.mubr.bf16.gmra.mrb[0].mxu0 %v102
  %v147 = vpop.f32.mrb[0].mxu0
  %v148 = vadd.f32 0.0, %v147
  %v149 = vpop.f32.mrb[0].mxu0
  %v150 = vpop.f32.mrb[0].mxu0
  %v151 = vadd.f32 0.0, %v150
  %v152 = vpop.f32.mrb[0].mxu0
  %153 = vmatprep.mubr.bf16.mxu0 0
  %154 = vmatmul.mubr.bf16.gmra.mrb[0].mxu0 %v105
  %v155 = vpop.f32.mrb[0].mxu0
  %v156 = vadd.f32 0.0, %v155
  %v157 = vpop.f32.mrb[0].mxu0
  %v158 = vpop.f32.mrb[0].mxu0
  %v159 = vadd.f32 0.0, %v158
  %v160 = vpop.f32.mrb[0].mxu0
  %161 = vmatprep.mubr.bf16.mxu0 0
  %162 = vmatmul.mubr.bf16.gmra.mrb[0].mxu0 %v108
  %v163 = vpop.f32.mrb[0].mxu0
  %v164 = vadd.f32 0.0, %v163
  %v165 = vpop.f32.mrb[0].mxu0
  %v166 = vpop.f32.mrb[0].mxu0
  %v167 = vadd.f32 0.0, %v166
  %v168 = vpop.f32.mrb[0].mxu0
  %169 = vmatprep.mubr.bf16.mxu0 0
  %170 = vmatmul.mubr.bf16.gmra.mrb[0].mxu0 %v111
  %v171 = vpop.f32.mrb[0].mxu0
  %v172 = vadd.f32 0.0, %v171
  %v173 = vpop.f32.mrb[0].mxu0
  %v174 = vpop.f32.mrb[0].mxu0
  %v175 = vadd.f32 0.0, %v174
  %v176 = vpop.f32.mrb[0].mxu0
  %177 = vdwg.mxu0
  %v178 = vpack.c.bf16 %v151, %v148
  %v179 = vpack.c.bf16 %v159, %v156
  %v180 = vpack.c.bf16 %v167, %v164
  %v181 = vpack.c.bf16 %v175, %v172
  %v182 = vld [vmem:[%s3] sm:$0x1]
  %v184 = vlaneseq
  %v185 = vshrl.u32 %v184, 7
  %v186 = vsub.s32 0, %v185
  %v187 = vrot.slane %v182, %v186
  %v197 = vunpack.c.l.b16 %v84
  %v198 = vunpack.c.l.b16 %v85
  %v199 = vunpack.c.l.b16 %v86
  %v200 = vunpack.c.l.b16 %v87
  %v201 = vunpack.c.l.b16 %v88
  %v202 = vunpack.c.l.b16 %v89
  %v203 = vunpack.c.l.b16 %v90
  %v204 = vunpack.c.l.b16 %v91
  %v205 = vpack.c.b16 %v198, %v197
  %v206 = vpack.c.b16 %v200, %v199
  %v207 = vpack.c.b16 %v202, %v201
  %v208 = vpack.c.b16 %v204, %v203
  %vm209 = vcmask 523264
  %v211 = vsel %vm209, %v205, 0
  %v214 = vsel %vm209, %v206, 0
  %v217 = vsel %vm209, %v207, 0
  %v220 = vsel %vm209, %v208, 0
  %222 = vmatprep.subr.bf16.mxu0 0
  %223 = vmatpush1.bf16.msra.mxu0 %v178
  %224 = vmatprep.subr.bf16.mxu0 0
  %225 = vmatpush1.bf16.msra.mxu0 %v179
  %226 = vmatprep.subr.bf16.mxu0 0
  %227 = vmatpush1.bf16.msra.mxu0 %v180
  %228 = vmatprep.subr.bf16.mxu0 0
  %229 = vmatpush1.bf16.msra.mxu0 %v181
  %230 = vmatprep.subr.bf16.mxu0 0
  %231 = vmatpush1.bf16.msra.mxu0 0
  %232 = vmatprep.subr.bf16.mxu0 0
  %233 = vmatpush1.bf16.msra.mxu0 0
  %234 = vmatprep.subr.bf16.mxu0 0
  %235 = vmatpush1.bf16.msra.mxu0 0
  %236 = vmatprep.subr.bf16.mxu0 0
  %237 = vmatpush1.bf16.msra.mxu0 0
  %238 = vmatprep.subr.bf16.mxu0 0
  %239 = vmatpush1.bf16.msra.mxu0 0
  %240 = vmatprep.subr.bf16.mxu0 0
  %241 = vmatpush1.bf16.msra.mxu0 0
  %242 = vmatprep.subr.bf16.mxu0 0
  %243 = vmatpush1.bf16.msra.mxu0 0
  %244 = vmatprep.subr.bf16.mxu0 0
  %245 = vmatpush1.bf16.msra.mxu0 0
  %246 = vmatprep.subr.bf16.mxu0 0
  %247 = vmatpush1.bf16.msra.mxu0 0
  %248 = vmatprep.subr.bf16.mxu0 0
  %249 = vmatpush1.bf16.msra.mxu0 0
  %250 = vmatprep.subr.bf16.mxu0 0
  %251 = vmatpush1.bf16.msra.mxu0 0
  %252 = vmatprep.subr.bf16.mxu0 0
  %253 = vmatpush1.bf16.msra.mxu0 0
  %254 = vmatprep.mubr.bf16.mxu0 0
  %255 = vmatmul.mubr.bf16.gmra.mrb[0].mxu0 %v211
  %v256 = vpop.f32.mrb[0].mxu0
  %v257 = vadd.f32 %v187, %v256
  %v258 = vpop.f32.mrb[0].mxu0
  %v259 = vpop.f32.mrb[0].mxu0
  %v260 = vadd.f32 %v187, %v259
  %v261 = vpop.f32.mrb[0].mxu0
  %262 = vmatprep.mubr.bf16.mxu0 0
  %263 = vmatmul.mubr.bf16.gmra.mrb[0].mxu0 %v214
  %v264 = vpop.f32.mrb[0].mxu0
  %v265 = vadd.f32 %v187, %v264
  %v266 = vpop.f32.mrb[0].mxu0
  %v267 = vpop.f32.mrb[0].mxu0
  %v268 = vadd.f32 %v187, %v267
  %v269 = vpop.f32.mrb[0].mxu0
  %270 = vmatprep.mubr.bf16.mxu0 0
  %271 = vmatmul.mubr.bf16.gmra.mrb[0].mxu0 %v217
  %v272 = vpop.f32.mrb[0].mxu0
  %v273 = vadd.f32 %v187, %v272
  %v274 = vpop.f32.mrb[0].mxu0
  %v275 = vpop.f32.mrb[0].mxu0
  %v276 = vadd.f32 %v187, %v275
  %v277 = vpop.f32.mrb[0].mxu0
  %278 = vmatprep.mubr.bf16.mxu0 0
  %279 = vmatmul.mubr.bf16.gmra.mrb[0].mxu0 %v220
  %v280 = vpop.f32.mrb[0].mxu0
  %v281 = vadd.f32 %v187, %v280
  %v282 = vpop.f32.mrb[0].mxu0
  %v283 = vpop.f32.mrb[0].mxu0
  %v284 = vadd.f32 %v187, %v283
  %v285 = vpop.f32.mrb[0].mxu0
  %286 = vdwg.mxu0
  %v287 = vmax.f32 %v257, 0.0
  %v288 = vmax.f32 %v260, 0.0
  %v289 = vmax.f32 %v265, 0.0
  %v290 = vmax.f32 %v268, 0.0
  %v291 = vmax.f32 %v273, 0.0
  %v292 = vmax.f32 %v276, 0.0
  %v293 = vmax.f32 %v281, 0.0
  %v294 = vmax.f32 %v284, 0.0
  %v295 = vpack.c.bf16 %v288, %v287
  %v296 = vpack.c.bf16 %v290, %v289
  %v297 = vpack.c.bf16 %v292, %v291
  %v298 = vpack.c.bf16 %v294, %v293
  %v299 = vld [vmem:[%s4] sm:$0xf]
  %v300 = vld [vmem:[%s4 + $0x4] sm:$0xf]
  %v301 = vld [vmem:[%s4 + $0x8] sm:$0xf]
  %v302 = vld [vmem:[%s4 + $0xc] sm:$0xf]
  %v307 = vunpack.c.l.b16 %v299
  %v308 = vunpack.c.l.b16 %v300
  %v309 = vunpack.c.l.b16 %v301
  %v310 = vunpack.c.l.b16 %v302
  %v311 = vpack.c.b16 %v308, %v307
  %v312 = vpack.c.b16 %v310, %v309
  %vm315 = vcmask 261120
  %v317 = vsel %vm315, %v295, 0
  %v320 = vsel %vm315, %v296, 0
  %v323 = vsel %vm315, %v297, 0
  %v326 = vsel %vm315, %v298, 0
  %328 = vmatprep.subr.bf16.mxu0 0
  %329 = vmatpush1.bf16.msra.mxu0 %v311
  %330 = vmatprep.subr.bf16.mxu0 0
  %331 = vmatpush1.bf16.msra.mxu0 %v312
  %332 = vmatprep.subr.bf16.mxu0 0
  %333 = vmatpush1.bf16.msra.mxu0 0
  %334 = vmatprep.subr.bf16.mxu0 0
  %335 = vmatpush1.bf16.msra.mxu0 0
  %336 = vmatprep.subr.bf16.mxu0 0
  %337 = vmatpush1.bf16.msra.mxu0 0
  %338 = vmatprep.subr.bf16.mxu0 0
  %339 = vmatpush1.bf16.msra.mxu0 0
  %340 = vmatprep.subr.bf16.mxu0 0
  %341 = vmatpush1.bf16.msra.mxu0 0
  %342 = vmatprep.subr.bf16.mxu0 0
  %343 = vmatpush1.bf16.msra.mxu0 0
  %344 = vmatprep.subr.bf16.mxu0 0
  %345 = vmatpush1.bf16.msra.mxu0 0
  %346 = vmatprep.subr.bf16.mxu0 0
  %347 = vmatpush1.bf16.msra.mxu0 0
  %348 = vmatprep.subr.bf16.mxu0 0
  %349 = vmatpush1.bf16.msra.mxu0 0
  %350 = vmatprep.subr.bf16.mxu0 0
  %351 = vmatpush1.bf16.msra.mxu0 0
  %352 = vmatprep.subr.bf16.mxu0 0
  %353 = vmatpush1.bf16.msra.mxu0 0
  %354 = vmatprep.subr.bf16.mxu0 0
  %355 = vmatpush1.bf16.msra.mxu0 0
  %356 = vmatprep.subr.bf16.mxu0 0
  %357 = vmatpush1.bf16.msra.mxu0 0
  %358 = vmatprep.subr.bf16.mxu0 0
  %359 = vmatpush1.bf16.msra.mxu0 0
  %360 = vmatprep.mubr.bf16.mxu0 0
  %361 = vmatmul.mubr.bf16.gmra.mrb[0].mxu0 %v317
  %v362 = vpop.f32.mrb[0].mxu0
  %v363 = vadd.f32 0.0, %v362
  %v364 = vpop.f32.mrb[0].mxu0
  %v365 = vpop.f32.mrb[0].mxu0
  %v366 = vadd.f32 0.0, %v365
  %v367 = vpop.f32.mrb[0].mxu0
  %368 = vmatprep.mubr.bf16.mxu0 0
  %369 = vmatmul.mubr.bf16.gmra.mrb[0].mxu0 %v320
  %v370 = vpop.f32.mrb[0].mxu0
  %v371 = vadd.f32 0.0, %v370
  %v372 = vpop.f32.mrb[0].mxu0
  %v373 = vpop.f32.mrb[0].mxu0
  %v374 = vadd.f32 0.0, %v373
  %v375 = vpop.f32.mrb[0].mxu0
  %376 = vmatprep.mubr.bf16.mxu0 0
  %377 = vmatmul.mubr.bf16.gmra.mrb[0].mxu0 %v323
  %v378 = vpop.f32.mrb[0].mxu0
  %v379 = vadd.f32 0.0, %v378
  %v380 = vpop.f32.mrb[0].mxu0
  %v381 = vpop.f32.mrb[0].mxu0
  %v382 = vadd.f32 0.0, %v381
  %v383 = vpop.f32.mrb[0].mxu0
  %384 = vmatprep.mubr.bf16.mxu0 0
  %385 = vmatmul.mubr.bf16.gmra.mrb[0].mxu0 %v326
  %v386 = vpop.f32.mrb[0].mxu0
  %v387 = vadd.f32 0.0, %v386
  %v388 = vpop.f32.mrb[0].mxu0
  %v389 = vpop.f32.mrb[0].mxu0
  %v390 = vadd.f32 0.0, %v389
  %v391 = vpop.f32.mrb[0].mxu0
  %392 = vdwg.mxu0
  %v393 = vpack.c.bf16 %v366, %v363
  %v394 = vpack.c.bf16 %v374, %v371
  %v395 = vpack.c.bf16 %v382, %v379
  %v396 = vpack.c.bf16 %v390, %v387
  %v397 = vld [vmem:[%s5] sm:$0x1]
  %v399 = vlaneseq
  %v400 = vshrl.u32 %v399, 7
  %v401 = vsub.s32 0, %v400
  %v402 = vrot.slane %v397, %v401
  %404 = vmatprep.subr.bf16.mxu0 0
  %405 = vmatpush1.bf16.msra.mxu0 %v393
  %406 = vmatprep.subr.bf16.mxu0 0
  %407 = vmatpush1.bf16.msra.mxu0 %v394
  %408 = vmatprep.subr.bf16.mxu0 0
  %409 = vmatpush1.bf16.msra.mxu0 %v395
  %410 = vmatprep.subr.bf16.mxu0 0
  %411 = vmatpush1.bf16.msra.mxu0 %v396
  %412 = vmatprep.subr.bf16.mxu0 0
  %413 = vmatpush1.bf16.msra.mxu0 0
  %414 = vmatprep.subr.bf16.mxu0 0
  %415 = vmatpush1.bf16.msra.mxu0 0
  %416 = vmatprep.subr.bf16.mxu0 0
  %417 = vmatpush1.bf16.msra.mxu0 0
  %418 = vmatprep.subr.bf16.mxu0 0
  %419 = vmatpush1.bf16.msra.mxu0 0
  %420 = vmatprep.subr.bf16.mxu0 0
  %421 = vmatpush1.bf16.msra.mxu0 0
  %422 = vmatprep.subr.bf16.mxu0 0
  %423 = vmatpush1.bf16.msra.mxu0 0
  %424 = vmatprep.subr.bf16.mxu0 0
  %425 = vmatpush1.bf16.msra.mxu0 0
  %426 = vmatprep.subr.bf16.mxu0 0
  %427 = vmatpush1.bf16.msra.mxu0 0
  %428 = vmatprep.subr.bf16.mxu0 0
  %429 = vmatpush1.bf16.msra.mxu0 0
  %430 = vmatprep.subr.bf16.mxu0 0
  %431 = vmatpush1.bf16.msra.mxu0 0
  %432 = vmatprep.subr.bf16.mxu0 0
  %433 = vmatpush1.bf16.msra.mxu0 0
  %434 = vmatprep.subr.bf16.mxu0 0
  %435 = vmatpush1.bf16.msra.mxu0 0
  %436 = vmatprep.mubr.bf16.mxu0 0
  %437 = vmatmul.mubr.bf16.gmra.mrb[0].mxu0 %v211
  %v438 = vpop.f32.mrb[0].mxu0
  %v439 = vadd.f32 %v402, %v438
  %v440 = vpop.f32.mrb[0].mxu0
  %v441 = vpop.f32.mrb[0].mxu0
  %v442 = vadd.f32 %v402, %v441
  %v443 = vpop.f32.mrb[0].mxu0
  %444 = vmatprep.mubr.bf16.mxu0 0
  %445 = vmatmul.mubr.bf16.gmra.mrb[0].mxu0 %v214
  %v446 = vpop.f32.mrb[0].mxu0
  %v447 = vadd.f32 %v402, %v446
  %v448 = vpop.f32.mrb[0].mxu0
  %v449 = vpop.f32.mrb[0].mxu0
  %v450 = vadd.f32 %v402, %v449
  %v451 = vpop.f32.mrb[0].mxu0
  %452 = vmatprep.mubr.bf16.mxu0 0
  %453 = vmatmul.mubr.bf16.gmra.mrb[0].mxu0 %v217
  %v454 = vpop.f32.mrb[0].mxu0
  %v455 = vadd.f32 %v402, %v454
  %v456 = vpop.f32.mrb[0].mxu0
  %v457 = vpop.f32.mrb[0].mxu0
  %v458 = vadd.f32 %v402, %v457
  %v459 = vpop.f32.mrb[0].mxu0
  %460 = vmatprep.mubr.bf16.mxu0 0
  %461 = vmatmul.mubr.bf16.gmra.mrb[0].mxu0 %v220
  %v462 = vpop.f32.mrb[0].mxu0
  %v463 = vadd.f32 %v402, %v462
  %v464 = vpop.f32.mrb[0].mxu0
  %v465 = vpop.f32.mrb[0].mxu0
  %v466 = vadd.f32 %v402, %v465
  %v467 = vpop.f32.mrb[0].mxu0
  %468 = vdwg.mxu0
  %v469 = vld [vmem:[%s6] sm:$0xf]
  %v470 = vld [vmem:[%s6 + $0x4] sm:$0xf]
  %v471 = vld [vmem:[%s7] sm:$0x1]
  %v473 = vlaneseq
  %v474 = vshrl.u32 %v473, 7
  %v475 = vsub.s32 0, %v474
  %v476 = vrot.slane %v471, %v475
  %v480 = vunpack.c.l.b16 %v469
  %v481 = vunpack.c.l.b16 %v470
  %v482 = vpack.c.b16 %v481, %v480
  %484 = vmatprep.subr.bf16.mxu0 0
  %485 = vmatpush1.bf16.msra.mxu0 %v482
  %486 = vmatprep.subr.bf16.mxu0 0
  %487 = vmatpush1.bf16.msra.mxu0 0
  %488 = vmatprep.subr.bf16.mxu0 0
  %489 = vmatpush1.bf16.msra.mxu0 0
  %490 = vmatprep.subr.bf16.mxu0 0
  %491 = vmatpush1.bf16.msra.mxu0 0
  %492 = vmatprep.subr.bf16.mxu0 0
  %493 = vmatpush1.bf16.msra.mxu0 0
  %494 = vmatprep.subr.bf16.mxu0 0
  %495 = vmatpush1.bf16.msra.mxu0 0
  %496 = vmatprep.subr.bf16.mxu0 0
  %497 = vmatpush1.bf16.msra.mxu0 0
  %498 = vmatprep.subr.bf16.mxu0 0
  %499 = vmatpush1.bf16.msra.mxu0 0
  %500 = vmatprep.subr.bf16.mxu0 0
  %501 = vmatpush1.bf16.msra.mxu0 0
  %502 = vmatprep.subr.bf16.mxu0 0
  %503 = vmatpush1.bf16.msra.mxu0 0
  %504 = vmatprep.subr.bf16.mxu0 0
  %505 = vmatpush1.bf16.msra.mxu0 0
  %506 = vmatprep.subr.bf16.mxu0 0
  %507 = vmatpush1.bf16.msra.mxu0 0
  %508 = vmatprep.subr.bf16.mxu0 0
  %509 = vmatpush1.bf16.msra.mxu0 0
  %510 = vmatprep.subr.bf16.mxu0 0
  %511 = vmatpush1.bf16.msra.mxu0 0
  %512 = vmatprep.subr.bf16.mxu0 0
  %513 = vmatpush1.bf16.msra.mxu0 0
  %514 = vmatprep.subr.bf16.mxu0 0
  %515 = vmatpush1.bf16.msra.mxu0 0
  %516 = vmatprep.mubr.bf16.mxu0 0
  %517 = vmatmul.mubr.bf16.gmra.mrb[0].mxu0 %v102
  %v518 = vpop.f32.mrb[0].mxu0
  %v519 = vadd.f32 %v476, %v518
  %v520 = vpop.f32.mrb[0].mxu0
  %v521 = vpop.f32.mrb[0].mxu0
  %v522 = vadd.f32 %v476, %v521
  %v523 = vpop.f32.mrb[0].mxu0
  %524 = vmatprep.mubr.bf16.mxu0 0
  %525 = vmatmul.mubr.bf16.gmra.mrb[0].mxu0 %v105
  %v526 = vpop.f32.mrb[0].mxu0
  %v527 = vadd.f32 %v476, %v526
  %v528 = vpop.f32.mrb[0].mxu0
  %v529 = vpop.f32.mrb[0].mxu0
  %v530 = vadd.f32 %v476, %v529
  %v531 = vpop.f32.mrb[0].mxu0
  %532 = vmatprep.mubr.bf16.mxu0 0
  %533 = vmatmul.mubr.bf16.gmra.mrb[0].mxu0 %v108
  %v534 = vpop.f32.mrb[0].mxu0
  %v535 = vadd.f32 %v476, %v534
  %v536 = vpop.f32.mrb[0].mxu0
  %v537 = vpop.f32.mrb[0].mxu0
  %v538 = vadd.f32 %v476, %v537
  %v539 = vpop.f32.mrb[0].mxu0
  %540 = vmatprep.mubr.bf16.mxu0 0
  %541 = vmatmul.mubr.bf16.gmra.mrb[0].mxu0 %v111
  %v542 = vpop.f32.mrb[0].mxu0
  %v543 = vadd.f32 %v476, %v542
  %v544 = vpop.f32.mrb[0].mxu0
  %v545 = vpop.f32.mrb[0].mxu0
  %v546 = vadd.f32 %v476, %v545
  %v547 = vpop.f32.mrb[0].mxu0
  %548 = vdwg.mxu0
  %v549 = vpack.c.bf16 %v522, %v519
  %v550 = vpack.c.bf16 %v530, %v527
  %v551 = vpack.c.bf16 %v538, %v535
  %v552 = vpack.c.bf16 %v546, %v543
  %v553 = vld [vmem:[%s8] sm:$0xf]
  %v554 = vld [vmem:[%s8 + $0x4] sm:$0xf]
  %v555 = vld [vmem:[%s8 + $0x8] sm:$0xf]
  %v556 = vld [vmem:[%s8 + $0xc] sm:$0xf]
  %v557 = vld [vmem:[%s8 + $0x10] sm:$0xf]
  %v558 = vld [vmem:[%s8 + $0x14] sm:$0xf]
  %v559 = vld [vmem:[%s8 + $0x18] sm:$0xf]
  %v560 = vld [vmem:[%s8 + $0x1c] sm:$0xf]
  %v561 = vld [vmem:[%s8 + $0x20] sm:$0xf]
  %v562 = vld [vmem:[%s8 + $0x24] sm:$0xf]
  %v563 = vld [vmem:[%s8 + $0x28] sm:$0xf]
  %v564 = vld [vmem:[%s8 + $0x2c] sm:$0xf]
  %v565 = vld [vmem:[%s8 + $0x30] sm:$0xf]
  %v566 = vld [vmem:[%s8 + $0x34] sm:$0xf]
  %v567 = vld [vmem:[%s8 + $0x38] sm:$0xf]
  %v568 = vld [vmem:[%s8 + $0x3c] sm:$0xf]
  %v573 = vunpack.c.l.b16 %v553
  %v574 = vunpack.c.l.b16 %v554
  %v575 = vunpack.c.l.b16 %v555
  %v576 = vunpack.c.l.b16 %v556
  %v577 = vpack.c.b16 %v574, %v573
  %v578 = vpack.c.b16 %v576, %v575
  %v582 = vsel %vm315, %v549, 0
  %v585 = vsel %vm315, %v550, 0
  %v588 = vsel %vm315, %v551, 0
  %v591 = vsel %vm315, %v552, 0
  %593 = vmatprep.subr.bf16.mxu0 0
  %594 = vmatpush1.bf16.msra.mxu0 %v577
  %595 = vmatprep.subr.bf16.mxu0 0
  %596 = vmatpush1.bf16.msra.mxu0 %v578
  %597 = vmatprep.subr.bf16.mxu0 0
  %598 = vmatpush1.bf16.msra.mxu0 0
  %599 = vmatprep.subr.bf16.mxu0 0
  %600 = vmatpush1.bf16.msra.mxu0 0
  %601 = vmatprep.subr.bf16.mxu0 0
  %602 = vmatpush1.bf16.msra.mxu0 0
  %603 = vmatprep.subr.bf16.mxu0 0
  %604 = vmatpush1.bf16.msra.mxu0 0
  %605 = vmatprep.subr.bf16.mxu0 0
  %606 = vmatpush1.bf16.msra.mxu0 0
  %607 = vmatprep.subr.bf16.mxu0 0
  %608 = vmatpush1.bf16.msra.mxu0 0
  %609 = vmatprep.subr.bf16.mxu0 0
  %610 = vmatpush1.bf16.msra.mxu0 0
  %611 = vmatprep.subr.bf16.mxu0 0
  %612 = vmatpush1.bf16.msra.mxu0 0
  %613 = vmatprep.subr.bf16.mxu0 0
  %614 = vmatpush1.bf16.msra.mxu0 0
  %615 = vmatprep.subr.bf16.mxu0 0
  %616 = vmatpush1.bf16.msra.mxu0 0
  %617 = vmatprep.subr.bf16.mxu0 0
  %618 = vmatpush1.bf16.msra.mxu0 0
  %619 = vmatprep.subr.bf16.mxu0 0
  %620 = vmatpush1.bf16.msra.mxu0 0
  %621 = vmatprep.subr.bf16.mxu0 0
  %622 = vmatpush1.bf16.msra.mxu0 0
  %623 = vmatprep.subr.bf16.mxu0 0
  %624 = vmatpush1.bf16.msra.mxu0 0
  %625 = vmatprep.mubr.bf16.mxu0 0
  %626 = vmatmul.mubr.bf16.gmra.mrb[0].mxu0 %v582
  %v627 = vpop.f32.mrb[0].mxu0
  %v628 = vadd.f32 0.0, %v627
  %v629 = vpop.f32.mrb[0].mxu0
  %v630 = vpop.f32.mrb[0].mxu0
  %v631 = vadd.f32 0.0, %v630
  %v632 = vpop.f32.mrb[0].mxu0
  %633 = vmatprep.mubr.bf16.mxu0 0
  %634 = vmatmul.mubr.bf16.gmra.mrb[0].mxu0 %v585
  %v635 = vpop.f32.mrb[0].mxu0
  %v636 = vadd.f32 0.0, %v635
  %v637 = vpop.f32.mrb[0].mxu0
  %v638 = vpop.f32.mrb[0].mxu0
  %v639 = vadd.f32 0.0, %v638
  %v640 = vpop.f32.mrb[0].mxu0
  %641 = vmatprep.mubr.bf16.mxu0 0
  %642 = vmatmul.mubr.bf16.gmra.mrb[0].mxu0 %v588
  %v643 = vpop.f32.mrb[0].mxu0
  %v644 = vadd.f32 0.0, %v643
  %v645 = vpop.f32.mrb[0].mxu0
  %v646 = vpop.f32.mrb[0].mxu0
  %v647 = vadd.f32 0.0, %v646
  %v648 = vpop.f32.mrb[0].mxu0
  %649 = vmatprep.mubr.bf16.mxu0 0
  %650 = vmatmul.mubr.bf16.gmra.mrb[0].mxu0 %v591
  %v651 = vpop.f32.mrb[0].mxu0
  %v652 = vadd.f32 0.0, %v651
  %v653 = vpop.f32.mrb[0].mxu0
  %v654 = vpop.f32.mrb[0].mxu0
  %v655 = vadd.f32 0.0, %v654
  %v656 = vpop.f32.mrb[0].mxu0
  %657 = vdwg.mxu0
  %v662 = vunpack.c.l.b16 %v557
  %v663 = vunpack.c.l.b16 %v558
  %v664 = vunpack.c.l.b16 %v559
  %v665 = vunpack.c.l.b16 %v560
  %v666 = vpack.c.b16 %v663, %v662
  %v667 = vpack.c.b16 %v665, %v664
  %670 = vmatprep.subr.bf16.mxu0 0
  %671 = vmatpush1.bf16.msra.mxu0 %v666
  %672 = vmatprep.subr.bf16.mxu0 0
  %673 = vmatpush1.bf16.msra.mxu0 %v667
  %674 = vmatprep.subr.bf16.mxu0 0
  %675 = vmatpush1.bf16.msra.mxu0 0
  %676 = vmatprep.subr.bf16.mxu0 0
  %677 = vmatpush1.bf16.msra.mxu0 0
  %678 = vmatprep.subr.bf16.mxu0 0
  %679 = vmatpush1.bf16.msra.mxu0 0
  %680 = vmatprep.subr.bf16.mxu0 0
  %681 = vmatpush1.bf16.msra.mxu0 0
  %682 = vmatprep.subr.bf16.mxu0 0
  %683 = vmatpush1.bf16.msra.mxu0 0
  %684 = vmatprep.subr.bf16.mxu0 0
  %685 = vmatpush1.bf16.msra.mxu0 0
  %686 = vmatprep.subr.bf16.mxu0 0
  %687 = vmatpush1.bf16.msra.mxu0 0
  %688 = vmatprep.subr.bf16.mxu0 0
  %689 = vmatpush1.bf16.msra.mxu0 0
  %690 = vmatprep.subr.bf16.mxu0 0
  %691 = vmatpush1.bf16.msra.mxu0 0
  %692 = vmatprep.subr.bf16.mxu0 0
  %693 = vmatpush1.bf16.msra.mxu0 0
  %694 = vmatprep.subr.bf16.mxu0 0
  %695 = vmatpush1.bf16.msra.mxu0 0
  %696 = vmatprep.subr.bf16.mxu0 0
  %697 = vmatpush1.bf16.msra.mxu0 0
  %698 = vmatprep.subr.bf16.mxu0 0
  %699 = vmatpush1.bf16.msra.mxu0 0
  %700 = vmatprep.subr.bf16.mxu0 0
  %701 = vmatpush1.bf16.msra.mxu0 0
  %702 = vmatprep.mubr.bf16.mxu0 0
  %703 = vmatmul.mubr.bf16.gmra.mrb[0].mxu0 %v582
  %v704 = vpop.f32.mrb[0].mxu0
  %v705 = vadd.f32 0.0, %v704
  %v706 = vpop.f32.mrb[0].mxu0
  %v707 = vpop.f32.mrb[0].mxu0
  %v708 = vadd.f32 0.0, %v707
  %v709 = vpop.f32.mrb[0].mxu0
  %710 = vmatprep.mubr.bf16.mxu0 0
  %711 = vmatmul.mubr.bf16.gmra.mrb[0].mxu0 %v585
  %v712 = vpop.f32.mrb[0].mxu0
  %v713 = vadd.f32 0.0, %v712
  %v714 = vpop.f32.mrb[0].mxu0
  %v715 = vpop.f32.mrb[0].mxu0
  %v716 = vadd.f32 0.0, %v715
  %v717 = vpop.f32.mrb[0].mxu0
  %718 = vmatprep.mubr.bf16.mxu0 0
  %719 = vmatmul.mubr.bf16.gmra.mrb[0].mxu0 %v588
  %v720 = vpop.f32.mrb[0].mxu0
  %v721 = vadd.f32 0.0, %v720
  %v722 = vpop.f32.mrb[0].mxu0
  %v723 = vpop.f32.mrb[0].mxu0
  %v724 = vadd.f32 0.0, %v723
  %v725 = vpop.f32.mrb[0].mxu0
  %726 = vmatprep.mubr.bf16.mxu0 0
  %727 = vmatmul.mubr.bf16.gmra.mrb[0].mxu0 %v591
  %v728 = vpop.f32.mrb[0].mxu0
  %v729 = vadd.f32 0.0, %v728
  %v730 = vpop.f32.mrb[0].mxu0
  %v731 = vpop.f32.mrb[0].mxu0
  %v732 = vadd.f32 0.0, %v731
  %v733 = vpop.f32.mrb[0].mxu0
  %734 = vdwg.mxu0
  %v739 = vunpack.c.l.b16 %v561
  %v740 = vunpack.c.l.b16 %v562
  %v741 = vunpack.c.l.b16 %v563
  %v742 = vunpack.c.l.b16 %v564
  %v743 = vpack.c.b16 %v740, %v739
  %v744 = vpack.c.b16 %v742, %v741
  %747 = vmatprep.subr.bf16.mxu0 0
  %748 = vmatpush1.bf16.msra.mxu0 %v743
  %749 = vmatprep.subr.bf16.mxu0 0
  %750 = vmatpush1.bf16.msra.mxu0 %v744
  %751 = vmatprep.subr.bf16.mxu0 0
  %752 = vmatpush1.bf16.msra.mxu0 0
  %753 = vmatprep.subr.bf16.mxu0 0
  %754 = vmatpush1.bf16.msra.mxu0 0
  %755 = vmatprep.subr.bf16.mxu0 0
  %756 = vmatpush1.bf16.msra.mxu0 0
  %757 = vmatprep.subr.bf16.mxu0 0
  %758 = vmatpush1.bf16.msra.mxu0 0
  %759 = vmatprep.subr.bf16.mxu0 0
  %760 = vmatpush1.bf16.msra.mxu0 0
  %761 = vmatprep.subr.bf16.mxu0 0
  %762 = vmatpush1.bf16.msra.mxu0 0
  %763 = vmatprep.subr.bf16.mxu0 0
  %764 = vmatpush1.bf16.msra.mxu0 0
  %765 = vmatprep.subr.bf16.mxu0 0
  %766 = vmatpush1.bf16.msra.mxu0 0
  %767 = vmatprep.subr.bf16.mxu0 0
  %768 = vmatpush1.bf16.msra.mxu0 0
  %769 = vmatprep.subr.bf16.mxu0 0
  %770 = vmatpush1.bf16.msra.mxu0 0
  %771 = vmatprep.subr.bf16.mxu0 0
  %772 = vmatpush1.bf16.msra.mxu0 0
  %773 = vmatprep.subr.bf16.mxu0 0
  %774 = vmatpush1.bf16.msra.mxu0 0
  %775 = vmatprep.subr.bf16.mxu0 0
  %776 = vmatpush1.bf16.msra.mxu0 0
  %777 = vmatprep.subr.bf16.mxu0 0
  %778 = vmatpush1.bf16.msra.mxu0 0
  %779 = vmatprep.mubr.bf16.mxu0 0
  %780 = vmatmul.mubr.bf16.gmra.mrb[0].mxu0 %v582
  %v781 = vpop.f32.mrb[0].mxu0
  %v782 = vadd.f32 0.0, %v781
  %v783 = vpop.f32.mrb[0].mxu0
  %v784 = vpop.f32.mrb[0].mxu0
  %v785 = vadd.f32 0.0, %v784
  %v786 = vpop.f32.mrb[0].mxu0
  %787 = vmatprep.mubr.bf16.mxu0 0
  %788 = vmatmul.mubr.bf16.gmra.mrb[0].mxu0 %v585
  %v789 = vpop.f32.mrb[0].mxu0
  %v790 = vadd.f32 0.0, %v789
  %v791 = vpop.f32.mrb[0].mxu0
  %v792 = vpop.f32.mrb[0].mxu0
  %v793 = vadd.f32 0.0, %v792
  %v794 = vpop.f32.mrb[0].mxu0
  %795 = vmatprep.mubr.bf16.mxu0 0
  %796 = vmatmul.mubr.bf16.gmra.mrb[0].mxu0 %v588
  %v797 = vpop.f32.mrb[0].mxu0
  %v798 = vadd.f32 0.0, %v797
  %v799 = vpop.f32.mrb[0].mxu0
  %v800 = vpop.f32.mrb[0].mxu0
  %v801 = vadd.f32 0.0, %v800
  %v802 = vpop.f32.mrb[0].mxu0
  %803 = vmatprep.mubr.bf16.mxu0 0
  %804 = vmatmul.mubr.bf16.gmra.mrb[0].mxu0 %v591
  %v805 = vpop.f32.mrb[0].mxu0
  %v806 = vadd.f32 0.0, %v805
  %v807 = vpop.f32.mrb[0].mxu0
  %v808 = vpop.f32.mrb[0].mxu0
  %v809 = vadd.f32 0.0, %v808
  %v810 = vpop.f32.mrb[0].mxu0
  %811 = vdwg.mxu0
  %v816 = vunpack.c.l.b16 %v565
  %v817 = vunpack.c.l.b16 %v566
  %v818 = vunpack.c.l.b16 %v567
  %v819 = vunpack.c.l.b16 %v568
  %v820 = vpack.c.b16 %v817, %v816
  %v821 = vpack.c.b16 %v819, %v818
  %824 = vmatprep.subr.bf16.mxu0 0
  %825 = vmatpush1.bf16.msra.mxu0 %v820
  %826 = vmatprep.subr.bf16.mxu0 0
  %827 = vmatpush1.bf16.msra.mxu0 %v821
  %828 = vmatprep.subr.bf16.mxu0 0
  %829 = vmatpush1.bf16.msra.mxu0 0
  %830 = vmatprep.subr.bf16.mxu0 0
  %831 = vmatpush1.bf16.msra.mxu0 0
  %832 = vmatprep.subr.bf16.mxu0 0
  %833 = vmatpush1.bf16.msra.mxu0 0
  %834 = vmatprep.subr.bf16.mxu0 0
  %835 = vmatpush1.bf16.msra.mxu0 0
  %836 = vmatprep.subr.bf16.mxu0 0
  %837 = vmatpush1.bf16.msra.mxu0 0
  %838 = vmatprep.subr.bf16.mxu0 0
  %839 = vmatpush1.bf16.msra.mxu0 0
  %840 = vmatprep.subr.bf16.mxu0 0
  %841 = vmatpush1.bf16.msra.mxu0 0
  %842 = vmatprep.subr.bf16.mxu0 0
  %843 = vmatpush1.bf16.msra.mxu0 0
  %844 = vmatprep.subr.bf16.mxu0 0
  %845 = vmatpush1.bf16.msra.mxu0 0
  %846 = vmatprep.subr.bf16.mxu0 0
  %847 = vmatpush1.bf16.msra.mxu0 0
  %848 = vmatprep.subr.bf16.mxu0 0
  %849 = vmatpush1.bf16.msra.mxu0 0
  %850 = vmatprep.subr.bf16.mxu0 0
  %851 = vmatpush1.bf16.msra.mxu0 0
  %852 = vmatprep.subr.bf16.mxu0 0
  %853 = vmatpush1.bf16.msra.mxu0 0
  %854 = vmatprep.subr.bf16.mxu0 0
  %855 = vmatpush1.bf16.msra.mxu0 0
  %856 = vmatprep.mubr.bf16.mxu0 0
  %857 = vmatmul.mubr.bf16.gmra.mrb[0].mxu0 %v582
  %v858 = vpop.f32.mrb[0].mxu0
  %v859 = vadd.f32 0.0, %v858
  %v860 = vpop.f32.mrb[0].mxu0
  %v861 = vpop.f32.mrb[0].mxu0
  %v862 = vadd.f32 0.0, %v861
  %v863 = vpop.f32.mrb[0].mxu0
  %864 = vmatprep.mubr.bf16.mxu0 0
  %865 = vmatmul.mubr.bf16.gmra.mrb[0].mxu0 %v585
  %v866 = vpop.f32.mrb[0].mxu0
  %v867 = vadd.f32 0.0, %v866
  %v868 = vpop.f32.mrb[0].mxu0
  %v869 = vpop.f32.mrb[0].mxu0
  %v870 = vadd.f32 0.0, %v869
  %v871 = vpop.f32.mrb[0].mxu0
  %872 = vmatprep.mubr.bf16.mxu0 0
  %873 = vmatmul.mubr.bf16.gmra.mrb[0].mxu0 %v588
  %v874 = vpop.f32.mrb[0].mxu0
  %v875 = vadd.f32 0.0, %v874
  %v876 = vpop.f32.mrb[0].mxu0
  %v877 = vpop.f32.mrb[0].mxu0
  %v878 = vadd.f32 0.0, %v877
  %v879 = vpop.f32.mrb[0].mxu0
  %880 = vmatprep.mubr.bf16.mxu0 0
  %881 = vmatmul.mubr.bf16.gmra.mrb[0].mxu0 %v591
  %v882 = vpop.f32.mrb[0].mxu0
  %v883 = vadd.f32 0.0, %v882
  %v884 = vpop.f32.mrb[0].mxu0
  %v885 = vpop.f32.mrb[0].mxu0
  %v886 = vadd.f32 0.0, %v885
  %v887 = vpop.f32.mrb[0].mxu0
  %888 = vdwg.mxu0
  %v889 = vld [vmem:[%s9] sm:$0xf]
  %v890 = vld [vmem:[%s9 + $0x4] sm:$0xf]
  %v891 = vld [vmem:[%s9 + $0x8] sm:$0xf]
  %v892 = vld [vmem:[%s9 + $0xc] sm:$0xf]
  %v893 = vld [vmem:[%s9 + $0x10] sm:$0xf]
  %v894 = vld [vmem:[%s9 + $0x14] sm:$0xf]
  %v895 = vld [vmem:[%s9 + $0x18] sm:$0xf]
  %v896 = vld [vmem:[%s9 + $0x1c] sm:$0xf]
  %v897 = vld [vmem:[%s9 + $0x20] sm:$0xf]
  %v898 = vld [vmem:[%s9 + $0x24] sm:$0xf]
  %v899 = vld [vmem:[%s9 + $0x28] sm:$0xf]
  %v900 = vld [vmem:[%s9 + $0x2c] sm:$0xf]
  %v901 = vld [vmem:[%s9 + $0x30] sm:$0xf]
  %v902 = vld [vmem:[%s9 + $0x34] sm:$0xf]
  %v903 = vld [vmem:[%s9 + $0x38] sm:$0xf]
  %v904 = vld [vmem:[%s9 + $0x3c] sm:$0xf]
  %v909 = vunpack.c.l.b16 %v889
  %v910 = vunpack.c.l.b16 %v890
  %v911 = vunpack.c.l.b16 %v891
  %v912 = vunpack.c.l.b16 %v892
  %v913 = vpack.c.b16 %v910, %v909
  %v914 = vpack.c.b16 %v912, %v911
  %917 = vmatprep.subr.bf16.mxu0 0
  %918 = vmatpush1.bf16.msra.mxu0 %v913
  %919 = vmatprep.subr.bf16.mxu0 0
  %920 = vmatpush1.bf16.msra.mxu0 %v914
  %921 = vmatprep.subr.bf16.mxu0 0
  %922 = vmatpush1.bf16.msra.mxu0 0
  %923 = vmatprep.subr.bf16.mxu0 0
  %924 = vmatpush1.bf16.msra.mxu0 0
  %925 = vmatprep.subr.bf16.mxu0 0
  %926 = vmatpush1.bf16.msra.mxu0 0
  %927 = vmatprep.subr.bf16.mxu0 0
  %928 = vmatpush1.bf16.msra.mxu0 0
  %929 = vmatprep.subr.bf16.mxu0 0
  %930 = vmatpush1.bf16.msra.mxu0 0
  %931 = vmatprep.subr.bf16.mxu0 0
  %932 = vmatpush1.bf16.msra.mxu0 0
  %933 = vmatprep.subr.bf16.mxu0 0
  %934 = vmatpush1.bf16.msra.mxu0 0
  %935 = vmatprep.subr.bf16.mxu0 0
  %936 = vmatpush1.bf16.msra.mxu0 0
  %937 = vmatprep.subr.bf16.mxu0 0
  %938 = vmatpush1.bf16.msra.mxu0 0
  %939 = vmatprep.subr.bf16.mxu0 0
  %940 = vmatpush1.bf16.msra.mxu0 0
  %941 = vmatprep.subr.bf16.mxu0 0
  %942 = vmatpush1.bf16.msra.mxu0 0
  %943 = vmatprep.subr.bf16.mxu0 0
  %944 = vmatpush1.bf16.msra.mxu0 0
  %945 = vmatprep.subr.bf16.mxu0 0
  %946 = vmatpush1.bf16.msra.mxu0 0
  %947 = vmatprep.subr.bf16.mxu0 0
  %948 = vmatpush1.bf16.msra.mxu0 0
  %949 = vmatprep.mubr.bf16.mxu0 0
  %950 = vmatmul.mubr.bf16.gmra.mrb[0].mxu0 %v582
  %v951 = vpop.f32.mrb[0].mxu0
  %v952 = vadd.f32 0.0, %v951
  %v953 = vpop.f32.mrb[0].mxu0
  %v954 = vpop.f32.mrb[0].mxu0
  %v955 = vadd.f32 0.0, %v954
  %v956 = vpop.f32.mrb[0].mxu0
  %957 = vmatprep.mubr.bf16.mxu0 0
  %958 = vmatmul.mubr.bf16.gmra.mrb[0].mxu0 %v585
  %v959 = vpop.f32.mrb[0].mxu0
  %v960 = vadd.f32 0.0, %v959
  %v961 = vpop.f32.mrb[0].mxu0
  %v962 = vpop.f32.mrb[0].mxu0
  %v963 = vadd.f32 0.0, %v962
  %v964 = vpop.f32.mrb[0].mxu0
  %965 = vmatprep.mubr.bf16.mxu0 0
  %966 = vmatmul.mubr.bf16.gmra.mrb[0].mxu0 %v588
  %v967 = vpop.f32.mrb[0].mxu0
  %v968 = vadd.f32 0.0, %v967
  %v969 = vpop.f32.mrb[0].mxu0
  %v970 = vpop.f32.mrb[0].mxu0
  %v971 = vadd.f32 0.0, %v970
  %v972 = vpop.f32.mrb[0].mxu0
  %973 = vmatprep.mubr.bf16.mxu0 0
  %974 = vmatmul.mubr.bf16.gmra.mrb[0].mxu0 %v591
  %v975 = vpop.f32.mrb[0].mxu0
  %v976 = vadd.f32 0.0, %v975
  %v977 = vpop.f32.mrb[0].mxu0
  %v978 = vpop.f32.mrb[0].mxu0
  %v979 = vadd.f32 0.0, %v978
  %v980 = vpop.f32.mrb[0].mxu0
  %981 = vdwg.mxu0
  %v986 = vunpack.c.l.b16 %v893
  %v987 = vunpack.c.l.b16 %v894
  %v988 = vunpack.c.l.b16 %v895
  %v989 = vunpack.c.l.b16 %v896
  %v990 = vpack.c.b16 %v987, %v986
  %v991 = vpack.c.b16 %v989, %v988
  %994 = vmatprep.subr.bf16.mxu0 0
  %995 = vmatpush1.bf16.msra.mxu0 %v990
  %996 = vmatprep.subr.bf16.mxu0 0
  %997 = vmatpush1.bf16.msra.mxu0 %v991
  %998 = vmatprep.subr.bf16.mxu0 0
  %999 = vmatpush1.bf16.msra.mxu0 0
  %1000 = vmatprep.subr.bf16.mxu0 0
  %1001 = vmatpush1.bf16.msra.mxu0 0
  %1002 = vmatprep.subr.bf16.mxu0 0
  %1003 = vmatpush1.bf16.msra.mxu0 0
  %1004 = vmatprep.subr.bf16.mxu0 0
  %1005 = vmatpush1.bf16.msra.mxu0 0
  %1006 = vmatprep.subr.bf16.mxu0 0
  %1007 = vmatpush1.bf16.msra.mxu0 0
  %1008 = vmatprep.subr.bf16.mxu0 0
  %1009 = vmatpush1.bf16.msra.mxu0 0
  %1010 = vmatprep.subr.bf16.mxu0 0
  %1011 = vmatpush1.bf16.msra.mxu0 0
  %1012 = vmatprep.subr.bf16.mxu0 0
  %1013 = vmatpush1.bf16.msra.mxu0 0
  %1014 = vmatprep.subr.bf16.mxu0 0
  %1015 = vmatpush1.bf16.msra.mxu0 0
  %1016 = vmatprep.subr.bf16.mxu0 0
  %1017 = vmatpush1.bf16.msra.mxu0 0
  %1018 = vmatprep.subr.bf16.mxu0 0
  %1019 = vmatpush1.bf16.msra.mxu0 0
  %1020 = vmatprep.subr.bf16.mxu0 0
  %1021 = vmatpush1.bf16.msra.mxu0 0
  %1022 = vmatprep.subr.bf16.mxu0 0
  %1023 = vmatpush1.bf16.msra.mxu0 0
  %1024 = vmatprep.subr.bf16.mxu0 0
  %1025 = vmatpush1.bf16.msra.mxu0 0
  %1026 = vmatprep.mubr.bf16.mxu0 0
  %1027 = vmatmul.mubr.bf16.gmra.mrb[0].mxu0 %v582
  %v1028 = vpop.f32.mrb[0].mxu0
  %v1029 = vadd.f32 0.0, %v1028
  %v1030 = vpop.f32.mrb[0].mxu0
  %v1031 = vpop.f32.mrb[0].mxu0
  %v1032 = vadd.f32 0.0, %v1031
  %v1033 = vpop.f32.mrb[0].mxu0
  %1034 = vmatprep.mubr.bf16.mxu0 0
  %1035 = vmatmul.mubr.bf16.gmra.mrb[0].mxu0 %v585
  %v1036 = vpop.f32.mrb[0].mxu0
  %v1037 = vadd.f32 0.0, %v1036
  %v1038 = vpop.f32.mrb[0].mxu0
  %v1039 = vpop.f32.mrb[0].mxu0
  %v1040 = vadd.f32 0.0, %v1039
  %v1041 = vpop.f32.mrb[0].mxu0
  %1042 = vmatprep.mubr.bf16.mxu0 0
  %1043 = vmatmul.mubr.bf16.gmra.mrb[0].mxu0 %v588
  %v1044 = vpop.f32.mrb[0].mxu0
  %v1045 = vadd.f32 0.0, %v1044
  %v1046 = vpop.f32.mrb[0].mxu0
  %v1047 = vpop.f32.mrb[0].mxu0
  %v1048 = vadd.f32 0.0, %v1047
  %v1049 = vpop.f32.mrb[0].mxu0
  %1050 = vmatprep.mubr.bf16.mxu0 0
  %1051 = vmatmul.mubr.bf16.gmra.mrb[0].mxu0 %v591
  %v1052 = vpop.f32.mrb[0].mxu0
  %v1053 = vadd.f32 0.0, %v1052
  %v1054 = vpop.f32.mrb[0].mxu0
  %v1055 = vpop.f32.mrb[0].mxu0
  %v1056 = vadd.f32 0.0, %v1055
  %v1057 = vpop.f32.mrb[0].mxu0
  %1058 = vdwg.mxu0
  %v1063 = vunpack.c.l.b16 %v897
  %v1064 = vunpack.c.l.b16 %v898
  %v1065 = vunpack.c.l.b16 %v899
  %v1066 = vunpack.c.l.b16 %v900
  %v1067 = vpack.c.b16 %v1064, %v1063
  %v1068 = vpack.c.b16 %v1066, %v1065
  %1071 = vmatprep.subr.bf16.mxu0 0
  %1072 = vmatpush1.bf16.msra.mxu0 %v1067
  %1073 = vmatprep.subr.bf16.mxu0 0
  %1074 = vmatpush1.bf16.msra.mxu0 %v1068
  %1075 = vmatprep.subr.bf16.mxu0 0
  %1076 = vmatpush1.bf16.msra.mxu0 0
  %1077 = vmatprep.subr.bf16.mxu0 0
  %1078 = vmatpush1.bf16.msra.mxu0 0
  %1079 = vmatprep.subr.bf16.mxu0 0
  %1080 = vmatpush1.bf16.msra.mxu0 0
  %1081 = vmatprep.subr.bf16.mxu0 0
  %1082 = vmatpush1.bf16.msra.mxu0 0
  %1083 = vmatprep.subr.bf16.mxu0 0
  %1084 = vmatpush1.bf16.msra.mxu0 0
  %1085 = vmatprep.subr.bf16.mxu0 0
  %1086 = vmatpush1.bf16.msra.mxu0 0
  %1087 = vmatprep.subr.bf16.mxu0 0
  %1088 = vmatpush1.bf16.msra.mxu0 0
  %1089 = vmatprep.subr.bf16.mxu0 0
  %1090 = vmatpush1.bf16.msra.mxu0 0
  %1091 = vmatprep.subr.bf16.mxu0 0
  %1092 = vmatpush1.bf16.msra.mxu0 0
  %1093 = vmatprep.subr.bf16.mxu0 0
  %1094 = vmatpush1.bf16.msra.mxu0 0
  %1095 = vmatprep.subr.bf16.mxu0 0
  %1096 = vmatpush1.bf16.msra.mxu0 0
  %1097 = vmatprep.subr.bf16.mxu0 0
  %1098 = vmatpush1.bf16.msra.mxu0 0
  %1099 = vmatprep.subr.bf16.mxu0 0
  %1100 = vmatpush1.bf16.msra.mxu0 0
  %1101 = vmatprep.subr.bf16.mxu0 0
  %1102 = vmatpush1.bf16.msra.mxu0 0
  %1103 = vmatprep.mubr.bf16.mxu0 0
  %1104 = vmatmul.mubr.bf16.gmra.mrb[0].mxu0 %v582
  %v1105 = vpop.f32.mrb[0].mxu0
  %v1106 = vadd.f32 0.0, %v1105
  %v1107 = vpop.f32.mrb[0].mxu0
  %v1108 = vpop.f32.mrb[0].mxu0
  %v1109 = vadd.f32 0.0, %v1108
  %v1110 = vpop.f32.mrb[0].mxu0
  %1111 = vmatprep.mubr.bf16.mxu0 0
  %1112 = vmatmul.mubr.bf16.gmra.mrb[0].mxu0 %v585
  %v1113 = vpop.f32.mrb[0].mxu0
  %v1114 = vadd.f32 0.0, %v1113
  %v1115 = vpop.f32.mrb[0].mxu0
  %v1116 = vpop.f32.mrb[0].mxu0
  %v1117 = vadd.f32 0.0, %v1116
  %v1118 = vpop.f32.mrb[0].mxu0
  %1119 = vmatprep.mubr.bf16.mxu0 0
  %1120 = vmatmul.mubr.bf16.gmra.mrb[0].mxu0 %v588
  %v1121 = vpop.f32.mrb[0].mxu0
  %v1122 = vadd.f32 0.0, %v1121
  %v1123 = vpop.f32.mrb[0].mxu0
  %v1124 = vpop.f32.mrb[0].mxu0
  %v1125 = vadd.f32 0.0, %v1124
  %v1126 = vpop.f32.mrb[0].mxu0
  %1127 = vmatprep.mubr.bf16.mxu0 0
  %1128 = vmatmul.mubr.bf16.gmra.mrb[0].mxu0 %v591
  %v1129 = vpop.f32.mrb[0].mxu0
  %v1130 = vadd.f32 0.0, %v1129
  %v1131 = vpop.f32.mrb[0].mxu0
  %v1132 = vpop.f32.mrb[0].mxu0
  %v1133 = vadd.f32 0.0, %v1132
  %v1134 = vpop.f32.mrb[0].mxu0
  %1135 = vdwg.mxu0
  %v1140 = vunpack.c.l.b16 %v901
  %v1141 = vunpack.c.l.b16 %v902
  %v1142 = vunpack.c.l.b16 %v903
  %v1143 = vunpack.c.l.b16 %v904
  %v1144 = vpack.c.b16 %v1141, %v1140
  %v1145 = vpack.c.b16 %v1143, %v1142
  %1148 = vmatprep.subr.bf16.mxu0 0
  %1149 = vmatpush1.bf16.msra.mxu0 %v1144
  %1150 = vmatprep.subr.bf16.mxu0 0
  %1151 = vmatpush1.bf16.msra.mxu0 %v1145
  %1152 = vmatprep.subr.bf16.mxu0 0
  %1153 = vmatpush1.bf16.msra.mxu0 0
  %1154 = vmatprep.subr.bf16.mxu0 0
  %1155 = vmatpush1.bf16.msra.mxu0 0
  %1156 = vmatprep.subr.bf16.mxu0 0
  %1157 = vmatpush1.bf16.msra.mxu0 0
  %1158 = vmatprep.subr.bf16.mxu0 0
  %1159 = vmatpush1.bf16.msra.mxu0 0
  %1160 = vmatprep.subr.bf16.mxu0 0
  %1161 = vmatpush1.bf16.msra.mxu0 0
  %1162 = vmatprep.subr.bf16.mxu0 0
  %1163 = vmatpush1.bf16.msra.mxu0 0
  %1164 = vmatprep.subr.bf16.mxu0 0
  %1165 = vmatpush1.bf16.msra.mxu0 0
  %1166 = vmatprep.subr.bf16.mxu0 0
  %1167 = vmatpush1.bf16.msra.mxu0 0
  %1168 = vmatprep.subr.bf16.mxu0 0
  %1169 = vmatpush1.bf16.msra.mxu0 0
  %1170 = vmatprep.subr.bf16.mxu0 0
  %1171 = vmatpush1.bf16.msra.mxu0 0
  %1172 = vmatprep.subr.bf16.mxu0 0
  %1173 = vmatpush1.bf16.msra.mxu0 0
  %1174 = vmatprep.subr.bf16.mxu0 0
  %1175 = vmatpush1.bf16.msra.mxu0 0
  %1176 = vmatprep.subr.bf16.mxu0 0
  %1177 = vmatpush1.bf16.msra.mxu0 0
  %1178 = vmatprep.subr.bf16.mxu0 0
  %1179 = vmatpush1.bf16.msra.mxu0 0
  %1180 = vmatprep.mubr.bf16.mxu0 0
  %1181 = vmatmul.mubr.bf16.gmra.mrb[0].mxu0 %v582
  %v1182 = vpop.f32.mrb[0].mxu0
  %v1183 = vadd.f32 0.0, %v1182
  %v1184 = vpop.f32.mrb[0].mxu0
  %v1185 = vpop.f32.mrb[0].mxu0
  %v1186 = vadd.f32 0.0, %v1185
  %v1187 = vpop.f32.mrb[0].mxu0
  %1188 = vmatprep.mubr.bf16.mxu0 0
  %1189 = vmatmul.mubr.bf16.gmra.mrb[0].mxu0 %v585
  %v1190 = vpop.f32.mrb[0].mxu0
  %v1191 = vadd.f32 0.0, %v1190
  %v1192 = vpop.f32.mrb[0].mxu0
  %v1193 = vpop.f32.mrb[0].mxu0
  %v1194 = vadd.f32 0.0, %v1193
  %v1195 = vpop.f32.mrb[0].mxu0
  %1196 = vmatprep.mubr.bf16.mxu0 0
  %1197 = vmatmul.mubr.bf16.gmra.mrb[0].mxu0 %v588
  %v1198 = vpop.f32.mrb[0].mxu0
  %v1199 = vadd.f32 0.0, %v1198
  %v1200 = vpop.f32.mrb[0].mxu0
  %v1201 = vpop.f32.mrb[0].mxu0
  %v1202 = vadd.f32 0.0, %v1201
  %v1203 = vpop.f32.mrb[0].mxu0
  %1204 = vmatprep.mubr.bf16.mxu0 0
  %1205 = vmatmul.mubr.bf16.gmra.mrb[0].mxu0 %v591
  %v1206 = vpop.f32.mrb[0].mxu0
  %v1207 = vadd.f32 0.0, %v1206
  %v1208 = vpop.f32.mrb[0].mxu0
  %v1209 = vpop.f32.mrb[0].mxu0
  %v1210 = vadd.f32 0.0, %v1209
  %v1211 = vpop.f32.mrb[0].mxu0
  %1212 = vdwg.mxu0
  %v1213 = vld [vmem:[%s10] sm:$0xf]
  %v1214 = vld [vmem:[%s10 + $0x4] sm:$0xf]
  %v1215 = vld [vmem:[%s10 + $0x8] sm:$0xf]
  %v1216 = vld [vmem:[%s10 + $0xc] sm:$0xf]
  %v1217 = vld [vmem:[%s10 + $0x10] sm:$0xf]
  %v1218 = vld [vmem:[%s10 + $0x14] sm:$0xf]
  %v1219 = vld [vmem:[%s10 + $0x18] sm:$0xf]
  %v1220 = vld [vmem:[%s10 + $0x1c] sm:$0xf]
  %v1221 = vld [vmem:[%s10 + $0x20] sm:$0xf]
  %v1222 = vld [vmem:[%s10 + $0x24] sm:$0xf]
  %v1223 = vld [vmem:[%s10 + $0x28] sm:$0xf]
  %v1224 = vld [vmem:[%s10 + $0x2c] sm:$0xf]
  %v1225 = vld [vmem:[%s10 + $0x30] sm:$0xf]
  %v1226 = vld [vmem:[%s10 + $0x34] sm:$0xf]
  %v1227 = vld [vmem:[%s10 + $0x38] sm:$0xf]
  %v1228 = vld [vmem:[%s10 + $0x3c] sm:$0xf]
  %v1233 = vunpack.c.l.b16 %v1213
  %v1234 = vunpack.c.l.b16 %v1214
  %v1235 = vunpack.c.l.b16 %v1215
  %v1236 = vunpack.c.l.b16 %v1216
  %v1237 = vpack.c.b16 %v1234, %v1233
  %v1238 = vpack.c.b16 %v1236, %v1235
  %1241 = vmatprep.subr.bf16.mxu0 0
  %1242 = vmatpush1.bf16.msra.mxu0 %v1237
  %1243 = vmatprep.subr.bf16.mxu0 0
  %1244 = vmatpush1.bf16.msra.mxu0 %v1238
  %1245 = vmatprep.subr.bf16.mxu0 0
  %1246 = vmatpush1.bf16.msra.mxu0 0
  %1247 = vmatprep.subr.bf16.mxu0 0
  %1248 = vmatpush1.bf16.msra.mxu0 0
  %1249 = vmatprep.subr.bf16.mxu0 0
  %1250 = vmatpush1.bf16.msra.mxu0 0
  %1251 = vmatprep.subr.bf16.mxu0 0
  %1252 = vmatpush1.bf16.msra.mxu0 0
  %1253 = vmatprep.subr.bf16.mxu0 0
  %1254 = vmatpush1.bf16.msra.mxu0 0
  %1255 = vmatprep.subr.bf16.mxu0 0
  %1256 = vmatpush1.bf16.msra.mxu0 0
  %1257 = vmatprep.subr.bf16.mxu0 0
  %1258 = vmatpush1.bf16.msra.mxu0 0
  %1259 = vmatprep.subr.bf16.mxu0 0
  %1260 = vmatpush1.bf16.msra.mxu0 0
  %1261 = vmatprep.subr.bf16.mxu0 0
  %1262 = vmatpush1.bf16.msra.mxu0 0
  %1263 = vmatprep.subr.bf16.mxu0 0
  %1264 = vmatpush1.bf16.msra.mxu0 0
  %1265 = vmatprep.subr.bf16.mxu0 0
  %1266 = vmatpush1.bf16.msra.mxu0 0
  %1267 = vmatprep.subr.bf16.mxu0 0
  %1268 = vmatpush1.bf16.msra.mxu0 0
  %1269 = vmatprep.subr.bf16.mxu0 0
  %1270 = vmatpush1.bf16.msra.mxu0 0
  %1271 = vmatprep.subr.bf16.mxu0 0
  %1272 = vmatpush1.bf16.msra.mxu0 0
  %1273 = vmatprep.mubr.bf16.mxu0 0
  %1274 = vmatmul.mubr.bf16.gmra.mrb[0].mxu0 %v582
  %v1275 = vpop.f32.mrb[0].mxu0
  %v1276 = vadd.f32 0.0, %v1275
  %v1277 = vpop.f32.mrb[0].mxu0
  %v1278 = vpop.f32.mrb[0].mxu0
  %v1279 = vadd.f32 0.0, %v1278
  %v1280 = vpop.f32.mrb[0].mxu0
  %1281 = vmatprep.mubr.bf16.mxu0 0
  %1282 = vmatmul.mubr.bf16.gmra.mrb[0].mxu0 %v585
  %v1283 = vpop.f32.mrb[0].mxu0
  %v1284 = vadd.f32 0.0, %v1283
  %v1285 = vpop.f32.mrb[0].mxu0
  %v1286 = vpop.f32.mrb[0].mxu0
  %v1287 = vadd.f32 0.0, %v1286
  %v1288 = vpop.f32.mrb[0].mxu0
  %1289 = vmatprep.mubr.bf16.mxu0 0
  %1290 = vmatmul.mubr.bf16.gmra.mrb[0].mxu0 %v588
  %v1291 = vpop.f32.mrb[0].mxu0
  %v1292 = vadd.f32 0.0, %v1291
  %v1293 = vpop.f32.mrb[0].mxu0
  %v1294 = vpop.f32.mrb[0].mxu0
  %v1295 = vadd.f32 0.0, %v1294
  %v1296 = vpop.f32.mrb[0].mxu0
  %1297 = vmatprep.mubr.bf16.mxu0 0
  %1298 = vmatmul.mubr.bf16.gmra.mrb[0].mxu0 %v591
  %v1299 = vpop.f32.mrb[0].mxu0
  %v1300 = vadd.f32 0.0, %v1299
  %v1301 = vpop.f32.mrb[0].mxu0
  %v1302 = vpop.f32.mrb[0].mxu0
  %v1303 = vadd.f32 0.0, %v1302
  %v1304 = vpop.f32.mrb[0].mxu0
  %1305 = vdwg.mxu0
  %v1310 = vunpack.c.l.b16 %v1217
  %v1311 = vunpack.c.l.b16 %v1218
  %v1312 = vunpack.c.l.b16 %v1219
  %v1313 = vunpack.c.l.b16 %v1220
  %v1314 = vpack.c.b16 %v1311, %v1310
  %v1315 = vpack.c.b16 %v1313, %v1312
  %1318 = vmatprep.subr.bf16.mxu0 0
  %1319 = vmatpush1.bf16.msra.mxu0 %v1314
  %1320 = vmatprep.subr.bf16.mxu0 0
  %1321 = vmatpush1.bf16.msra.mxu0 %v1315
  %1322 = vmatprep.subr.bf16.mxu0 0
  %1323 = vmatpush1.bf16.msra.mxu0 0
  %1324 = vmatprep.subr.bf16.mxu0 0
  %1325 = vmatpush1.bf16.msra.mxu0 0
  %1326 = vmatprep.subr.bf16.mxu0 0
  %1327 = vmatpush1.bf16.msra.mxu0 0
  %1328 = vmatprep.subr.bf16.mxu0 0
  %1329 = vmatpush1.bf16.msra.mxu0 0
  %1330 = vmatprep.subr.bf16.mxu0 0
  %1331 = vmatpush1.bf16.msra.mxu0 0
  %1332 = vmatprep.subr.bf16.mxu0 0
  %1333 = vmatpush1.bf16.msra.mxu0 0
  %1334 = vmatprep.subr.bf16.mxu0 0
  %1335 = vmatpush1.bf16.msra.mxu0 0
  %1336 = vmatprep.subr.bf16.mxu0 0
  %1337 = vmatpush1.bf16.msra.mxu0 0
  %1338 = vmatprep.subr.bf16.mxu0 0
  %1339 = vmatpush1.bf16.msra.mxu0 0
  %1340 = vmatprep.subr.bf16.mxu0 0
  %1341 = vmatpush1.bf16.msra.mxu0 0
  %1342 = vmatprep.subr.bf16.mxu0 0
  %1343 = vmatpush1.bf16.msra.mxu0 0
  %1344 = vmatprep.subr.bf16.mxu0 0
  %1345 = vmatpush1.bf16.msra.mxu0 0
  %1346 = vmatprep.subr.bf16.mxu0 0
  %1347 = vmatpush1.bf16.msra.mxu0 0
  %1348 = vmatprep.subr.bf16.mxu0 0
  %1349 = vmatpush1.bf16.msra.mxu0 0
  %1350 = vmatprep.mubr.bf16.mxu0 0
  %1351 = vmatmul.mubr.bf16.gmra.mrb[0].mxu0 %v582
  %v1352 = vpop.f32.mrb[0].mxu0
  %v1353 = vadd.f32 0.0, %v1352
  %v1354 = vpop.f32.mrb[0].mxu0
  %v1355 = vpop.f32.mrb[0].mxu0
  %v1356 = vadd.f32 0.0, %v1355
  %v1357 = vpop.f32.mrb[0].mxu0
  %1358 = vmatprep.mubr.bf16.mxu0 0
  %1359 = vmatmul.mubr.bf16.gmra.mrb[0].mxu0 %v585
  %v1360 = vpop.f32.mrb[0].mxu0
  %v1361 = vadd.f32 0.0, %v1360
  %v1362 = vpop.f32.mrb[0].mxu0
  %v1363 = vpop.f32.mrb[0].mxu0
  %v1364 = vadd.f32 0.0, %v1363
  %v1365 = vpop.f32.mrb[0].mxu0
  %1366 = vmatprep.mubr.bf16.mxu0 0
  %1367 = vmatmul.mubr.bf16.gmra.mrb[0].mxu0 %v588
  %v1368 = vpop.f32.mrb[0].mxu0
  %v1369 = vadd.f32 0.0, %v1368
  %v1370 = vpop.f32.mrb[0].mxu0
  %v1371 = vpop.f32.mrb[0].mxu0
  %v1372 = vadd.f32 0.0, %v1371
  %v1373 = vpop.f32.mrb[0].mxu0
  %1374 = vmatprep.mubr.bf16.mxu0 0
  %1375 = vmatmul.mubr.bf16.gmra.mrb[0].mxu0 %v591
  %v1376 = vpop.f32.mrb[0].mxu0
  %v1377 = vadd.f32 0.0, %v1376
  %v1378 = vpop.f32.mrb[0].mxu0
  %v1379 = vpop.f32.mrb[0].mxu0
  %v1380 = vadd.f32 0.0, %v1379
  %v1381 = vpop.f32.mrb[0].mxu0
  %1382 = vdwg.mxu0
  %v1387 = vunpack.c.l.b16 %v1221
  %v1388 = vunpack.c.l.b16 %v1222
  %v1389 = vunpack.c.l.b16 %v1223
  %v1390 = vunpack.c.l.b16 %v1224
  %v1391 = vpack.c.b16 %v1388, %v1387
  %v1392 = vpack.c.b16 %v1390, %v1389
  %1395 = vmatprep.subr.bf16.mxu0 0
  %1396 = vmatpush1.bf16.msra.mxu0 %v1391
  %1397 = vmatprep.subr.bf16.mxu0 0
  %1398 = vmatpush1.bf16.msra.mxu0 %v1392
  %1399 = vmatprep.subr.bf16.mxu0 0
  %1400 = vmatpush1.bf16.msra.mxu0 0
  %1401 = vmatprep.subr.bf16.mxu0 0
  %1402 = vmatpush1.bf16.msra.mxu0 0
  %1403 = vmatprep.subr.bf16.mxu0 0
  %1404 = vmatpush1.bf16.msra.mxu0 0
  %1405 = vmatprep.subr.bf16.mxu0 0
  %1406 = vmatpush1.bf16.msra.mxu0 0
  %1407 = vmatprep.subr.bf16.mxu0 0
  %1408 = vmatpush1.bf16.msra.mxu0 0
  %1409 = vmatprep.subr.bf16.mxu0 0
  %1410 = vmatpush1.bf16.msra.mxu0 0
  %1411 = vmatprep.subr.bf16.mxu0 0
  %1412 = vmatpush1.bf16.msra.mxu0 0
  %1413 = vmatprep.subr.bf16.mxu0 0
  %1414 = vmatpush1.bf16.msra.mxu0 0
  %1415 = vmatprep.subr.bf16.mxu0 0
  %1416 = vmatpush1.bf16.msra.mxu0 0
  %1417 = vmatprep.subr.bf16.mxu0 0
  %1418 = vmatpush1.bf16.msra.mxu0 0
  %1419 = vmatprep.subr.bf16.mxu0 0
  %1420 = vmatpush1.bf16.msra.mxu0 0
  %1421 = vmatprep.subr.bf16.mxu0 0
  %1422 = vmatpush1.bf16.msra.mxu0 0
  %1423 = vmatprep.subr.bf16.mxu0 0
  %1424 = vmatpush1.bf16.msra.mxu0 0
  %1425 = vmatprep.subr.bf16.mxu0 0
  %1426 = vmatpush1.bf16.msra.mxu0 0
  %1427 = vmatprep.mubr.bf16.mxu0 0
  %1428 = vmatmul.mubr.bf16.gmra.mrb[0].mxu0 %v582
  %v1429 = vpop.f32.mrb[0].mxu0
  %v1430 = vadd.f32 0.0, %v1429
  %v1431 = vpop.f32.mrb[0].mxu0
  %v1432 = vpop.f32.mrb[0].mxu0
  %v1433 = vadd.f32 0.0, %v1432
  %v1434 = vpop.f32.mrb[0].mxu0
  %1435 = vmatprep.mubr.bf16.mxu0 0
  %1436 = vmatmul.mubr.bf16.gmra.mrb[0].mxu0 %v585
  %v1437 = vpop.f32.mrb[0].mxu0
  %v1438 = vadd.f32 0.0, %v1437
  %v1439 = vpop.f32.mrb[0].mxu0
  %v1440 = vpop.f32.mrb[0].mxu0
  %v1441 = vadd.f32 0.0, %v1440
  %v1442 = vpop.f32.mrb[0].mxu0
  %1443 = vmatprep.mubr.bf16.mxu0 0
  %1444 = vmatmul.mubr.bf16.gmra.mrb[0].mxu0 %v588
  %v1445 = vpop.f32.mrb[0].mxu0
  %v1446 = vadd.f32 0.0, %v1445
  %v1447 = vpop.f32.mrb[0].mxu0
  %v1448 = vpop.f32.mrb[0].mxu0
  %v1449 = vadd.f32 0.0, %v1448
  %v1450 = vpop.f32.mrb[0].mxu0
  %1451 = vmatprep.mubr.bf16.mxu0 0
  %1452 = vmatmul.mubr.bf16.gmra.mrb[0].mxu0 %v591
  %v1453 = vpop.f32.mrb[0].mxu0
  %v1454 = vadd.f32 0.0, %v1453
  %v1455 = vpop.f32.mrb[0].mxu0
  %v1456 = vpop.f32.mrb[0].mxu0
  %v1457 = vadd.f32 0.0, %v1456
  %v1458 = vpop.f32.mrb[0].mxu0
  %1459 = vdwg.mxu0
  %v1464 = vunpack.c.l.b16 %v1225
  %v1465 = vunpack.c.l.b16 %v1226
  %v1466 = vunpack.c.l.b16 %v1227
  %v1467 = vunpack.c.l.b16 %v1228
  %v1468 = vpack.c.b16 %v1465, %v1464
  %v1469 = vpack.c.b16 %v1467, %v1466
  %1472 = vmatprep.subr.bf16.mxu0 0
  %1473 = vmatpush1.bf16.msra.mxu0 %v1468
  %1474 = vmatprep.subr.bf16.mxu0 0
  %1475 = vmatpush1.bf16.msra.mxu0 %v1469
  %1476 = vmatprep.subr.bf16.mxu0 0
  %1477 = vmatpush1.bf16.msra.mxu0 0
  %1478 = vmatprep.subr.bf16.mxu0 0
  %1479 = vmatpush1.bf16.msra.mxu0 0
  %1480 = vmatprep.subr.bf16.mxu0 0
  %1481 = vmatpush1.bf16.msra.mxu0 0
  %1482 = vmatprep.subr.bf16.mxu0 0
  %1483 = vmatpush1.bf16.msra.mxu0 0
  %1484 = vmatprep.subr.bf16.mxu0 0
  %1485 = vmatpush1.bf16.msra.mxu0 0
  %1486 = vmatprep.subr.bf16.mxu0 0
  %1487 = vmatpush1.bf16.msra.mxu0 0
  %1488 = vmatprep.subr.bf16.mxu0 0
  %1489 = vmatpush1.bf16.msra.mxu0 0
  %1490 = vmatprep.subr.bf16.mxu0 0
  %1491 = vmatpush1.bf16.msra.mxu0 0
  %1492 = vmatprep.subr.bf16.mxu0 0
  %1493 = vmatpush1.bf16.msra.mxu0 0
  %1494 = vmatprep.subr.bf16.mxu0 0
  %1495 = vmatpush1.bf16.msra.mxu0 0
  %1496 = vmatprep.subr.bf16.mxu0 0
  %1497 = vmatpush1.bf16.msra.mxu0 0
  %1498 = vmatprep.subr.bf16.mxu0 0
  %1499 = vmatpush1.bf16.msra.mxu0 0
  %1500 = vmatprep.subr.bf16.mxu0 0
  %1501 = vmatpush1.bf16.msra.mxu0 0
  %1502 = vmatprep.subr.bf16.mxu0 0
  %1503 = vmatpush1.bf16.msra.mxu0 0
  %1504 = vmatprep.mubr.bf16.mxu0 0
  %1505 = vmatmul.mubr.bf16.gmra.mrb[0].mxu0 %v582
  %v1506 = vpop.f32.mrb[0].mxu0
  %v1507 = vadd.f32 0.0, %v1506
  %v1508 = vpop.f32.mrb[0].mxu0
  %v1509 = vpop.f32.mrb[0].mxu0
  %v1510 = vadd.f32 0.0, %v1509
  %v1511 = vpop.f32.mrb[0].mxu0
  %1512 = vmatprep.mubr.bf16.mxu0 0
  %1513 = vmatmul.mubr.bf16.gmra.mrb[0].mxu0 %v585
  %v1514 = vpop.f32.mrb[0].mxu0
  %v1515 = vadd.f32 0.0, %v1514
  %v1516 = vpop.f32.mrb[0].mxu0
  %v1517 = vpop.f32.mrb[0].mxu0
  %v1518 = vadd.f32 0.0, %v1517
  %v1519 = vpop.f32.mrb[0].mxu0
  %1520 = vmatprep.mubr.bf16.mxu0 0
  %1521 = vmatmul.mubr.bf16.gmra.mrb[0].mxu0 %v588
  %v1522 = vpop.f32.mrb[0].mxu0
  %v1523 = vadd.f32 0.0, %v1522
  %v1524 = vpop.f32.mrb[0].mxu0
  %v1525 = vpop.f32.mrb[0].mxu0
  %v1526 = vadd.f32 0.0, %v1525
  %v1527 = vpop.f32.mrb[0].mxu0
  %1528 = vmatprep.mubr.bf16.mxu0 0
  %1529 = vmatmul.mubr.bf16.gmra.mrb[0].mxu0 %v591
  %v1530 = vpop.f32.mrb[0].mxu0
  %v1531 = vadd.f32 0.0, %v1530
  %v1532 = vpop.f32.mrb[0].mxu0
  %v1533 = vpop.f32.mrb[0].mxu0
  %v1534 = vadd.f32 0.0, %v1533
  %v1535 = vpop.f32.mrb[0].mxu0
  %1536 = vdwg.mxu0
  %v1537 = vpack.c.bf16 %v631, %v628
  %v1538 = vpack.c.bf16 %v639, %v636
  %v1539 = vpack.c.bf16 %v647, %v644
  %v1540 = vpack.c.bf16 %v655, %v652
  %v1541 = vpack.c.bf16 %v708, %v705
  %v1542 = vpack.c.bf16 %v716, %v713
  %v1543 = vpack.c.bf16 %v724, %v721
  %v1544 = vpack.c.bf16 %v732, %v729
  %v1545 = vpack.c.bf16 %v785, %v782
  %v1546 = vpack.c.bf16 %v793, %v790
  %v1547 = vpack.c.bf16 %v801, %v798
  %v1548 = vpack.c.bf16 %v809, %v806
  %v1549 = vpack.c.bf16 %v862, %v859
  %v1550 = vpack.c.bf16 %v870, %v867
  %v1551 = vpack.c.bf16 %v878, %v875
  %v1552 = vpack.c.bf16 %v886, %v883
  %v1553 = vpack.c.bf16 %v955, %v952
  %v1554 = vpack.c.bf16 %v963, %v960
  %v1555 = vpack.c.bf16 %v971, %v968
  %v1556 = vpack.c.bf16 %v979, %v976
  %v1557 = vpack.c.bf16 %v1032, %v1029
  %v1558 = vpack.c.bf16 %v1040, %v1037
  %v1559 = vpack.c.bf16 %v1048, %v1045
  %v1560 = vpack.c.bf16 %v1056, %v1053
  %v1561 = vpack.c.bf16 %v1109, %v1106
  %v1562 = vpack.c.bf16 %v1117, %v1114
  %v1563 = vpack.c.bf16 %v1125, %v1122
  %v1564 = vpack.c.bf16 %v1133, %v1130
  %v1565 = vpack.c.bf16 %v1186, %v1183
  %v1566 = vpack.c.bf16 %v1194, %v1191
  %v1567 = vpack.c.bf16 %v1202, %v1199
  %v1568 = vpack.c.bf16 %v1210, %v1207
  %vm1569 = vcmask 64512
  %v1571 = vsel %vm1569, %v1537, 0
  %v1574 = vsel %vm1569, %v1538, 0
  %v1577 = vsel %vm1569, %v1539, 0
  %v1580 = vsel %vm1569, %v1540, 0
  %v1583 = vsel %vm1569, %v1553, 0
  %v1586 = vsel %vm1569, %v1554, 0
  %v1589 = vsel %vm1569, %v1555, 0
  %v1592 = vsel %vm1569, %v1556, 0
  %1594 = vmatprep.subr.bf16.mxu0 0
  %1595 = vmatpush1.bf16.xpose.msra.mxu0 %v1583
  %1596 = vmatprep.subr.bf16.mxu0 0
  %1597 = vmatpush1.bf16.xpose.msra.mxu0 %v1586
  %1598 = vmatprep.subr.bf16.mxu0 0
  %1599 = vmatpush1.bf16.xpose.msra.mxu0 %v1589
  %1600 = vmatprep.subr.bf16.mxu0 0
  %1601 = vmatpush1.bf16.xpose.msra.mxu0 %v1592
  %1602 = vmatprep.subr.bf16.mxu0 0
  %1603 = vmatpush1.bf16.xpose.msra.mxu0 0
  %1604 = vmatprep.subr.bf16.mxu0 0
  %1605 = vmatpush1.bf16.xpose.msra.mxu0 0
  %1606 = vmatprep.subr.bf16.mxu0 0
  %1607 = vmatpush1.bf16.xpose.msra.mxu0 0
  %1608 = vmatprep.subr.bf16.mxu0 0
  %1609 = vmatpush1.bf16.xpose.msra.mxu0 0
  %1610 = vmatprep.subr.bf16.mxu0 0
  %1611 = vmatpush1.bf16.xpose.msra.mxu0 0
  %1612 = vmatprep.subr.bf16.mxu0 0
  %1613 = vmatpush1.bf16.xpose.msra.mxu0 0
  %1614 = vmatprep.subr.bf16.mxu0 0
  %1615 = vmatpush1.bf16.xpose.msra.mxu0 0
  %1616 = vmatprep.subr.bf16.mxu0 0
  %1617 = vmatpush1.bf16.xpose.msra.mxu0 0
  %1618 = vmatprep.subr.bf16.mxu0 0
  %1619 = vmatpush1.bf16.xpose.msra.mxu0 0
  %1620 = vmatprep.subr.bf16.mxu0 0
  %1621 = vmatpush1.bf16.xpose.msra.mxu0 0
  %1622 = vmatprep.subr.bf16.mxu0 0
  %1623 = vmatpush1.bf16.xpose.msra.mxu0 0
  %1624 = vmatprep.subr.bf16.mxu0 0
  %1625 = vmatpush1.bf16.xpose.msra.mxu0 0
  %1626 = vmatprep.mubr.bf16.mxu0 0
  %1627 = vmatmul.mubr.bf16.gmra.mrb[0].mxu0 %v1571
  %v1628 = vpop.f32.mrb[0].mxu0
  %v1629 = vadd.f32 0.0, %v1628
  %v1630 = vpop.f32.mrb[0].mxu0
  %v1631 = vpop.f32.mrb[0].mxu0
  %v1632 = vadd.f32 0.0, %v1631
  %v1633 = vpop.f32.mrb[0].mxu0
  %1634 = vmatprep.mubr.bf16.mxu0 0
  %1635 = vmatmul.mubr.bf16.gmra.mrb[0].mxu0 %v1574
  %v1636 = vpop.f32.mrb[0].mxu0
  %v1637 = vadd.f32 0.0, %v1636
  %v1638 = vpop.f32.mrb[0].mxu0
  %v1639 = vpop.f32.mrb[0].mxu0
  %v1640 = vadd.f32 0.0, %v1639
  %v1641 = vpop.f32.mrb[0].mxu0
  %1642 = vmatprep.mubr.bf16.mxu0 0
  %1643 = vmatmul.mubr.bf16.gmra.mrb[0].mxu0 %v1577
  %v1644 = vpop.f32.mrb[0].mxu0
  %v1645 = vadd.f32 0.0, %v1644
  %v1646 = vpop.f32.mrb[0].mxu0
  %v1647 = vpop.f32.mrb[0].mxu0
  %v1648 = vadd.f32 0.0, %v1647
  %v1649 = vpop.f32.mrb[0].mxu0
  %1650 = vmatprep.mubr.bf16.mxu0 0
  %1651 = vmatmul.mubr.bf16.gmra.mrb[0].mxu0 %v1580
  %v1652 = vpop.f32.mrb[0].mxu0
  %v1653 = vadd.f32 0.0, %v1652
  %v1654 = vpop.f32.mrb[0].mxu0
  %v1655 = vpop.f32.mrb[0].mxu0
  %v1656 = vadd.f32 0.0, %v1655
  %v1657 = vpop.f32.mrb[0].mxu0
  %1658 = vdwg.mxu0
  %v1660 = vsel %vm1569, %v1541, 0
  %v1663 = vsel %vm1569, %v1542, 0
  %v1666 = vsel %vm1569, %v1543, 0
  %v1669 = vsel %vm1569, %v1544, 0
  %v1672 = vsel %vm1569, %v1557, 0
  %v1675 = vsel %vm1569, %v1558, 0
  %v1678 = vsel %vm1569, %v1559, 0
  %v1681 = vsel %vm1569, %v1560, 0
  %1683 = vmatprep.subr.bf16.mxu0 0
  %1684 = vmatpush1.bf16.xpose.msra.mxu0 %v1672
  %1685 = vmatprep.subr.bf16.mxu0 0
  %1686 = vmatpush1.bf16.xpose.msra.mxu0 %v1675
  %1687 = vmatprep.subr.bf16.mxu0 0
  %1688 = vmatpush1.bf16.xpose.msra.mxu0 %v1678
  %1689 = vmatprep.subr.bf16.mxu0 0
  %1690 = vmatpush1.bf16.xpose.msra.mxu0 %v1681
  %1691 = vmatprep.subr.bf16.mxu0 0
  %1692 = vmatpush1.bf16.xpose.msra.mxu0 0
  %1693 = vmatprep.subr.bf16.mxu0 0
  %1694 = vmatpush1.bf16.xpose.msra.mxu0 0
  %1695 = vmatprep.subr.bf16.mxu0 0
  %1696 = vmatpush1.bf16.xpose.msra.mxu0 0
  %1697 = vmatprep.subr.bf16.mxu0 0
  %1698 = vmatpush1.bf16.xpose.msra.mxu0 0
  %1699 = vmatprep.subr.bf16.mxu0 0
  %1700 = vmatpush1.bf16.xpose.msra.mxu0 0
  %1701 = vmatprep.subr.bf16.mxu0 0
  %1702 = vmatpush1.bf16.xpose.msra.mxu0 0
  %1703 = vmatprep.subr.bf16.mxu0 0
  %1704 = vmatpush1.bf16.xpose.msra.mxu0 0
  %1705 = vmatprep.subr.bf16.mxu0 0
  %1706 = vmatpush1.bf16.xpose.msra.mxu0 0
  %1707 = vmatprep.subr.bf16.mxu0 0
  %1708 = vmatpush1.bf16.xpose.msra.mxu0 0
  %1709 = vmatprep.subr.bf16.mxu0 0
  %1710 = vmatpush1.bf16.xpose.msra.mxu0 0
  %1711 = vmatprep.subr.bf16.mxu0 0
  %1712 = vmatpush1.bf16.xpose.msra.mxu0 0
  %1713 = vmatprep.subr.bf16.mxu0 0
  %1714 = vmatpush1.bf16.xpose.msra.mxu0 0
  %1715 = vmatprep.mubr.bf16.mxu0 0
  %1716 = vmatmul.mubr.bf16.gmra.mrb[0].mxu0 %v1660
  %v1717 = vpop.f32.mrb[0].mxu0
  %v1718 = vadd.f32 0.0, %v1717
  %v1719 = vpop.f32.mrb[0].mxu0
  %v1720 = vpop.f32.mrb[0].mxu0
  %v1721 = vadd.f32 0.0, %v1720
  %v1722 = vpop.f32.mrb[0].mxu0
  %1723 = vmatprep.mubr.bf16.mxu0 0
  %1724 = vmatmul.mubr.bf16.gmra.mrb[0].mxu0 %v1663
  %v1725 = vpop.f32.mrb[0].mxu0
  %v1726 = vadd.f32 0.0, %v1725
  %v1727 = vpop.f32.mrb[0].mxu0
  %v1728 = vpop.f32.mrb[0].mxu0
  %v1729 = vadd.f32 0.0, %v1728
  %v1730 = vpop.f32.mrb[0].mxu0
  %1731 = vmatprep.mubr.bf16.mxu0 0
  %1732 = vmatmul.mubr.bf16.gmra.mrb[0].mxu0 %v1666
  %v1733 = vpop.f32.mrb[0].mxu0
  %v1734 = vadd.f32 0.0, %v1733
  %v1735 = vpop.f32.mrb[0].mxu0
  %v1736 = vpop.f32.mrb[0].mxu0
  %v1737 = vadd.f32 0.0, %v1736
  %v1738 = vpop.f32.mrb[0].mxu0
  %1739 = vmatprep.mubr.bf16.mxu0 0
  %1740 = vmatmul.mubr.bf16.gmra.mrb[0].mxu0 %v1669
  %v1741 = vpop.f32.mrb[0].mxu0
  %v1742 = vadd.f32 0.0, %v1741
  %v1743 = vpop.f32.mrb[0].mxu0
  %v1744 = vpop.f32.mrb[0].mxu0
  %v1745 = vadd.f32 0.0, %v1744
  %v1746 = vpop.f32.mrb[0].mxu0
  %1747 = vdwg.mxu0
  %v1749 = vsel %vm1569, %v1545, 0
  %v1752 = vsel %vm1569, %v1546, 0
  %v1755 = vsel %vm1569, %v1547, 0
  %v1758 = vsel %vm1569, %v1548, 0
  %v1761 = vsel %vm1569, %v1561, 0
  %v1764 = vsel %vm1569, %v1562, 0
  %v1767 = vsel %vm1569, %v1563, 0
  %v1770 = vsel %vm1569, %v1564, 0
  %1772 = vmatprep.subr.bf16.mxu0 0
  %1773 = vmatpush1.bf16.xpose.msra.mxu0 %v1761
  %1774 = vmatprep.subr.bf16.mxu0 0
  %1775 = vmatpush1.bf16.xpose.msra.mxu0 %v1764
  %1776 = vmatprep.subr.bf16.mxu0 0
  %1777 = vmatpush1.bf16.xpose.msra.mxu0 %v1767
  %1778 = vmatprep.subr.bf16.mxu0 0
  %1779 = vmatpush1.bf16.xpose.msra.mxu0 %v1770
  %1780 = vmatprep.subr.bf16.mxu0 0
  %1781 = vmatpush1.bf16.xpose.msra.mxu0 0
  %1782 = vmatprep.subr.bf16.mxu0 0
  %1783 = vmatpush1.bf16.xpose.msra.mxu0 0
  %1784 = vmatprep.subr.bf16.mxu0 0
  %1785 = vmatpush1.bf16.xpose.msra.mxu0 0
  %1786 = vmatprep.subr.bf16.mxu0 0
  %1787 = vmatpush1.bf16.xpose.msra.mxu0 0
  %1788 = vmatprep.subr.bf16.mxu0 0
  %1789 = vmatpush1.bf16.xpose.msra.mxu0 0
  %1790 = vmatprep.subr.bf16.mxu0 0
  %1791 = vmatpush1.bf16.xpose.msra.mxu0 0
  %1792 = vmatprep.subr.bf16.mxu0 0
  %1793 = vmatpush1.bf16.xpose.msra.mxu0 0
  %1794 = vmatprep.subr.bf16.mxu0 0
  %1795 = vmatpush1.bf16.xpose.msra.mxu0 0
  %1796 = vmatprep.subr.bf16.mxu0 0
  %1797 = vmatpush1.bf16.xpose.msra.mxu0 0
  %1798 = vmatprep.subr.bf16.mxu0 0
  %1799 = vmatpush1.bf16.xpose.msra.mxu0 0
  %1800 = vmatprep.subr.bf16.mxu0 0
  %1801 = vmatpush1.bf16.xpose.msra.mxu0 0
  %1802 = vmatprep.subr.bf16.mxu0 0
  %1803 = vmatpush1.bf16.xpose.msra.mxu0 0
  %1804 = vmatprep.mubr.bf16.mxu0 0
  %1805 = vmatmul.mubr.bf16.gmra.mrb[0].mxu0 %v1749
  %v1806 = vpop.f32.mrb[0].mxu0
  %v1807 = vadd.f32 0.0, %v1806
  %v1808 = vpop.f32.mrb[0].mxu0
  %v1809 = vpop.f32.mrb[0].mxu0
  %v1810 = vadd.f32 0.0, %v1809
  %v1811 = vpop.f32.mrb[0].mxu0
  %1812 = vmatprep.mubr.bf16.mxu0 0
  %1813 = vmatmul.mubr.bf16.gmra.mrb[0].mxu0 %v1752
  %v1814 = vpop.f32.mrb[0].mxu0
  %v1815 = vadd.f32 0.0, %v1814
  %v1816 = vpop.f32.mrb[0].mxu0
  %v1817 = vpop.f32.mrb[0].mxu0
  %v1818 = vadd.f32 0.0, %v1817
  %v1819 = vpop.f32.mrb[0].mxu0
  %1820 = vmatprep.mubr.bf16.mxu0 0
  %1821 = vmatmul.mubr.bf16.gmra.mrb[0].mxu0 %v1755
  %v1822 = vpop.f32.mrb[0].mxu0
  %v1823 = vadd.f32 0.0, %v1822
  %v1824 = vpop.f32.mrb[0].mxu0
  %v1825 = vpop.f32.mrb[0].mxu0
  %v1826 = vadd.f32 0.0, %v1825
  %v1827 = vpop.f32.mrb[0].mxu0
  %1828 = vmatprep.mubr.bf16.mxu0 0
  %1829 = vmatmul.mubr.bf16.gmra.mrb[0].mxu0 %v1758
  %v1830 = vpop.f32.mrb[0].mxu0
  %v1831 = vadd.f32 0.0, %v1830
  %v1832 = vpop.f32.mrb[0].mxu0
  %v1833 = vpop.f32.mrb[0].mxu0
  %v1834 = vadd.f32 0.0, %v1833
  %v1835 = vpop.f32.mrb[0].mxu0
  %1836 = vdwg.mxu0
  %v1838 = vsel %vm1569, %v1549, 0
  %v1841 = vsel %vm1569, %v1550, 0
  %v1844 = vsel %vm1569, %v1551, 0
  %v1847 = vsel %vm1569, %v1552, 0
  %v1850 = vsel %vm1569, %v1565, 0
  %v1853 = vsel %vm1569, %v1566, 0
  %v1856 = vsel %vm1569, %v1567, 0
  %v1859 = vsel %vm1569, %v1568, 0
  %1861 = vmatprep.subr.bf16.mxu0 0
  %1862 = vmatpush1.bf16.xpose.msra.mxu0 %v1850
  %1863 = vmatprep.subr.bf16.mxu0 0
  %1864 = vmatpush1.bf16.xpose.msra.mxu0 %v1853
  %1865 = vmatprep.subr.bf16.mxu0 0
  %1866 = vmatpush1.bf16.xpose.msra.mxu0 %v1856
  %1867 = vmatprep.subr.bf16.mxu0 0
  %1868 = vmatpush1.bf16.xpose.msra.mxu0 %v1859
  %1869 = vmatprep.subr.bf16.mxu0 0
  %1870 = vmatpush1.bf16.xpose.msra.mxu0 0
  %1871 = vmatprep.subr.bf16.mxu0 0
  %1872 = vmatpush1.bf16.xpose.msra.mxu0 0
  %1873 = vmatprep.subr.bf16.mxu0 0
  %1874 = vmatpush1.bf16.xpose.msra.mxu0 0
  %1875 = vmatprep.subr.bf16.mxu0 0
  %1876 = vmatpush1.bf16.xpose.msra.mxu0 0
  %1877 = vmatprep.subr.bf16.mxu0 0
  %1878 = vmatpush1.bf16.xpose.msra.mxu0 0
  %1879 = vmatprep.subr.bf16.mxu0 0
  %1880 = vmatpush1.bf16.xpose.msra.mxu0 0
  %1881 = vmatprep.subr.bf16.mxu0 0
  %1882 = vmatpush1.bf16.xpose.msra.mxu0 0
  %1883 = vmatprep.subr.bf16.mxu0 0
  %1884 = vmatpush1.bf16.xpose.msra.mxu0 0
  %1885 = vmatprep.subr.bf16.mxu0 0
  %1886 = vmatpush1.bf16.xpose.msra.mxu0 0
  %1887 = vmatprep.subr.bf16.mxu0 0
  %1888 = vmatpush1.bf16.xpose.msra.mxu0 0
  %1889 = vmatprep.subr.bf16.mxu0 0
  %1890 = vmatpush1.bf16.xpose.msra.mxu0 0
  %1891 = vmatprep.subr.bf16.mxu0 0
  %1892 = vmatpush1.bf16.xpose.msra.mxu0 0
  %1893 = vmatprep.mubr.bf16.mxu0 0
  %1894 = vmatmul.mubr.bf16.gmra.mrb[0].mxu0 %v1838
  %v1895 = vpop.f32.mrb[0].mxu0
  %v1896 = vadd.f32 0.0, %v1895
  %v1897 = vpop.f32.mrb[0].mxu0
  %v1898 = vpop.f32.mrb[0].mxu0
  %v1899 = vadd.f32 0.0, %v1898
  %v1900 = vpop.f32.mrb[0].mxu0
  %1901 = vmatprep.mubr.bf16.mxu0 0
  %1902 = vmatmul.mubr.bf16.gmra.mrb[0].mxu0 %v1841
  %v1903 = vpop.f32.mrb[0].mxu0
  %v1904 = vadd.f32 0.0, %v1903
  %v1905 = vpop.f32.mrb[0].mxu0
  %v1906 = vpop.f32.mrb[0].mxu0
  %v1907 = vadd.f32 0.0, %v1906
  %v1908 = vpop.f32.mrb[0].mxu0
  %1909 = vmatprep.mubr.bf16.mxu0 0
  %1910 = vmatmul.mubr.bf16.gmra.mrb[0].mxu0 %v1844
  %v1911 = vpop.f32.mrb[0].mxu0
  %v1912 = vadd.f32 0.0, %v1911
  %v1913 = vpop.f32.mrb[0].mxu0
  %v1914 = vpop.f32.mrb[0].mxu0
  %v1915 = vadd.f32 0.0, %v1914
  %v1916 = vpop.f32.mrb[0].mxu0
  %1917 = vmatprep.mubr.bf16.mxu0 0
  %1918 = vmatmul.mubr.bf16.gmra.mrb[0].mxu0 %v1847
  %v1919 = vpop.f32.mrb[0].mxu0
  %v1920 = vadd.f32 0.0, %v1919
  %v1921 = vpop.f32.mrb[0].mxu0
  %v1922 = vpop.f32.mrb[0].mxu0
  %v1923 = vadd.f32 0.0, %v1922
  %v1924 = vpop.f32.mrb[0].mxu0
  %1925 = vdwg.mxu0
  %v1926 = vsel %vm209, %v1629, -inf
  %1927 = vmax.xlane.f32.xlu0 %v1926
  %v1928 = vpop.xlane.xlu0 %1927
  %v1929 = vsel %vm209, %v1632, -inf
  %1930 = vmax.xlane.f32.xlu0 %v1929
  %v1931 = vpop.xlane.xlu0 %1930
  %v1932 = vsel %vm209, %v1637, -inf
  %1933 = vmax.xlane.f32.xlu0 %v1932
  %v1934 = vpop.xlane.xlu0 %1933
  %v1935 = vsel %vm209, %v1640, -inf
  %1936 = vmax.xlane.f32.xlu0 %v1935
  %v1937 = vpop.xlane.xlu0 %1936
  %v1938 = vsel %vm209, %v1645, -inf
  %1939 = vmax.xlane.f32.xlu0 %v1938
  %v1940 = vpop.xlane.xlu0 %1939
  %v1941 = vsel %vm209, %v1648, -inf
  %1942 = vmax.xlane.f32.xlu0 %v1941
  %v1943 = vpop.xlane.xlu0 %1942
  %v1944 = vsel %vm209, %v1653, -inf
  %1945 = vmax.xlane.f32.xlu0 %v1944
  %v1946 = vpop.xlane.xlu0 %1945
  %v1947 = vsel %vm209, %v1656, -inf
  %1948 = vmax.xlane.f32.xlu0 %v1947
  %v1949 = vpop.xlane.xlu0 %1948
  %v1950 = vsel %vm209, %v1718, -inf
  %1951 = vmax.xlane.f32.xlu0 %v1950
  %v1952 = vpop.xlane.xlu0 %1951
  %v1953 = vsel %vm209, %v1721, -inf
  %1954 = vmax.xlane.f32.xlu0 %v1953
  %v1955 = vpop.xlane.xlu0 %1954
  %v1956 = vsel %vm209, %v1726, -inf
  %1957 = vmax.xlane.f32.xlu0 %v1956
  %v1958 = vpop.xlane.xlu0 %1957
  %v1959 = vsel %vm209, %v1729, -inf
  %1960 = vmax.xlane.f32.xlu0 %v1959
  %v1961 = vpop.xlane.xlu0 %1960
  %v1962 = vsel %vm209, %v1734, -inf
  %1963 = vmax.xlane.f32.xlu0 %v1962
  %v1964 = vpop.xlane.xlu0 %1963
  %v1965 = vsel %vm209, %v1737, -inf
  %1966 = vmax.xlane.f32.xlu0 %v1965
  %v1967 = vpop.xlane.xlu0 %1966
  %v1968 = vsel %vm209, %v1742, -inf
  %1969 = vmax.xlane.f32.xlu0 %v1968
  %v1970 = vpop.xlane.xlu0 %1969
  %v1971 = vsel %vm209, %v1745, -inf
  %1972 = vmax.xlane.f32.xlu0 %v1971
  %v1973 = vpop.xlane.xlu0 %1972
  %v1974 = vsel %vm209, %v1807, -inf
  %1975 = vmax.xlane.f32.xlu0 %v1974
  %v1976 = vpop.xlane.xlu0 %1975
  %v1977 = vsel %vm209, %v1810, -inf
  %1978 = vmax.xlane.f32.xlu0 %v1977
  %v1979 = vpop.xlane.xlu0 %1978
  %v1980 = vsel %vm209, %v1815, -inf
  %1981 = vmax.xlane.f32.xlu0 %v1980
  %v1982 = vpop.xlane.xlu0 %1981
  %v1983 = vsel %vm209, %v1818, -inf
  %1984 = vmax.xlane.f32.xlu0 %v1983
  %v1985 = vpop.xlane.xlu0 %1984
  %v1986 = vsel %vm209, %v1823, -inf
  %1987 = vmax.xlane.f32.xlu0 %v1986
  %v1988 = vpop.xlane.xlu0 %1987
  %v1989 = vsel %vm209, %v1826, -inf
  %1990 = vmax.xlane.f32.xlu0 %v1989
  %v1991 = vpop.xlane.xlu0 %1990
  %v1992 = vsel %vm209, %v1831, -inf
  %1993 = vmax.xlane.f32.xlu0 %v1992
  %v1994 = vpop.xlane.xlu0 %1993
  %v1995 = vsel %vm209, %v1834, -inf
  %1996 = vmax.xlane.f32.xlu0 %v1995
  %v1997 = vpop.xlane.xlu0 %1996
  %v1998 = vsel %vm209, %v1896, -inf
  %1999 = vmax.xlane.f32.xlu0 %v1998
  %v2000 = vpop.xlane.xlu0 %1999
  %v2001 = vsel %vm209, %v1899, -inf
  %2002 = vmax.xlane.f32.xlu0 %v2001
  %v2003 = vpop.xlane.xlu0 %2002
  %v2004 = vsel %vm209, %v1904, -inf
  %2005 = vmax.xlane.f32.xlu0 %v2004
  %v2006 = vpop.xlane.xlu0 %2005
  %v2007 = vsel %vm209, %v1907, -inf
  %2008 = vmax.xlane.f32.xlu0 %v2007
  %v2009 = vpop.xlane.xlu0 %2008
  %v2010 = vsel %vm209, %v1912, -inf
  %2011 = vmax.xlane.f32.xlu0 %v2010
  %v2012 = vpop.xlane.xlu0 %2011
  %v2013 = vsel %vm209, %v1915, -inf
  %2014 = vmax.xlane.f32.xlu0 %v2013
  %v2015 = vpop.xlane.xlu0 %2014
  %v2016 = vsel %vm209, %v1920, -inf
  %2017 = vmax.xlane.f32.xlu0 %v2016
  %v2018 = vpop.xlane.xlu0 %2017
  %v2019 = vsel %vm209, %v1923, -inf
  %2020 = vmax.xlane.f32.xlu0 %v2019
  %v2021 = vpop.xlane.xlu0 %2020
  %v2022 = vsub.f32 %v1629, %v1928
  %v2023 = vsub.f32 %v1632, %v1931
  %v2024 = vsub.f32 %v1637, %v1934
  %v2025 = vsub.f32 %v1640, %v1937
  %v2026 = vsub.f32 %v1645, %v1940
  %v2027 = vsub.f32 %v1648, %v1943
  %v2028 = vsub.f32 %v1653, %v1946
  %v2029 = vsub.f32 %v1656, %v1949
  %v2030 = vsub.f32 %v1718, %v1952
  %v2031 = vsub.f32 %v1721, %v1955
  %v2032 = vsub.f32 %v1726, %v1958
  %v2033 = vsub.f32 %v1729, %v1961
  %v2034 = vsub.f32 %v1734, %v1964
  %v2035 = vsub.f32 %v1737, %v1967
  %v2036 = vsub.f32 %v1742, %v1970
  %v2037 = vsub.f32 %v1745, %v1973
  %v2038 = vsub.f32 %v1807, %v1976
  %v2039 = vsub.f32 %v1810, %v1979
  %v2040 = vsub.f32 %v1815, %v1982
  %v2041 = vsub.f32 %v1818, %v1985
  %v2042 = vsub.f32 %v1823, %v1988
  %v2043 = vsub.f32 %v1826, %v1991
  %v2044 = vsub.f32 %v1831, %v1994
  %v2045 = vsub.f32 %v1834, %v1997
  %v2046 = vsub.f32 %v1896, %v2000
  %v2047 = vsub.f32 %v1899, %v2003
  %v2048 = vsub.f32 %v1904, %v2006
  %v2049 = vsub.f32 %v1907, %v2009
  %v2050 = vsub.f32 %v1912, %v2012
  %v2051 = vsub.f32 %v1915, %v2015
  %v2052 = vsub.f32 %v1920, %v2018
  %v2053 = vsub.f32 %v1923, %v2021
  %v2054 = vmul.f32 %v2022, 1.442695
  %v2055 = vpow.pop %v2054
  %v2056 = vmul.f32 %v2023, 1.442695
  %v2057 = vpow.pop %v2056
  %v2058 = vmul.f32 %v2024, 1.442695
  %v2059 = vpow.pop %v2058
  %v2060 = vmul.f32 %v2025, 1.442695
  %v2061 = vpow.pop %v2060
  %v2062 = vmul.f32 %v2026, 1.442695
  %v2063 = vpow.pop %v2062
  %v2064 = vmul.f32 %v2027, 1.442695
  %v2065 = vpow.pop %v2064
  %v2066 = vmul.f32 %v2028, 1.442695
  %v2067 = vpow.pop %v2066
  %v2068 = vmul.f32 %v2029, 1.442695
  %v2069 = vpow.pop %v2068
  %v2070 = vmul.f32 %v2030, 1.442695
  %v2071 = vpow.pop %v2070
  %v2072 = vmul.f32 %v2031, 1.442695
  %v2073 = vpow.pop %v2072
  %v2074 = vmul.f32 %v2032, 1.442695
  %v2075 = vpow.pop %v2074
  %v2076 = vmul.f32 %v2033, 1.442695
  %v2077 = vpow.pop %v2076
  %v2078 = vmul.f32 %v2034, 1.442695
  %v2079 = vpow.pop %v2078
  %v2080 = vmul.f32 %v2035, 1.442695
  %v2081 = vpow.pop %v2080
  %v2082 = vmul.f32 %v2036, 1.442695
  %v2083 = vpow.pop %v2082
  %v2084 = vmul.f32 %v2037, 1.442695
  %v2085 = vpow.pop %v2084
  %v2086 = vmul.f32 %v2038, 1.442695
  %v2087 = vpow.pop %v2086
  %v2088 = vmul.f32 %v2039, 1.442695
  %v2089 = vpow.pop %v2088
  %v2090 = vmul.f32 %v2040, 1.442695
  %v2091 = vpow.pop %v2090
  %v2092 = vmul.f32 %v2041, 1.442695
  %v2093 = vpow.pop %v2092
  %v2094 = vmul.f32 %v2042, 1.442695
  %v2095 = vpow.pop %v2094
  %v2096 = vmul.f32 %v2043, 1.442695
  %v2097 = vpow.pop %v2096
  %v2098 = vmul.f32 %v2044, 1.442695
  %v2099 = vpow.pop %v2098
  %v2100 = vmul.f32 %v2045, 1.442695
  %v2101 = vpow.pop %v2100
  %v2102 = vmul.f32 %v2046, 1.442695
  %v2103 = vpow.pop %v2102
  %v2104 = vmul.f32 %v2047, 1.442695
  %v2105 = vpow.pop %v2104
  %v2106 = vmul.f32 %v2048, 1.442695
  %v2107 = vpow.pop %v2106
  %v2108 = vmul.f32 %v2049, 1.442695
  %v2109 = vpow.pop %v2108
  %v2110 = vmul.f32 %v2050, 1.442695
  %v2111 = vpow.pop %v2110
  %v2112 = vmul.f32 %v2051, 1.442695
  %v2113 = vpow.pop %v2112
  %v2114 = vmul.f32 %v2052, 1.442695
  %v2115 = vpow.pop %v2114
  %v2116 = vmul.f32 %v2053, 1.442695
  %v2117 = vpow.pop %v2116
  %v2118 = vsel %vm209, %v2055, 0.0
  %2119 = vadd.xlane.f32.xlu0 %v2118
  %v2120 = vpop.xlane.xlu0 %2119
  %v2121 = vsel %vm209, %v2057, 0.0
  %2122 = vadd.xlane.f32.xlu0 %v2121
  %v2123 = vpop.xlane.xlu0 %2122
  %v2124 = vsel %vm209, %v2059, 0.0
  %2125 = vadd.xlane.f32.xlu0 %v2124
  %v2126 = vpop.xlane.xlu0 %2125
  %v2127 = vsel %vm209, %v2061, 0.0
  %2128 = vadd.xlane.f32.xlu0 %v2127
  %v2129 = vpop.xlane.xlu0 %2128
  %v2130 = vsel %vm209, %v2063, 0.0
  %2131 = vadd.xlane.f32.xlu0 %v2130
  %v2132 = vpop.xlane.xlu0 %2131
  %v2133 = vsel %vm209, %v2065, 0.0
  %2134 = vadd.xlane.f32.xlu0 %v2133
  %v2135 = vpop.xlane.xlu0 %2134
  %v2136 = vsel %vm209, %v2067, 0.0
  %2137 = vadd.xlane.f32.xlu0 %v2136
  %v2138 = vpop.xlane.xlu0 %2137
  %v2139 = vsel %vm209, %v2069, 0.0
  %2140 = vadd.xlane.f32.xlu0 %v2139
  %v2141 = vpop.xlane.xlu0 %2140
  %v2142 = vsel %vm209, %v2071, 0.0
  %2143 = vadd.xlane.f32.xlu0 %v2142
  %v2144 = vpop.xlane.xlu0 %2143
  %v2145 = vsel %vm209, %v2073, 0.0
  %2146 = vadd.xlane.f32.xlu0 %v2145
  %v2147 = vpop.xlane.xlu0 %2146
  %v2148 = vsel %vm209, %v2075, 0.0
  %2149 = vadd.xlane.f32.xlu0 %v2148
  %v2150 = vpop.xlane.xlu0 %2149
  %v2151 = vsel %vm209, %v2077, 0.0
  %2152 = vadd.xlane.f32.xlu0 %v2151
  %v2153 = vpop.xlane.xlu0 %2152
  %v2154 = vsel %vm209, %v2079, 0.0
  %2155 = vadd.xlane.f32.xlu0 %v2154
  %v2156 = vpop.xlane.xlu0 %2155
  %v2157 = vsel %vm209, %v2081, 0.0
  %2158 = vadd.xlane.f32.xlu0 %v2157
  %v2159 = vpop.xlane.xlu0 %2158
  %v2160 = vsel %vm209, %v2083, 0.0
  %2161 = vadd.xlane.f32.xlu0 %v2160
  %v2162 = vpop.xlane.xlu0 %2161
  %v2163 = vsel %vm209, %v2085, 0.0
  %2164 = vadd.xlane.f32.xlu0 %v2163
  %v2165 = vpop.xlane.xlu0 %2164
  %v2166 = vsel %vm209, %v2087, 0.0
  %2167 = vadd.xlane.f32.xlu0 %v2166
  %v2168 = vpop.xlane.xlu0 %2167
  %v2169 = vsel %vm209, %v2089, 0.0
  %2170 = vadd.xlane.f32.xlu0 %v2169
  %v2171 = vpop.xlane.xlu0 %2170
  %v2172 = vsel %vm209, %v2091, 0.0
  %2173 = vadd.xlane.f32.xlu0 %v2172
  %v2174 = vpop.xlane.xlu0 %2173
  %v2175 = vsel %vm209, %v2093, 0.0
  %2176 = vadd.xlane.f32.xlu0 %v2175
  %v2177 = vpop.xlane.xlu0 %2176
  %v2178 = vsel %vm209, %v2095, 0.0
  %2179 = vadd.xlane.f32.xlu0 %v2178
  %v2180 = vpop.xlane.xlu0 %2179
  %v2181 = vsel %vm209, %v2097, 0.0
  %2182 = vadd.xlane.f32.xlu0 %v2181
  %v2183 = vpop.xlane.xlu0 %2182
  %v2184 = vsel %vm209, %v2099, 0.0
  %2185 = vadd.xlane.f32.xlu0 %v2184
  %v2186 = vpop.xlane.xlu0 %2185
  %v2187 = vsel %vm209, %v2101, 0.0
  %2188 = vadd.xlane.f32.xlu0 %v2187
  %v2189 = vpop.xlane.xlu0 %2188
  %v2190 = vsel %vm209, %v2103, 0.0
  %2191 = vadd.xlane.f32.xlu0 %v2190
  %v2192 = vpop.xlane.xlu0 %2191
  %v2193 = vsel %vm209, %v2105, 0.0
  %2194 = vadd.xlane.f32.xlu0 %v2193
  %v2195 = vpop.xlane.xlu0 %2194
  %v2196 = vsel %vm209, %v2107, 0.0
  %2197 = vadd.xlane.f32.xlu0 %v2196
  %v2198 = vpop.xlane.xlu0 %2197
  %v2199 = vsel %vm209, %v2109, 0.0
  %2200 = vadd.xlane.f32.xlu0 %v2199
  %v2201 = vpop.xlane.xlu0 %2200
  %v2202 = vsel %vm209, %v2111, 0.0
  %2203 = vadd.xlane.f32.xlu0 %v2202
  %v2204 = vpop.xlane.xlu0 %2203
  %v2205 = vsel %vm209, %v2113, 0.0
  %2206 = vadd.xlane.f32.xlu0 %v2205
  %v2207 = vpop.xlane.xlu0 %2206
  %v2208 = vsel %vm209, %v2115, 0.0
  %2209 = vadd.xlane.f32.xlu0 %v2208
  %v2210 = vpop.xlane.xlu0 %2209
  %v2211 = vsel %vm209, %v2117, 0.0
  %2212 = vadd.xlane.f32.xlu0 %v2211
  %v2213 = vpop.xlane.xlu0 %2212
  %v2214 = vrcp.pop %v2120
  %v2215 = vrcp.pop %v2123
  %v2216 = vrcp.pop %v2126
  %v2217 = vrcp.pop %v2129
  %v2218 = vrcp.pop %v2132
  %v2219 = vrcp.pop %v2135
  %v2220 = vrcp.pop %v2138
  %v2221 = vrcp.pop %v2141
  %v2222 = vrcp.pop %v2144
  %v2223 = vrcp.pop %v2147
  %v2224 = vrcp.pop %v2150
  %v2225 = vrcp.pop %v2153
  %v2226 = vrcp.pop %v2156
  %v2227 = vrcp.pop %v2159
  %v2228 = vrcp.pop %v2162
  %v2229 = vrcp.pop %v2165
  %v2230 = vrcp.pop %v2168
  %v2231 = vrcp.pop %v2171
  %v2232 = vrcp.pop %v2174
  %v2233 = vrcp.pop %v2177
  %v2234 = vrcp.pop %v2180
  %v2235 = vrcp.pop %v2183
  %v2236 = vrcp.pop %v2186
  %v2237 = vrcp.pop %v2189
  %v2238 = vrcp.pop %v2192
  %v2239 = vrcp.pop %v2195
  %v2240 = vrcp.pop %v2198
  %v2241 = vrcp.pop %v2201
  %v2242 = vrcp.pop %v2204
  %v2243 = vrcp.pop %v2207
  %v2244 = vrcp.pop %v2210
  %v2245 = vrcp.pop %v2213
  %v2246 = vmul.f32 %v2055, %v2214
  %v2247 = vmul.f32 %v2057, %v2215
  %v2248 = vmul.f32 %v2059, %v2216
  %v2249 = vmul.f32 %v2061, %v2217
  %v2250 = vmul.f32 %v2063, %v2218
  %v2251 = vmul.f32 %v2065, %v2219
  %v2252 = vmul.f32 %v2067, %v2220
  %v2253 = vmul.f32 %v2069, %v2221
  %v2254 = vmul.f32 %v2071, %v2222
  %v2255 = vmul.f32 %v2073, %v2223
  %v2256 = vmul.f32 %v2075, %v2224
  %v2257 = vmul.f32 %v2077, %v2225
  %v2258 = vmul.f32 %v2079, %v2226
  %v2259 = vmul.f32 %v2081, %v2227
  %v2260 = vmul.f32 %v2083, %v2228
  %v2261 = vmul.f32 %v2085, %v2229
  %v2262 = vmul.f32 %v2087, %v2230
  %v2263 = vmul.f32 %v2089, %v2231
  %v2264 = vmul.f32 %v2091, %v2232
  %v2265 = vmul.f32 %v2093, %v2233
  %v2266 = vmul.f32 %v2095, %v2234
  %v2267 = vmul.f32 %v2097, %v2235
  %v2268 = vmul.f32 %v2099, %v2236
  %v2269 = vmul.f32 %v2101, %v2237
  %v2270 = vmul.f32 %v2103, %v2238
  %v2271 = vmul.f32 %v2105, %v2239
  %v2272 = vmul.f32 %v2107, %v2240
  %v2273 = vmul.f32 %v2109, %v2241
  %v2274 = vmul.f32 %v2111, %v2242
  %v2275 = vmul.f32 %v2113, %v2243
  %v2276 = vmul.f32 %v2115, %v2244
  %v2277 = vmul.f32 %v2117, %v2245
  %v2278 = vpack.c.bf16 %v2247, %v2246
  %v2279 = vpack.c.bf16 %v2249, %v2248
  %v2280 = vpack.c.bf16 %v2251, %v2250
  %v2281 = vpack.c.bf16 %v2253, %v2252
  %v2282 = vpack.c.bf16 %v2255, %v2254
  %v2283 = vpack.c.bf16 %v2257, %v2256
  %v2284 = vpack.c.bf16 %v2259, %v2258
  %v2285 = vpack.c.bf16 %v2261, %v2260
  %v2286 = vpack.c.bf16 %v2263, %v2262
  %v2287 = vpack.c.bf16 %v2265, %v2264
  %v2288 = vpack.c.bf16 %v2267, %v2266
  %v2289 = vpack.c.bf16 %v2269, %v2268
  %v2290 = vpack.c.bf16 %v2271, %v2270
  %v2291 = vpack.c.bf16 %v2273, %v2272
  %v2292 = vpack.c.bf16 %v2275, %v2274
  %v2293 = vpack.c.bf16 %v2277, %v2276
  %v2294 = vpack.c.bf16 %v1279, %v1276
  %v2295 = vpack.c.bf16 %v1287, %v1284
  %v2296 = vpack.c.bf16 %v1295, %v1292
  %v2297 = vpack.c.bf16 %v1303, %v1300
  %v2298 = vpack.c.bf16 %v1356, %v1353
  %v2299 = vpack.c.bf16 %v1364, %v1361
  %v2300 = vpack.c.bf16 %v1372, %v1369
  %v2301 = vpack.c.bf16 %v1380, %v1377
  %v2302 = vpack.c.bf16 %v1433, %v1430
  %v2303 = vpack.c.bf16 %v1441, %v1438
  %v2304 = vpack.c.bf16 %v1449, %v1446
  %v2305 = vpack.c.bf16 %v1457, %v1454
  %v2306 = vpack.c.bf16 %v1510, %v1507
  %v2307 = vpack.c.bf16 %v1518, %v1515
  %v2308 = vpack.c.bf16 %v1526, %v1523
  %v2309 = vpack.c.bf16 %v1534, %v1531
  %v2311 = vsel %vm209, %v2278, 0
  %v2314 = vsel %vm209, %v2279, 0
  %v2317 = vsel %vm209, %v2280, 0
  %v2320 = vsel %vm209, %v2281, 0
  %2322 = vmatprep.subr.bf16.mxu0 0
  %2323 = vmatpush1.bf16.msra.mxu0 %v2294
  %2324 = vmatprep.subr.bf16.mxu0 0
  %2325 = vmatpush1.bf16.msra.mxu0 %v2295
  %2326 = vmatprep.subr.bf16.mxu0 0
  %2327 = vmatpush1.bf16.msra.mxu0 %v2296
  %2328 = vmatprep.subr.bf16.mxu0 0
  %2329 = vmatpush1.bf16.msra.mxu0 %v2297
  %2330 = vmatprep.subr.bf16.mxu0 0
  %2331 = vmatpush1.bf16.msra.mxu0 0
  %2332 = vmatprep.subr.bf16.mxu0 0
  %2333 = vmatpush1.bf16.msra.mxu0 0
  %2334 = vmatprep.subr.bf16.mxu0 0
  %2335 = vmatpush1.bf16.msra.mxu0 0
  %2336 = vmatprep.subr.bf16.mxu0 0
  %2337 = vmatpush1.bf16.msra.mxu0 0
  %2338 = vmatprep.subr.bf16.mxu0 0
  %2339 = vmatpush1.bf16.msra.mxu0 0
  %2340 = vmatprep.subr.bf16.mxu0 0
  %2341 = vmatpush1.bf16.msra.mxu0 0
  %2342 = vmatprep.subr.bf16.mxu0 0
  %2343 = vmatpush1.bf16.msra.mxu0 0
  %2344 = vmatprep.subr.bf16.mxu0 0
  %2345 = vmatpush1.bf16.msra.mxu0 0
  %2346 = vmatprep.subr.bf16.mxu0 0
  %2347 = vmatpush1.bf16.msra.mxu0 0
  %2348 = vmatprep.subr.bf16.mxu0 0
  %2349 = vmatpush1.bf16.msra.mxu0 0
  %2350 = vmatprep.subr.bf16.mxu0 0
  %2351 = vmatpush1.bf16.msra.mxu0 0
  %2352 = vmatprep.subr.bf16.mxu0 0
  %2353 = vmatpush1.bf16.msra.mxu0 0
  %2354 = vmatprep.mubr.bf16.mxu0 0
  %2355 = vmatmul.mubr.bf16.gmra.mrb[0].mxu0 %v2311
  %v2356 = vpop.f32.mrb[0].mxu0
  %v2357 = vadd.f32 0.0, %v2356
  %v2358 = vpop.f32.mrb[0].mxu0
  %v2359 = vpop.f32.mrb[0].mxu0
  %v2360 = vadd.f32 0.0, %v2359
  %v2361 = vpop.f32.mrb[0].mxu0
  %2362 = vmatprep.mubr.bf16.mxu0 0
  %2363 = vmatmul.mubr.bf16.gmra.mrb[0].mxu0 %v2314
  %v2364 = vpop.f32.mrb[0].mxu0
  %v2365 = vadd.f32 0.0, %v2364
  %v2366 = vpop.f32.mrb[0].mxu0
  %v2367 = vpop.f32.mrb[0].mxu0
  %v2368 = vadd.f32 0.0, %v2367
  %v2369 = vpop.f32.mrb[0].mxu0
  %2370 = vmatprep.mubr.bf16.mxu0 0
  %2371 = vmatmul.mubr.bf16.gmra.mrb[0].mxu0 %v2317
  %v2372 = vpop.f32.mrb[0].mxu0
  %v2373 = vadd.f32 0.0, %v2372
  %v2374 = vpop.f32.mrb[0].mxu0
  %v2375 = vpop.f32.mrb[0].mxu0
  %v2376 = vadd.f32 0.0, %v2375
  %v2377 = vpop.f32.mrb[0].mxu0
  %2378 = vmatprep.mubr.bf16.mxu0 0
  %2379 = vmatmul.mubr.bf16.gmra.mrb[0].mxu0 %v2320
  %v2380 = vpop.f32.mrb[0].mxu0
  %v2381 = vadd.f32 0.0, %v2380
  %v2382 = vpop.f32.mrb[0].mxu0
  %v2383 = vpop.f32.mrb[0].mxu0
  %v2384 = vadd.f32 0.0, %v2383
  %v2385 = vpop.f32.mrb[0].mxu0
  %2386 = vdwg.mxu0
  %v2388 = vsel %vm209, %v2282, 0
  %v2391 = vsel %vm209, %v2283, 0
  %v2394 = vsel %vm209, %v2284, 0
  %v2397 = vsel %vm209, %v2285, 0
  %2399 = vmatprep.subr.bf16.mxu0 0
  %2400 = vmatpush1.bf16.msra.mxu0 %v2298
  %2401 = vmatprep.subr.bf16.mxu0 0
  %2402 = vmatpush1.bf16.msra.mxu0 %v2299
  %2403 = vmatprep.subr.bf16.mxu0 0
  %2404 = vmatpush1.bf16.msra.mxu0 %v2300
  %2405 = vmatprep.subr.bf16.mxu0 0
  %2406 = vmatpush1.bf16.msra.mxu0 %v2301
  %2407 = vmatprep.subr.bf16.mxu0 0
  %2408 = vmatpush1.bf16.msra.mxu0 0
  %2409 = vmatprep.subr.bf16.mxu0 0
  %2410 = vmatpush1.bf16.msra.mxu0 0
  %2411 = vmatprep.subr.bf16.mxu0 0
  %2412 = vmatpush1.bf16.msra.mxu0 0
  %2413 = vmatprep.subr.bf16.mxu0 0
  %2414 = vmatpush1.bf16.msra.mxu0 0
  %2415 = vmatprep.subr.bf16.mxu0 0
  %2416 = vmatpush1.bf16.msra.mxu0 0
  %2417 = vmatprep.subr.bf16.mxu0 0
  %2418 = vmatpush1.bf16.msra.mxu0 0
  %2419 = vmatprep.subr.bf16.mxu0 0
  %2420 = vmatpush1.bf16.msra.mxu0 0
  %2421 = vmatprep.subr.bf16.mxu0 0
  %2422 = vmatpush1.bf16.msra.mxu0 0
  %2423 = vmatprep.subr.bf16.mxu0 0
  %2424 = vmatpush1.bf16.msra.mxu0 0
  %2425 = vmatprep.subr.bf16.mxu0 0
  %2426 = vmatpush1.bf16.msra.mxu0 0
  %2427 = vmatprep.subr.bf16.mxu0 0
  %2428 = vmatpush1.bf16.msra.mxu0 0
  %2429 = vmatprep.subr.bf16.mxu0 0
  %2430 = vmatpush1.bf16.msra.mxu0 0
  %2431 = vmatprep.mubr.bf16.mxu0 0
  %2432 = vmatmul.mubr.bf16.gmra.mrb[0].mxu0 %v2388
  %v2433 = vpop.f32.mrb[0].mxu0
  %v2434 = vadd.f32 0.0, %v2433
  %v2435 = vpop.f32.mrb[0].mxu0
  %v2436 = vpop.f32.mrb[0].mxu0
  %v2437 = vadd.f32 0.0, %v2436
  %v2438 = vpop.f32.mrb[0].mxu0
  %2439 = vmatprep.mubr.bf16.mxu0 0
  %2440 = vmatmul.mubr.bf16.gmra.mrb[0].mxu0 %v2391
  %v2441 = vpop.f32.mrb[0].mxu0
  %v2442 = vadd.f32 0.0, %v2441
  %v2443 = vpop.f32.mrb[0].mxu0
  %v2444 = vpop.f32.mrb[0].mxu0
  %v2445 = vadd.f32 0.0, %v2444
  %v2446 = vpop.f32.mrb[0].mxu0
  %2447 = vmatprep.mubr.bf16.mxu0 0
  %2448 = vmatmul.mubr.bf16.gmra.mrb[0].mxu0 %v2394
  %v2449 = vpop.f32.mrb[0].mxu0
  %v2450 = vadd.f32 0.0, %v2449
  %v2451 = vpop.f32.mrb[0].mxu0
  %v2452 = vpop.f32.mrb[0].mxu0
  %v2453 = vadd.f32 0.0, %v2452
  %v2454 = vpop.f32.mrb[0].mxu0
  %2455 = vmatprep.mubr.bf16.mxu0 0
  %2456 = vmatmul.mubr.bf16.gmra.mrb[0].mxu0 %v2397
  %v2457 = vpop.f32.mrb[0].mxu0
  %v2458 = vadd.f32 0.0, %v2457
  %v2459 = vpop.f32.mrb[0].mxu0
  %v2460 = vpop.f32.mrb[0].mxu0
  %v2461 = vadd.f32 0.0, %v2460
  %v2462 = vpop.f32.mrb[0].mxu0
  %2463 = vdwg.mxu0
  %v2465 = vsel %vm209, %v2286, 0
  %v2468 = vsel %vm209, %v2287, 0
  %v2471 = vsel %vm209, %v2288, 0
  %v2474 = vsel %vm209, %v2289, 0
  %2476 = vmatprep.subr.bf16.mxu0 0
  %2477 = vmatpush1.bf16.msra.mxu0 %v2302
  %2478 = vmatprep.subr.bf16.mxu0 0
  %2479 = vmatpush1.bf16.msra.mxu0 %v2303
  %2480 = vmatprep.subr.bf16.mxu0 0
  %2481 = vmatpush1.bf16.msra.mxu0 %v2304
  %2482 = vmatprep.subr.bf16.mxu0 0
  %2483 = vmatpush1.bf16.msra.mxu0 %v2305
  %2484 = vmatprep.subr.bf16.mxu0 0
  %2485 = vmatpush1.bf16.msra.mxu0 0
  %2486 = vmatprep.subr.bf16.mxu0 0
  %2487 = vmatpush1.bf16.msra.mxu0 0
  %2488 = vmatprep.subr.bf16.mxu0 0
  %2489 = vmatpush1.bf16.msra.mxu0 0
  %2490 = vmatprep.subr.bf16.mxu0 0
  %2491 = vmatpush1.bf16.msra.mxu0 0
  %2492 = vmatprep.subr.bf16.mxu0 0
  %2493 = vmatpush1.bf16.msra.mxu0 0
  %2494 = vmatprep.subr.bf16.mxu0 0
  %2495 = vmatpush1.bf16.msra.mxu0 0
  %2496 = vmatprep.subr.bf16.mxu0 0
  %2497 = vmatpush1.bf16.msra.mxu0 0
  %2498 = vmatprep.subr.bf16.mxu0 0
  %2499 = vmatpush1.bf16.msra.mxu0 0
  %2500 = vmatprep.subr.bf16.mxu0 0
  %2501 = vmatpush1.bf16.msra.mxu0 0
  %2502 = vmatprep.subr.bf16.mxu0 0
  %2503 = vmatpush1.bf16.msra.mxu0 0
  %2504 = vmatprep.subr.bf16.mxu0 0
  %2505 = vmatpush1.bf16.msra.mxu0 0
  %2506 = vmatprep.subr.bf16.mxu0 0
  %2507 = vmatpush1.bf16.msra.mxu0 0
  %2508 = vmatprep.mubr.bf16.mxu0 0
  %2509 = vmatmul.mubr.bf16.gmra.mrb[0].mxu0 %v2465
  %v2510 = vpop.f32.mrb[0].mxu0
  %v2511 = vadd.f32 0.0, %v2510
  %v2512 = vpop.f32.mrb[0].mxu0
  %v2513 = vpop.f32.mrb[0].mxu0
  %v2514 = vadd.f32 0.0, %v2513
  %v2515 = vpop.f32.mrb[0].mxu0
  %2516 = vmatprep.mubr.bf16.mxu0 0
  %2517 = vmatmul.mubr.bf16.gmra.mrb[0].mxu0 %v2468
  %v2518 = vpop.f32.mrb[0].mxu0
  %v2519 = vadd.f32 0.0, %v2518
  %v2520 = vpop.f32.mrb[0].mxu0
  %v2521 = vpop.f32.mrb[0].mxu0
  %v2522 = vadd.f32 0.0, %v2521
  %v2523 = vpop.f32.mrb[0].mxu0
  %2524 = vmatprep.mubr.bf16.mxu0 0
  %2525 = vmatmul.mubr.bf16.gmra.mrb[0].mxu0 %v2471
  %v2526 = vpop.f32.mrb[0].mxu0
  %v2527 = vadd.f32 0.0, %v2526
  %v2528 = vpop.f32.mrb[0].mxu0
  %v2529 = vpop.f32.mrb[0].mxu0
  %v2530 = vadd.f32 0.0, %v2529
  %v2531 = vpop.f32.mrb[0].mxu0
  %2532 = vmatprep.mubr.bf16.mxu0 0
  %2533 = vmatmul.mubr.bf16.gmra.mrb[0].mxu0 %v2474
  %v2534 = vpop.f32.mrb[0].mxu0
  %v2535 = vadd.f32 0.0, %v2534
  %v2536 = vpop.f32.mrb[0].mxu0
  %v2537 = vpop.f32.mrb[0].mxu0
  %v2538 = vadd.f32 0.0, %v2537
  %v2539 = vpop.f32.mrb[0].mxu0
  %2540 = vdwg.mxu0
  %v2542 = vsel %vm209, %v2290, 0
  %v2545 = vsel %vm209, %v2291, 0
  %v2548 = vsel %vm209, %v2292, 0
  %v2551 = vsel %vm209, %v2293, 0
  %2553 = vmatprep.subr.bf16.mxu0 0
  %2554 = vmatpush1.bf16.msra.mxu0 %v2306
  %2555 = vmatprep.subr.bf16.mxu0 0
  %2556 = vmatpush1.bf16.msra.mxu0 %v2307
  %2557 = vmatprep.subr.bf16.mxu0 0
  %2558 = vmatpush1.bf16.msra.mxu0 %v2308
  %2559 = vmatprep.subr.bf16.mxu0 0
  %2560 = vmatpush1.bf16.msra.mxu0 %v2309
  %2561 = vmatprep.subr.bf16.mxu0 0
  %2562 = vmatpush1.bf16.msra.mxu0 0
  %2563 = vmatprep.subr.bf16.mxu0 0
  %2564 = vmatpush1.bf16.msra.mxu0 0
  %2565 = vmatprep.subr.bf16.mxu0 0
  %2566 = vmatpush1.bf16.msra.mxu0 0
  %2567 = vmatprep.subr.bf16.mxu0 0
  %2568 = vmatpush1.bf16.msra.mxu0 0
  %2569 = vmatprep.subr.bf16.mxu0 0
  %2570 = vmatpush1.bf16.msra.mxu0 0
  %2571 = vmatprep.subr.bf16.mxu0 0
  %2572 = vmatpush1.bf16.msra.mxu0 0
  %2573 = vmatprep.subr.bf16.mxu0 0
  %2574 = vmatpush1.bf16.msra.mxu0 0
  %2575 = vmatprep.subr.bf16.mxu0 0
  %2576 = vmatpush1.bf16.msra.mxu0 0
  %2577 = vmatprep.subr.bf16.mxu0 0
  %2578 = vmatpush1.bf16.msra.mxu0 0
  %2579 = vmatprep.subr.bf16.mxu0 0
  %2580 = vmatpush1.bf16.msra.mxu0 0
  %2581 = vmatprep.subr.bf16.mxu0 0
  %2582 = vmatpush1.bf16.msra.mxu0 0
  %2583 = vmatprep.subr.bf16.mxu0 0
  %2584 = vmatpush1.bf16.msra.mxu0 0
  %2585 = vmatprep.mubr.bf16.mxu0 0
  %2586 = vmatmul.mubr.bf16.gmra.mrb[0].mxu0 %v2542
  %v2587 = vpop.f32.mrb[0].mxu0
  %v2588 = vadd.f32 0.0, %v2587
  %v2589 = vpop.f32.mrb[0].mxu0
  %v2590 = vpop.f32.mrb[0].mxu0
  %v2591 = vadd.f32 0.0, %v2590
  %v2592 = vpop.f32.mrb[0].mxu0
  %2593 = vmatprep.mubr.bf16.mxu0 0
  %2594 = vmatmul.mubr.bf16.gmra.mrb[0].mxu0 %v2545
  %v2595 = vpop.f32.mrb[0].mxu0
  %v2596 = vadd.f32 0.0, %v2595
  %v2597 = vpop.f32.mrb[0].mxu0
  %v2598 = vpop.f32.mrb[0].mxu0
  %v2599 = vadd.f32 0.0, %v2598
  %v2600 = vpop.f32.mrb[0].mxu0
  %2601 = vmatprep.mubr.bf16.mxu0 0
  %2602 = vmatmul.mubr.bf16.gmra.mrb[0].mxu0 %v2548
  %v2603 = vpop.f32.mrb[0].mxu0
  %v2604 = vadd.f32 0.0, %v2603
  %v2605 = vpop.f32.mrb[0].mxu0
  %v2606 = vpop.f32.mrb[0].mxu0
  %v2607 = vadd.f32 0.0, %v2606
  %v2608 = vpop.f32.mrb[0].mxu0
  %2609 = vmatprep.mubr.bf16.mxu0 0
  %2610 = vmatmul.mubr.bf16.gmra.mrb[0].mxu0 %v2551
  %v2611 = vpop.f32.mrb[0].mxu0
  %v2612 = vadd.f32 0.0, %v2611
  %v2613 = vpop.f32.mrb[0].mxu0
  %v2614 = vpop.f32.mrb[0].mxu0
  %v2615 = vadd.f32 0.0, %v2614
  %v2616 = vpop.f32.mrb[0].mxu0
  %2617 = vdwg.mxu0
  %v2618 = vpack.c.bf16 %v2360, %v2357
  %v2619 = vpack.c.bf16 %v2368, %v2365
  %v2620 = vpack.c.bf16 %v2376, %v2373
  %v2621 = vpack.c.bf16 %v2384, %v2381
  %v2622 = vpack.c.bf16 %v2437, %v2434
  %v2623 = vpack.c.bf16 %v2445, %v2442
  %v2624 = vpack.c.bf16 %v2453, %v2450
  %v2625 = vpack.c.bf16 %v2461, %v2458
  %v2626 = vpack.c.bf16 %v2514, %v2511
  %v2627 = vpack.c.bf16 %v2522, %v2519
  %v2628 = vpack.c.bf16 %v2530, %v2527
  %v2629 = vpack.c.bf16 %v2538, %v2535
  %v2630 = vpack.c.bf16 %v2591, %v2588
  %v2631 = vpack.c.bf16 %v2599, %v2596
  %v2632 = vpack.c.bf16 %v2607, %v2604
  %v2633 = vpack.c.bf16 %v2615, %v2612
  %v2634 = vld [vmem:[%s11] sm:$0xf]
  %v2635 = vld [vmem:[%s11 + $0x4] sm:$0xf]
  %v2636 = vld [vmem:[%s11 + $0x8] sm:$0xf]
  %v2637 = vld [vmem:[%s11 + $0xc] sm:$0xf]
  %v2639 = vsel %vm1569, %v2618, 0
  %v2642 = vsel %vm1569, %v2619, 0
  %v2645 = vsel %vm1569, %v2620, 0
  %v2648 = vsel %vm1569, %v2621, 0
  %vm2650 = vcmask 1043456
  %v2652 = vsel %vm2650, %v2634, 0
  %2654 = vmatprep.subr.bf16.mxu0 0
  %2655 = vmatpush1.bf16.msra.mxu0 %v2652
  %2656 = vmatprep.subr.bf16.mxu0 0
  %2657 = vmatpush1.bf16.msra.mxu0 0
  %2658 = vmatprep.subr.bf16.mxu0 0
  %2659 = vmatpush1.bf16.msra.mxu0 0
  %2660 = vmatprep.subr.bf16.mxu0 0
  %2661 = vmatpush1.bf16.msra.mxu0 0
  %2662 = vmatprep.subr.bf16.mxu0 0
  %2663 = vmatpush1.bf16.msra.mxu0 0
  %2664 = vmatprep.subr.bf16.mxu0 0
  %2665 = vmatpush1.bf16.msra.mxu0 0
  %2666 = vmatprep.subr.bf16.mxu0 0
  %2667 = vmatpush1.bf16.msra.mxu0 0
  %2668 = vmatprep.subr.bf16.mxu0 0
  %2669 = vmatpush1.bf16.msra.mxu0 0
  %2670 = vmatprep.subr.bf16.mxu0 0
  %2671 = vmatpush1.bf16.msra.mxu0 0
  %2672 = vmatprep.subr.bf16.mxu0 0
  %2673 = vmatpush1.bf16.msra.mxu0 0
  %2674 = vmatprep.subr.bf16.mxu0 0
  %2675 = vmatpush1.bf16.msra.mxu0 0
  %2676 = vmatprep.subr.bf16.mxu0 0
  %2677 = vmatpush1.bf16.msra.mxu0 0
  %2678 = vmatprep.subr.bf16.mxu0 0
  %2679 = vmatpush1.bf16.msra.mxu0 0
  %2680 = vmatprep.subr.bf16.mxu0 0
  %2681 = vmatpush1.bf16.msra.mxu0 0
  %2682 = vmatprep.subr.bf16.mxu0 0
  %2683 = vmatpush1.bf16.msra.mxu0 0
  %2684 = vmatprep.subr.bf16.mxu0 0
  %2685 = vmatpush1.bf16.msra.mxu0 0
  %2686 = vmatprep.mubr.bf16.mxu0 0
  %2687 = vmatmul.mubr.bf16.gmra.mrb[0].mxu0 %v2639
  %v2688 = vpop.f32.mrb[0].mxu0
  %v2689 = vadd.f32 0.0, %v2688
  %v2690 = vpop.f32.mrb[0].mxu0
  %v2691 = vpop.f32.mrb[0].mxu0
  %v2692 = vadd.f32 0.0, %v2691
  %v2693 = vpop.f32.mrb[0].mxu0
  %2694 = vmatprep.mubr.bf16.mxu0 0
  %2695 = vmatmul.mubr.bf16.gmra.mrb[0].mxu0 %v2642
  %v2696 = vpop.f32.mrb[0].mxu0
  %v2697 = vadd.f32 0.0, %v2696
  %v2698 = vpop.f32.mrb[0].mxu0
  %v2699 = vpop.f32.mrb[0].mxu0
  %v2700 = vadd.f32 0.0, %v2699
  %v2701 = vpop.f32.mrb[0].mxu0
  %2702 = vmatprep.mubr.bf16.mxu0 0
  %2703 = vmatmul.mubr.bf16.gmra.mrb[0].mxu0 %v2645
  %v2704 = vpop.f32.mrb[0].mxu0
  %v2705 = vadd.f32 0.0, %v2704
  %v2706 = vpop.f32.mrb[0].mxu0
  %v2707 = vpop.f32.mrb[0].mxu0
  %v2708 = vadd.f32 0.0, %v2707
  %v2709 = vpop.f32.mrb[0].mxu0
  %2710 = vmatprep.mubr.bf16.mxu0 0
  %2711 = vmatmul.mubr.bf16.gmra.mrb[0].mxu0 %v2648
  %v2712 = vpop.f32.mrb[0].mxu0
  %v2713 = vadd.f32 0.0, %v2712
  %v2714 = vpop.f32.mrb[0].mxu0
  %v2715 = vpop.f32.mrb[0].mxu0
  %v2716 = vadd.f32 0.0, %v2715
  %v2717 = vpop.f32.mrb[0].mxu0
  %2718 = vdwg.mxu0
  %v2720 = vsel %vm1569, %v2622, 0
  %v2723 = vsel %vm1569, %v2623, 0
  %v2726 = vsel %vm1569, %v2624, 0
  %v2729 = vsel %vm1569, %v2625, 0
  %v2732 = vsel %vm2650, %v2635, 0
  %2734 = vmatprep.subr.bf16.mxu0 0
  %2735 = vmatpush1.bf16.msra.mxu0 %v2732
  %2736 = vmatprep.subr.bf16.mxu0 0
  %2737 = vmatpush1.bf16.msra.mxu0 0
  %2738 = vmatprep.subr.bf16.mxu0 0
  %2739 = vmatpush1.bf16.msra.mxu0 0
  %2740 = vmatprep.subr.bf16.mxu0 0
  %2741 = vmatpush1.bf16.msra.mxu0 0
  %2742 = vmatprep.subr.bf16.mxu0 0
  %2743 = vmatpush1.bf16.msra.mxu0 0
  %2744 = vmatprep.subr.bf16.mxu0 0
  %2745 = vmatpush1.bf16.msra.mxu0 0
  %2746 = vmatprep.subr.bf16.mxu0 0
  %2747 = vmatpush1.bf16.msra.mxu0 0
  %2748 = vmatprep.subr.bf16.mxu0 0
  %2749 = vmatpush1.bf16.msra.mxu0 0
  %2750 = vmatprep.subr.bf16.mxu0 0
  %2751 = vmatpush1.bf16.msra.mxu0 0
  %2752 = vmatprep.subr.bf16.mxu0 0
  %2753 = vmatpush1.bf16.msra.mxu0 0
  %2754 = vmatprep.subr.bf16.mxu0 0
  %2755 = vmatpush1.bf16.msra.mxu0 0
  %2756 = vmatprep.subr.bf16.mxu0 0
  %2757 = vmatpush1.bf16.msra.mxu0 0
  %2758 = vmatprep.subr.bf16.mxu0 0
  %2759 = vmatpush1.bf16.msra.mxu0 0
  %2760 = vmatprep.subr.bf16.mxu0 0
  %2761 = vmatpush1.bf16.msra.mxu0 0
  %2762 = vmatprep.subr.bf16.mxu0 0
  %2763 = vmatpush1.bf16.msra.mxu0 0
  %2764 = vmatprep.subr.bf16.mxu0 0
  %2765 = vmatpush1.bf16.msra.mxu0 0
  %2766 = vmatprep.mubr.bf16.mxu0 0
  %2767 = vmatmul.mubr.bf16.gmra.mrb[0].mxu0 %v2720
  %v2768 = vpop.f32.mrb[0].mxu0
  %v2769 = vadd.f32 0.0, %v2768
  %v2770 = vpop.f32.mrb[0].mxu0
  %v2771 = vpop.f32.mrb[0].mxu0
  %v2772 = vadd.f32 0.0, %v2771
  %v2773 = vpop.f32.mrb[0].mxu0
  %2774 = vmatprep.mubr.bf16.mxu0 0
  %2775 = vmatmul.mubr.bf16.gmra.mrb[0].mxu0 %v2723
  %v2776 = vpop.f32.mrb[0].mxu0
  %v2777 = vadd.f32 0.0, %v2776
  %v2778 = vpop.f32.mrb[0].mxu0
  %v2779 = vpop.f32.mrb[0].mxu0
  %v2780 = vadd.f32 0.0, %v2779
  %v2781 = vpop.f32.mrb[0].mxu0
  %2782 = vmatprep.mubr.bf16.mxu0 0
  %2783 = vmatmul.mubr.bf16.gmra.mrb[0].mxu0 %v2726
  %v2784 = vpop.f32.mrb[0].mxu0
  %v2785 = vadd.f32 0.0, %v2784
  %v2786 = vpop.f32.mrb[0].mxu0
  %v2787 = vpop.f32.mrb[0].mxu0
  %v2788 = vadd.f32 0.0, %v2787
  %v2789 = vpop.f32.mrb[0].mxu0
  %2790 = vmatprep.mubr.bf16.mxu0 0
  %2791 = vmatmul.mubr.bf16.gmra.mrb[0].mxu0 %v2729
  %v2792 = vpop.f32.mrb[0].mxu0
  %v2793 = vadd.f32 0.0, %v2792
  %v2794 = vpop.f32.mrb[0].mxu0
  %v2795 = vpop.f32.mrb[0].mxu0
  %v2796 = vadd.f32 0.0, %v2795
  %v2797 = vpop.f32.mrb[0].mxu0
  %2798 = vdwg.mxu0
  %v2800 = vsel %vm1569, %v2626, 0
  %v2803 = vsel %vm1569, %v2627, 0
  %v2806 = vsel %vm1569, %v2628, 0
  %v2809 = vsel %vm1569, %v2629, 0
  %v2812 = vsel %vm2650, %v2636, 0
  %2814 = vmatprep.subr.bf16.mxu0 0
  %2815 = vmatpush1.bf16.msra.mxu0 %v2812
  %2816 = vmatprep.subr.bf16.mxu0 0
  %2817 = vmatpush1.bf16.msra.mxu0 0
  %2818 = vmatprep.subr.bf16.mxu0 0
  %2819 = vmatpush1.bf16.msra.mxu0 0
  %2820 = vmatprep.subr.bf16.mxu0 0
  %2821 = vmatpush1.bf16.msra.mxu0 0
  %2822 = vmatprep.subr.bf16.mxu0 0
  %2823 = vmatpush1.bf16.msra.mxu0 0
  %2824 = vmatprep.subr.bf16.mxu0 0
  %2825 = vmatpush1.bf16.msra.mxu0 0
  %2826 = vmatprep.subr.bf16.mxu0 0
  %2827 = vmatpush1.bf16.msra.mxu0 0
  %2828 = vmatprep.subr.bf16.mxu0 0
  %2829 = vmatpush1.bf16.msra.mxu0 0
  %2830 = vmatprep.subr.bf16.mxu0 0
  %2831 = vmatpush1.bf16.msra.mxu0 0
  %2832 = vmatprep.subr.bf16.mxu0 0
  %2833 = vmatpush1.bf16.msra.mxu0 0
  %2834 = vmatprep.subr.bf16.mxu0 0
  %2835 = vmatpush1.bf16.msra.mxu0 0
  %2836 = vmatprep.subr.bf16.mxu0 0
  %2837 = vmatpush1.bf16.msra.mxu0 0
  %2838 = vmatprep.subr.bf16.mxu0 0
  %2839 = vmatpush1.bf16.msra.mxu0 0
  %2840 = vmatprep.subr.bf16.mxu0 0
  %2841 = vmatpush1.bf16.msra.mxu0 0
  %2842 = vmatprep.subr.bf16.mxu0 0
  %2843 = vmatpush1.bf16.msra.mxu0 0
  %2844 = vmatprep.subr.bf16.mxu0 0
  %2845 = vmatpush1.bf16.msra.mxu0 0
  %2846 = vmatprep.mubr.bf16.mxu0 0
  %2847 = vmatmul.mubr.bf16.gmra.mrb[0].mxu0 %v2800
  %v2848 = vpop.f32.mrb[0].mxu0
  %v2849 = vadd.f32 0.0, %v2848
  %v2850 = vpop.f32.mrb[0].mxu0
  %v2851 = vpop.f32.mrb[0].mxu0
  %v2852 = vadd.f32 0.0, %v2851
  %v2853 = vpop.f32.mrb[0].mxu0
  %2854 = vmatprep.mubr.bf16.mxu0 0
  %2855 = vmatmul.mubr.bf16.gmra.mrb[0].mxu0 %v2803
  %v2856 = vpop.f32.mrb[0].mxu0
  %v2857 = vadd.f32 0.0, %v2856
  %v2858 = vpop.f32.mrb[0].mxu0
  %v2859 = vpop.f32.mrb[0].mxu0
  %v2860 = vadd.f32 0.0, %v2859
  %v2861 = vpop.f32.mrb[0].mxu0
  %2862 = vmatprep.mubr.bf16.mxu0 0
  %2863 = vmatmul.mubr.bf16.gmra.mrb[0].mxu0 %v2806
  %v2864 = vpop.f32.mrb[0].mxu0
  %v2865 = vadd.f32 0.0, %v2864
  %v2866 = vpop.f32.mrb[0].mxu0
  %v2867 = vpop.f32.mrb[0].mxu0
  %v2868 = vadd.f32 0.0, %v2867
  %v2869 = vpop.f32.mrb[0].mxu0
  %2870 = vmatprep.mubr.bf16.mxu0 0
  %2871 = vmatmul.mubr.bf16.gmra.mrb[0].mxu0 %v2809
  %v2872 = vpop.f32.mrb[0].mxu0
  %v2873 = vadd.f32 0.0, %v2872
  %v2874 = vpop.f32.mrb[0].mxu0
  %v2875 = vpop.f32.mrb[0].mxu0
  %v2876 = vadd.f32 0.0, %v2875
  %v2877 = vpop.f32.mrb[0].mxu0
  %2878 = vdwg.mxu0
  %v2880 = vsel %vm1569, %v2630, 0
  %v2883 = vsel %vm1569, %v2631, 0
  %v2886 = vsel %vm1569, %v2632, 0
  %v2889 = vsel %vm1569, %v2633, 0
  %v2892 = vsel %vm2650, %v2637, 0
  %2894 = vmatprep.subr.bf16.mxu0 0
  %2895 = vmatpush1.bf16.msra.mxu0 %v2892
  %2896 = vmatprep.subr.bf16.mxu0 0
  %2897 = vmatpush1.bf16.msra.mxu0 0
  %2898 = vmatprep.subr.bf16.mxu0 0
  %2899 = vmatpush1.bf16.msra.mxu0 0
  %2900 = vmatprep.subr.bf16.mxu0 0
  %2901 = vmatpush1.bf16.msra.mxu0 0
  %2902 = vmatprep.subr.bf16.mxu0 0
  %2903 = vmatpush1.bf16.msra.mxu0 0
  %2904 = vmatprep.subr.bf16.mxu0 0
  %2905 = vmatpush1.bf16.msra.mxu0 0
  %2906 = vmatprep.subr.bf16.mxu0 0
  %2907 = vmatpush1.bf16.msra.mxu0 0
  %2908 = vmatprep.subr.bf16.mxu0 0
  %2909 = vmatpush1.bf16.msra.mxu0 0
  %2910 = vmatprep.subr.bf16.mxu0 0
  %2911 = vmatpush1.bf16.msra.mxu0 0
  %2912 = vmatprep.subr.bf16.mxu0 0
  %2913 = vmatpush1.bf16.msra.mxu0 0
  %2914 = vmatprep.subr.bf16.mxu0 0
  %2915 = vmatpush1.bf16.msra.mxu0 0
  %2916 = vmatprep.subr.bf16.mxu0 0
  %2917 = vmatpush1.bf16.msra.mxu0 0
  %2918 = vmatprep.subr.bf16.mxu0 0
  %2919 = vmatpush1.bf16.msra.mxu0 0
  %2920 = vmatprep.subr.bf16.mxu0 0
  %2921 = vmatpush1.bf16.msra.mxu0 0
  %2922 = vmatprep.subr.bf16.mxu0 0
  %2923 = vmatpush1.bf16.msra.mxu0 0
  %2924 = vmatprep.subr.bf16.mxu0 0
  %2925 = vmatpush1.bf16.msra.mxu0 0
  %2926 = vmatprep.mubr.bf16.mxu0 0
  %2927 = vmatmul.mubr.bf16.gmra.mrb[0].mxu0 %v2880
  %v2928 = vpop.f32.mrb[0].mxu0
  %v2929 = vadd.f32 0.0, %v2928
  %v2930 = vpop.f32.mrb[0].mxu0
  %v2931 = vpop.f32.mrb[0].mxu0
  %v2932 = vadd.f32 0.0, %v2931
  %v2933 = vpop.f32.mrb[0].mxu0
  %2934 = vmatprep.mubr.bf16.mxu0 0
  %2935 = vmatmul.mubr.bf16.gmra.mrb[0].mxu0 %v2883
  %v2936 = vpop.f32.mrb[0].mxu0
  %v2937 = vadd.f32 0.0, %v2936
  %v2938 = vpop.f32.mrb[0].mxu0
  %v2939 = vpop.f32.mrb[0].mxu0
  %v2940 = vadd.f32 0.0, %v2939
  %v2941 = vpop.f32.mrb[0].mxu0
  %2942 = vmatprep.mubr.bf16.mxu0 0
  %2943 = vmatmul.mubr.bf16.gmra.mrb[0].mxu0 %v2886
  %v2944 = vpop.f32.mrb[0].mxu0
  %v2945 = vadd.f32 0.0, %v2944
  %v2946 = vpop.f32.mrb[0].mxu0
  %v2947 = vpop.f32.mrb[0].mxu0
  %v2948 = vadd.f32 0.0, %v2947
  %v2949 = vpop.f32.mrb[0].mxu0
  %2950 = vmatprep.mubr.bf16.mxu0 0
  %2951 = vmatmul.mubr.bf16.gmra.mrb[0].mxu0 %v2889
  %v2952 = vpop.f32.mrb[0].mxu0
  %v2953 = vadd.f32 0.0, %v2952
  %v2954 = vpop.f32.mrb[0].mxu0
  %v2955 = vpop.f32.mrb[0].mxu0
  %v2956 = vadd.f32 0.0, %v2955
  %v2957 = vpop.f32.mrb[0].mxu0
  %2958 = vdwg.mxu0
  %v2959 = vsel %vm315, %v2689, 0.0
  %v2960 = vsel %vm315, %v2769, 0.0
  %v2961 = vadd.f32 %v2959, %v2960
  %v2962 = vsel %vm315, %v2849, 0.0
  %v2963 = vadd.f32 %v2961, %v2962
  %v2964 = vsel %vm315, %v2929, 0.0
  %v2965 = vadd.f32 %v2963, %v2964
  %v2966 = vsel %vm315, %v2692, 0.0
  %v2967 = vsel %vm315, %v2772, 0.0
  %v2968 = vadd.f32 %v2966, %v2967
  %v2969 = vsel %vm315, %v2852, 0.0
  %v2970 = vadd.f32 %v2968, %v2969
  %v2971 = vsel %vm315, %v2932, 0.0
  %v2972 = vadd.f32 %v2970, %v2971
  %v2973 = vsel %vm315, %v2697, 0.0
  %v2974 = vsel %vm315, %v2777, 0.0
  %v2975 = vadd.f32 %v2973, %v2974
  %v2976 = vsel %vm315, %v2857, 0.0
  %v2977 = vadd.f32 %v2975, %v2976
  %v2978 = vsel %vm315, %v2937, 0.0
  %v2979 = vadd.f32 %v2977, %v2978
  %v2980 = vsel %vm315, %v2700, 0.0
  %v2981 = vsel %vm315, %v2780, 0.0
  %v2982 = vadd.f32 %v2980, %v2981
  %v2983 = vsel %vm315, %v2860, 0.0
  %v2984 = vadd.f32 %v2982, %v2983
  %v2985 = vsel %vm315, %v2940, 0.0
  %v2986 = vadd.f32 %v2984, %v2985
  %v2987 = vsel %vm315, %v2705, 0.0
  %v2988 = vsel %vm315, %v2785, 0.0
  %v2989 = vadd.f32 %v2987, %v2988
  %v2990 = vsel %vm315, %v2865, 0.0
  %v2991 = vadd.f32 %v2989, %v2990
  %v2992 = vsel %vm315, %v2945, 0.0
  %v2993 = vadd.f32 %v2991, %v2992
  %v2994 = vsel %vm315, %v2708, 0.0
  %v2995 = vsel %vm315, %v2788, 0.0
  %v2996 = vadd.f32 %v2994, %v2995
  %v2997 = vsel %vm315, %v2868, 0.0
  %v2998 = vadd.f32 %v2996, %v2997
  %v2999 = vsel %vm315, %v2948, 0.0
  %v3000 = vadd.f32 %v2998, %v2999
  %v3001 = vsel %vm315, %v2713, 0.0
  %v3002 = vsel %vm315, %v2793, 0.0
  %v3003 = vadd.f32 %v3001, %v3002
  %v3004 = vsel %vm315, %v2873, 0.0
  %v3005 = vadd.f32 %v3003, %v3004
  %v3006 = vsel %vm315, %v2953, 0.0
  %v3007 = vadd.f32 %v3005, %v3006
  %v3008 = vsel %vm315, %v2716, 0.0
  %v3009 = vsel %vm315, %v2796, 0.0
  %v3010 = vadd.f32 %v3008, %v3009
  %v3011 = vsel %vm315, %v2876, 0.0
  %v3012 = vadd.f32 %v3010, %v3011
  %v3013 = vsel %vm315, %v2956, 0.0
  %v3014 = vadd.f32 %v3012, %v3013
  %v3015 = vadd.f32 %v519, %v2965
  %v3016 = vadd.f32 %v522, %v2972
  %v3017 = vadd.f32 %v527, %v2979
  %v3018 = vadd.f32 %v530, %v2986
  %v3019 = vadd.f32 %v535, %v2993
  %v3020 = vadd.f32 %v538, %v3000
  %v3021 = vadd.f32 %v543, %v3007
  %v3022 = vadd.f32 %v546, %v3014
  %v3023 = vld [vmem:[%s12] sm:$0x1]
  %v3024 = vld [vmem:[%s13] sm:$0x1]
  %v3025 = vsel %vm315, %v3015, 0.0
  %3026 = vadd.xlane.f32.xlu0 %v3025
  %v3027 = vpop.xlane.xlu0 %3026
  %v3028 = vsel %vm315, %v3016, 0.0
  %3029 = vadd.xlane.f32.xlu0 %v3028
  %v3030 = vpop.xlane.xlu0 %3029
  %v3031 = vsel %vm315, %v3017, 0.0
  %3032 = vadd.xlane.f32.xlu0 %v3031
  %v3033 = vpop.xlane.xlu0 %3032
  %v3034 = vsel %vm315, %v3018, 0.0
  %3035 = vadd.xlane.f32.xlu0 %v3034
  %v3036 = vpop.xlane.xlu0 %3035
  %v3037 = vsel %vm315, %v3019, 0.0
  %3038 = vadd.xlane.f32.xlu0 %v3037
  %v3039 = vpop.xlane.xlu0 %3038
  %v3040 = vsel %vm315, %v3020, 0.0
  %3041 = vadd.xlane.f32.xlu0 %v3040
  %v3042 = vpop.xlane.xlu0 %3041
  %v3043 = vsel %vm315, %v3021, 0.0
  %3044 = vadd.xlane.f32.xlu0 %v3043
  %v3045 = vpop.xlane.xlu0 %3044
  %v3046 = vsel %vm315, %v3022, 0.0
  %3047 = vadd.xlane.f32.xlu0 %v3046
  %v3048 = vpop.xlane.xlu0 %3047
  %v3049 = vrcp.pop 32.0
  %v3050 = vmul.f32 %v3027, %v3049
  %v3051 = vmul.f32 %v3030, %v3049
  %v3052 = vmul.f32 %v3033, %v3049
  %v3053 = vmul.f32 %v3036, %v3049
  %v3054 = vmul.f32 %v3039, %v3049
  %v3055 = vmul.f32 %v3042, %v3049
  %v3056 = vmul.f32 %v3045, %v3049
  %v3057 = vmul.f32 %v3048, %v3049
  %v3058 = vmul.f32 %v3015, %v3015
  %v3059 = vmul.f32 %v3016, %v3016
  %v3060 = vmul.f32 %v3017, %v3017
  %v3061 = vmul.f32 %v3018, %v3018
  %v3062 = vmul.f32 %v3019, %v3019
  %v3063 = vmul.f32 %v3020, %v3020
  %v3064 = vmul.f32 %v3021, %v3021
  %v3065 = vmul.f32 %v3022, %v3022
  %v3066 = vsel %vm315, %v3058, 0.0
  %3067 = vadd.xlane.f32.xlu0 %v3066
  %v3068 = vpop.xlane.xlu0 %3067
  %v3069 = vsel %vm315, %v3059, 0.0
  %3070 = vadd.xlane.f32.xlu0 %v3069
  %v3071 = vpop.xlane.xlu0 %3070
  %v3072 = vsel %vm315, %v3060, 0.0
  %3073 = vadd.xlane.f32.xlu0 %v3072
  %v3074 = vpop.xlane.xlu0 %3073
  %v3075 = vsel %vm315, %v3061, 0.0
  %3076 = vadd.xlane.f32.xlu0 %v3075
  %v3077 = vpop.xlane.xlu0 %3076
  %v3078 = vsel %vm315, %v3062, 0.0
  %3079 = vadd.xlane.f32.xlu0 %v3078
  %v3080 = vpop.xlane.xlu0 %3079
  %v3081 = vsel %vm315, %v3063, 0.0
  %3082 = vadd.xlane.f32.xlu0 %v3081
  %v3083 = vpop.xlane.xlu0 %3082
  %v3084 = vsel %vm315, %v3064, 0.0
  %3085 = vadd.xlane.f32.xlu0 %v3084
  %v3086 = vpop.xlane.xlu0 %3085
  %v3087 = vsel %vm315, %v3065, 0.0
  %3088 = vadd.xlane.f32.xlu0 %v3087
  %v3089 = vpop.xlane.xlu0 %3088
  %v3090 = vmul.f32 %v3068, %v3049
  %v3091 = vmul.f32 %v3071, %v3049
  %v3092 = vmul.f32 %v3074, %v3049
  %v3093 = vmul.f32 %v3077, %v3049
  %v3094 = vmul.f32 %v3080, %v3049
  %v3095 = vmul.f32 %v3083, %v3049
  %v3096 = vmul.f32 %v3086, %v3049
  %v3097 = vmul.f32 %v3089, %v3049
  %v3098 = vmul.f32 %v3050, %v3050
  %v3099 = vmul.f32 %v3051, %v3051
  %v3100 = vmul.f32 %v3052, %v3052
  %v3101 = vmul.f32 %v3053, %v3053
  %v3102 = vmul.f32 %v3054, %v3054
  %v3103 = vmul.f32 %v3055, %v3055
  %v3104 = vmul.f32 %v3056, %v3056
  %v3105 = vmul.f32 %v3057, %v3057
  %v3106 = vsub.f32 %v3090, %v3098
  %v3107 = vsub.f32 %v3091, %v3099
  %v3108 = vsub.f32 %v3092, %v3100
  %v3109 = vsub.f32 %v3093, %v3101
  %v3110 = vsub.f32 %v3094, %v3102
  %v3111 = vsub.f32 %v3095, %v3103
  %v3112 = vsub.f32 %v3096, %v3104
  %v3113 = vsub.f32 %v3097, %v3105
  %v3114 = vsub.f32 %v3015, %v3050
  %v3115 = vsub.f32 %v3016, %v3051
  %v3116 = vsub.f32 %v3017, %v3052
  %v3117 = vsub.f32 %v3018, %v3053
  %v3118 = vsub.f32 %v3019, %v3054
  %v3119 = vsub.f32 %v3020, %v3055
  %v3120 = vsub.f32 %v3021, %v3056
  %v3121 = vsub.f32 %v3022, %v3057
  %v3122 = vadd.f32 %v3106, 1e-05
  %v3123 = vadd.f32 %v3107, 1e-05
  %v3124 = vadd.f32 %v3108, 1e-05
  %v3125 = vadd.f32 %v3109, 1e-05
  %v3126 = vadd.f32 %v3110, 1e-05
  %v3127 = vadd.f32 %v3111, 1e-05
  %v3128 = vadd.f32 %v3112, 1e-05
  %v3129 = vadd.f32 %v3113, 1e-05
  %v3130 = vrsqrt.pop %v3122
  %v3131 = vrsqrt.pop %v3123
  %v3132 = vrsqrt.pop %v3124
  %v3133 = vrsqrt.pop %v3125
  %v3134 = vrsqrt.pop %v3126
  %v3135 = vrsqrt.pop %v3127
  %v3136 = vrsqrt.pop %v3128
  %v3137 = vrsqrt.pop %v3129
  %v3138 = vmul.f32 %v3114, %v3130
  %v3139 = vmul.f32 %v3115, %v3131
  %v3140 = vmul.f32 %v3116, %v3132
  %v3141 = vmul.f32 %v3117, %v3133
  %v3142 = vmul.f32 %v3118, %v3134
  %v3143 = vmul.f32 %v3119, %v3135
  %v3144 = vmul.f32 %v3120, %v3136
  %v3145 = vmul.f32 %v3121, %v3137
  %v3147 = vlaneseq
  %v3148 = vshrl.u32 %v3147, 7
  %v3149 = vsub.s32 0, %v3148
  %v3150 = vrot.slane %v3023, %v3149
  %v3152 = vmul.f32 %v3138, %v3150
  %v3153 = vmul.f32 %v3139, %v3150
  %v3154 = vmul.f32 %v3140, %v3150
  %v3155 = vmul.f32 %v3141, %v3150
  %v3156 = vmul.f32 %v3142, %v3150
  %v3157 = vmul.f32 %v3143, %v3150
  %v3158 = vmul.f32 %v3144, %v3150
  %v3159 = vmul.f32 %v3145, %v3150
  %v3161 = vlaneseq
  %v3162 = vshrl.u32 %v3161, 7
  %v3163 = vsub.s32 0, %v3162
  %v3164 = vrot.slane %v3024, %v3163
  %v3166 = vadd.f32 %v3152, %v3164
  %v3167 = vadd.f32 %v3153, %v3164
  %v3168 = vadd.f32 %v3154, %v3164
  %v3169 = vadd.f32 %v3155, %v3164
  %v3170 = vadd.f32 %v3156, %v3164
  %v3171 = vadd.f32 %v3157, %v3164
  %v3172 = vadd.f32 %v3158, %v3164
  %v3173 = vadd.f32 %v3159, %v3164
  %v3174 = vpack.c.bf16 %v3167, %v3166
  %v3175 = vpack.c.bf16 %v3169, %v3168
  %v3176 = vpack.c.bf16 %v3171, %v3170
  %v3177 = vpack.c.bf16 %v3173, %v3172
  %v3178 = vld [vmem:[%s14] sm:$0xf]
  %v3179 = vld [vmem:[%s14 + $0x4] sm:$0xf]
  %v3180 = vld [vmem:[%s14 + $0x8] sm:$0xf]
  %v3181 = vld [vmem:[%s14 + $0xc] sm:$0xf]
  %v3182 = vld [vmem:[%s15] sm:$0x1]
  %v3184 = vlaneseq
  %v3185 = vshrl.u32 %v3184, 7
  %v3186 = vsub.s32 0, %v3185
  %v3187 = vrot.slane %v3182, %v3186
  %v3193 = vunpack.c.l.b16 %v3178
  %v3194 = vunpack.c.l.b16 %v3179
  %v3195 = vunpack.c.l.b16 %v3180
  %v3196 = vunpack.c.l.b16 %v3181
  %v3197 = vpack.c.b16 %v3194, %v3193
  %v3198 = vpack.c.b16 %v3196, %v3195
  %v3202 = vsel %vm315, %v3174, 0
  %v3205 = vsel %vm315, %v3175, 0
  %v3208 = vsel %vm315, %v3176, 0
  %v3211 = vsel %vm315, %v3177, 0
  %3213 = vmatprep.subr.bf16.mxu0 0
  %3214 = vmatpush1.bf16.msra.mxu0 %v3197
  %3215 = vmatprep.subr.bf16.mxu0 0
  %3216 = vmatpush1.bf16.msra.mxu0 %v3198
  %3217 = vmatprep.subr.bf16.mxu0 0
  %3218 = vmatpush1.bf16.msra.mxu0 0
  %3219 = vmatprep.subr.bf16.mxu0 0
  %3220 = vmatpush1.bf16.msra.mxu0 0
  %3221 = vmatprep.subr.bf16.mxu0 0
  %3222 = vmatpush1.bf16.msra.mxu0 0
  %3223 = vmatprep.subr.bf16.mxu0 0
  %3224 = vmatpush1.bf16.msra.mxu0 0
  %3225 = vmatprep.subr.bf16.mxu0 0
  %3226 = vmatpush1.bf16.msra.mxu0 0
  %3227 = vmatprep.subr.bf16.mxu0 0
  %3228 = vmatpush1.bf16.msra.mxu0 0
  %3229 = vmatprep.subr.bf16.mxu0 0
  %3230 = vmatpush1.bf16.msra.mxu0 0
  %3231 = vmatprep.subr.bf16.mxu0 0
  %3232 = vmatpush1.bf16.msra.mxu0 0
  %3233 = vmatprep.subr.bf16.mxu0 0
  %3234 = vmatpush1.bf16.msra.mxu0 0
  %3235 = vmatprep.subr.bf16.mxu0 0
  %3236 = vmatpush1.bf16.msra.mxu0 0
  %3237 = vmatprep.subr.bf16.mxu0 0
  %3238 = vmatpush1.bf16.msra.mxu0 0
  %3239 = vmatprep.subr.bf16.mxu0 0
  %3240 = vmatpush1.bf16.msra.mxu0 0
  %3241 = vmatprep.subr.bf16.mxu0 0
  %3242 = vmatpush1.bf16.msra.mxu0 0
  %3243 = vmatprep.subr.bf16.mxu0 0
  %3244 = vmatpush1.bf16.msra.mxu0 0
  %3245 = vmatprep.mubr.bf16.mxu0 0
  %3246 = vmatmul.mubr.bf16.gmra.mrb[0].mxu0 %v3202
  %v3247 = vpop.f32.mrb[0].mxu0
  %v3248 = vadd.f32 %v3187, %v3247
  %v3249 = vpop.f32.mrb[0].mxu0
  %v3250 = vpop.f32.mrb[0].mxu0
  %v3251 = vadd.f32 %v3187, %v3250
  %v3252 = vpop.f32.mrb[0].mxu0
  %3253 = vmatprep.mubr.bf16.mxu0 0
  %3254 = vmatmul.mubr.bf16.gmra.mrb[0].mxu0 %v3205
  %v3255 = vpop.f32.mrb[0].mxu0
  %v3256 = vadd.f32 %v3187, %v3255
  %v3257 = vpop.f32.mrb[0].mxu0
  %v3258 = vpop.f32.mrb[0].mxu0
  %v3259 = vadd.f32 %v3187, %v3258
  %v3260 = vpop.f32.mrb[0].mxu0
  %3261 = vmatprep.mubr.bf16.mxu0 0
  %3262 = vmatmul.mubr.bf16.gmra.mrb[0].mxu0 %v3208
  %v3263 = vpop.f32.mrb[0].mxu0
  %v3264 = vadd.f32 %v3187, %v3263
  %v3265 = vpop.f32.mrb[0].mxu0
  %v3266 = vpop.f32.mrb[0].mxu0
  %v3267 = vadd.f32 %v3187, %v3266
  %v3268 = vpop.f32.mrb[0].mxu0
  %3269 = vmatprep.mubr.bf16.mxu0 0
  %3270 = vmatmul.mubr.bf16.gmra.mrb[0].mxu0 %v3211
  %v3271 = vpop.f32.mrb[0].mxu0
  %v3272 = vadd.f32 %v3187, %v3271
  %v3273 = vpop.f32.mrb[0].mxu0
  %v3274 = vpop.f32.mrb[0].mxu0
  %v3275 = vadd.f32 %v3187, %v3274
  %v3276 = vpop.f32.mrb[0].mxu0
  %3277 = vdwg.mxu0
  %v3278 = vmax.f32 %v3248, 0.0
  %v3279 = vmax.f32 %v3251, 0.0
  %v3280 = vmax.f32 %v3256, 0.0
  %v3281 = vmax.f32 %v3259, 0.0
  %v3282 = vmax.f32 %v3264, 0.0
  %v3283 = vmax.f32 %v3267, 0.0
  %v3284 = vmax.f32 %v3272, 0.0
  %v3285 = vmax.f32 %v3275, 0.0
  %v3286 = vpack.c.bf16 %v3279, %v3278
  %v3287 = vpack.c.bf16 %v3281, %v3280
  %v3288 = vpack.c.bf16 %v3283, %v3282
  %v3289 = vpack.c.bf16 %v3285, %v3284
  %v3290 = vld [vmem:[%s16] sm:$0xf]
  %v3291 = vld [vmem:[%s16 + $0x4] sm:$0xf]
  %v3292 = vld [vmem:[%s16 + $0x8] sm:$0xf]
  %v3293 = vld [vmem:[%s16 + $0xc] sm:$0xf]
  %v3294 = vld [vmem:[%s16 + $0x10] sm:$0xf]
  %v3295 = vld [vmem:[%s16 + $0x14] sm:$0xf]
  %v3296 = vld [vmem:[%s16 + $0x18] sm:$0xf]
  %v3297 = vld [vmem:[%s16 + $0x1c] sm:$0xf]
  %v3298 = vld [vmem:[%s17] sm:$0x1]
  %v3300 = vlaneseq
  %v3301 = vshrl.u32 %v3300, 7
  %v3302 = vsub.s32 0, %v3301
  %v3303 = vrot.slane %v3298, %v3302
  %v3313 = vunpack.c.l.b16 %v3290
  %v3314 = vunpack.c.l.b16 %v3291
  %v3315 = vunpack.c.l.b16 %v3292
  %v3316 = vunpack.c.l.b16 %v3293
  %v3317 = vunpack.c.l.b16 %v3294
  %v3318 = vunpack.c.l.b16 %v3295
  %v3319 = vunpack.c.l.b16 %v3296
  %v3320 = vunpack.c.l.b16 %v3297
  %v3321 = vpack.c.b16 %v3314, %v3313
  %v3322 = vpack.c.b16 %v3316, %v3315
  %v3323 = vpack.c.b16 %v3318, %v3317
  %v3324 = vpack.c.b16 %v3320, %v3319
  %v3330 = vsel %vm209, %v3286, 0
  %v3333 = vsel %vm209, %v3287, 0
  %v3336 = vsel %vm209, %v3288, 0
  %v3339 = vsel %vm209, %v3289, 0
  %3341 = vmatprep.subr.bf16.mxu0 0
  %3342 = vmatpush1.bf16.msra.mxu0 %v3321
  %3343 = vmatprep.subr.bf16.mxu0 0
  %3344 = vmatpush1.bf16.msra.mxu0 %v3322
  %3345 = vmatprep.subr.bf16.mxu0 0
  %3346 = vmatpush1.bf16.msra.mxu0 %v3323
  %3347 = vmatprep.subr.bf16.mxu0 0
  %3348 = vmatpush1.bf16.msra.mxu0 %v3324
  %3349 = vmatprep.subr.bf16.mxu0 0
  %3350 = vmatpush1.bf16.msra.mxu0 0
  %3351 = vmatprep.subr.bf16.mxu0 0
  %3352 = vmatpush1.bf16.msra.mxu0 0
  %3353 = vmatprep.subr.bf16.mxu0 0
  %3354 = vmatpush1.bf16.msra.mxu0 0
  %3355 = vmatprep.subr.bf16.mxu0 0
  %3356 = vmatpush1.bf16.msra.mxu0 0
  %3357 = vmatprep.subr.bf16.mxu0 0
  %3358 = vmatpush1.bf16.msra.mxu0 0
  %3359 = vmatprep.subr.bf16.mxu0 0
  %3360 = vmatpush1.bf16.msra.mxu0 0
  %3361 = vmatprep.subr.bf16.mxu0 0
  %3362 = vmatpush1.bf16.msra.mxu0 0
  %3363 = vmatprep.subr.bf16.mxu0 0
  %3364 = vmatpush1.bf16.msra.mxu0 0
  %3365 = vmatprep.subr.bf16.mxu0 0
  %3366 = vmatpush1.bf16.msra.mxu0 0
  %3367 = vmatprep.subr.bf16.mxu0 0
  %3368 = vmatpush1.bf16.msra.mxu0 0
  %3369 = vmatprep.subr.bf16.mxu0 0
  %3370 = vmatpush1.bf16.msra.mxu0 0
  %3371 = vmatprep.subr.bf16.mxu0 0
  %3372 = vmatpush1.bf16.msra.mxu0 0
  %3373 = vmatprep.mubr.bf16.mxu0 0
  %3374 = vmatmul.mubr.bf16.gmra.mrb[0].mxu0 %v3330
  %v3375 = vpop.f32.mrb[0].mxu0
  %v3376 = vadd.f32 %v3303, %v3375
  %v3377 = vpop.f32.mrb[0].mxu0
  %v3378 = vpop.f32.mrb[0].mxu0
  %v3379 = vadd.f32 %v3303, %v3378
  %v3380 = vpop.f32.mrb[0].mxu0
  %3381 = vmatprep.mubr.bf16.mxu0 0
  %3382 = vmatmul.mubr.bf16.gmra.mrb[0].mxu0 %v3333
  %v3383 = vpop.f32.mrb[0].mxu0
  %v3384 = vadd.f32 %v3303, %v3383
  %v3385 = vpop.f32.mrb[0].mxu0
  %v3386 = vpop.f32.mrb[0].mxu0
  %v3387 = vadd.f32 %v3303, %v3386
  %v3388 = vpop.f32.mrb[0].mxu0
  %3389 = vmatprep.mubr.bf16.mxu0 0
  %3390 = vmatmul.mubr.bf16.gmra.mrb[0].mxu0 %v3336
  %v3391 = vpop.f32.mrb[0].mxu0
  %v3392 = vadd.f32 %v3303, %v3391
  %v3393 = vpop.f32.mrb[0].mxu0
  %v3394 = vpop.f32.mrb[0].mxu0
  %v3395 = vadd.f32 %v3303, %v3394
  %v3396 = vpop.f32.mrb[0].mxu0
  %3397 = vmatprep.mubr.bf16.mxu0 0
  %3398 = vmatmul.mubr.bf16.gmra.mrb[0].mxu0 %v3339
  %v3399 = vpop.f32.mrb[0].mxu0
  %v3400 = vadd.f32 %v3303, %v3399
  %v3401 = vpop.f32.mrb[0].mxu0
  %v3402 = vpop.f32.mrb[0].mxu0
  %v3403 = vadd.f32 %v3303, %v3402
  %v3404 = vpop.f32.mrb[0].mxu0
  %3405 = vdwg.mxu0
  %v3406 = vadd.f32 %v3166, %v3376
  %v3407 = vadd.f32 %v3167, %v3379
  %v3408 = vadd.f32 %v3168, %v3384
  %v3409 = vadd.f32 %v3169, %v3387
  %v3410 = vadd.f32 %v3170, %v3392
  %v3411 = vadd.f32 %v3171, %v3395
  %v3412 = vadd.f32 %v3172, %v3400
  %v3413 = vadd.f32 %v3173, %v3403
  %v3414 = vld [vmem:[%s18] sm:$0x1]
  %v3415 = vld [vmem:[%s19] sm:$0x1]
  %v3416 = vsel %vm315, %v3406, 0.0
  %3417 = vadd.xlane.f32.xlu0 %v3416
  %v3418 = vpop.xlane.xlu0 %3417
  %v3419 = vsel %vm315, %v3407, 0.0
  %3420 = vadd.xlane.f32.xlu0 %v3419
  %v3421 = vpop.xlane.xlu0 %3420
  %v3422 = vsel %vm315, %v3408, 0.0
  %3423 = vadd.xlane.f32.xlu0 %v3422
  %v3424 = vpop.xlane.xlu0 %3423
  %v3425 = vsel %vm315, %v3409, 0.0
  %3426 = vadd.xlane.f32.xlu0 %v3425
  %v3427 = vpop.xlane.xlu0 %3426
  %v3428 = vsel %vm315, %v3410, 0.0
  %3429 = vadd.xlane.f32.xlu0 %v3428
  %v3430 = vpop.xlane.xlu0 %3429
  %v3431 = vsel %vm315, %v3411, 0.0
  %3432 = vadd.xlane.f32.xlu0 %v3431
  %v3433 = vpop.xlane.xlu0 %3432
  %v3434 = vsel %vm315, %v3412, 0.0
  %3435 = vadd.xlane.f32.xlu0 %v3434
  %v3436 = vpop.xlane.xlu0 %3435
  %v3437 = vsel %vm315, %v3413, 0.0
  %3438 = vadd.xlane.f32.xlu0 %v3437
  %v3439 = vpop.xlane.xlu0 %3438
  %v3440 = vmul.f32 %v3418, %v3049
  %v3441 = vmul.f32 %v3421, %v3049
  %v3442 = vmul.f32 %v3424, %v3049
  %v3443 = vmul.f32 %v3427, %v3049
  %v3444 = vmul.f32 %v3430, %v3049
  %v3445 = vmul.f32 %v3433, %v3049
  %v3446 = vmul.f32 %v3436, %v3049
  %v3447 = vmul.f32 %v3439, %v3049
  %v3448 = vmul.f32 %v3406, %v3406
  %v3449 = vmul.f32 %v3407, %v3407
  %v3450 = vmul.f32 %v3408, %v3408
  %v3451 = vmul.f32 %v3409, %v3409
  %v3452 = vmul.f32 %v3410, %v3410
  %v3453 = vmul.f32 %v3411, %v3411
  %v3454 = vmul.f32 %v3412, %v3412
  %v3455 = vmul.f32 %v3413, %v3413
  %v3456 = vsel %vm315, %v3448, 0.0
  %3457 = vadd.xlane.f32.xlu0 %v3456
  %v3458 = vpop.xlane.xlu0 %3457
  %v3459 = vsel %vm315, %v3449, 0.0
  %3460 = vadd.xlane.f32.xlu0 %v3459
  %v3461 = vpop.xlane.xlu0 %3460
  %v3462 = vsel %vm315, %v3450, 0.0
  %3463 = vadd.xlane.f32.xlu0 %v3462
  %v3464 = vpop.xlane.xlu0 %3463
  %v3465 = vsel %vm315, %v3451, 0.0
  %3466 = vadd.xlane.f32.xlu0 %v3465
  %v3467 = vpop.xlane.xlu0 %3466
  %v3468 = vsel %vm315, %v3452, 0.0
  %3469 = vadd.xlane.f32.xlu0 %v3468
  %v3470 = vpop.xlane.xlu0 %3469
  %v3471 = vsel %vm315, %v3453, 0.0
  %3472 = vadd.xlane.f32.xlu0 %v3471
  %v3473 = vpop.xlane.xlu0 %3472
  %v3474 = vsel %vm315, %v3454, 0.0
  %3475 = vadd.xlane.f32.xlu0 %v3474
  %v3476 = vpop.xlane.xlu0 %3475
  %v3477 = vsel %vm315, %v3455, 0.0
  %3478 = vadd.xlane.f32.xlu0 %v3477
  %v3479 = vpop.xlane.xlu0 %3478
  %v3480 = vmul.f32 %v3458, %v3049
  %v3481 = vmul.f32 %v3461, %v3049
  %v3482 = vmul.f32 %v3464, %v3049
  %v3483 = vmul.f32 %v3467, %v3049
  %v3484 = vmul.f32 %v3470, %v3049
  %v3485 = vmul.f32 %v3473, %v3049
  %v3486 = vmul.f32 %v3476, %v3049
  %v3487 = vmul.f32 %v3479, %v3049
  %v3488 = vmul.f32 %v3440, %v3440
  %v3489 = vmul.f32 %v3441, %v3441
  %v3490 = vmul.f32 %v3442, %v3442
  %v3491 = vmul.f32 %v3443, %v3443
  %v3492 = vmul.f32 %v3444, %v3444
  %v3493 = vmul.f32 %v3445, %v3445
  %v3494 = vmul.f32 %v3446, %v3446
  %v3495 = vmul.f32 %v3447, %v3447
  %v3496 = vsub.f32 %v3480, %v3488
  %v3497 = vsub.f32 %v3481, %v3489
  %v3498 = vsub.f32 %v3482, %v3490
  %v3499 = vsub.f32 %v3483, %v3491
  %v3500 = vsub.f32 %v3484, %v3492
  %v3501 = vsub.f32 %v3485, %v3493
  %v3502 = vsub.f32 %v3486, %v3494
  %v3503 = vsub.f32 %v3487, %v3495
  %v3504 = vsub.f32 %v3406, %v3440
  %v3505 = vsub.f32 %v3407, %v3441
  %v3506 = vsub.f32 %v3408, %v3442
  %v3507 = vsub.f32 %v3409, %v3443
  %v3508 = vsub.f32 %v3410, %v3444
  %v3509 = vsub.f32 %v3411, %v3445
  %v3510 = vsub.f32 %v3412, %v3446
  %v3511 = vsub.f32 %v3413, %v3447
  %v3512 = vadd.f32 %v3496, 1e-05
  %v3513 = vadd.f32 %v3497, 1e-05
  %v3514 = vadd.f32 %v3498, 1e-05
  %v3515 = vadd.f32 %v3499, 1e-05
  %v3516 = vadd.f32 %v3500, 1e-05
  %v3517 = vadd.f32 %v3501, 1e-05
  %v3518 = vadd.f32 %v3502, 1e-05
  %v3519 = vadd.f32 %v3503, 1e-05
  %v3520 = vrsqrt.pop %v3512
  %v3521 = vrsqrt.pop %v3513
  %v3522 = vrsqrt.pop %v3514
  %v3523 = vrsqrt.pop %v3515
  %v3524 = vrsqrt.pop %v3516
  %v3525 = vrsqrt.pop %v3517
  %v3526 = vrsqrt.pop %v3518
  %v3527 = vrsqrt.pop %v3519
  %v3528 = vmul.f32 %v3504, %v3520
  %v3529 = vmul.f32 %v3505, %v3521
  %v3530 = vmul.f32 %v3506, %v3522
  %v3531 = vmul.f32 %v3507, %v3523
  %v3532 = vmul.f32 %v3508, %v3524
  %v3533 = vmul.f32 %v3509, %v3525
  %v3534 = vmul.f32 %v3510, %v3526
  %v3535 = vmul.f32 %v3511, %v3527
  %v3537 = vlaneseq
  %v3538 = vshrl.u32 %v3537, 7
  %v3539 = vsub.s32 0, %v3538
  %v3540 = vrot.slane %v3414, %v3539
  %v3542 = vmul.f32 %v3528, %v3540
  %v3543 = vmul.f32 %v3529, %v3540
  %v3544 = vmul.f32 %v3530, %v3540
  %v3545 = vmul.f32 %v3531, %v3540
  %v3546 = vmul.f32 %v3532, %v3540
  %v3547 = vmul.f32 %v3533, %v3540
  %v3548 = vmul.f32 %v3534, %v3540
  %v3549 = vmul.f32 %v3535, %v3540
  %v3551 = vlaneseq
  %v3552 = vshrl.u32 %v3551, 7
  %v3553 = vsub.s32 0, %v3552
  %v3554 = vrot.slane %v3415, %v3553
  %v3556 = vadd.f32 %v3542, %v3554
  %v3557 = vadd.f32 %v3543, %v3554
  %v3558 = vadd.f32 %v3544, %v3554
  %v3559 = vadd.f32 %v3545, %v3554
  %v3560 = vadd.f32 %v3546, %v3554
  %v3561 = vadd.f32 %v3547, %v3554
  %v3562 = vadd.f32 %v3548, %v3554
  %v3563 = vadd.f32 %v3549, %v3554
  %v3564 = vpack.c.bf16 %v3557, %v3556
  %v3565 = vpack.c.bf16 %v3559, %v3558
  %v3566 = vpack.c.bf16 %v3561, %v3560
  %v3567 = vpack.c.bf16 %v3563, %v3562
  %s3568 = scalar_lea.vmem %s8, 64
  %v3569 = vld [vmem:[%s3568] sm:$0xf]
  %v3570 = vld [vmem:[%s3568 + $0x4] sm:$0xf]
  %v3571 = vld [vmem:[%s3568 + $0x8] sm:$0xf]
  %v3572 = vld [vmem:[%s3568 + $0xc] sm:$0xf]
  %v3573 = vld [vmem:[%s3568 + $0x10] sm:$0xf]
  %v3574 = vld [vmem:[%s3568 + $0x14] sm:$0xf]
  %v3575 = vld [vmem:[%s3568 + $0x18] sm:$0xf]
  %v3576 = vld [vmem:[%s3568 + $0x1c] sm:$0xf]
  %v3577 = vld [vmem:[%s3568 + $0x20] sm:$0xf]
  %v3578 = vld [vmem:[%s3568 + $0x24] sm:$0xf]
  %v3579 = vld [vmem:[%s3568 + $0x28] sm:$0xf]
  %v3580 = vld [vmem:[%s3568 + $0x2c] sm:$0xf]
  %v3581 = vld [vmem:[%s3568 + $0x30] sm:$0xf]
  %v3582 = vld [vmem:[%s3568 + $0x34] sm:$0xf]
  %v3583 = vld [vmem:[%s3568 + $0x38] sm:$0xf]
  %v3584 = vld [vmem:[%s3568 + $0x3c] sm:$0xf]
  %v3589 = vunpack.c.l.b16 %v3569
  %v3590 = vunpack.c.l.b16 %v3570
  %v3591 = vunpack.c.l.b16 %v3571
  %v3592 = vunpack.c.l.b16 %v3572
  %v3593 = vpack.c.b16 %v3590, %v3589
  %v3594 = vpack.c.b16 %v3592, %v3591
  %v3598 = vsel %vm315, %v3564, 0
  %v3601 = vsel %vm315, %v3565, 0
  %v3604 = vsel %vm315, %v3566, 0
  %v3607 = vsel %vm315, %v3567, 0
  %3609 = vmatprep.subr.bf16.mxu0 0
  %3610 = vmatpush1.bf16.msra.mxu0 %v3593
  %3611 = vmatprep.subr.bf16.mxu0 0
  %3612 = vmatpush1.bf16.msra.mxu0 %v3594
  %3613 = vmatprep.subr.bf16.mxu0 0
  %3614 = vmatpush1.bf16.msra.mxu0 0
  %3615 = vmatprep.subr.bf16.mxu0 0
  %3616 = vmatpush1.bf16.msra.mxu0 0
  %3617 = vmatprep.subr.bf16.mxu0 0
  %3618 = vmatpush1.bf16.msra.mxu0 0
  %3619 = vmatprep.subr.bf16.mxu0 0
  %3620 = vmatpush1.bf16.msra.mxu0 0
  %3621 = vmatprep.subr.bf16.mxu0 0
  %3622 = vmatpush1.bf16.msra.mxu0 0
  %3623 = vmatprep.subr.bf16.mxu0 0
  %3624 = vmatpush1.bf16.msra.mxu0 0
  %3625 = vmatprep.subr.bf16.mxu0 0
  %3626 = vmatpush1.bf16.msra.mxu0 0
  %3627 = vmatprep.subr.bf16.mxu0 0
  %3628 = vmatpush1.bf16.msra.mxu0 0
  %3629 = vmatprep.subr.bf16.mxu0 0
  %3630 = vmatpush1.bf16.msra.mxu0 0
  %3631 = vmatprep.subr.bf16.mxu0 0
  %3632 = vmatpush1.bf16.msra.mxu0 0
  %3633 = vmatprep.subr.bf16.mxu0 0
  %3634 = vmatpush1.bf16.msra.mxu0 0
  %3635 = vmatprep.subr.bf16.mxu0 0
  %3636 = vmatpush1.bf16.msra.mxu0 0
  %3637 = vmatprep.subr.bf16.mxu0 0
  %3638 = vmatpush1.bf16.msra.mxu0 0
  %3639 = vmatprep.subr.bf16.mxu0 0
  %3640 = vmatpush1.bf16.msra.mxu0 0
  %3641 = vmatprep.mubr.bf16.mxu0 0
  %3642 = vmatmul.mubr.bf16.gmra.mrb[0].mxu0 %v3598
  %v3643 = vpop.f32.mrb[0].mxu0
  %v3644 = vadd.f32 0.0, %v3643
  %v3645 = vpop.f32.mrb[0].mxu0
  %v3646 = vpop.f32.mrb[0].mxu0
  %v3647 = vadd.f32 0.0, %v3646
  %v3648 = vpop.f32.mrb[0].mxu0
  %3649 = vmatprep.mubr.bf16.mxu0 0
  %3650 = vmatmul.mubr.bf16.gmra.mrb[0].mxu0 %v3601
  %v3651 = vpop.f32.mrb[0].mxu0
  %v3652 = vadd.f32 0.0, %v3651
  %v3653 = vpop.f32.mrb[0].mxu0
  %v3654 = vpop.f32.mrb[0].mxu0
  %v3655 = vadd.f32 0.0, %v3654
  %v3656 = vpop.f32.mrb[0].mxu0
  %3657 = vmatprep.mubr.bf16.mxu0 0
  %3658 = vmatmul.mubr.bf16.gmra.mrb[0].mxu0 %v3604
  %v3659 = vpop.f32.mrb[0].mxu0
  %v3660 = vadd.f32 0.0, %v3659
  %v3661 = vpop.f32.mrb[0].mxu0
  %v3662 = vpop.f32.mrb[0].mxu0
  %v3663 = vadd.f32 0.0, %v3662
  %v3664 = vpop.f32.mrb[0].mxu0
  %3665 = vmatprep.mubr.bf16.mxu0 0
  %3666 = vmatmul.mubr.bf16.gmra.mrb[0].mxu0 %v3607
  %v3667 = vpop.f32.mrb[0].mxu0
  %v3668 = vadd.f32 0.0, %v3667
  %v3669 = vpop.f32.mrb[0].mxu0
  %v3670 = vpop.f32.mrb[0].mxu0
  %v3671 = vadd.f32 0.0, %v3670
  %v3672 = vpop.f32.mrb[0].mxu0
  %3673 = vdwg.mxu0
  %v3678 = vunpack.c.l.b16 %v3573
  %v3679 = vunpack.c.l.b16 %v3574
  %v3680 = vunpack.c.l.b16 %v3575
  %v3681 = vunpack.c.l.b16 %v3576
  %v3682 = vpack.c.b16 %v3679, %v3678
  %v3683 = vpack.c.b16 %v3681, %v3680
  %3686 = vmatprep.subr.bf16.mxu0 0
  %3687 = vmatpush1.bf16.msra.mxu0 %v3682
  %3688 = vmatprep.subr.bf16.mxu0 0
  %3689 = vmatpush1.bf16.msra.mxu0 %v3683
  %3690 = vmatprep.subr.bf16.mxu0 0
  %3691 = vmatpush1.bf16.msra.mxu0 0
  %3692 = vmatprep.subr.bf16.mxu0 0
  %3693 = vmatpush1.bf16.msra.mxu0 0
  %3694 = vmatprep.subr.bf16.mxu0 0
  %3695 = vmatpush1.bf16.msra.mxu0 0
  %3696 = vmatprep.subr.bf16.mxu0 0
  %3697 = vmatpush1.bf16.msra.mxu0 0
  %3698 = vmatprep.subr.bf16.mxu0 0
  %3699 = vmatpush1.bf16.msra.mxu0 0
  %3700 = vmatprep.subr.bf16.mxu0 0
  %3701 = vmatpush1.bf16.msra.mxu0 0
  %3702 = vmatprep.subr.bf16.mxu0 0
  %3703 = vmatpush1.bf16.msra.mxu0 0
  %3704 = vmatprep.subr.bf16.mxu0 0
  %3705 = vmatpush1.bf16.msra.mxu0 0
  %3706 = vmatprep.subr.bf16.mxu0 0
  %3707 = vmatpush1.bf16.msra.mxu0 0
  %3708 = vmatprep.subr.bf16.mxu0 0
  %3709 = vmatpush1.bf16.msra.mxu0 0
  %3710 = vmatprep.subr.bf16.mxu0 0
  %3711 = vmatpush1.bf16.msra.mxu0 0
  %3712 = vmatprep.subr.bf16.mxu0 0
  %3713 = vmatpush1.bf16.msra.mxu0 0
  %3714 = vmatprep.subr.bf16.mxu0 0
  %3715 = vmatpush1.bf16.msra.mxu0 0
  %3716 = vmatprep.subr.bf16.mxu0 0
  %3717 = vmatpush1.bf16.msra.mxu0 0
  %3718 = vmatprep.mubr.bf16.mxu0 0
  %3719 = vmatmul.mubr.bf16.gmra.mrb[0].mxu0 %v3598
  %v3720 = vpop.f32.mrb[0].mxu0
  %v3721 = vadd.f32 0.0, %v3720
  %v3722 = vpop.f32.mrb[0].mxu0
  %v3723 = vpop.f32.mrb[0].mxu0
  %v3724 = vadd.f32 0.0, %v3723
  %v3725 = vpop.f32.mrb[0].mxu0
  %3726 = vmatprep.mubr.bf16.mxu0 0
  %3727 = vmatmul.mubr.bf16.gmra.mrb[0].mxu0 %v3601
  %v3728 = vpop.f32.mrb[0].mxu0
  %v3729 = vadd.f32 0.0, %v3728
  %v3730 = vpop.f32.mrb[0].mxu0
  %v3731 = vpop.f32.mrb[0].mxu0
  %v3732 = vadd.f32 0.0, %v3731
  %v3733 = vpop.f32.mrb[0].mxu0
  %3734 = vmatprep.mubr.bf16.mxu0 0
  %3735 = vmatmul.mubr.bf16.gmra.mrb[0].mxu0 %v3604
  %v3736 = vpop.f32.mrb[0].mxu0
  %v3737 = vadd.f32 0.0, %v3736
  %v3738 = vpop.f32.mrb[0].mxu0
  %v3739 = vpop.f32.mrb[0].mxu0
  %v3740 = vadd.f32 0.0, %v3739
  %v3741 = vpop.f32.mrb[0].mxu0
  %3742 = vmatprep.mubr.bf16.mxu0 0
  %3743 = vmatmul.mubr.bf16.gmra.mrb[0].mxu0 %v3607
  %v3744 = vpop.f32.mrb[0].mxu0
  %v3745 = vadd.f32 0.0, %v3744
  %v3746 = vpop.f32.mrb[0].mxu0
  %v3747 = vpop.f32.mrb[0].mxu0
  %v3748 = vadd.f32 0.0, %v3747
  %v3749 = vpop.f32.mrb[0].mxu0
  %3750 = vdwg.mxu0
  %v3755 = vunpack.c.l.b16 %v3577
  %v3756 = vunpack.c.l.b16 %v3578
  %v3757 = vunpack.c.l.b16 %v3579
  %v3758 = vunpack.c.l.b16 %v3580
  %v3759 = vpack.c.b16 %v3756, %v3755
  %v3760 = vpack.c.b16 %v3758, %v3757
  %3763 = vmatprep.subr.bf16.mxu0 0
  %3764 = vmatpush1.bf16.msra.mxu0 %v3759
  %3765 = vmatprep.subr.bf16.mxu0 0
  %3766 = vmatpush1.bf16.msra.mxu0 %v3760
  %3767 = vmatprep.subr.bf16.mxu0 0
  %3768 = vmatpush1.bf16.msra.mxu0 0
  %3769 = vmatprep.subr.bf16.mxu0 0
  %3770 = vmatpush1.bf16.msra.mxu0 0
  %3771 = vmatprep.subr.bf16.mxu0 0
  %3772 = vmatpush1.bf16.msra.mxu0 0
  %3773 = vmatprep.subr.bf16.mxu0 0
  %3774 = vmatpush1.bf16.msra.mxu0 0
  %3775 = vmatprep.subr.bf16.mxu0 0
  %3776 = vmatpush1.bf16.msra.mxu0 0
  %3777 = vmatprep.subr.bf16.mxu0 0
  %3778 = vmatpush1.bf16.msra.mxu0 0
  %3779 = vmatprep.subr.bf16.mxu0 0
  %3780 = vmatpush1.bf16.msra.mxu0 0
  %3781 = vmatprep.subr.bf16.mxu0 0
  %3782 = vmatpush1.bf16.msra.mxu0 0
  %3783 = vmatprep.subr.bf16.mxu0 0
  %3784 = vmatpush1.bf16.msra.mxu0 0
  %3785 = vmatprep.subr.bf16.mxu0 0
  %3786 = vmatpush1.bf16.msra.mxu0 0
  %3787 = vmatprep.subr.bf16.mxu0 0
  %3788 = vmatpush1.bf16.msra.mxu0 0
  %3789 = vmatprep.subr.bf16.mxu0 0
  %3790 = vmatpush1.bf16.msra.mxu0 0
  %3791 = vmatprep.subr.bf16.mxu0 0
  %3792 = vmatpush1.bf16.msra.mxu0 0
  %3793 = vmatprep.subr.bf16.mxu0 0
  %3794 = vmatpush1.bf16.msra.mxu0 0
  %3795 = vmatprep.mubr.bf16.mxu0 0
  %3796 = vmatmul.mubr.bf16.gmra.mrb[0].mxu0 %v3598
  %v3797 = vpop.f32.mrb[0].mxu0
  %v3798 = vadd.f32 0.0, %v3797
  %v3799 = vpop.f32.mrb[0].mxu0
  %v3800 = vpop.f32.mrb[0].mxu0
  %v3801 = vadd.f32 0.0, %v3800
  %v3802 = vpop.f32.mrb[0].mxu0
  %3803 = vmatprep.mubr.bf16.mxu0 0
  %3804 = vmatmul.mubr.bf16.gmra.mrb[0].mxu0 %v3601
  %v3805 = vpop.f32.mrb[0].mxu0
  %v3806 = vadd.f32 0.0, %v3805
  %v3807 = vpop.f32.mrb[0].mxu0
  %v3808 = vpop.f32.mrb[0].mxu0
  %v3809 = vadd.f32 0.0, %v3808
  %v3810 = vpop.f32.mrb[0].mxu0
  %3811 = vmatprep.mubr.bf16.mxu0 0
  %3812 = vmatmul.mubr.bf16.gmra.mrb[0].mxu0 %v3604
  %v3813 = vpop.f32.mrb[0].mxu0
  %v3814 = vadd.f32 0.0, %v3813
  %v3815 = vpop.f32.mrb[0].mxu0
  %v3816 = vpop.f32.mrb[0].mxu0
  %v3817 = vadd.f32 0.0, %v3816
  %v3818 = vpop.f32.mrb[0].mxu0
  %3819 = vmatprep.mubr.bf16.mxu0 0
  %3820 = vmatmul.mubr.bf16.gmra.mrb[0].mxu0 %v3607
  %v3821 = vpop.f32.mrb[0].mxu0
  %v3822 = vadd.f32 0.0, %v3821
  %v3823 = vpop.f32.mrb[0].mxu0
  %v3824 = vpop.f32.mrb[0].mxu0
  %v3825 = vadd.f32 0.0, %v3824
  %v3826 = vpop.f32.mrb[0].mxu0
  %3827 = vdwg.mxu0
  %v3832 = vunpack.c.l.b16 %v3581
  %v3833 = vunpack.c.l.b16 %v3582
  %v3834 = vunpack.c.l.b16 %v3583
  %v3835 = vunpack.c.l.b16 %v3584
  %v3836 = vpack.c.b16 %v3833, %v3832
  %v3837 = vpack.c.b16 %v3835, %v3834
  %3840 = vmatprep.subr.bf16.mxu0 0
  %3841 = vmatpush1.bf16.msra.mxu0 %v3836
  %3842 = vmatprep.subr.bf16.mxu0 0
  %3843 = vmatpush1.bf16.msra.mxu0 %v3837
  %3844 = vmatprep.subr.bf16.mxu0 0
  %3845 = vmatpush1.bf16.msra.mxu0 0
  %3846 = vmatprep.subr.bf16.mxu0 0
  %3847 = vmatpush1.bf16.msra.mxu0 0
  %3848 = vmatprep.subr.bf16.mxu0 0
  %3849 = vmatpush1.bf16.msra.mxu0 0
  %3850 = vmatprep.subr.bf16.mxu0 0
  %3851 = vmatpush1.bf16.msra.mxu0 0
  %3852 = vmatprep.subr.bf16.mxu0 0
  %3853 = vmatpush1.bf16.msra.mxu0 0
  %3854 = vmatprep.subr.bf16.mxu0 0
  %3855 = vmatpush1.bf16.msra.mxu0 0
  %3856 = vmatprep.subr.bf16.mxu0 0
  %3857 = vmatpush1.bf16.msra.mxu0 0
  %3858 = vmatprep.subr.bf16.mxu0 0
  %3859 = vmatpush1.bf16.msra.mxu0 0
  %3860 = vmatprep.subr.bf16.mxu0 0
  %3861 = vmatpush1.bf16.msra.mxu0 0
  %3862 = vmatprep.subr.bf16.mxu0 0
  %3863 = vmatpush1.bf16.msra.mxu0 0
  %3864 = vmatprep.subr.bf16.mxu0 0
  %3865 = vmatpush1.bf16.msra.mxu0 0
  %3866 = vmatprep.subr.bf16.mxu0 0
  %3867 = vmatpush1.bf16.msra.mxu0 0
  %3868 = vmatprep.subr.bf16.mxu0 0
  %3869 = vmatpush1.bf16.msra.mxu0 0
  %3870 = vmatprep.subr.bf16.mxu0 0
  %3871 = vmatpush1.bf16.msra.mxu0 0
  %3872 = vmatprep.mubr.bf16.mxu0 0
  %3873 = vmatmul.mubr.bf16.gmra.mrb[0].mxu0 %v3598
  %v3874 = vpop.f32.mrb[0].mxu0
  %v3875 = vadd.f32 0.0, %v3874
  %v3876 = vpop.f32.mrb[0].mxu0
  %v3877 = vpop.f32.mrb[0].mxu0
  %v3878 = vadd.f32 0.0, %v3877
  %v3879 = vpop.f32.mrb[0].mxu0
  %3880 = vmatprep.mubr.bf16.mxu0 0
  %3881 = vmatmul.mubr.bf16.gmra.mrb[0].mxu0 %v3601
  %v3882 = vpop.f32.mrb[0].mxu0
  %v3883 = vadd.f32 0.0, %v3882
  %v3884 = vpop.f32.mrb[0].mxu0
  %v3885 = vpop.f32.mrb[0].mxu0
  %v3886 = vadd.f32 0.0, %v3885
  %v3887 = vpop.f32.mrb[0].mxu0
  %3888 = vmatprep.mubr.bf16.mxu0 0
  %3889 = vmatmul.mubr.bf16.gmra.mrb[0].mxu0 %v3604
  %v3890 = vpop.f32.mrb[0].mxu0
  %v3891 = vadd.f32 0.0, %v3890
  %v3892 = vpop.f32.mrb[0].mxu0
  %v3893 = vpop.f32.mrb[0].mxu0
  %v3894 = vadd.f32 0.0, %v3893
  %v3895 = vpop.f32.mrb[0].mxu0
  %3896 = vmatprep.mubr.bf16.mxu0 0
  %3897 = vmatmul.mubr.bf16.gmra.mrb[0].mxu0 %v3607
  %v3898 = vpop.f32.mrb[0].mxu0
  %v3899 = vadd.f32 0.0, %v3898
  %v3900 = vpop.f32.mrb[0].mxu0
  %v3901 = vpop.f32.mrb[0].mxu0
  %v3902 = vadd.f32 0.0, %v3901
  %v3903 = vpop.f32.mrb[0].mxu0
  %3904 = vdwg.mxu0
  %s3905 = scalar_lea.vmem %s9, 64
  %v3906 = vld [vmem:[%s3905] sm:$0xf]
  %v3907 = vld [vmem:[%s3905 + $0x4] sm:$0xf]
  %v3908 = vld [vmem:[%s3905 + $0x8] sm:$0xf]
  %v3909 = vld [vmem:[%s3905 + $0xc] sm:$0xf]
  %v3910 = vld [vmem:[%s3905 + $0x10] sm:$0xf]
  %v3911 = vld [vmem:[%s3905 + $0x14] sm:$0xf]
  %v3912 = vld [vmem:[%s3905 + $0x18] sm:$0xf]
  %v3913 = vld [vmem:[%s3905 + $0x1c] sm:$0xf]
  %v3914 = vld [vmem:[%s3905 + $0x20] sm:$0xf]
  %v3915 = vld [vmem:[%s3905 + $0x24] sm:$0xf]
  %v3916 = vld [vmem:[%s3905 + $0x28] sm:$0xf]
  %v3917 = vld [vmem:[%s3905 + $0x2c] sm:$0xf]
  %v3918 = vld [vmem:[%s3905 + $0x30] sm:$0xf]
  %v3919 = vld [vmem:[%s3905 + $0x34] sm:$0xf]
  %v3920 = vld [vmem:[%s3905 + $0x38] sm:$0xf]
  %v3921 = vld [vmem:[%s3905 + $0x3c] sm:$0xf]
  %v3926 = vunpack.c.l.b16 %v3906
  %v3927 = vunpack.c.l.b16 %v3907
  %v3928 = vunpack.c.l.b16 %v3908
  %v3929 = vunpack.c.l.b16 %v3909
  %v3930 = vpack.c.b16 %v3927, %v3926
  %v3931 = vpack.c.b16 %v3929, %v3928
  %3934 = vmatprep.subr.bf16.mxu0 0
  %3935 = vmatpush1.bf16.msra.mxu0 %v3930
  %3936 = vmatprep.subr.bf16.mxu0 0
  %3937 = vmatpush1.bf16.msra.mxu0 %v3931
  %3938 = vmatprep.subr.bf16.mxu0 0
  %3939 = vmatpush1.bf16.msra.mxu0 0
  %3940 = vmatprep.subr.bf16.mxu0 0
  %3941 = vmatpush1.bf16.msra.mxu0 0
  %3942 = vmatprep.subr.bf16.mxu0 0
  %3943 = vmatpush1.bf16.msra.mxu0 0
  %3944 = vmatprep.subr.bf16.mxu0 0
  %3945 = vmatpush1.bf16.msra.mxu0 0
  %3946 = vmatprep.subr.bf16.mxu0 0
  %3947 = vmatpush1.bf16.msra.mxu0 0
  %3948 = vmatprep.subr.bf16.mxu0 0
  %3949 = vmatpush1.bf16.msra.mxu0 0
  %3950 = vmatprep.subr.bf16.mxu0 0
  %3951 = vmatpush1.bf16.msra.mxu0 0
  %3952 = vmatprep.subr.bf16.mxu0 0
  %3953 = vmatpush1.bf16.msra.mxu0 0
  %3954 = vmatprep.subr.bf16.mxu0 0
  %3955 = vmatpush1.bf16.msra.mxu0 0
  %3956 = vmatprep.subr.bf16.mxu0 0
  %3957 = vmatpush1.bf16.msra.mxu0 0
  %3958 = vmatprep.subr.bf16.mxu0 0
  %3959 = vmatpush1.bf16.msra.mxu0 0
  %3960 = vmatprep.subr.bf16.mxu0 0
  %3961 = vmatpush1.bf16.msra.mxu0 0
  %3962 = vmatprep.subr.bf16.mxu0 0
  %3963 = vmatpush1.bf16.msra.mxu0 0
  %3964 = vmatprep.subr.bf16.mxu0 0
  %3965 = vmatpush1.bf16.msra.mxu0 0
  %3966 = vmatprep.mubr.bf16.mxu0 0
  %3967 = vmatmul.mubr.bf16.gmra.mrb[0].mxu0 %v3598
  %v3968 = vpop.f32.mrb[0].mxu0
  %v3969 = vadd.f32 0.0, %v3968
  %v3970 = vpop.f32.mrb[0].mxu0
  %v3971 = vpop.f32.mrb[0].mxu0
  %v3972 = vadd.f32 0.0, %v3971
  %v3973 = vpop.f32.mrb[0].mxu0
  %3974 = vmatprep.mubr.bf16.mxu0 0
  %3975 = vmatmul.mubr.bf16.gmra.mrb[0].mxu0 %v3601
  %v3976 = vpop.f32.mrb[0].mxu0
  %v3977 = vadd.f32 0.0, %v3976
  %v3978 = vpop.f32.mrb[0].mxu0
  %v3979 = vpop.f32.mrb[0].mxu0
  %v3980 = vadd.f32 0.0, %v3979
  %v3981 = vpop.f32.mrb[0].mxu0
  %3982 = vmatprep.mubr.bf16.mxu0 0
  %3983 = vmatmul.mubr.bf16.gmra.mrb[0].mxu0 %v3604
  %v3984 = vpop.f32.mrb[0].mxu0
  %v3985 = vadd.f32 0.0, %v3984
  %v3986 = vpop.f32.mrb[0].mxu0
  %v3987 = vpop.f32.mrb[0].mxu0
  %v3988 = vadd.f32 0.0, %v3987
  %v3989 = vpop.f32.mrb[0].mxu0
  %3990 = vmatprep.mubr.bf16.mxu0 0
  %3991 = vmatmul.mubr.bf16.gmra.mrb[0].mxu0 %v3607
  %v3992 = vpop.f32.mrb[0].mxu0
  %v3993 = vadd.f32 0.0, %v3992
  %v3994 = vpop.f32.mrb[0].mxu0
  %v3995 = vpop.f32.mrb[0].mxu0
  %v3996 = vadd.f32 0.0, %v3995
  %v3997 = vpop.f32.mrb[0].mxu0
  %3998 = vdwg.mxu0
  %v4003 = vunpack.c.l.b16 %v3910
  %v4004 = vunpack.c.l.b16 %v3911
  %v4005 = vunpack.c.l.b16 %v3912
  %v4006 = vunpack.c.l.b16 %v3913
  %v4007 = vpack.c.b16 %v4004, %v4003
  %v4008 = vpack.c.b16 %v4006, %v4005
  %4011 = vmatprep.subr.bf16.mxu0 0
  %4012 = vmatpush1.bf16.msra.mxu0 %v4007
  %4013 = vmatprep.subr.bf16.mxu0 0
  %4014 = vmatpush1.bf16.msra.mxu0 %v4008
  %4015 = vmatprep.subr.bf16.mxu0 0
  %4016 = vmatpush1.bf16.msra.mxu0 0
  %4017 = vmatprep.subr.bf16.mxu0 0
  %4018 = vmatpush1.bf16.msra.mxu0 0
  %4019 = vmatprep.subr.bf16.mxu0 0
  %4020 = vmatpush1.bf16.msra.mxu0 0
  %4021 = vmatprep.subr.bf16.mxu0 0
  %4022 = vmatpush1.bf16.msra.mxu0 0
  %4023 = vmatprep.subr.bf16.mxu0 0
  %4024 = vmatpush1.bf16.msra.mxu0 0
  %4025 = vmatprep.subr.bf16.mxu0 0
  %4026 = vmatpush1.bf16.msra.mxu0 0
  %4027 = vmatprep.subr.bf16.mxu0 0
  %4028 = vmatpush1.bf16.msra.mxu0 0
  %4029 = vmatprep.subr.bf16.mxu0 0
  %4030 = vmatpush1.bf16.msra.mxu0 0
  %4031 = vmatprep.subr.bf16.mxu0 0
  %4032 = vmatpush1.bf16.msra.mxu0 0
  %4033 = vmatprep.subr.bf16.mxu0 0
  %4034 = vmatpush1.bf16.msra.mxu0 0
  %4035 = vmatprep.subr.bf16.mxu0 0
  %4036 = vmatpush1.bf16.msra.mxu0 0
  %4037 = vmatprep.subr.bf16.mxu0 0
  %4038 = vmatpush1.bf16.msra.mxu0 0
  %4039 = vmatprep.subr.bf16.mxu0 0
  %4040 = vmatpush1.bf16.msra.mxu0 0
  %4041 = vmatprep.subr.bf16.mxu0 0
  %4042 = vmatpush1.bf16.msra.mxu0 0
  %4043 = vmatprep.mubr.bf16.mxu0 0
  %4044 = vmatmul.mubr.bf16.gmra.mrb[0].mxu0 %v3598
  %v4045 = vpop.f32.mrb[0].mxu0
  %v4046 = vadd.f32 0.0, %v4045
  %v4047 = vpop.f32.mrb[0].mxu0
  %v4048 = vpop.f32.mrb[0].mxu0
  %v4049 = vadd.f32 0.0, %v4048
  %v4050 = vpop.f32.mrb[0].mxu0
  %4051 = vmatprep.mubr.bf16.mxu0 0
  %4052 = vmatmul.mubr.bf16.gmra.mrb[0].mxu0 %v3601
  %v4053 = vpop.f32.mrb[0].mxu0
  %v4054 = vadd.f32 0.0, %v4053
  %v4055 = vpop.f32.mrb[0].mxu0
  %v4056 = vpop.f32.mrb[0].mxu0
  %v4057 = vadd.f32 0.0, %v4056
  %v4058 = vpop.f32.mrb[0].mxu0
  %4059 = vmatprep.mubr.bf16.mxu0 0
  %4060 = vmatmul.mubr.bf16.gmra.mrb[0].mxu0 %v3604
  %v4061 = vpop.f32.mrb[0].mxu0
  %v4062 = vadd.f32 0.0, %v4061
  %v4063 = vpop.f32.mrb[0].mxu0
  %v4064 = vpop.f32.mrb[0].mxu0
  %v4065 = vadd.f32 0.0, %v4064
  %v4066 = vpop.f32.mrb[0].mxu0
  %4067 = vmatprep.mubr.bf16.mxu0 0
  %4068 = vmatmul.mubr.bf16.gmra.mrb[0].mxu0 %v3607
  %v4069 = vpop.f32.mrb[0].mxu0
  %v4070 = vadd.f32 0.0, %v4069
  %v4071 = vpop.f32.mrb[0].mxu0
  %v4072 = vpop.f32.mrb[0].mxu0
  %v4073 = vadd.f32 0.0, %v4072
  %v4074 = vpop.f32.mrb[0].mxu0
  %4075 = vdwg.mxu0
  %v4080 = vunpack.c.l.b16 %v3914
  %v4081 = vunpack.c.l.b16 %v3915
  %v4082 = vunpack.c.l.b16 %v3916
  %v4083 = vunpack.c.l.b16 %v3917
  %v4084 = vpack.c.b16 %v4081, %v4080
  %v4085 = vpack.c.b16 %v4083, %v4082
  %4088 = vmatprep.subr.bf16.mxu0 0
  %4089 = vmatpush1.bf16.msra.mxu0 %v4084
  %4090 = vmatprep.subr.bf16.mxu0 0
  %4091 = vmatpush1.bf16.msra.mxu0 %v4085
  %4092 = vmatprep.subr.bf16.mxu0 0
  %4093 = vmatpush1.bf16.msra.mxu0 0
  %4094 = vmatprep.subr.bf16.mxu0 0
  %4095 = vmatpush1.bf16.msra.mxu0 0
  %4096 = vmatprep.subr.bf16.mxu0 0
  %4097 = vmatpush1.bf16.msra.mxu0 0
  %4098 = vmatprep.subr.bf16.mxu0 0
  %4099 = vmatpush1.bf16.msra.mxu0 0
  %4100 = vmatprep.subr.bf16.mxu0 0
  %4101 = vmatpush1.bf16.msra.mxu0 0
  %4102 = vmatprep.subr.bf16.mxu0 0
  %4103 = vmatpush1.bf16.msra.mxu0 0
  %4104 = vmatprep.subr.bf16.mxu0 0
  %4105 = vmatpush1.bf16.msra.mxu0 0
  %4106 = vmatprep.subr.bf16.mxu0 0
  %4107 = vmatpush1.bf16.msra.mxu0 0
  %4108 = vmatprep.subr.bf16.mxu0 0
  %4109 = vmatpush1.bf16.msra.mxu0 0
  %4110 = vmatprep.subr.bf16.mxu0 0
  %4111 = vmatpush1.bf16.msra.mxu0 0
  %4112 = vmatprep.subr.bf16.mxu0 0
  %4113 = vmatpush1.bf16.msra.mxu0 0
  %4114 = vmatprep.subr.bf16.mxu0 0
  %4115 = vmatpush1.bf16.msra.mxu0 0
  %4116 = vmatprep.subr.bf16.mxu0 0
  %4117 = vmatpush1.bf16.msra.mxu0 0
  %4118 = vmatprep.subr.bf16.mxu0 0
  %4119 = vmatpush1.bf16.msra.mxu0 0
  %4120 = vmatprep.mubr.bf16.mxu0 0
  %4121 = vmatmul.mubr.bf16.gmra.mrb[0].mxu0 %v3598
  %v4122 = vpop.f32.mrb[0].mxu0
  %v4123 = vadd.f32 0.0, %v4122
  %v4124 = vpop.f32.mrb[0].mxu0
  %v4125 = vpop.f32.mrb[0].mxu0
  %v4126 = vadd.f32 0.0, %v4125
  %v4127 = vpop.f32.mrb[0].mxu0
  %4128 = vmatprep.mubr.bf16.mxu0 0
  %4129 = vmatmul.mubr.bf16.gmra.mrb[0].mxu0 %v3601
  %v4130 = vpop.f32.mrb[0].mxu0
  %v4131 = vadd.f32 0.0, %v4130
  %v4132 = vpop.f32.mrb[0].mxu0
  %v4133 = vpop.f32.mrb[0].mxu0
  %v4134 = vadd.f32 0.0, %v4133
  %v4135 = vpop.f32.mrb[0].mxu0
  %4136 = vmatprep.mubr.bf16.mxu0 0
  %4137 = vmatmul.mubr.bf16.gmra.mrb[0].mxu0 %v3604
  %v4138 = vpop.f32.mrb[0].mxu0
  %v4139 = vadd.f32 0.0, %v4138
  %v4140 = vpop.f32.mrb[0].mxu0
  %v4141 = vpop.f32.mrb[0].mxu0
  %v4142 = vadd.f32 0.0, %v4141
  %v4143 = vpop.f32.mrb[0].mxu0
  %4144 = vmatprep.mubr.bf16.mxu0 0
  %4145 = vmatmul.mubr.bf16.gmra.mrb[0].mxu0 %v3607
  %v4146 = vpop.f32.mrb[0].mxu0
  %v4147 = vadd.f32 0.0, %v4146
  %v4148 = vpop.f32.mrb[0].mxu0
  %v4149 = vpop.f32.mrb[0].mxu0
  %v4150 = vadd.f32 0.0, %v4149
  %v4151 = vpop.f32.mrb[0].mxu0
  %4152 = vdwg.mxu0
  %v4157 = vunpack.c.l.b16 %v3918
  %v4158 = vunpack.c.l.b16 %v3919
  %v4159 = vunpack.c.l.b16 %v3920
  %v4160 = vunpack.c.l.b16 %v3921
  %v4161 = vpack.c.b16 %v4158, %v4157
  %v4162 = vpack.c.b16 %v4160, %v4159
  %4165 = vmatprep.subr.bf16.mxu0 0
  %4166 = vmatpush1.bf16.msra.mxu0 %v4161
  %4167 = vmatprep.subr.bf16.mxu0 0
  %4168 = vmatpush1.bf16.msra.mxu0 %v4162
  %4169 = vmatprep.subr.bf16.mxu0 0
  %4170 = vmatpush1.bf16.msra.mxu0 0
  %4171 = vmatprep.subr.bf16.mxu0 0
  %4172 = vmatpush1.bf16.msra.mxu0 0
  %4173 = vmatprep.subr.bf16.mxu0 0
  %4174 = vmatpush1.bf16.msra.mxu0 0
  %4175 = vmatprep.subr.bf16.mxu0 0
  %4176 = vmatpush1.bf16.msra.mxu0 0
  %4177 = vmatprep.subr.bf16.mxu0 0
  %4178 = vmatpush1.bf16.msra.mxu0 0
  %4179 = vmatprep.subr.bf16.mxu0 0
  %4180 = vmatpush1.bf16.msra.mxu0 0
  %4181 = vmatprep.subr.bf16.mxu0 0
  %4182 = vmatpush1.bf16.msra.mxu0 0
  %4183 = vmatprep.subr.bf16.mxu0 0
  %4184 = vmatpush1.bf16.msra.mxu0 0
  %4185 = vmatprep.subr.bf16.mxu0 0
  %4186 = vmatpush1.bf16.msra.mxu0 0
  %4187 = vmatprep.subr.bf16.mxu0 0
  %4188 = vmatpush1.bf16.msra.mxu0 0
  %4189 = vmatprep.subr.bf16.mxu0 0
  %4190 = vmatpush1.bf16.msra.mxu0 0
  %4191 = vmatprep.subr.bf16.mxu0 0
  %4192 = vmatpush1.bf16.msra.mxu0 0
  %4193 = vmatprep.subr.bf16.mxu0 0
  %4194 = vmatpush1.bf16.msra.mxu0 0
  %4195 = vmatprep.subr.bf16.mxu0 0
  %4196 = vmatpush1.bf16.msra.mxu0 0
  %4197 = vmatprep.mubr.bf16.mxu0 0
  %4198 = vmatmul.mubr.bf16.gmra.mrb[0].mxu0 %v3598
  %v4199 = vpop.f32.mrb[0].mxu0
  %v4200 = vadd.f32 0.0, %v4199
  %v4201 = vpop.f32.mrb[0].mxu0
  %v4202 = vpop.f32.mrb[0].mxu0
  %v4203 = vadd.f32 0.0, %v4202
  %v4204 = vpop.f32.mrb[0].mxu0
  %4205 = vmatprep.mubr.bf16.mxu0 0
  %4206 = vmatmul.mubr.bf16.gmra.mrb[0].mxu0 %v3601
  %v4207 = vpop.f32.mrb[0].mxu0
  %v4208 = vadd.f32 0.0, %v4207
  %v4209 = vpop.f32.mrb[0].mxu0
  %v4210 = vpop.f32.mrb[0].mxu0
  %v4211 = vadd.f32 0.0, %v4210
  %v4212 = vpop.f32.mrb[0].mxu0
  %4213 = vmatprep.mubr.bf16.mxu0 0
  %4214 = vmatmul.mubr.bf16.gmra.mrb[0].mxu0 %v3604
  %v4215 = vpop.f32.mrb[0].mxu0
  %v4216 = vadd.f32 0.0, %v4215
  %v4217 = vpop.f32.mrb[0].mxu0
  %v4218 = vpop.f32.mrb[0].mxu0
  %v4219 = vadd.f32 0.0, %v4218
  %v4220 = vpop.f32.mrb[0].mxu0
  %4221 = vmatprep.mubr.bf16.mxu0 0
  %4222 = vmatmul.mubr.bf16.gmra.mrb[0].mxu0 %v3607
  %v4223 = vpop.f32.mrb[0].mxu0
  %v4224 = vadd.f32 0.0, %v4223
  %v4225 = vpop.f32.mrb[0].mxu0
  %v4226 = vpop.f32.mrb[0].mxu0
  %v4227 = vadd.f32 0.0, %v4226
  %v4228 = vpop.f32.mrb[0].mxu0
  %4229 = vdwg.mxu0
  %s4230 = scalar_lea.vmem %s10, 64
  %v4231 = vld [vmem:[%s4230] sm:$0xf]
  %v4232 = vld [vmem:[%s4230 + $0x4] sm:$0xf]
  %v4233 = vld [vmem:[%s4230 + $0x8] sm:$0xf]
  %v4234 = vld [vmem:[%s4230 + $0xc] sm:$0xf]
  %v4235 = vld [vmem:[%s4230 + $0x10] sm:$0xf]
  %v4236 = vld [vmem:[%s4230 + $0x14] sm:$0xf]
  %v4237 = vld [vmem:[%s4230 + $0x18] sm:$0xf]
  %v4238 = vld [vmem:[%s4230 + $0x1c] sm:$0xf]
  %v4239 = vld [vmem:[%s4230 + $0x20] sm:$0xf]
  %v4240 = vld [vmem:[%s4230 + $0x24] sm:$0xf]
  %v4241 = vld [vmem:[%s4230 + $0x28] sm:$0xf]
  %v4242 = vld [vmem:[%s4230 + $0x2c] sm:$0xf]
  %v4243 = vld [vmem:[%s4230 + $0x30] sm:$0xf]
  %v4244 = vld [vmem:[%s4230 + $0x34] sm:$0xf]
  %v4245 = vld [vmem:[%s4230 + $0x38] sm:$0xf]
  %v4246 = vld [vmem:[%s4230 + $0x3c] sm:$0xf]
  %v4251 = vunpack.c.l.b16 %v4231
  %v4252 = vunpack.c.l.b16 %v4232
  %v4253 = vunpack.c.l.b16 %v4233
  %v4254 = vunpack.c.l.b16 %v4234
  %v4255 = vpack.c.b16 %v4252, %v4251
  %v4256 = vpack.c.b16 %v4254, %v4253
  %4259 = vmatprep.subr.bf16.mxu0 0
  %4260 = vmatpush1.bf16.msra.mxu0 %v4255
  %4261 = vmatprep.subr.bf16.mxu0 0
  %4262 = vmatpush1.bf16.msra.mxu0 %v4256
  %4263 = vmatprep.subr.bf16.mxu0 0
  %4264 = vmatpush1.bf16.msra.mxu0 0
  %4265 = vmatprep.subr.bf16.mxu0 0
  %4266 = vmatpush1.bf16.msra.mxu0 0
  %4267 = vmatprep.subr.bf16.mxu0 0
  %4268 = vmatpush1.bf16.msra.mxu0 0
  %4269 = vmatprep.subr.bf16.mxu0 0
  %4270 = vmatpush1.bf16.msra.mxu0 0
  %4271 = vmatprep.subr.bf16.mxu0 0
  %4272 = vmatpush1.bf16.msra.mxu0 0
  %4273 = vmatprep.subr.bf16.mxu0 0
  %4274 = vmatpush1.bf16.msra.mxu0 0
  %4275 = vmatprep.subr.bf16.mxu0 0
  %4276 = vmatpush1.bf16.msra.mxu0 0
  %4277 = vmatprep.subr.bf16.mxu0 0
  %4278 = vmatpush1.bf16.msra.mxu0 0
  %4279 = vmatprep.subr.bf16.mxu0 0
  %4280 = vmatpush1.bf16.msra.mxu0 0
  %4281 = vmatprep.subr.bf16.mxu0 0
  %4282 = vmatpush1.bf16.msra.mxu0 0
  %4283 = vmatprep.subr.bf16.mxu0 0
  %4284 = vmatpush1.bf16.msra.mxu0 0
  %4285 = vmatprep.subr.bf16.mxu0 0
  %4286 = vmatpush1.bf16.msra.mxu0 0
  %4287 = vmatprep.subr.bf16.mxu0 0
  %4288 = vmatpush1.bf16.msra.mxu0 0
  %4289 = vmatprep.subr.bf16.mxu0 0
  %4290 = vmatpush1.bf16.msra.mxu0 0
  %4291 = vmatprep.mubr.bf16.mxu0 0
  %4292 = vmatmul.mubr.bf16.gmra.mrb[0].mxu0 %v3598
  %v4293 = vpop.f32.mrb[0].mxu0
  %v4294 = vadd.f32 0.0, %v4293
  %v4295 = vpop.f32.mrb[0].mxu0
  %v4296 = vpop.f32.mrb[0].mxu0
  %v4297 = vadd.f32 0.0, %v4296
  %v4298 = vpop.f32.mrb[0].mxu0
  %4299 = vmatprep.mubr.bf16.mxu0 0
  %4300 = vmatmul.mubr.bf16.gmra.mrb[0].mxu0 %v3601
  %v4301 = vpop.f32.mrb[0].mxu0
  %v4302 = vadd.f32 0.0, %v4301
  %v4303 = vpop.f32.mrb[0].mxu0
  %v4304 = vpop.f32.mrb[0].mxu0
  %v4305 = vadd.f32 0.0, %v4304
  %v4306 = vpop.f32.mrb[0].mxu0
  %4307 = vmatprep.mubr.bf16.mxu0 0
  %4308 = vmatmul.mubr.bf16.gmra.mrb[0].mxu0 %v3604
  %v4309 = vpop.f32.mrb[0].mxu0
  %v4310 = vadd.f32 0.0, %v4309
  %v4311 = vpop.f32.mrb[0].mxu0
  %v4312 = vpop.f32.mrb[0].mxu0
  %v4313 = vadd.f32 0.0, %v4312
  %v4314 = vpop.f32.mrb[0].mxu0
  %4315 = vmatprep.mubr.bf16.mxu0 0
  %4316 = vmatmul.mubr.bf16.gmra.mrb[0].mxu0 %v3607
  %v4317 = vpop.f32.mrb[0].mxu0
  %v4318 = vadd.f32 0.0, %v4317
  %v4319 = vpop.f32.mrb[0].mxu0
  %v4320 = vpop.f32.mrb[0].mxu0
  %v4321 = vadd.f32 0.0, %v4320
  %v4322 = vpop.f32.mrb[0].mxu0
  %4323 = vdwg.mxu0
  %v4328 = vunpack.c.l.b16 %v4235
  %v4329 = vunpack.c.l.b16 %v4236
  %v4330 = vunpack.c.l.b16 %v4237
  %v4331 = vunpack.c.l.b16 %v4238
  %v4332 = vpack.c.b16 %v4329, %v4328
  %v4333 = vpack.c.b16 %v4331, %v4330
  %4336 = vmatprep.subr.bf16.mxu0 0
  %4337 = vmatpush1.bf16.msra.mxu0 %v4332
  %4338 = vmatprep.subr.bf16.mxu0 0
  %4339 = vmatpush1.bf16.msra.mxu0 %v4333
  %4340 = vmatprep.subr.bf16.mxu0 0
  %4341 = vmatpush1.bf16.msra.mxu0 0
  %4342 = vmatprep.subr.bf16.mxu0 0
  %4343 = vmatpush1.bf16.msra.mxu0 0
  %4344 = vmatprep.subr.bf16.mxu0 0
  %4345 = vmatpush1.bf16.msra.mxu0 0
  %4346 = vmatprep.subr.bf16.mxu0 0
  %4347 = vmatpush1.bf16.msra.mxu0 0
  %4348 = vmatprep.subr.bf16.mxu0 0
  %4349 = vmatpush1.bf16.msra.mxu0 0
  %4350 = vmatprep.subr.bf16.mxu0 0
  %4351 = vmatpush1.bf16.msra.mxu0 0
  %4352 = vmatprep.subr.bf16.mxu0 0
  %4353 = vmatpush1.bf16.msra.mxu0 0
  %4354 = vmatprep.subr.bf16.mxu0 0
  %4355 = vmatpush1.bf16.msra.mxu0 0
  %4356 = vmatprep.subr.bf16.mxu0 0
  %4357 = vmatpush1.bf16.msra.mxu0 0
  %4358 = vmatprep.subr.bf16.mxu0 0
  %4359 = vmatpush1.bf16.msra.mxu0 0
  %4360 = vmatprep.subr.bf16.mxu0 0
  %4361 = vmatpush1.bf16.msra.mxu0 0
  %4362 = vmatprep.subr.bf16.mxu0 0
  %4363 = vmatpush1.bf16.msra.mxu0 0
  %4364 = vmatprep.subr.bf16.mxu0 0
  %4365 = vmatpush1.bf16.msra.mxu0 0
  %4366 = vmatprep.subr.bf16.mxu0 0
  %4367 = vmatpush1.bf16.msra.mxu0 0
  %4368 = vmatprep.mubr.bf16.mxu0 0
  %4369 = vmatmul.mubr.bf16.gmra.mrb[0].mxu0 %v3598
  %v4370 = vpop.f32.mrb[0].mxu0
  %v4371 = vadd.f32 0.0, %v4370
  %v4372 = vpop.f32.mrb[0].mxu0
  %v4373 = vpop.f32.mrb[0].mxu0
  %v4374 = vadd.f32 0.0, %v4373
  %v4375 = vpop.f32.mrb[0].mxu0
  %4376 = vmatprep.mubr.bf16.mxu0 0
  %4377 = vmatmul.mubr.bf16.gmra.mrb[0].mxu0 %v3601
  %v4378 = vpop.f32.mrb[0].mxu0
  %v4379 = vadd.f32 0.0, %v4378
  %v4380 = vpop.f32.mrb[0].mxu0
  %v4381 = vpop.f32.mrb[0].mxu0
  %v4382 = vadd.f32 0.0, %v4381
  %v4383 = vpop.f32.mrb[0].mxu0
  %4384 = vmatprep.mubr.bf16.mxu0 0
  %4385 = vmatmul.mubr.bf16.gmra.mrb[0].mxu0 %v3604
  %v4386 = vpop.f32.mrb[0].mxu0
  %v4387 = vadd.f32 0.0, %v4386
  %v4388 = vpop.f32.mrb[0].mxu0
  %v4389 = vpop.f32.mrb[0].mxu0
  %v4390 = vadd.f32 0.0, %v4389
  %v4391 = vpop.f32.mrb[0].mxu0
  %4392 = vmatprep.mubr.bf16.mxu0 0
  %4393 = vmatmul.mubr.bf16.gmra.mrb[0].mxu0 %v3607
  %v4394 = vpop.f32.mrb[0].mxu0
  %v4395 = vadd.f32 0.0, %v4394
  %v4396 = vpop.f32.mrb[0].mxu0
  %v4397 = vpop.f32.mrb[0].mxu0
  %v4398 = vadd.f32 0.0, %v4397
  %v4399 = vpop.f32.mrb[0].mxu0
  %4400 = vdwg.mxu0
  %v4405 = vunpack.c.l.b16 %v4239
  %v4406 = vunpack.c.l.b16 %v4240
  %v4407 = vunpack.c.l.b16 %v4241
  %v4408 = vunpack.c.l.b16 %v4242
  %v4409 = vpack.c.b16 %v4406, %v4405
  %v4410 = vpack.c.b16 %v4408, %v4407
  %4413 = vmatprep.subr.bf16.mxu0 0
  %4414 = vmatpush1.bf16.msra.mxu0 %v4409
  %4415 = vmatprep.subr.bf16.mxu0 0
  %4416 = vmatpush1.bf16.msra.mxu0 %v4410
  %4417 = vmatprep.subr.bf16.mxu0 0
  %4418 = vmatpush1.bf16.msra.mxu0 0
  %4419 = vmatprep.subr.bf16.mxu0 0
  %4420 = vmatpush1.bf16.msra.mxu0 0
  %4421 = vmatprep.subr.bf16.mxu0 0
  %4422 = vmatpush1.bf16.msra.mxu0 0
  %4423 = vmatprep.subr.bf16.mxu0 0
  %4424 = vmatpush1.bf16.msra.mxu0 0
  %4425 = vmatprep.subr.bf16.mxu0 0
  %4426 = vmatpush1.bf16.msra.mxu0 0
  %4427 = vmatprep.subr.bf16.mxu0 0
  %4428 = vmatpush1.bf16.msra.mxu0 0
  %4429 = vmatprep.subr.bf16.mxu0 0
  %4430 = vmatpush1.bf16.msra.mxu0 0
  %4431 = vmatprep.subr.bf16.mxu0 0
  %4432 = vmatpush1.bf16.msra.mxu0 0
  %4433 = vmatprep.subr.bf16.mxu0 0
  %4434 = vmatpush1.bf16.msra.mxu0 0
  %4435 = vmatprep.subr.bf16.mxu0 0
  %4436 = vmatpush1.bf16.msra.mxu0 0
  %4437 = vmatprep.subr.bf16.mxu0 0
  %4438 = vmatpush1.bf16.msra.mxu0 0
  %4439 = vmatprep.subr.bf16.mxu0 0
  %4440 = vmatpush1.bf16.msra.mxu0 0
  %4441 = vmatprep.subr.bf16.mxu0 0
  %4442 = vmatpush1.bf16.msra.mxu0 0
  %4443 = vmatprep.subr.bf16.mxu0 0
  %4444 = vmatpush1.bf16.msra.mxu0 0
  %4445 = vmatprep.mubr.bf16.mxu0 0
  %4446 = vmatmul.mubr.bf16.gmra.mrb[0].mxu0 %v3598
  %v4447 = vpop.f32.mrb[0].mxu0
  %v4448 = vadd.f32 0.0, %v4447
  %v4449 = vpop.f32.mrb[0].mxu0
  %v4450 = vpop.f32.mrb[0].mxu0
  %v4451 = vadd.f32 0.0, %v4450
  %v4452 = vpop.f32.mrb[0].mxu0
  %4453 = vmatprep.mubr.bf16.mxu0 0
  %4454 = vmatmul.mubr.bf16.gmra.mrb[0].mxu0 %v3601
  %v4455 = vpop.f32.mrb[0].mxu0
  %v4456 = vadd.f32 0.0, %v4455
  %v4457 = vpop.f32.mrb[0].mxu0
  %v4458 = vpop.f32.mrb[0].mxu0
  %v4459 = vadd.f32 0.0, %v4458
  %v4460 = vpop.f32.mrb[0].mxu0
  %4461 = vmatprep.mubr.bf16.mxu0 0
  %4462 = vmatmul.mubr.bf16.gmra.mrb[0].mxu0 %v3604
  %v4463 = vpop.f32.mrb[0].mxu0
  %v4464 = vadd.f32 0.0, %v4463
  %v4465 = vpop.f32.mrb[0].mxu0
  %v4466 = vpop.f32.mrb[0].mxu0
  %v4467 = vadd.f32 0.0, %v4466
  %v4468 = vpop.f32.mrb[0].mxu0
  %4469 = vmatprep.mubr.bf16.mxu0 0
  %4470 = vmatmul.mubr.bf16.gmra.mrb[0].mxu0 %v3607
  %v4471 = vpop.f32.mrb[0].mxu0
  %v4472 = vadd.f32 0.0, %v4471
  %v4473 = vpop.f32.mrb[0].mxu0
  %v4474 = vpop.f32.mrb[0].mxu0
  %v4475 = vadd.f32 0.0, %v4474
  %v4476 = vpop.f32.mrb[0].mxu0
  %4477 = vdwg.mxu0
  %v4482 = vunpack.c.l.b16 %v4243
  %v4483 = vunpack.c.l.b16 %v4244
  %v4484 = vunpack.c.l.b16 %v4245
  %v4485 = vunpack.c.l.b16 %v4246
  %v4486 = vpack.c.b16 %v4483, %v4482
  %v4487 = vpack.c.b16 %v4485, %v4484
  %4490 = vmatprep.subr.bf16.mxu0 0
  %4491 = vmatpush1.bf16.msra.mxu0 %v4486
  %4492 = vmatprep.subr.bf16.mxu0 0
  %4493 = vmatpush1.bf16.msra.mxu0 %v4487
  %4494 = vmatprep.subr.bf16.mxu0 0
  %4495 = vmatpush1.bf16.msra.mxu0 0
  %4496 = vmatprep.subr.bf16.mxu0 0
  %4497 = vmatpush1.bf16.msra.mxu0 0
  %4498 = vmatprep.subr.bf16.mxu0 0
  %4499 = vmatpush1.bf16.msra.mxu0 0
  %4500 = vmatprep.subr.bf16.mxu0 0
  %4501 = vmatpush1.bf16.msra.mxu0 0
  %4502 = vmatprep.subr.bf16.mxu0 0
  %4503 = vmatpush1.bf16.msra.mxu0 0
  %4504 = vmatprep.subr.bf16.mxu0 0
  %4505 = vmatpush1.bf16.msra.mxu0 0
  %4506 = vmatprep.subr.bf16.mxu0 0
  %4507 = vmatpush1.bf16.msra.mxu0 0
  %4508 = vmatprep.subr.bf16.mxu0 0
  %4509 = vmatpush1.bf16.msra.mxu0 0
  %4510 = vmatprep.subr.bf16.mxu0 0
  %4511 = vmatpush1.bf16.msra.mxu0 0
  %4512 = vmatprep.subr.bf16.mxu0 0
  %4513 = vmatpush1.bf16.msra.mxu0 0
  %4514 = vmatprep.subr.bf16.mxu0 0
  %4515 = vmatpush1.bf16.msra.mxu0 0
  %4516 = vmatprep.subr.bf16.mxu0 0
  %4517 = vmatpush1.bf16.msra.mxu0 0
  %4518 = vmatprep.subr.bf16.mxu0 0
  %4519 = vmatpush1.bf16.msra.mxu0 0
  %4520 = vmatprep.subr.bf16.mxu0 0
  %4521 = vmatpush1.bf16.msra.mxu0 0
  %4522 = vmatprep.mubr.bf16.mxu0 0
  %4523 = vmatmul.mubr.bf16.gmra.mrb[0].mxu0 %v3598
  %v4524 = vpop.f32.mrb[0].mxu0
  %v4525 = vadd.f32 0.0, %v4524
  %v4526 = vpop.f32.mrb[0].mxu0
  %v4527 = vpop.f32.mrb[0].mxu0
  %v4528 = vadd.f32 0.0, %v4527
  %v4529 = vpop.f32.mrb[0].mxu0
  %4530 = vmatprep.mubr.bf16.mxu0 0
  %4531 = vmatmul.mubr.bf16.gmra.mrb[0].mxu0 %v3601
  %v4532 = vpop.f32.mrb[0].mxu0
  %v4533 = vadd.f32 0.0, %v4532
  %v4534 = vpop.f32.mrb[0].mxu0
  %v4535 = vpop.f32.mrb[0].mxu0
  %v4536 = vadd.f32 0.0, %v4535
  %v4537 = vpop.f32.mrb[0].mxu0
  %4538 = vmatprep.mubr.bf16.mxu0 0
  %4539 = vmatmul.mubr.bf16.gmra.mrb[0].mxu0 %v3604
  %v4540 = vpop.f32.mrb[0].mxu0
  %v4541 = vadd.f32 0.0, %v4540
  %v4542 = vpop.f32.mrb[0].mxu0
  %v4543 = vpop.f32.mrb[0].mxu0
  %v4544 = vadd.f32 0.0, %v4543
  %v4545 = vpop.f32.mrb[0].mxu0
  %4546 = vmatprep.mubr.bf16.mxu0 0
  %4547 = vmatmul.mubr.bf16.gmra.mrb[0].mxu0 %v3607
  %v4548 = vpop.f32.mrb[0].mxu0
  %v4549 = vadd.f32 0.0, %v4548
  %v4550 = vpop.f32.mrb[0].mxu0
  %v4551 = vpop.f32.mrb[0].mxu0
  %v4552 = vadd.f32 0.0, %v4551
  %v4553 = vpop.f32.mrb[0].mxu0
  %4554 = vdwg.mxu0
  %v4555 = vpack.c.bf16 %v3647, %v3644
  %v4556 = vpack.c.bf16 %v3655, %v3652
  %v4557 = vpack.c.bf16 %v3663, %v3660
  %v4558 = vpack.c.bf16 %v3671, %v3668
  %v4559 = vpack.c.bf16 %v3724, %v3721
  %v4560 = vpack.c.bf16 %v3732, %v3729
  %v4561 = vpack.c.bf16 %v3740, %v3737
  %v4562 = vpack.c.bf16 %v3748, %v3745
  %v4563 = vpack.c.bf16 %v3801, %v3798
  %v4564 = vpack.c.bf16 %v3809, %v3806
  %v4565 = vpack.c.bf16 %v3817, %v3814
  %v4566 = vpack.c.bf16 %v3825, %v3822
  %v4567 = vpack.c.bf16 %v3878, %v3875
  %v4568 = vpack.c.bf16 %v3886, %v3883
  %v4569 = vpack.c.bf16 %v3894, %v3891
  %v4570 = vpack.c.bf16 %v3902, %v3899
  %v4571 = vpack.c.bf16 %v3972, %v3969
  %v4572 = vpack.c.bf16 %v3980, %v3977
  %v4573 = vpack.c.bf16 %v3988, %v3985
  %v4574 = vpack.c.bf16 %v3996, %v3993
  %v4575 = vpack.c.bf16 %v4049, %v4046
  %v4576 = vpack.c.bf16 %v4057, %v4054
  %v4577 = vpack.c.bf16 %v4065, %v4062
  %v4578 = vpack.c.bf16 %v4073, %v4070
  %v4579 = vpack.c.bf16 %v4126, %v4123
  %v4580 = vpack.c.bf16 %v4134, %v4131
  %v4581 = vpack.c.bf16 %v4142, %v4139
  %v4582 = vpack.c.bf16 %v4150, %v4147
  %v4583 = vpack.c.bf16 %v4203, %v4200
  %v4584 = vpack.c.bf16 %v4211, %v4208
  %v4585 = vpack.c.bf16 %v4219, %v4216
  %v4586 = vpack.c.bf16 %v4227, %v4224
  %v4588 = vsel %vm1569, %v4555, 0
  %v4591 = vsel %vm1569, %v4556, 0
  %v4594 = vsel %vm1569, %v4557, 0
  %v4597 = vsel %vm1569, %v4558, 0
  %v4600 = vsel %vm1569, %v4571, 0
  %v4603 = vsel %vm1569, %v4572, 0
  %v4606 = vsel %vm1569, %v4573, 0
  %v4609 = vsel %vm1569, %v4574, 0
  %4611 = vmatprep.subr.bf16.mxu0 0
  %4612 = vmatpush1.bf16.xpose.msra.mxu0 %v4600
  %4613 = vmatprep.subr.bf16.mxu0 0
  %4614 = vmatpush1.bf16.xpose.msra.mxu0 %v4603
  %4615 = vmatprep.subr.bf16.mxu0 0
  %4616 = vmatpush1.bf16.xpose.msra.mxu0 %v4606
  %4617 = vmatprep.subr.bf16.mxu0 0
  %4618 = vmatpush1.bf16.xpose.msra.mxu0 %v4609
  %4619 = vmatprep.subr.bf16.mxu0 0
  %4620 = vmatpush1.bf16.xpose.msra.mxu0 0
  %4621 = vmatprep.subr.bf16.mxu0 0
  %4622 = vmatpush1.bf16.xpose.msra.mxu0 0
  %4623 = vmatprep.subr.bf16.mxu0 0
  %4624 = vmatpush1.bf16.xpose.msra.mxu0 0
  %4625 = vmatprep.subr.bf16.mxu0 0
  %4626 = vmatpush1.bf16.xpose.msra.mxu0 0
  %4627 = vmatprep.subr.bf16.mxu0 0
  %4628 = vmatpush1.bf16.xpose.msra.mxu0 0
  %4629 = vmatprep.subr.bf16.mxu0 0
  %4630 = vmatpush1.bf16.xpose.msra.mxu0 0
  %4631 = vmatprep.subr.bf16.mxu0 0
  %4632 = vmatpush1.bf16.xpose.msra.mxu0 0
  %4633 = vmatprep.subr.bf16.mxu0 0
  %4634 = vmatpush1.bf16.xpose.msra.mxu0 0
  %4635 = vmatprep.subr.bf16.mxu0 0
  %4636 = vmatpush1.bf16.xpose.msra.mxu0 0
  %4637 = vmatprep.subr.bf16.mxu0 0
  %4638 = vmatpush1.bf16.xpose.msra.mxu0 0
  %4639 = vmatprep.subr.bf16.mxu0 0
  %4640 = vmatpush1.bf16.xpose.msra.mxu0 0
  %4641 = vmatprep.subr.bf16.mxu0 0
  %4642 = vmatpush1.bf16.xpose.msra.mxu0 0
  %4643 = vmatprep.mubr.bf16.mxu0 0
  %4644 = vmatmul.mubr.bf16.gmra.mrb[0].mxu0 %v4588
  %v4645 = vpop.f32.mrb[0].mxu0
  %v4646 = vadd.f32 0.0, %v4645
  %v4647 = vpop.f32.mrb[0].mxu0
  %v4648 = vpop.f32.mrb[0].mxu0
  %v4649 = vadd.f32 0.0, %v4648
  %v4650 = vpop.f32.mrb[0].mxu0
  %4651 = vmatprep.mubr.bf16.mxu0 0
  %4652 = vmatmul.mubr.bf16.gmra.mrb[0].mxu0 %v4591
  %v4653 = vpop.f32.mrb[0].mxu0
  %v4654 = vadd.f32 0.0, %v4653
  %v4655 = vpop.f32.mrb[0].mxu0
  %v4656 = vpop.f32.mrb[0].mxu0
  %v4657 = vadd.f32 0.0, %v4656
  %v4658 = vpop.f32.mrb[0].mxu0
  %4659 = vmatprep.mubr.bf16.mxu0 0
  %4660 = vmatmul.mubr.bf16.gmra.mrb[0].mxu0 %v4594
  %v4661 = vpop.f32.mrb[0].mxu0
  %v4662 = vadd.f32 0.0, %v4661
  %v4663 = vpop.f32.mrb[0].mxu0
  %v4664 = vpop.f32.mrb[0].mxu0
  %v4665 = vadd.f32 0.0, %v4664
  %v4666 = vpop.f32.mrb[0].mxu0
  %4667 = vmatprep.mubr.bf16.mxu0 0
  %4668 = vmatmul.mubr.bf16.gmra.mrb[0].mxu0 %v4597
  %v4669 = vpop.f32.mrb[0].mxu0
  %v4670 = vadd.f32 0.0, %v4669
  %v4671 = vpop.f32.mrb[0].mxu0
  %v4672 = vpop.f32.mrb[0].mxu0
  %v4673 = vadd.f32 0.0, %v4672
  %v4674 = vpop.f32.mrb[0].mxu0
  %4675 = vdwg.mxu0
  %v4677 = vsel %vm1569, %v4559, 0
  %v4680 = vsel %vm1569, %v4560, 0
  %v4683 = vsel %vm1569, %v4561, 0
  %v4686 = vsel %vm1569, %v4562, 0
  %v4689 = vsel %vm1569, %v4575, 0
  %v4692 = vsel %vm1569, %v4576, 0
  %v4695 = vsel %vm1569, %v4577, 0
  %v4698 = vsel %vm1569, %v4578, 0
  %4700 = vmatprep.subr.bf16.mxu0 0
  %4701 = vmatpush1.bf16.xpose.msra.mxu0 %v4689
  %4702 = vmatprep.subr.bf16.mxu0 0
  %4703 = vmatpush1.bf16.xpose.msra.mxu0 %v4692
  %4704 = vmatprep.subr.bf16.mxu0 0
  %4705 = vmatpush1.bf16.xpose.msra.mxu0 %v4695
  %4706 = vmatprep.subr.bf16.mxu0 0
  %4707 = vmatpush1.bf16.xpose.msra.mxu0 %v4698
  %4708 = vmatprep.subr.bf16.mxu0 0
  %4709 = vmatpush1.bf16.xpose.msra.mxu0 0
  %4710 = vmatprep.subr.bf16.mxu0 0
  %4711 = vmatpush1.bf16.xpose.msra.mxu0 0
  %4712 = vmatprep.subr.bf16.mxu0 0
  %4713 = vmatpush1.bf16.xpose.msra.mxu0 0
  %4714 = vmatprep.subr.bf16.mxu0 0
  %4715 = vmatpush1.bf16.xpose.msra.mxu0 0
  %4716 = vmatprep.subr.bf16.mxu0 0
  %4717 = vmatpush1.bf16.xpose.msra.mxu0 0
  %4718 = vmatprep.subr.bf16.mxu0 0
  %4719 = vmatpush1.bf16.xpose.msra.mxu0 0
  %4720 = vmatprep.subr.bf16.mxu0 0
  %4721 = vmatpush1.bf16.xpose.msra.mxu0 0
  %4722 = vmatprep.subr.bf16.mxu0 0
  %4723 = vmatpush1.bf16.xpose.msra.mxu0 0
  %4724 = vmatprep.subr.bf16.mxu0 0
  %4725 = vmatpush1.bf16.xpose.msra.mxu0 0
  %4726 = vmatprep.subr.bf16.mxu0 0
  %4727 = vmatpush1.bf16.xpose.msra.mxu0 0
  %4728 = vmatprep.subr.bf16.mxu0 0
  %4729 = vmatpush1.bf16.xpose.msra.mxu0 0
  %4730 = vmatprep.subr.bf16.mxu0 0
  %4731 = vmatpush1.bf16.xpose.msra.mxu0 0
  %4732 = vmatprep.mubr.bf16.mxu0 0
  %4733 = vmatmul.mubr.bf16.gmra.mrb[0].mxu0 %v4677
  %v4734 = vpop.f32.mrb[0].mxu0
  %v4735 = vadd.f32 0.0, %v4734
  %v4736 = vpop.f32.mrb[0].mxu0
  %v4737 = vpop.f32.mrb[0].mxu0
  %v4738 = vadd.f32 0.0, %v4737
  %v4739 = vpop.f32.mrb[0].mxu0
  %4740 = vmatprep.mubr.bf16.mxu0 0
  %4741 = vmatmul.mubr.bf16.gmra.mrb[0].mxu0 %v4680
  %v4742 = vpop.f32.mrb[0].mxu0
  %v4743 = vadd.f32 0.0, %v4742
  %v4744 = vpop.f32.mrb[0].mxu0
  %v4745 = vpop.f32.mrb[0].mxu0
  %v4746 = vadd.f32 0.0, %v4745
  %v4747 = vpop.f32.mrb[0].mxu0
  %4748 = vmatprep.mubr.bf16.mxu0 0
  %4749 = vmatmul.mubr.bf16.gmra.mrb[0].mxu0 %v4683
  %v4750 = vpop.f32.mrb[0].mxu0
  %v4751 = vadd.f32 0.0, %v4750
  %v4752 = vpop.f32.mrb[0].mxu0
  %v4753 = vpop.f32.mrb[0].mxu0
  %v4754 = vadd.f32 0.0, %v4753
  %v4755 = vpop.f32.mrb[0].mxu0
  %4756 = vmatprep.mubr.bf16.mxu0 0
  %4757 = vmatmul.mubr.bf16.gmra.mrb[0].mxu0 %v4686
  %v4758 = vpop.f32.mrb[0].mxu0
  %v4759 = vadd.f32 0.0, %v4758
  %v4760 = vpop.f32.mrb[0].mxu0
  %v4761 = vpop.f32.mrb[0].mxu0
  %v4762 = vadd.f32 0.0, %v4761
  %v4763 = vpop.f32.mrb[0].mxu0
  %4764 = vdwg.mxu0
  %v4766 = vsel %vm1569, %v4563, 0
  %v4769 = vsel %vm1569, %v4564, 0
  %v4772 = vsel %vm1569, %v4565, 0
  %v4775 = vsel %vm1569, %v4566, 0
  %v4778 = vsel %vm1569, %v4579, 0
  %v4781 = vsel %vm1569, %v4580, 0
  %v4784 = vsel %vm1569, %v4581, 0
  %v4787 = vsel %vm1569, %v4582, 0
  %4789 = vmatprep.subr.bf16.mxu0 0
  %4790 = vmatpush1.bf16.xpose.msra.mxu0 %v4778
  %4791 = vmatprep.subr.bf16.mxu0 0
  %4792 = vmatpush1.bf16.xpose.msra.mxu0 %v4781
  %4793 = vmatprep.subr.bf16.mxu0 0
  %4794 = vmatpush1.bf16.xpose.msra.mxu0 %v4784
  %4795 = vmatprep.subr.bf16.mxu0 0
  %4796 = vmatpush1.bf16.xpose.msra.mxu0 %v4787
  %4797 = vmatprep.subr.bf16.mxu0 0
  %4798 = vmatpush1.bf16.xpose.msra.mxu0 0
  %4799 = vmatprep.subr.bf16.mxu0 0
  %4800 = vmatpush1.bf16.xpose.msra.mxu0 0
  %4801 = vmatprep.subr.bf16.mxu0 0
  %4802 = vmatpush1.bf16.xpose.msra.mxu0 0
  %4803 = vmatprep.subr.bf16.mxu0 0
  %4804 = vmatpush1.bf16.xpose.msra.mxu0 0
  %4805 = vmatprep.subr.bf16.mxu0 0
  %4806 = vmatpush1.bf16.xpose.msra.mxu0 0
  %4807 = vmatprep.subr.bf16.mxu0 0
  %4808 = vmatpush1.bf16.xpose.msra.mxu0 0
  %4809 = vmatprep.subr.bf16.mxu0 0
  %4810 = vmatpush1.bf16.xpose.msra.mxu0 0
  %4811 = vmatprep.subr.bf16.mxu0 0
  %4812 = vmatpush1.bf16.xpose.msra.mxu0 0
  %4813 = vmatprep.subr.bf16.mxu0 0
  %4814 = vmatpush1.bf16.xpose.msra.mxu0 0
  %4815 = vmatprep.subr.bf16.mxu0 0
  %4816 = vmatpush1.bf16.xpose.msra.mxu0 0
  %4817 = vmatprep.subr.bf16.mxu0 0
  %4818 = vmatpush1.bf16.xpose.msra.mxu0 0
  %4819 = vmatprep.subr.bf16.mxu0 0
  %4820 = vmatpush1.bf16.xpose.msra.mxu0 0
  %4821 = vmatprep.mubr.bf16.mxu0 0
  %4822 = vmatmul.mubr.bf16.gmra.mrb[0].mxu0 %v4766
  %v4823 = vpop.f32.mrb[0].mxu0
  %v4824 = vadd.f32 0.0, %v4823
  %v4825 = vpop.f32.mrb[0].mxu0
  %v4826 = vpop.f32.mrb[0].mxu0
  %v4827 = vadd.f32 0.0, %v4826
  %v4828 = vpop.f32.mrb[0].mxu0
  %4829 = vmatprep.mubr.bf16.mxu0 0
  %4830 = vmatmul.mubr.bf16.gmra.mrb[0].mxu0 %v4769
  %v4831 = vpop.f32.mrb[0].mxu0
  %v4832 = vadd.f32 0.0, %v4831
  %v4833 = vpop.f32.mrb[0].mxu0
  %v4834 = vpop.f32.mrb[0].mxu0
  %v4835 = vadd.f32 0.0, %v4834
  %v4836 = vpop.f32.mrb[0].mxu0
  %4837 = vmatprep.mubr.bf16.mxu0 0
  %4838 = vmatmul.mubr.bf16.gmra.mrb[0].mxu0 %v4772
  %v4839 = vpop.f32.mrb[0].mxu0
  %v4840 = vadd.f32 0.0, %v4839
  %v4841 = vpop.f32.mrb[0].mxu0
  %v4842 = vpop.f32.mrb[0].mxu0
  %v4843 = vadd.f32 0.0, %v4842
  %v4844 = vpop.f32.mrb[0].mxu0
  %4845 = vmatprep.mubr.bf16.mxu0 0
  %4846 = vmatmul.mubr.bf16.gmra.mrb[0].mxu0 %v4775
  %v4847 = vpop.f32.mrb[0].mxu0
  %v4848 = vadd.f32 0.0, %v4847
  %v4849 = vpop.f32.mrb[0].mxu0
  %v4850 = vpop.f32.mrb[0].mxu0
  %v4851 = vadd.f32 0.0, %v4850
  %v4852 = vpop.f32.mrb[0].mxu0
  %4853 = vdwg.mxu0
  %v4855 = vsel %vm1569, %v4567, 0
  %v4858 = vsel %vm1569, %v4568, 0
  %v4861 = vsel %vm1569, %v4569, 0
  %v4864 = vsel %vm1569, %v4570, 0
  %v4867 = vsel %vm1569, %v4583, 0
  %v4870 = vsel %vm1569, %v4584, 0
  %v4873 = vsel %vm1569, %v4585, 0
  %v4876 = vsel %vm1569, %v4586, 0
  %4878 = vmatprep.subr.bf16.mxu0 0
  %4879 = vmatpush1.bf16.xpose.msra.mxu0 %v4867
  %4880 = vmatprep.subr.bf16.mxu0 0
  %4881 = vmatpush1.bf16.xpose.msra.mxu0 %v4870
  %4882 = vmatprep.subr.bf16.mxu0 0
  %4883 = vmatpush1.bf16.xpose.msra.mxu0 %v4873
  %4884 = vmatprep.subr.bf16.mxu0 0
  %4885 = vmatpush1.bf16.xpose.msra.mxu0 %v4876
  %4886 = vmatprep.subr.bf16.mxu0 0
  %4887 = vmatpush1.bf16.xpose.msra.mxu0 0
  %4888 = vmatprep.subr.bf16.mxu0 0
  %4889 = vmatpush1.bf16.xpose.msra.mxu0 0
  %4890 = vmatprep.subr.bf16.mxu0 0
  %4891 = vmatpush1.bf16.xpose.msra.mxu0 0
  %4892 = vmatprep.subr.bf16.mxu0 0
  %4893 = vmatpush1.bf16.xpose.msra.mxu0 0
  %4894 = vmatprep.subr.bf16.mxu0 0
  %4895 = vmatpush1.bf16.xpose.msra.mxu0 0
  %4896 = vmatprep.subr.bf16.mxu0 0
  %4897 = vmatpush1.bf16.xpose.msra.mxu0 0
  %4898 = vmatprep.subr.bf16.mxu0 0
  %4899 = vmatpush1.bf16.xpose.msra.mxu0 0
  %4900 = vmatprep.subr.bf16.mxu0 0
  %4901 = vmatpush1.bf16.xpose.msra.mxu0 0
  %4902 = vmatprep.subr.bf16.mxu0 0
  %4903 = vmatpush1.bf16.xpose.msra.mxu0 0
  %4904 = vmatprep.subr.bf16.mxu0 0
  %4905 = vmatpush1.bf16.xpose.msra.mxu0 0
  %4906 = vmatprep.subr.bf16.mxu0 0
  %4907 = vmatpush1.bf16.xpose.msra.mxu0 0
  %4908 = vmatprep.subr.bf16.mxu0 0
  %4909 = vmatpush1.bf16.xpose.msra.mxu0 0
  %4910 = vmatprep.mubr.bf16.mxu0 0
  %4911 = vmatmul.mubr.bf16.gmra.mrb[0].mxu0 %v4855
  %v4912 = vpop.f32.mrb[0].mxu0
  %v4913 = vadd.f32 0.0, %v4912
  %v4914 = vpop.f32.mrb[0].mxu0
  %v4915 = vpop.f32.mrb[0].mxu0
  %v4916 = vadd.f32 0.0, %v4915
  %v4917 = vpop.f32.mrb[0].mxu0
  %4918 = vmatprep.mubr.bf16.mxu0 0
  %4919 = vmatmul.mubr.bf16.gmra.mrb[0].mxu0 %v4858
  %v4920 = vpop.f32.mrb[0].mxu0
  %v4921 = vadd.f32 0.0, %v4920
  %v4922 = vpop.f32.mrb[0].mxu0
  %v4923 = vpop.f32.mrb[0].mxu0
  %v4924 = vadd.f32 0.0, %v4923
  %v4925 = vpop.f32.mrb[0].mxu0
  %4926 = vmatprep.mubr.bf16.mxu0 0
  %4927 = vmatmul.mubr.bf16.gmra.mrb[0].mxu0 %v4861
  %v4928 = vpop.f32.mrb[0].mxu0
  %v4929 = vadd.f32 0.0, %v4928
  %v4930 = vpop.f32.mrb[0].mxu0
  %v4931 = vpop.f32.mrb[0].mxu0
  %v4932 = vadd.f32 0.0, %v4931
  %v4933 = vpop.f32.mrb[0].mxu0
  %4934 = vmatprep.mubr.bf16.mxu0 0
  %4935 = vmatmul.mubr.bf16.gmra.mrb[0].mxu0 %v4864
  %v4936 = vpop.f32.mrb[0].mxu0
  %v4937 = vadd.f32 0.0, %v4936
  %v4938 = vpop.f32.mrb[0].mxu0
  %v4939 = vpop.f32.mrb[0].mxu0
  %v4940 = vadd.f32 0.0, %v4939
  %v4941 = vpop.f32.mrb[0].mxu0
  %4942 = vdwg.mxu0
  %v4943 = vsel %vm209, %v4646, -inf
  %4944 = vmax.xlane.f32.xlu0 %v4943
  %v4945 = vpop.xlane.xlu0 %4944
  %v4946 = vsel %vm209, %v4649, -inf
  %4947 = vmax.xlane.f32.xlu0 %v4946
  %v4948 = vpop.xlane.xlu0 %4947
  %v4949 = vsel %vm209, %v4654, -inf
  %4950 = vmax.xlane.f32.xlu0 %v4949
  %v4951 = vpop.xlane.xlu0 %4950
  %v4952 = vsel %vm209, %v4657, -inf
  %4953 = vmax.xlane.f32.xlu0 %v4952
  %v4954 = vpop.xlane.xlu0 %4953
  %v4955 = vsel %vm209, %v4662, -inf
  %4956 = vmax.xlane.f32.xlu0 %v4955
  %v4957 = vpop.xlane.xlu0 %4956
  %v4958 = vsel %vm209, %v4665, -inf
  %4959 = vmax.xlane.f32.xlu0 %v4958
  %v4960 = vpop.xlane.xlu0 %4959
  %v4961 = vsel %vm209, %v4670, -inf
  %4962 = vmax.xlane.f32.xlu0 %v4961
  %v4963 = vpop.xlane.xlu0 %4962
  %v4964 = vsel %vm209, %v4673, -inf
  %4965 = vmax.xlane.f32.xlu0 %v4964
  %v4966 = vpop.xlane.xlu0 %4965
  %v4967 = vsel %vm209, %v4735, -inf
  %4968 = vmax.xlane.f32.xlu0 %v4967
  %v4969 = vpop.xlane.xlu0 %4968
  %v4970 = vsel %vm209, %v4738, -inf
  %4971 = vmax.xlane.f32.xlu0 %v4970
  %v4972 = vpop.xlane.xlu0 %4971
  %v4973 = vsel %vm209, %v4743, -inf
  %4974 = vmax.xlane.f32.xlu0 %v4973
  %v4975 = vpop.xlane.xlu0 %4974
  %v4976 = vsel %vm209, %v4746, -inf
  %4977 = vmax.xlane.f32.xlu0 %v4976
  %v4978 = vpop.xlane.xlu0 %4977
  %v4979 = vsel %vm209, %v4751, -inf
  %4980 = vmax.xlane.f32.xlu0 %v4979
  %v4981 = vpop.xlane.xlu0 %4980
  %v4982 = vsel %vm209, %v4754, -inf
  %4983 = vmax.xlane.f32.xlu0 %v4982
  %v4984 = vpop.xlane.xlu0 %4983
  %v4985 = vsel %vm209, %v4759, -inf
  %4986 = vmax.xlane.f32.xlu0 %v4985
  %v4987 = vpop.xlane.xlu0 %4986
  %v4988 = vsel %vm209, %v4762, -inf
  %4989 = vmax.xlane.f32.xlu0 %v4988
  %v4990 = vpop.xlane.xlu0 %4989
  %v4991 = vsel %vm209, %v4824, -inf
  %4992 = vmax.xlane.f32.xlu0 %v4991
  %v4993 = vpop.xlane.xlu0 %4992
  %v4994 = vsel %vm209, %v4827, -inf
  %4995 = vmax.xlane.f32.xlu0 %v4994
  %v4996 = vpop.xlane.xlu0 %4995
  %v4997 = vsel %vm209, %v4832, -inf
  %4998 = vmax.xlane.f32.xlu0 %v4997
  %v4999 = vpop.xlane.xlu0 %4998
  %v5000 = vsel %vm209, %v4835, -inf
  %5001 = vmax.xlane.f32.xlu0 %v5000
  %v5002 = vpop.xlane.xlu0 %5001
  %v5003 = vsel %vm209, %v4840, -inf
  %5004 = vmax.xlane.f32.xlu0 %v5003
  %v5005 = vpop.xlane.xlu0 %5004
  %v5006 = vsel %vm209, %v4843, -inf
  %5007 = vmax.xlane.f32.xlu0 %v5006
  %v5008 = vpop.xlane.xlu0 %5007
  %v5009 = vsel %vm209, %v4848, -inf
  %5010 = vmax.xlane.f32.xlu0 %v5009
  %v5011 = vpop.xlane.xlu0 %5010
  %v5012 = vsel %vm209, %v4851, -inf
  %5013 = vmax.xlane.f32.xlu0 %v5012
  %v5014 = vpop.xlane.xlu0 %5013
  %v5015 = vsel %vm209, %v4913, -inf
  %5016 = vmax.xlane.f32.xlu0 %v5015
  %v5017 = vpop.xlane.xlu0 %5016
  %v5018 = vsel %vm209, %v4916, -inf
  %5019 = vmax.xlane.f32.xlu0 %v5018
  %v5020 = vpop.xlane.xlu0 %5019
  %v5021 = vsel %vm209, %v4921, -inf
  %5022 = vmax.xlane.f32.xlu0 %v5021
  %v5023 = vpop.xlane.xlu0 %5022
  %v5024 = vsel %vm209, %v4924, -inf
  %5025 = vmax.xlane.f32.xlu0 %v5024
  %v5026 = vpop.xlane.xlu0 %5025
  %v5027 = vsel %vm209, %v4929, -inf
  %5028 = vmax.xlane.f32.xlu0 %v5027
  %v5029 = vpop.xlane.xlu0 %5028
  %v5030 = vsel %vm209, %v4932, -inf
  %5031 = vmax.xlane.f32.xlu0 %v5030
  %v5032 = vpop.xlane.xlu0 %5031
  %v5033 = vsel %vm209, %v4937, -inf
  %5034 = vmax.xlane.f32.xlu0 %v5033
  %v5035 = vpop.xlane.xlu0 %5034
  %v5036 = vsel %vm209, %v4940, -inf
  %5037 = vmax.xlane.f32.xlu0 %v5036
  %v5038 = vpop.xlane.xlu0 %5037
  %v5039 = vsub.f32 %v4646, %v4945
  %v5040 = vsub.f32 %v4649, %v4948
  %v5041 = vsub.f32 %v4654, %v4951
  %v5042 = vsub.f32 %v4657, %v4954
  %v5043 = vsub.f32 %v4662, %v4957
  %v5044 = vsub.f32 %v4665, %v4960
  %v5045 = vsub.f32 %v4670, %v4963
  %v5046 = vsub.f32 %v4673, %v4966
  %v5047 = vsub.f32 %v4735, %v4969
  %v5048 = vsub.f32 %v4738, %v4972
  %v5049 = vsub.f32 %v4743, %v4975
  %v5050 = vsub.f32 %v4746, %v4978
  %v5051 = vsub.f32 %v4751, %v4981
  %v5052 = vsub.f32 %v4754, %v4984
  %v5053 = vsub.f32 %v4759, %v4987
  %v5054 = vsub.f32 %v4762, %v4990
  %v5055 = vsub.f32 %v4824, %v4993
  %v5056 = vsub.f32 %v4827, %v4996
  %v5057 = vsub.f32 %v4832, %v4999
  %v5058 = vsub.f32 %v4835, %v5002
  %v5059 = vsub.f32 %v4840, %v5005
  %v5060 = vsub.f32 %v4843, %v5008
  %v5061 = vsub.f32 %v4848, %v5011
  %v5062 = vsub.f32 %v4851, %v5014
  %v5063 = vsub.f32 %v4913, %v5017
  %v5064 = vsub.f32 %v4916, %v5020
  %v5065 = vsub.f32 %v4921, %v5023
  %v5066 = vsub.f32 %v4924, %v5026
  %v5067 = vsub.f32 %v4929, %v5029
  %v5068 = vsub.f32 %v4932, %v5032
  %v5069 = vsub.f32 %v4937, %v5035
  %v5070 = vsub.f32 %v4940, %v5038
  %v5071 = vmul.f32 %v5039, 1.442695
  %v5072 = vpow.pop %v5071
  %v5073 = vmul.f32 %v5040, 1.442695
  %v5074 = vpow.pop %v5073
  %v5075 = vmul.f32 %v5041, 1.442695
  %v5076 = vpow.pop %v5075
  %v5077 = vmul.f32 %v5042, 1.442695
  %v5078 = vpow.pop %v5077
  %v5079 = vmul.f32 %v5043, 1.442695
  %v5080 = vpow.pop %v5079
  %v5081 = vmul.f32 %v5044, 1.442695
  %v5082 = vpow.pop %v5081
  %v5083 = vmul.f32 %v5045, 1.442695
  %v5084 = vpow.pop %v5083
  %v5085 = vmul.f32 %v5046, 1.442695
  %v5086 = vpow.pop %v5085
  %v5087 = vmul.f32 %v5047, 1.442695
  %v5088 = vpow.pop %v5087
  %v5089 = vmul.f32 %v5048, 1.442695
  %v5090 = vpow.pop %v5089
  %v5091 = vmul.f32 %v5049, 1.442695
  %v5092 = vpow.pop %v5091
  %v5093 = vmul.f32 %v5050, 1.442695
  %v5094 = vpow.pop %v5093
  %v5095 = vmul.f32 %v5051, 1.442695
  %v5096 = vpow.pop %v5095
  %v5097 = vmul.f32 %v5052, 1.442695
  %v5098 = vpow.pop %v5097
  %v5099 = vmul.f32 %v5053, 1.442695
  %v5100 = vpow.pop %v5099
  %v5101 = vmul.f32 %v5054, 1.442695
  %v5102 = vpow.pop %v5101
  %v5103 = vmul.f32 %v5055, 1.442695
  %v5104 = vpow.pop %v5103
  %v5105 = vmul.f32 %v5056, 1.442695
  %v5106 = vpow.pop %v5105
  %v5107 = vmul.f32 %v5057, 1.442695
  %v5108 = vpow.pop %v5107
  %v5109 = vmul.f32 %v5058, 1.442695
  %v5110 = vpow.pop %v5109
  %v5111 = vmul.f32 %v5059, 1.442695
  %v5112 = vpow.pop %v5111
  %v5113 = vmul.f32 %v5060, 1.442695
  %v5114 = vpow.pop %v5113
  %v5115 = vmul.f32 %v5061, 1.442695
  %v5116 = vpow.pop %v5115
  %v5117 = vmul.f32 %v5062, 1.442695
  %v5118 = vpow.pop %v5117
  %v5119 = vmul.f32 %v5063, 1.442695
  %v5120 = vpow.pop %v5119
  %v5121 = vmul.f32 %v5064, 1.442695
  %v5122 = vpow.pop %v5121
  %v5123 = vmul.f32 %v5065, 1.442695
  %v5124 = vpow.pop %v5123
  %v5125 = vmul.f32 %v5066, 1.442695
  %v5126 = vpow.pop %v5125
  %v5127 = vmul.f32 %v5067, 1.442695
  %v5128 = vpow.pop %v5127
  %v5129 = vmul.f32 %v5068, 1.442695
  %v5130 = vpow.pop %v5129
  %v5131 = vmul.f32 %v5069, 1.442695
  %v5132 = vpow.pop %v5131
  %v5133 = vmul.f32 %v5070, 1.442695
  %v5134 = vpow.pop %v5133
  %v5135 = vsel %vm209, %v5072, 0.0
  %5136 = vadd.xlane.f32.xlu0 %v5135
  %v5137 = vpop.xlane.xlu0 %5136
  %v5138 = vsel %vm209, %v5074, 0.0
  %5139 = vadd.xlane.f32.xlu0 %v5138
  %v5140 = vpop.xlane.xlu0 %5139
  %v5141 = vsel %vm209, %v5076, 0.0
  %5142 = vadd.xlane.f32.xlu0 %v5141
  %v5143 = vpop.xlane.xlu0 %5142
  %v5144 = vsel %vm209, %v5078, 0.0
  %5145 = vadd.xlane.f32.xlu0 %v5144
  %v5146 = vpop.xlane.xlu0 %5145
  %v5147 = vsel %vm209, %v5080, 0.0
  %5148 = vadd.xlane.f32.xlu0 %v5147
  %v5149 = vpop.xlane.xlu0 %5148
  %v5150 = vsel %vm209, %v5082, 0.0
  %5151 = vadd.xlane.f32.xlu0 %v5150
  %v5152 = vpop.xlane.xlu0 %5151
  %v5153 = vsel %vm209, %v5084, 0.0
  %5154 = vadd.xlane.f32.xlu0 %v5153
  %v5155 = vpop.xlane.xlu0 %5154
  %v5156 = vsel %vm209, %v5086, 0.0
  %5157 = vadd.xlane.f32.xlu0 %v5156
  %v5158 = vpop.xlane.xlu0 %5157
  %v5159 = vsel %vm209, %v5088, 0.0
  %5160 = vadd.xlane.f32.xlu0 %v5159
  %v5161 = vpop.xlane.xlu0 %5160
  %v5162 = vsel %vm209, %v5090, 0.0
  %5163 = vadd.xlane.f32.xlu0 %v5162
  %v5164 = vpop.xlane.xlu0 %5163
  %v5165 = vsel %vm209, %v5092, 0.0
  %5166 = vadd.xlane.f32.xlu0 %v5165
  %v5167 = vpop.xlane.xlu0 %5166
  %v5168 = vsel %vm209, %v5094, 0.0
  %5169 = vadd.xlane.f32.xlu0 %v5168
  %v5170 = vpop.xlane.xlu0 %5169
  %v5171 = vsel %vm209, %v5096, 0.0
  %5172 = vadd.xlane.f32.xlu0 %v5171
  %v5173 = vpop.xlane.xlu0 %5172
  %v5174 = vsel %vm209, %v5098, 0.0
  %5175 = vadd.xlane.f32.xlu0 %v5174
  %v5176 = vpop.xlane.xlu0 %5175
  %v5177 = vsel %vm209, %v5100, 0.0
  %5178 = vadd.xlane.f32.xlu0 %v5177
  %v5179 = vpop.xlane.xlu0 %5178
  %v5180 = vsel %vm209, %v5102, 0.0
  %5181 = vadd.xlane.f32.xlu0 %v5180
  %v5182 = vpop.xlane.xlu0 %5181
  %v5183 = vsel %vm209, %v5104, 0.0
  %5184 = vadd.xlane.f32.xlu0 %v5183
  %v5185 = vpop.xlane.xlu0 %5184
  %v5186 = vsel %vm209, %v5106, 0.0
  %5187 = vadd.xlane.f32.xlu0 %v5186
  %v5188 = vpop.xlane.xlu0 %5187
  %v5189 = vsel %vm209, %v5108, 0.0
  %5190 = vadd.xlane.f32.xlu0 %v5189
  %v5191 = vpop.xlane.xlu0 %5190
  %v5192 = vsel %vm209, %v5110, 0.0
  %5193 = vadd.xlane.f32.xlu0 %v5192
  %v5194 = vpop.xlane.xlu0 %5193
  %v5195 = vsel %vm209, %v5112, 0.0
  %5196 = vadd.xlane.f32.xlu0 %v5195
  %v5197 = vpop.xlane.xlu0 %5196
  %v5198 = vsel %vm209, %v5114, 0.0
  %5199 = vadd.xlane.f32.xlu0 %v5198
  %v5200 = vpop.xlane.xlu0 %5199
  %v5201 = vsel %vm209, %v5116, 0.0
  %5202 = vadd.xlane.f32.xlu0 %v5201
  %v5203 = vpop.xlane.xlu0 %5202
  %v5204 = vsel %vm209, %v5118, 0.0
  %5205 = vadd.xlane.f32.xlu0 %v5204
  %v5206 = vpop.xlane.xlu0 %5205
  %v5207 = vsel %vm209, %v5120, 0.0
  %5208 = vadd.xlane.f32.xlu0 %v5207
  %v5209 = vpop.xlane.xlu0 %5208
  %v5210 = vsel %vm209, %v5122, 0.0
  %5211 = vadd.xlane.f32.xlu0 %v5210
  %v5212 = vpop.xlane.xlu0 %5211
  %v5213 = vsel %vm209, %v5124, 0.0
  %5214 = vadd.xlane.f32.xlu0 %v5213
  %v5215 = vpop.xlane.xlu0 %5214
  %v5216 = vsel %vm209, %v5126, 0.0
  %5217 = vadd.xlane.f32.xlu0 %v5216
  %v5218 = vpop.xlane.xlu0 %5217
  %v5219 = vsel %vm209, %v5128, 0.0
  %5220 = vadd.xlane.f32.xlu0 %v5219
  %v5221 = vpop.xlane.xlu0 %5220
  %v5222 = vsel %vm209, %v5130, 0.0
  %5223 = vadd.xlane.f32.xlu0 %v5222
  %v5224 = vpop.xlane.xlu0 %5223
  %v5225 = vsel %vm209, %v5132, 0.0
  %5226 = vadd.xlane.f32.xlu0 %v5225
  %v5227 = vpop.xlane.xlu0 %5226
  %v5228 = vsel %vm209, %v5134, 0.0
  %5229 = vadd.xlane.f32.xlu0 %v5228
  %v5230 = vpop.xlane.xlu0 %5229
  %v5231 = vrcp.pop %v5137
  %v5232 = vrcp.pop %v5140
  %v5233 = vrcp.pop %v5143
  %v5234 = vrcp.pop %v5146
  %v5235 = vrcp.pop %v5149
  %v5236 = vrcp.pop %v5152
  %v5237 = vrcp.pop %v5155
  %v5238 = vrcp.pop %v5158
  %v5239 = vrcp.pop %v5161
  %v5240 = vrcp.pop %v5164
  %v5241 = vrcp.pop %v5167
  %v5242 = vrcp.pop %v5170
  %v5243 = vrcp.pop %v5173
  %v5244 = vrcp.pop %v5176
  %v5245 = vrcp.pop %v5179
  %v5246 = vrcp.pop %v5182
  %v5247 = vrcp.pop %v5185
  %v5248 = vrcp.pop %v5188
  %v5249 = vrcp.pop %v5191
  %v5250 = vrcp.pop %v5194
  %v5251 = vrcp.pop %v5197
  %v5252 = vrcp.pop %v5200
  %v5253 = vrcp.pop %v5203
  %v5254 = vrcp.pop %v5206
  %v5255 = vrcp.pop %v5209
  %v5256 = vrcp.pop %v5212
  %v5257 = vrcp.pop %v5215
  %v5258 = vrcp.pop %v5218
  %v5259 = vrcp.pop %v5221
  %v5260 = vrcp.pop %v5224
  %v5261 = vrcp.pop %v5227
  %v5262 = vrcp.pop %v5230
  %v5263 = vmul.f32 %v5072, %v5231
  %v5264 = vmul.f32 %v5074, %v5232
  %v5265 = vmul.f32 %v5076, %v5233
  %v5266 = vmul.f32 %v5078, %v5234
  %v5267 = vmul.f32 %v5080, %v5235
  %v5268 = vmul.f32 %v5082, %v5236
  %v5269 = vmul.f32 %v5084, %v5237
  %v5270 = vmul.f32 %v5086, %v5238
  %v5271 = vmul.f32 %v5088, %v5239
  %v5272 = vmul.f32 %v5090, %v5240
  %v5273 = vmul.f32 %v5092, %v5241
  %v5274 = vmul.f32 %v5094, %v5242
  %v5275 = vmul.f32 %v5096, %v5243
  %v5276 = vmul.f32 %v5098, %v5244
  %v5277 = vmul.f32 %v5100, %v5245
  %v5278 = vmul.f32 %v5102, %v5246
  %v5279 = vmul.f32 %v5104, %v5247
  %v5280 = vmul.f32 %v5106, %v5248
  %v5281 = vmul.f32 %v5108, %v5249
  %v5282 = vmul.f32 %v5110, %v5250
  %v5283 = vmul.f32 %v5112, %v5251
  %v5284 = vmul.f32 %v5114, %v5252
  %v5285 = vmul.f32 %v5116, %v5253
  %v5286 = vmul.f32 %v5118, %v5254
  %v5287 = vmul.f32 %v5120, %v5255
  %v5288 = vmul.f32 %v5122, %v5256
  %v5289 = vmul.f32 %v5124, %v5257
  %v5290 = vmul.f32 %v5126, %v5258
  %v5291 = vmul.f32 %v5128, %v5259
  %v5292 = vmul.f32 %v5130, %v5260
  %v5293 = vmul.f32 %v5132, %v5261
  %v5294 = vmul.f32 %v5134, %v5262
  %v5295 = vpack.c.bf16 %v5264, %v5263
  %v5296 = vpack.c.bf16 %v5266, %v5265
  %v5297 = vpack.c.bf16 %v5268, %v5267
  %v5298 = vpack.c.bf16 %v5270, %v5269
  %v5299 = vpack.c.bf16 %v5272, %v5271
  %v5300 = vpack.c.bf16 %v5274, %v5273
  %v5301 = vpack.c.bf16 %v5276, %v5275
  %v5302 = vpack.c.bf16 %v5278, %v5277
  %v5303 = vpack.c.bf16 %v5280, %v5279
  %v5304 = vpack.c.bf16 %v5282, %v5281
  %v5305 = vpack.c.bf16 %v5284, %v5283
  %v5306 = vpack.c.bf16 %v5286, %v5285
  %v5307 = vpack.c.bf16 %v5288, %v5287
  %v5308 = vpack.c.bf16 %v5290, %v5289
  %v5309 = vpack.c.bf16 %v5292, %v5291
  %v5310 = vpack.c.bf16 %v5294, %v5293
  %v5311 = vpack.c.bf16 %v4297, %v4294
  %v5312 = vpack.c.bf16 %v4305, %v4302
  %v5313 = vpack.c.bf16 %v4313, %v4310
  %v5314 = vpack.c.bf16 %v4321, %v4318
  %v5315 = vpack.c.bf16 %v4374, %v4371
  %v5316 = vpack.c.bf16 %v4382, %v4379
  %v5317 = vpack.c.bf16 %v4390, %v4387
  %v5318 = vpack.c.bf16 %v4398, %v4395
  %v5319 = vpack.c.bf16 %v4451, %v4448
  %v5320 = vpack.c.bf16 %v4459, %v4456
  %v5321 = vpack.c.bf16 %v4467, %v4464
  %v5322 = vpack.c.bf16 %v4475, %v4472
  %v5323 = vpack.c.bf16 %v4528, %v4525
  %v5324 = vpack.c.bf16 %v4536, %v4533
  %v5325 = vpack.c.bf16 %v4544, %v4541
  %v5326 = vpack.c.bf16 %v4552, %v4549
  %v5328 = vsel %vm209, %v5295, 0
  %v5331 = vsel %vm209, %v5296, 0
  %v5334 = vsel %vm209, %v5297, 0
  %v5337 = vsel %vm209, %v5298, 0
  %5339 = vmatprep.subr.bf16.mxu0 0
  %5340 = vmatpush1.bf16.msra.mxu0 %v5311
  %5341 = vmatprep.subr.bf16.mxu0 0
  %5342 = vmatpush1.bf16.msra.mxu0 %v5312
  %5343 = vmatprep.subr.bf16.mxu0 0
  %5344 = vmatpush1.bf16.msra.mxu0 %v5313
  %5345 = vmatprep.subr.bf16.mxu0 0
  %5346 = vmatpush1.bf16.msra.mxu0 %v5314
  %5347 = vmatprep.subr.bf16.mxu0 0
  %5348 = vmatpush1.bf16.msra.mxu0 0
  %5349 = vmatprep.subr.bf16.mxu0 0
  %5350 = vmatpush1.bf16.msra.mxu0 0
  %5351 = vmatprep.subr.bf16.mxu0 0
  %5352 = vmatpush1.bf16.msra.mxu0 0
  %5353 = vmatprep.subr.bf16.mxu0 0
  %5354 = vmatpush1.bf16.msra.mxu0 0
  %5355 = vmatprep.subr.bf16.mxu0 0
  %5356 = vmatpush1.bf16.msra.mxu0 0
  %5357 = vmatprep.subr.bf16.mxu0 0
  %5358 = vmatpush1.bf16.msra.mxu0 0
  %5359 = vmatprep.subr.bf16.mxu0 0
  %5360 = vmatpush1.bf16.msra.mxu0 0
  %5361 = vmatprep.subr.bf16.mxu0 0
  %5362 = vmatpush1.bf16.msra.mxu0 0
  %5363 = vmatprep.subr.bf16.mxu0 0
  %5364 = vmatpush1.bf16.msra.mxu0 0
  %5365 = vmatprep.subr.bf16.mxu0 0
  %5366 = vmatpush1.bf16.msra.mxu0 0
  %5367 = vmatprep.subr.bf16.mxu0 0
  %5368 = vmatpush1.bf16.msra.mxu0 0
  %5369 = vmatprep.subr.bf16.mxu0 0
  %5370 = vmatpush1.bf16.msra.mxu0 0
  %5371 = vmatprep.mubr.bf16.mxu0 0
  %5372 = vmatmul.mubr.bf16.gmra.mrb[0].mxu0 %v5328
  %v5373 = vpop.f32.mrb[0].mxu0
  %v5374 = vadd.f32 0.0, %v5373
  %v5375 = vpop.f32.mrb[0].mxu0
  %v5376 = vpop.f32.mrb[0].mxu0
  %v5377 = vadd.f32 0.0, %v5376
  %v5378 = vpop.f32.mrb[0].mxu0
  %5379 = vmatprep.mubr.bf16.mxu0 0
  %5380 = vmatmul.mubr.bf16.gmra.mrb[0].mxu0 %v5331
  %v5381 = vpop.f32.mrb[0].mxu0
  %v5382 = vadd.f32 0.0, %v5381
  %v5383 = vpop.f32.mrb[0].mxu0
  %v5384 = vpop.f32.mrb[0].mxu0
  %v5385 = vadd.f32 0.0, %v5384
  %v5386 = vpop.f32.mrb[0].mxu0
  %5387 = vmatprep.mubr.bf16.mxu0 0
  %5388 = vmatmul.mubr.bf16.gmra.mrb[0].mxu0 %v5334
  %v5389 = vpop.f32.mrb[0].mxu0
  %v5390 = vadd.f32 0.0, %v5389
  %v5391 = vpop.f32.mrb[0].mxu0
  %v5392 = vpop.f32.mrb[0].mxu0
  %v5393 = vadd.f32 0.0, %v5392
  %v5394 = vpop.f32.mrb[0].mxu0
  %5395 = vmatprep.mubr.bf16.mxu0 0
  %5396 = vmatmul.mubr.bf16.gmra.mrb[0].mxu0 %v5337
  %v5397 = vpop.f32.mrb[0].mxu0
  %v5398 = vadd.f32 0.0, %v5397
  %v5399 = vpop.f32.mrb[0].mxu0
  %v5400 = vpop.f32.mrb[0].mxu0
  %v5401 = vadd.f32 0.0, %v5400
  %v5402 = vpop.f32.mrb[0].mxu0
  %5403 = vdwg.mxu0
  %v5405 = vsel %vm209, %v5299, 0
  %v5408 = vsel %vm209, %v5300, 0
  %v5411 = vsel %vm209, %v5301, 0
  %v5414 = vsel %vm209, %v5302, 0
  %5416 = vmatprep.subr.bf16.mxu0 0
  %5417 = vmatpush1.bf16.msra.mxu0 %v5315
  %5418 = vmatprep.subr.bf16.mxu0 0
  %5419 = vmatpush1.bf16.msra.mxu0 %v5316
  %5420 = vmatprep.subr.bf16.mxu0 0
  %5421 = vmatpush1.bf16.msra.mxu0 %v5317
  %5422 = vmatprep.subr.bf16.mxu0 0
  %5423 = vmatpush1.bf16.msra.mxu0 %v5318
  %5424 = vmatprep.subr.bf16.mxu0 0
  %5425 = vmatpush1.bf16.msra.mxu0 0
  %5426 = vmatprep.subr.bf16.mxu0 0
  %5427 = vmatpush1.bf16.msra.mxu0 0
  %5428 = vmatprep.subr.bf16.mxu0 0
  %5429 = vmatpush1.bf16.msra.mxu0 0
  %5430 = vmatprep.subr.bf16.mxu0 0
  %5431 = vmatpush1.bf16.msra.mxu0 0
  %5432 = vmatprep.subr.bf16.mxu0 0
  %5433 = vmatpush1.bf16.msra.mxu0 0
  %5434 = vmatprep.subr.bf16.mxu0 0
  %5435 = vmatpush1.bf16.msra.mxu0 0
  %5436 = vmatprep.subr.bf16.mxu0 0
  %5437 = vmatpush1.bf16.msra.mxu0 0
  %5438 = vmatprep.subr.bf16.mxu0 0
  %5439 = vmatpush1.bf16.msra.mxu0 0
  %5440 = vmatprep.subr.bf16.mxu0 0
  %5441 = vmatpush1.bf16.msra.mxu0 0
  %5442 = vmatprep.subr.bf16.mxu0 0
  %5443 = vmatpush1.bf16.msra.mxu0 0
  %5444 = vmatprep.subr.bf16.mxu0 0
  %5445 = vmatpush1.bf16.msra.mxu0 0
  %5446 = vmatprep.subr.bf16.mxu0 0
  %5447 = vmatpush1.bf16.msra.mxu0 0
  %5448 = vmatprep.mubr.bf16.mxu0 0
  %5449 = vmatmul.mubr.bf16.gmra.mrb[0].mxu0 %v5405
  %v5450 = vpop.f32.mrb[0].mxu0
  %v5451 = vadd.f32 0.0, %v5450
  %v5452 = vpop.f32.mrb[0].mxu0
  %v5453 = vpop.f32.mrb[0].mxu0
  %v5454 = vadd.f32 0.0, %v5453
  %v5455 = vpop.f32.mrb[0].mxu0
  %5456 = vmatprep.mubr.bf16.mxu0 0
  %5457 = vmatmul.mubr.bf16.gmra.mrb[0].mxu0 %v5408
  %v5458 = vpop.f32.mrb[0].mxu0
  %v5459 = vadd.f32 0.0, %v5458
  %v5460 = vpop.f32.mrb[0].mxu0
  %v5461 = vpop.f32.mrb[0].mxu0
  %v5462 = vadd.f32 0.0, %v5461
  %v5463 = vpop.f32.mrb[0].mxu0
  %5464 = vmatprep.mubr.bf16.mxu0 0
  %5465 = vmatmul.mubr.bf16.gmra.mrb[0].mxu0 %v5411
  %v5466 = vpop.f32.mrb[0].mxu0
  %v5467 = vadd.f32 0.0, %v5466
  %v5468 = vpop.f32.mrb[0].mxu0
  %v5469 = vpop.f32.mrb[0].mxu0
  %v5470 = vadd.f32 0.0, %v5469
  %v5471 = vpop.f32.mrb[0].mxu0
  %5472 = vmatprep.mubr.bf16.mxu0 0
  %5473 = vmatmul.mubr.bf16.gmra.mrb[0].mxu0 %v5414
  %v5474 = vpop.f32.mrb[0].mxu0
  %v5475 = vadd.f32 0.0, %v5474
  %v5476 = vpop.f32.mrb[0].mxu0
  %v5477 = vpop.f32.mrb[0].mxu0
  %v5478 = vadd.f32 0.0, %v5477
  %v5479 = vpop.f32.mrb[0].mxu0
  %5480 = vdwg.mxu0
  %v5482 = vsel %vm209, %v5303, 0
  %v5485 = vsel %vm209, %v5304, 0
  %v5488 = vsel %vm209, %v5305, 0
  %v5491 = vsel %vm209, %v5306, 0
  %5493 = vmatprep.subr.bf16.mxu0 0
  %5494 = vmatpush1.bf16.msra.mxu0 %v5319
  %5495 = vmatprep.subr.bf16.mxu0 0
  %5496 = vmatpush1.bf16.msra.mxu0 %v5320
  %5497 = vmatprep.subr.bf16.mxu0 0
  %5498 = vmatpush1.bf16.msra.mxu0 %v5321
  %5499 = vmatprep.subr.bf16.mxu0 0
  %5500 = vmatpush1.bf16.msra.mxu0 %v5322
  %5501 = vmatprep.subr.bf16.mxu0 0
  %5502 = vmatpush1.bf16.msra.mxu0 0
  %5503 = vmatprep.subr.bf16.mxu0 0
  %5504 = vmatpush1.bf16.msra.mxu0 0
  %5505 = vmatprep.subr.bf16.mxu0 0
  %5506 = vmatpush1.bf16.msra.mxu0 0
  %5507 = vmatprep.subr.bf16.mxu0 0
  %5508 = vmatpush1.bf16.msra.mxu0 0
  %5509 = vmatprep.subr.bf16.mxu0 0
  %5510 = vmatpush1.bf16.msra.mxu0 0
  %5511 = vmatprep.subr.bf16.mxu0 0
  %5512 = vmatpush1.bf16.msra.mxu0 0
  %5513 = vmatprep.subr.bf16.mxu0 0
  %5514 = vmatpush1.bf16.msra.mxu0 0
  %5515 = vmatprep.subr.bf16.mxu0 0
  %5516 = vmatpush1.bf16.msra.mxu0 0
  %5517 = vmatprep.subr.bf16.mxu0 0
  %5518 = vmatpush1.bf16.msra.mxu0 0
  %5519 = vmatprep.subr.bf16.mxu0 0
  %5520 = vmatpush1.bf16.msra.mxu0 0
  %5521 = vmatprep.subr.bf16.mxu0 0
  %5522 = vmatpush1.bf16.msra.mxu0 0
  %5523 = vmatprep.subr.bf16.mxu0 0
  %5524 = vmatpush1.bf16.msra.mxu0 0
  %5525 = vmatprep.mubr.bf16.mxu0 0
  %5526 = vmatmul.mubr.bf16.gmra.mrb[0].mxu0 %v5482
  %v5527 = vpop.f32.mrb[0].mxu0
  %v5528 = vadd.f32 0.0, %v5527
  %v5529 = vpop.f32.mrb[0].mxu0
  %v5530 = vpop.f32.mrb[0].mxu0
  %v5531 = vadd.f32 0.0, %v5530
  %v5532 = vpop.f32.mrb[0].mxu0
  %5533 = vmatprep.mubr.bf16.mxu0 0
  %5534 = vmatmul.mubr.bf16.gmra.mrb[0].mxu0 %v5485
  %v5535 = vpop.f32.mrb[0].mxu0
  %v5536 = vadd.f32 0.0, %v5535
  %v5537 = vpop.f32.mrb[0].mxu0
  %v5538 = vpop.f32.mrb[0].mxu0
  %v5539 = vadd.f32 0.0, %v5538
  %v5540 = vpop.f32.mrb[0].mxu0
  %5541 = vmatprep.mubr.bf16.mxu0 0
  %5542 = vmatmul.mubr.bf16.gmra.mrb[0].mxu0 %v5488
  %v5543 = vpop.f32.mrb[0].mxu0
  %v5544 = vadd.f32 0.0, %v5543
  %v5545 = vpop.f32.mrb[0].mxu0
  %v5546 = vpop.f32.mrb[0].mxu0
  %v5547 = vadd.f32 0.0, %v5546
  %v5548 = vpop.f32.mrb[0].mxu0
  %5549 = vmatprep.mubr.bf16.mxu0 0
  %5550 = vmatmul.mubr.bf16.gmra.mrb[0].mxu0 %v5491
  %v5551 = vpop.f32.mrb[0].mxu0
  %v5552 = vadd.f32 0.0, %v5551
  %v5553 = vpop.f32.mrb[0].mxu0
  %v5554 = vpop.f32.mrb[0].mxu0
  %v5555 = vadd.f32 0.0, %v5554
  %v5556 = vpop.f32.mrb[0].mxu0
  %5557 = vdwg.mxu0
  %v5559 = vsel %vm209, %v5307, 0
  %v5562 = vsel %vm209, %v5308, 0
  %v5565 = vsel %vm209, %v5309, 0
  %v5568 = vsel %vm209, %v5310, 0
  %5570 = vmatprep.subr.bf16.mxu0 0
  %5571 = vmatpush1.bf16.msra.mxu0 %v5323
  %5572 = vmatprep.subr.bf16.mxu0 0
  %5573 = vmatpush1.bf16.msra.mxu0 %v5324
  %5574 = vmatprep.subr.bf16.mxu0 0
  %5575 = vmatpush1.bf16.msra.mxu0 %v5325
  %5576 = vmatprep.subr.bf16.mxu0 0
  %5577 = vmatpush1.bf16.msra.mxu0 %v5326
  %5578 = vmatprep.subr.bf16.mxu0 0
  %5579 = vmatpush1.bf16.msra.mxu0 0
  %5580 = vmatprep.subr.bf16.mxu0 0
  %5581 = vmatpush1.bf16.msra.mxu0 0
  %5582 = vmatprep.subr.bf16.mxu0 0
  %5583 = vmatpush1.bf16.msra.mxu0 0
  %5584 = vmatprep.subr.bf16.mxu0 0
  %5585 = vmatpush1.bf16.msra.mxu0 0
  %5586 = vmatprep.subr.bf16.mxu0 0
  %5587 = vmatpush1.bf16.msra.mxu0 0
  %5588 = vmatprep.subr.bf16.mxu0 0
  %5589 = vmatpush1.bf16.msra.mxu0 0
  %5590 = vmatprep.subr.bf16.mxu0 0
  %5591 = vmatpush1.bf16.msra.mxu0 0
  %5592 = vmatprep.subr.bf16.mxu0 0
  %5593 = vmatpush1.bf16.msra.mxu0 0
  %5594 = vmatprep.subr.bf16.mxu0 0
  %5595 = vmatpush1.bf16.msra.mxu0 0
  %5596 = vmatprep.subr.bf16.mxu0 0
  %5597 = vmatpush1.bf16.msra.mxu0 0
  %5598 = vmatprep.subr.bf16.mxu0 0
  %5599 = vmatpush1.bf16.msra.mxu0 0
  %5600 = vmatprep.subr.bf16.mxu0 0
  %5601 = vmatpush1.bf16.msra.mxu0 0
  %5602 = vmatprep.mubr.bf16.mxu0 0
  %5603 = vmatmul.mubr.bf16.gmra.mrb[0].mxu0 %v5559
  %v5604 = vpop.f32.mrb[0].mxu0
  %v5605 = vadd.f32 0.0, %v5604
  %v5606 = vpop.f32.mrb[0].mxu0
  %v5607 = vpop.f32.mrb[0].mxu0
  %v5608 = vadd.f32 0.0, %v5607
  %v5609 = vpop.f32.mrb[0].mxu0
  %5610 = vmatprep.mubr.bf16.mxu0 0
  %5611 = vmatmul.mubr.bf16.gmra.mrb[0].mxu0 %v5562
  %v5612 = vpop.f32.mrb[0].mxu0
  %v5613 = vadd.f32 0.0, %v5612
  %v5614 = vpop.f32.mrb[0].mxu0
  %v5615 = vpop.f32.mrb[0].mxu0
  %v5616 = vadd.f32 0.0, %v5615
  %v5617 = vpop.f32.mrb[0].mxu0
  %5618 = vmatprep.mubr.bf16.mxu0 0
  %5619 = vmatmul.mubr.bf16.gmra.mrb[0].mxu0 %v5565
  %v5620 = vpop.f32.mrb[0].mxu0
  %v5621 = vadd.f32 0.0, %v5620
  %v5622 = vpop.f32.mrb[0].mxu0
  %v5623 = vpop.f32.mrb[0].mxu0
  %v5624 = vadd.f32 0.0, %v5623
  %v5625 = vpop.f32.mrb[0].mxu0
  %5626 = vmatprep.mubr.bf16.mxu0 0
  %5627 = vmatmul.mubr.bf16.gmra.mrb[0].mxu0 %v5568
  %v5628 = vpop.f32.mrb[0].mxu0
  %v5629 = vadd.f32 0.0, %v5628
  %v5630 = vpop.f32.mrb[0].mxu0
  %v5631 = vpop.f32.mrb[0].mxu0
  %v5632 = vadd.f32 0.0, %v5631
  %v5633 = vpop.f32.mrb[0].mxu0
  %5634 = vdwg.mxu0
  %v5635 = vpack.c.bf16 %v5377, %v5374
  %v5636 = vpack.c.bf16 %v5385, %v5382
  %v5637 = vpack.c.bf16 %v5393, %v5390
  %v5638 = vpack.c.bf16 %v5401, %v5398
  %v5639 = vpack.c.bf16 %v5454, %v5451
  %v5640 = vpack.c.bf16 %v5462, %v5459
  %v5641 = vpack.c.bf16 %v5470, %v5467
  %v5642 = vpack.c.bf16 %v5478, %v5475
  %v5643 = vpack.c.bf16 %v5531, %v5528
  %v5644 = vpack.c.bf16 %v5539, %v5536
  %v5645 = vpack.c.bf16 %v5547, %v5544
  %v5646 = vpack.c.bf16 %v5555, %v5552
  %v5647 = vpack.c.bf16 %v5608, %v5605
  %v5648 = vpack.c.bf16 %v5616, %v5613
  %v5649 = vpack.c.bf16 %v5624, %v5621
  %v5650 = vpack.c.bf16 %v5632, %v5629
  %s5651 = scalar_lea.vmem %s11, 16
  %v5652 = vld [vmem:[%s5651] sm:$0xf]
  %v5653 = vld [vmem:[%s5651 + $0x4] sm:$0xf]
  %v5654 = vld [vmem:[%s5651 + $0x8] sm:$0xf]
  %v5655 = vld [vmem:[%s5651 + $0xc] sm:$0xf]
  %v5657 = vsel %vm1569, %v5635, 0
  %v5660 = vsel %vm1569, %v5636, 0
  %v5663 = vsel %vm1569, %v5637, 0
  %v5666 = vsel %vm1569, %v5638, 0
  %v5669 = vsel %vm2650, %v5652, 0
  %5671 = vmatprep.subr.bf16.mxu0 0
  %5672 = vmatpush1.bf16.msra.mxu0 %v5669
  %5673 = vmatprep.subr.bf16.mxu0 0
  %5674 = vmatpush1.bf16.msra.mxu0 0
  %5675 = vmatprep.subr.bf16.mxu0 0
  %5676 = vmatpush1.bf16.msra.mxu0 0
  %5677 = vmatprep.subr.bf16.mxu0 0
  %5678 = vmatpush1.bf16.msra.mxu0 0
  %5679 = vmatprep.subr.bf16.mxu0 0
  %5680 = vmatpush1.bf16.msra.mxu0 0
  %5681 = vmatprep.subr.bf16.mxu0 0
  %5682 = vmatpush1.bf16.msra.mxu0 0
  %5683 = vmatprep.subr.bf16.mxu0 0
  %5684 = vmatpush1.bf16.msra.mxu0 0
  %5685 = vmatprep.subr.bf16.mxu0 0
  %5686 = vmatpush1.bf16.msra.mxu0 0
  %5687 = vmatprep.subr.bf16.mxu0 0
  %5688 = vmatpush1.bf16.msra.mxu0 0
  %5689 = vmatprep.subr.bf16.mxu0 0
  %5690 = vmatpush1.bf16.msra.mxu0 0
  %5691 = vmatprep.subr.bf16.mxu0 0
  %5692 = vmatpush1.bf16.msra.mxu0 0
  %5693 = vmatprep.subr.bf16.mxu0 0
  %5694 = vmatpush1.bf16.msra.mxu0 0
  %5695 = vmatprep.subr.bf16.mxu0 0
  %5696 = vmatpush1.bf16.msra.mxu0 0
  %5697 = vmatprep.subr.bf16.mxu0 0
  %5698 = vmatpush1.bf16.msra.mxu0 0
  %5699 = vmatprep.subr.bf16.mxu0 0
  %5700 = vmatpush1.bf16.msra.mxu0 0
  %5701 = vmatprep.subr.bf16.mxu0 0
  %5702 = vmatpush1.bf16.msra.mxu0 0
  %5703 = vmatprep.mubr.bf16.mxu0 0
  %5704 = vmatmul.mubr.bf16.gmra.mrb[0].mxu0 %v5657
  %v5705 = vpop.f32.mrb[0].mxu0
  %v5706 = vadd.f32 0.0, %v5705
  %v5707 = vpop.f32.mrb[0].mxu0
  %v5708 = vpop.f32.mrb[0].mxu0
  %v5709 = vadd.f32 0.0, %v5708
  %v5710 = vpop.f32.mrb[0].mxu0
  %5711 = vmatprep.mubr.bf16.mxu0 0
  %5712 = vmatmul.mubr.bf16.gmra.mrb[0].mxu0 %v5660
  %v5713 = vpop.f32.mrb[0].mxu0
  %v5714 = vadd.f32 0.0, %v5713
  %v5715 = vpop.f32.mrb[0].mxu0
  %v5716 = vpop.f32.mrb[0].mxu0
  %v5717 = vadd.f32 0.0, %v5716
  %v5718 = vpop.f32.mrb[0].mxu0
  %5719 = vmatprep.mubr.bf16.mxu0 0
  %5720 = vmatmul.mubr.bf16.gmra.mrb[0].mxu0 %v5663
  %v5721 = vpop.f32.mrb[0].mxu0
  %v5722 = vadd.f32 0.0, %v5721
  %v5723 = vpop.f32.mrb[0].mxu0
  %v5724 = vpop.f32.mrb[0].mxu0
  %v5725 = vadd.f32 0.0, %v5724
  %v5726 = vpop.f32.mrb[0].mxu0
  %5727 = vmatprep.mubr.bf16.mxu0 0
  %5728 = vmatmul.mubr.bf16.gmra.mrb[0].mxu0 %v5666
  %v5729 = vpop.f32.mrb[0].mxu0
  %v5730 = vadd.f32 0.0, %v5729
  %v5731 = vpop.f32.mrb[0].mxu0
  %v5732 = vpop.f32.mrb[0].mxu0
  %v5733 = vadd.f32 0.0, %v5732
  %v5734 = vpop.f32.mrb[0].mxu0
  %5735 = vdwg.mxu0
  %v5737 = vsel %vm1569, %v5639, 0
  %v5740 = vsel %vm1569, %v5640, 0
  %v5743 = vsel %vm1569, %v5641, 0
  %v5746 = vsel %vm1569, %v5642, 0
  %v5749 = vsel %vm2650, %v5653, 0
  %5751 = vmatprep.subr.bf16.mxu0 0
  %5752 = vmatpush1.bf16.msra.mxu0 %v5749
  %5753 = vmatprep.subr.bf16.mxu0 0
  %5754 = vmatpush1.bf16.msra.mxu0 0
  %5755 = vmatprep.subr.bf16.mxu0 0
  %5756 = vmatpush1.bf16.msra.mxu0 0
  %5757 = vmatprep.subr.bf16.mxu0 0
  %5758 = vmatpush1.bf16.msra.mxu0 0
  %5759 = vmatprep.subr.bf16.mxu0 0
  %5760 = vmatpush1.bf16.msra.mxu0 0
  %5761 = vmatprep.subr.bf16.mxu0 0
  %5762 = vmatpush1.bf16.msra.mxu0 0
  %5763 = vmatprep.subr.bf16.mxu0 0
  %5764 = vmatpush1.bf16.msra.mxu0 0
  %5765 = vmatprep.subr.bf16.mxu0 0
  %5766 = vmatpush1.bf16.msra.mxu0 0
  %5767 = vmatprep.subr.bf16.mxu0 0
  %5768 = vmatpush1.bf16.msra.mxu0 0
  %5769 = vmatprep.subr.bf16.mxu0 0
  %5770 = vmatpush1.bf16.msra.mxu0 0
  %5771 = vmatprep.subr.bf16.mxu0 0
  %5772 = vmatpush1.bf16.msra.mxu0 0
  %5773 = vmatprep.subr.bf16.mxu0 0
  %5774 = vmatpush1.bf16.msra.mxu0 0
  %5775 = vmatprep.subr.bf16.mxu0 0
  %5776 = vmatpush1.bf16.msra.mxu0 0
  %5777 = vmatprep.subr.bf16.mxu0 0
  %5778 = vmatpush1.bf16.msra.mxu0 0
  %5779 = vmatprep.subr.bf16.mxu0 0
  %5780 = vmatpush1.bf16.msra.mxu0 0
  %5781 = vmatprep.subr.bf16.mxu0 0
  %5782 = vmatpush1.bf16.msra.mxu0 0
  %5783 = vmatprep.mubr.bf16.mxu0 0
  %5784 = vmatmul.mubr.bf16.gmra.mrb[0].mxu0 %v5737
  %v5785 = vpop.f32.mrb[0].mxu0
  %v5786 = vadd.f32 0.0, %v5785
  %v5787 = vpop.f32.mrb[0].mxu0
  %v5788 = vpop.f32.mrb[0].mxu0
  %v5789 = vadd.f32 0.0, %v5788
  %v5790 = vpop.f32.mrb[0].mxu0
  %5791 = vmatprep.mubr.bf16.mxu0 0
  %5792 = vmatmul.mubr.bf16.gmra.mrb[0].mxu0 %v5740
  %v5793 = vpop.f32.mrb[0].mxu0
  %v5794 = vadd.f32 0.0, %v5793
  %v5795 = vpop.f32.mrb[0].mxu0
  %v5796 = vpop.f32.mrb[0].mxu0
  %v5797 = vadd.f32 0.0, %v5796
  %v5798 = vpop.f32.mrb[0].mxu0
  %5799 = vmatprep.mubr.bf16.mxu0 0
  %5800 = vmatmul.mubr.bf16.gmra.mrb[0].mxu0 %v5743
  %v5801 = vpop.f32.mrb[0].mxu0
  %v5802 = vadd.f32 0.0, %v5801
  %v5803 = vpop.f32.mrb[0].mxu0
  %v5804 = vpop.f32.mrb[0].mxu0
  %v5805 = vadd.f32 0.0, %v5804
  %v5806 = vpop.f32.mrb[0].mxu0
  %5807 = vmatprep.mubr.bf16.mxu0 0
  %5808 = vmatmul.mubr.bf16.gmra.mrb[0].mxu0 %v5746
  %v5809 = vpop.f32.mrb[0].mxu0
  %v5810 = vadd.f32 0.0, %v5809
  %v5811 = vpop.f32.mrb[0].mxu0
  %v5812 = vpop.f32.mrb[0].mxu0
  %v5813 = vadd.f32 0.0, %v5812
  %v5814 = vpop.f32.mrb[0].mxu0
  %5815 = vdwg.mxu0
  %v5817 = vsel %vm1569, %v5643, 0
  %v5820 = vsel %vm1569, %v5644, 0
  %v5823 = vsel %vm1569, %v5645, 0
  %v5826 = vsel %vm1569, %v5646, 0
  %v5829 = vsel %vm2650, %v5654, 0
  %5831 = vmatprep.subr.bf16.mxu0 0
  %5832 = vmatpush1.bf16.msra.mxu0 %v5829
  %5833 = vmatprep.subr.bf16.mxu0 0
  %5834 = vmatpush1.bf16.msra.mxu0 0
  %5835 = vmatprep.subr.bf16.mxu0 0
  %5836 = vmatpush1.bf16.msra.mxu0 0
  %5837 = vmatprep.subr.bf16.mxu0 0
  %5838 = vmatpush1.bf16.msra.mxu0 0
  %5839 = vmatprep.subr.bf16.mxu0 0
  %5840 = vmatpush1.bf16.msra.mxu0 0
  %5841 = vmatprep.subr.bf16.mxu0 0
  %5842 = vmatpush1.bf16.msra.mxu0 0
  %5843 = vmatprep.subr.bf16.mxu0 0
  %5844 = vmatpush1.bf16.msra.mxu0 0
  %5845 = vmatprep.subr.bf16.mxu0 0
  %5846 = vmatpush1.bf16.msra.mxu0 0
  %5847 = vmatprep.subr.bf16.mxu0 0
  %5848 = vmatpush1.bf16.msra.mxu0 0
  %5849 = vmatprep.subr.bf16.mxu0 0
  %5850 = vmatpush1.bf16.msra.mxu0 0
  %5851 = vmatprep.subr.bf16.mxu0 0
  %5852 = vmatpush1.bf16.msra.mxu0 0
  %5853 = vmatprep.subr.bf16.mxu0 0
  %5854 = vmatpush1.bf16.msra.mxu0 0
  %5855 = vmatprep.subr.bf16.mxu0 0
  %5856 = vmatpush1.bf16.msra.mxu0 0
  %5857 = vmatprep.subr.bf16.mxu0 0
  %5858 = vmatpush1.bf16.msra.mxu0 0
  %5859 = vmatprep.subr.bf16.mxu0 0
  %5860 = vmatpush1.bf16.msra.mxu0 0
  %5861 = vmatprep.subr.bf16.mxu0 0
  %5862 = vmatpush1.bf16.msra.mxu0 0
  %5863 = vmatprep.mubr.bf16.mxu0 0
  %5864 = vmatmul.mubr.bf16.gmra.mrb[0].mxu0 %v5817
  %v5865 = vpop.f32.mrb[0].mxu0
  %v5866 = vadd.f32 0.0, %v5865
  %v5867 = vpop.f32.mrb[0].mxu0
  %v5868 = vpop.f32.mrb[0].mxu0
  %v5869 = vadd.f32 0.0, %v5868
  %v5870 = vpop.f32.mrb[0].mxu0
  %5871 = vmatprep.mubr.bf16.mxu0 0
  %5872 = vmatmul.mubr.bf16.gmra.mrb[0].mxu0 %v5820
  %v5873 = vpop.f32.mrb[0].mxu0
  %v5874 = vadd.f32 0.0, %v5873
  %v5875 = vpop.f32.mrb[0].mxu0
  %v5876 = vpop.f32.mrb[0].mxu0
  %v5877 = vadd.f32 0.0, %v5876
  %v5878 = vpop.f32.mrb[0].mxu0
  %5879 = vmatprep.mubr.bf16.mxu0 0
  %5880 = vmatmul.mubr.bf16.gmra.mrb[0].mxu0 %v5823
  %v5881 = vpop.f32.mrb[0].mxu0
  %v5882 = vadd.f32 0.0, %v5881
  %v5883 = vpop.f32.mrb[0].mxu0
  %v5884 = vpop.f32.mrb[0].mxu0
  %v5885 = vadd.f32 0.0, %v5884
  %v5886 = vpop.f32.mrb[0].mxu0
  %5887 = vmatprep.mubr.bf16.mxu0 0
  %5888 = vmatmul.mubr.bf16.gmra.mrb[0].mxu0 %v5826
  %v5889 = vpop.f32.mrb[0].mxu0
  %v5890 = vadd.f32 0.0, %v5889
  %v5891 = vpop.f32.mrb[0].mxu0
  %v5892 = vpop.f32.mrb[0].mxu0
  %v5893 = vadd.f32 0.0, %v5892
  %v5894 = vpop.f32.mrb[0].mxu0
  %5895 = vdwg.mxu0
  %v5897 = vsel %vm1569, %v5647, 0
  %v5900 = vsel %vm1569, %v5648, 0
  %v5903 = vsel %vm1569, %v5649, 0
  %v5906 = vsel %vm1569, %v5650, 0
  %v5909 = vsel %vm2650, %v5655, 0
  %5911 = vmatprep.subr.bf16.mxu0 0
  %5912 = vmatpush1.bf16.msra.mxu0 %v5909
  %5913 = vmatprep.subr.bf16.mxu0 0
  %5914 = vmatpush1.bf16.msra.mxu0 0
  %5915 = vmatprep.subr.bf16.mxu0 0
  %5916 = vmatpush1.bf16.msra.mxu0 0
  %5917 = vmatprep.subr.bf16.mxu0 0
  %5918 = vmatpush1.bf16.msra.mxu0 0
  %5919 = vmatprep.subr.bf16.mxu0 0
  %5920 = vmatpush1.bf16.msra.mxu0 0
  %5921 = vmatprep.subr.bf16.mxu0 0
  %5922 = vmatpush1.bf16.msra.mxu0 0
  %5923 = vmatprep.subr.bf16.mxu0 0
  %5924 = vmatpush1.bf16.msra.mxu0 0
  %5925 = vmatprep.subr.bf16.mxu0 0
  %5926 = vmatpush1.bf16.msra.mxu0 0
  %5927 = vmatprep.subr.bf16.mxu0 0
  %5928 = vmatpush1.bf16.msra.mxu0 0
  %5929 = vmatprep.subr.bf16.mxu0 0
  %5930 = vmatpush1.bf16.msra.mxu0 0
  %5931 = vmatprep.subr.bf16.mxu0 0
  %5932 = vmatpush1.bf16.msra.mxu0 0
  %5933 = vmatprep.subr.bf16.mxu0 0
  %5934 = vmatpush1.bf16.msra.mxu0 0
  %5935 = vmatprep.subr.bf16.mxu0 0
  %5936 = vmatpush1.bf16.msra.mxu0 0
  %5937 = vmatprep.subr.bf16.mxu0 0
  %5938 = vmatpush1.bf16.msra.mxu0 0
  %5939 = vmatprep.subr.bf16.mxu0 0
  %5940 = vmatpush1.bf16.msra.mxu0 0
  %5941 = vmatprep.subr.bf16.mxu0 0
  %5942 = vmatpush1.bf16.msra.mxu0 0
  %5943 = vmatprep.mubr.bf16.mxu0 0
  %5944 = vmatmul.mubr.bf16.gmra.mrb[0].mxu0 %v5897
  %v5945 = vpop.f32.mrb[0].mxu0
  %v5946 = vadd.f32 0.0, %v5945
  %v5947 = vpop.f32.mrb[0].mxu0
  %v5948 = vpop.f32.mrb[0].mxu0
  %v5949 = vadd.f32 0.0, %v5948
  %v5950 = vpop.f32.mrb[0].mxu0
  %5951 = vmatprep.mubr.bf16.mxu0 0
  %5952 = vmatmul.mubr.bf16.gmra.mrb[0].mxu0 %v5900
  %v5953 = vpop.f32.mrb[0].mxu0
  %v5954 = vadd.f32 0.0, %v5953
  %v5955 = vpop.f32.mrb[0].mxu0
  %v5956 = vpop.f32.mrb[0].mxu0
  %v5957 = vadd.f32 0.0, %v5956
  %v5958 = vpop.f32.mrb[0].mxu0
  %5959 = vmatprep.mubr.bf16.mxu0 0
  %5960 = vmatmul.mubr.bf16.gmra.mrb[0].mxu0 %v5903
  %v5961 = vpop.f32.mrb[0].mxu0
  %v5962 = vadd.f32 0.0, %v5961
  %v5963 = vpop.f32.mrb[0].mxu0
  %v5964 = vpop.f32.mrb[0].mxu0
  %v5965 = vadd.f32 0.0, %v5964
  %v5966 = vpop.f32.mrb[0].mxu0
  %5967 = vmatprep.mubr.bf16.mxu0 0
  %5968 = vmatmul.mubr.bf16.gmra.mrb[0].mxu0 %v5906
  %v5969 = vpop.f32.mrb[0].mxu0
  %v5970 = vadd.f32 0.0, %v5969
  %v5971 = vpop.f32.mrb[0].mxu0
  %v5972 = vpop.f32.mrb[0].mxu0
  %v5973 = vadd.f32 0.0, %v5972
  %v5974 = vpop.f32.mrb[0].mxu0
  %5975 = vdwg.mxu0
  %v5976 = vsel %vm315, %v5706, 0.0
  %v5977 = vsel %vm315, %v5786, 0.0
  %v5978 = vadd.f32 %v5976, %v5977
  %v5979 = vsel %vm315, %v5866, 0.0
  %v5980 = vadd.f32 %v5978, %v5979
  %v5981 = vsel %vm315, %v5946, 0.0
  %v5982 = vadd.f32 %v5980, %v5981
  %v5983 = vsel %vm315, %v5709, 0.0
  %v5984 = vsel %vm315, %v5789, 0.0
  %v5985 = vadd.f32 %v5983, %v5984
  %v5986 = vsel %vm315, %v5869, 0.0
  %v5987 = vadd.f32 %v5985, %v5986
  %v5988 = vsel %vm315, %v5949, 0.0
  %v5989 = vadd.f32 %v5987, %v5988
  %v5990 = vsel %vm315, %v5714, 0.0
  %v5991 = vsel %vm315, %v5794, 0.0
  %v5992 = vadd.f32 %v5990, %v5991
  %v5993 = vsel %vm315, %v5874, 0.0
  %v5994 = vadd.f32 %v5992, %v5993
  %v5995 = vsel %vm315, %v5954, 0.0
  %v5996 = vadd.f32 %v5994, %v5995
  %v5997 = vsel %vm315, %v5717, 0.0
  %v5998 = vsel %vm315, %v5797, 0.0
  %v5999 = vadd.f32 %v5997, %v5998
  %v6000 = vsel %vm315, %v5877, 0.0
  %v6001 = vadd.f32 %v5999, %v6000
  %v6002 = vsel %vm315, %v5957, 0.0
  %v6003 = vadd.f32 %v6001, %v6002
  %v6004 = vsel %vm315, %v5722, 0.0
  %v6005 = vsel %vm315, %v5802, 0.0
  %v6006 = vadd.f32 %v6004, %v6005
  %v6007 = vsel %vm315, %v5882, 0.0
  %v6008 = vadd.f32 %v6006, %v6007
  %v6009 = vsel %vm315, %v5962, 0.0
  %v6010 = vadd.f32 %v6008, %v6009
  %v6011 = vsel %vm315, %v5725, 0.0
  %v6012 = vsel %vm315, %v5805, 0.0
  %v6013 = vadd.f32 %v6011, %v6012
  %v6014 = vsel %vm315, %v5885, 0.0
  %v6015 = vadd.f32 %v6013, %v6014
  %v6016 = vsel %vm315, %v5965, 0.0
  %v6017 = vadd.f32 %v6015, %v6016
  %v6018 = vsel %vm315, %v5730, 0.0
  %v6019 = vsel %vm315, %v5810, 0.0
  %v6020 = vadd.f32 %v6018, %v6019
  %v6021 = vsel %vm315, %v5890, 0.0
  %v6022 = vadd.f32 %v6020, %v6021
  %v6023 = vsel %vm315, %v5970, 0.0
  %v6024 = vadd.f32 %v6022, %v6023
  %v6025 = vsel %vm315, %v5733, 0.0
  %v6026 = vsel %vm315, %v5813, 0.0
  %v6027 = vadd.f32 %v6025, %v6026
  %v6028 = vsel %vm315, %v5893, 0.0
  %v6029 = vadd.f32 %v6027, %v6028
  %v6030 = vsel %vm315, %v5973, 0.0
  %v6031 = vadd.f32 %v6029, %v6030
  %v6032 = vadd.f32 %v3556, %v5982
  %v6033 = vadd.f32 %v3557, %v5989
  %v6034 = vadd.f32 %v3558, %v5996
  %v6035 = vadd.f32 %v3559, %v6003
  %v6036 = vadd.f32 %v3560, %v6010
  %v6037 = vadd.f32 %v3561, %v6017
  %v6038 = vadd.f32 %v3562, %v6024
  %v6039 = vadd.f32 %v3563, %v6031
  %s6040 = scalar_lea.vmem %s12, 1
  %v6041 = vld [vmem:[%s6040] sm:$0x1]
  %s6042 = scalar_lea.vmem %s13, 1
  %v6043 = vld [vmem:[%s6042] sm:$0x1]
  %v6044 = vsel %vm315, %v6032, 0.0
  %6045 = vadd.xlane.f32.xlu0 %v6044
  %v6046 = vpop.xlane.xlu0 %6045
  %v6047 = vsel %vm315, %v6033, 0.0
  %6048 = vadd.xlane.f32.xlu0 %v6047
  %v6049 = vpop.xlane.xlu0 %6048
  %v6050 = vsel %vm315, %v6034, 0.0
  %6051 = vadd.xlane.f32.xlu0 %v6050
  %v6052 = vpop.xlane.xlu0 %6051
  %v6053 = vsel %vm315, %v6035, 0.0
  %6054 = vadd.xlane.f32.xlu0 %v6053
  %v6055 = vpop.xlane.xlu0 %6054
  %v6056 = vsel %vm315, %v6036, 0.0
  %6057 = vadd.xlane.f32.xlu0 %v6056
  %v6058 = vpop.xlane.xlu0 %6057
  %v6059 = vsel %vm315, %v6037, 0.0
  %6060 = vadd.xlane.f32.xlu0 %v6059
  %v6061 = vpop.xlane.xlu0 %6060
  %v6062 = vsel %vm315, %v6038, 0.0
  %6063 = vadd.xlane.f32.xlu0 %v6062
  %v6064 = vpop.xlane.xlu0 %6063
  %v6065 = vsel %vm315, %v6039, 0.0
  %6066 = vadd.xlane.f32.xlu0 %v6065
  %v6067 = vpop.xlane.xlu0 %6066
  %v6068 = vmul.f32 %v6046, %v3049
  %v6069 = vmul.f32 %v6049, %v3049
  %v6070 = vmul.f32 %v6052, %v3049
  %v6071 = vmul.f32 %v6055, %v3049
  %v6072 = vmul.f32 %v6058, %v3049
  %v6073 = vmul.f32 %v6061, %v3049
  %v6074 = vmul.f32 %v6064, %v3049
  %v6075 = vmul.f32 %v6067, %v3049
  %v6076 = vmul.f32 %v6032, %v6032
  %v6077 = vmul.f32 %v6033, %v6033
  %v6078 = vmul.f32 %v6034, %v6034
  %v6079 = vmul.f32 %v6035, %v6035
  %v6080 = vmul.f32 %v6036, %v6036
  %v6081 = vmul.f32 %v6037, %v6037
  %v6082 = vmul.f32 %v6038, %v6038
  %v6083 = vmul.f32 %v6039, %v6039
  %v6084 = vsel %vm315, %v6076, 0.0
  %6085 = vadd.xlane.f32.xlu0 %v6084
  %v6086 = vpop.xlane.xlu0 %6085
  %v6087 = vsel %vm315, %v6077, 0.0
  %6088 = vadd.xlane.f32.xlu0 %v6087
  %v6089 = vpop.xlane.xlu0 %6088
  %v6090 = vsel %vm315, %v6078, 0.0
  %6091 = vadd.xlane.f32.xlu0 %v6090
  %v6092 = vpop.xlane.xlu0 %6091
  %v6093 = vsel %vm315, %v6079, 0.0
  %6094 = vadd.xlane.f32.xlu0 %v6093
  %v6095 = vpop.xlane.xlu0 %6094
  %v6096 = vsel %vm315, %v6080, 0.0
  %6097 = vadd.xlane.f32.xlu0 %v6096
  %v6098 = vpop.xlane.xlu0 %6097
  %v6099 = vsel %vm315, %v6081, 0.0
  %6100 = vadd.xlane.f32.xlu0 %v6099
  %v6101 = vpop.xlane.xlu0 %6100
  %v6102 = vsel %vm315, %v6082, 0.0
  %6103 = vadd.xlane.f32.xlu0 %v6102
  %v6104 = vpop.xlane.xlu0 %6103
  %v6105 = vsel %vm315, %v6083, 0.0
  %6106 = vadd.xlane.f32.xlu0 %v6105
  %v6107 = vpop.xlane.xlu0 %6106
  %v6108 = vmul.f32 %v6086, %v3049
  %v6109 = vmul.f32 %v6089, %v3049
  %v6110 = vmul.f32 %v6092, %v3049
  %v6111 = vmul.f32 %v6095, %v3049
  %v6112 = vmul.f32 %v6098, %v3049
  %v6113 = vmul.f32 %v6101, %v3049
  %v6114 = vmul.f32 %v6104, %v3049
  %v6115 = vmul.f32 %v6107, %v3049
  %v6116 = vmul.f32 %v6068, %v6068
  %v6117 = vmul.f32 %v6069, %v6069
  %v6118 = vmul.f32 %v6070, %v6070
  %v6119 = vmul.f32 %v6071, %v6071
  %v6120 = vmul.f32 %v6072, %v6072
  %v6121 = vmul.f32 %v6073, %v6073
  %v6122 = vmul.f32 %v6074, %v6074
  %v6123 = vmul.f32 %v6075, %v6075
  %v6124 = vsub.f32 %v6108, %v6116
  %v6125 = vsub.f32 %v6109, %v6117
  %v6126 = vsub.f32 %v6110, %v6118
  %v6127 = vsub.f32 %v6111, %v6119
  %v6128 = vsub.f32 %v6112, %v6120
  %v6129 = vsub.f32 %v6113, %v6121
  %v6130 = vsub.f32 %v6114, %v6122
  %v6131 = vsub.f32 %v6115, %v6123
  %v6132 = vsub.f32 %v6032, %v6068
  %v6133 = vsub.f32 %v6033, %v6069
  %v6134 = vsub.f32 %v6034, %v6070
  %v6135 = vsub.f32 %v6035, %v6071
  %v6136 = vsub.f32 %v6036, %v6072
  %v6137 = vsub.f32 %v6037, %v6073
  %v6138 = vsub.f32 %v6038, %v6074
  %v6139 = vsub.f32 %v6039, %v6075
  %v6140 = vadd.f32 %v6124, 1e-05
  %v6141 = vadd.f32 %v6125, 1e-05
  %v6142 = vadd.f32 %v6126, 1e-05
  %v6143 = vadd.f32 %v6127, 1e-05
  %v6144 = vadd.f32 %v6128, 1e-05
  %v6145 = vadd.f32 %v6129, 1e-05
  %v6146 = vadd.f32 %v6130, 1e-05
  %v6147 = vadd.f32 %v6131, 1e-05
  %v6148 = vrsqrt.pop %v6140
  %v6149 = vrsqrt.pop %v6141
  %v6150 = vrsqrt.pop %v6142
  %v6151 = vrsqrt.pop %v6143
  %v6152 = vrsqrt.pop %v6144
  %v6153 = vrsqrt.pop %v6145
  %v6154 = vrsqrt.pop %v6146
  %v6155 = vrsqrt.pop %v6147
  %v6156 = vmul.f32 %v6132, %v6148
  %v6157 = vmul.f32 %v6133, %v6149
  %v6158 = vmul.f32 %v6134, %v6150
  %v6159 = vmul.f32 %v6135, %v6151
  %v6160 = vmul.f32 %v6136, %v6152
  %v6161 = vmul.f32 %v6137, %v6153
  %v6162 = vmul.f32 %v6138, %v6154
  %v6163 = vmul.f32 %v6139, %v6155
  %v6165 = vlaneseq
  %v6166 = vshrl.u32 %v6165, 7
  %v6167 = vsub.s32 0, %v6166
  %v6168 = vrot.slane %v6041, %v6167
  %v6170 = vmul.f32 %v6156, %v6168
  %v6171 = vmul.f32 %v6157, %v6168
  %v6172 = vmul.f32 %v6158, %v6168
  %v6173 = vmul.f32 %v6159, %v6168
  %v6174 = vmul.f32 %v6160, %v6168
  %v6175 = vmul.f32 %v6161, %v6168
  %v6176 = vmul.f32 %v6162, %v6168
  %v6177 = vmul.f32 %v6163, %v6168
  %v6179 = vlaneseq
  %v6180 = vshrl.u32 %v6179, 7
  %v6181 = vsub.s32 0, %v6180
  %v6182 = vrot.slane %v6043, %v6181
  %v6184 = vadd.f32 %v6170, %v6182
  %v6185 = vadd.f32 %v6171, %v6182
  %v6186 = vadd.f32 %v6172, %v6182
  %v6187 = vadd.f32 %v6173, %v6182
  %v6188 = vadd.f32 %v6174, %v6182
  %v6189 = vadd.f32 %v6175, %v6182
  %v6190 = vadd.f32 %v6176, %v6182
  %v6191 = vadd.f32 %v6177, %v6182
  %v6192 = vpack.c.bf16 %v6185, %v6184
  %v6193 = vpack.c.bf16 %v6187, %v6186
  %v6194 = vpack.c.bf16 %v6189, %v6188
  %v6195 = vpack.c.bf16 %v6191, %v6190
  %s6196 = scalar_lea.vmem %s14, 16
  %v6197 = vld [vmem:[%s6196] sm:$0xf]
  %v6198 = vld [vmem:[%s6196 + $0x4] sm:$0xf]
  %v6199 = vld [vmem:[%s6196 + $0x8] sm:$0xf]
  %v6200 = vld [vmem:[%s6196 + $0xc] sm:$0xf]
  %s6201 = scalar_lea.vmem %s15, 1
  %v6202 = vld [vmem:[%s6201] sm:$0x1]
  %v6204 = vlaneseq
  %v6205 = vshrl.u32 %v6204, 7
  %v6206 = vsub.s32 0, %v6205
  %v6207 = vrot.slane %v6202, %v6206
  %v6213 = vunpack.c.l.b16 %v6197
  %v6214 = vunpack.c.l.b16 %v6198
  %v6215 = vunpack.c.l.b16 %v6199
  %v6216 = vunpack.c.l.b16 %v6200
  %v6217 = vpack.c.b16 %v6214, %v6213
  %v6218 = vpack.c.b16 %v6216, %v6215
  %v6222 = vsel %vm315, %v6192, 0
  %v6225 = vsel %vm315, %v6193, 0
  %v6228 = vsel %vm315, %v6194, 0
  %v6231 = vsel %vm315, %v6195, 0
  %6233 = vmatprep.subr.bf16.mxu0 0
  %6234 = vmatpush1.bf16.msra.mxu0 %v6217
  %6235 = vmatprep.subr.bf16.mxu0 0
  %6236 = vmatpush1.bf16.msra.mxu0 %v6218
  %6237 = vmatprep.subr.bf16.mxu0 0
  %6238 = vmatpush1.bf16.msra.mxu0 0
  %6239 = vmatprep.subr.bf16.mxu0 0
  %6240 = vmatpush1.bf16.msra.mxu0 0
  %6241 = vmatprep.subr.bf16.mxu0 0
  %6242 = vmatpush1.bf16.msra.mxu0 0
  %6243 = vmatprep.subr.bf16.mxu0 0
  %6244 = vmatpush1.bf16.msra.mxu0 0
  %6245 = vmatprep.subr.bf16.mxu0 0
  %6246 = vmatpush1.bf16.msra.mxu0 0
  %6247 = vmatprep.subr.bf16.mxu0 0
  %6248 = vmatpush1.bf16.msra.mxu0 0
  %6249 = vmatprep.subr.bf16.mxu0 0
  %6250 = vmatpush1.bf16.msra.mxu0 0
  %6251 = vmatprep.subr.bf16.mxu0 0
  %6252 = vmatpush1.bf16.msra.mxu0 0
  %6253 = vmatprep.subr.bf16.mxu0 0
  %6254 = vmatpush1.bf16.msra.mxu0 0
  %6255 = vmatprep.subr.bf16.mxu0 0
  %6256 = vmatpush1.bf16.msra.mxu0 0
  %6257 = vmatprep.subr.bf16.mxu0 0
  %6258 = vmatpush1.bf16.msra.mxu0 0
  %6259 = vmatprep.subr.bf16.mxu0 0
  %6260 = vmatpush1.bf16.msra.mxu0 0
  %6261 = vmatprep.subr.bf16.mxu0 0
  %6262 = vmatpush1.bf16.msra.mxu0 0
  %6263 = vmatprep.subr.bf16.mxu0 0
  %6264 = vmatpush1.bf16.msra.mxu0 0
  %6265 = vmatprep.mubr.bf16.mxu0 0
  %6266 = vmatmul.mubr.bf16.gmra.mrb[0].mxu0 %v6222
  %v6267 = vpop.f32.mrb[0].mxu0
  %v6268 = vadd.f32 %v6207, %v6267
  %v6269 = vpop.f32.mrb[0].mxu0
  %v6270 = vpop.f32.mrb[0].mxu0
  %v6271 = vadd.f32 %v6207, %v6270
  %v6272 = vpop.f32.mrb[0].mxu0
  %6273 = vmatprep.mubr.bf16.mxu0 0
  %6274 = vmatmul.mubr.bf16.gmra.mrb[0].mxu0 %v6225
  %v6275 = vpop.f32.mrb[0].mxu0
  %v6276 = vadd.f32 %v6207, %v6275
  %v6277 = vpop.f32.mrb[0].mxu0
  %v6278 = vpop.f32.mrb[0].mxu0
  %v6279 = vadd.f32 %v6207, %v6278
  %v6280 = vpop.f32.mrb[0].mxu0
  %6281 = vmatprep.mubr.bf16.mxu0 0
  %6282 = vmatmul.mubr.bf16.gmra.mrb[0].mxu0 %v6228
  %v6283 = vpop.f32.mrb[0].mxu0
  %v6284 = vadd.f32 %v6207, %v6283
  %v6285 = vpop.f32.mrb[0].mxu0
  %v6286 = vpop.f32.mrb[0].mxu0
  %v6287 = vadd.f32 %v6207, %v6286
  %v6288 = vpop.f32.mrb[0].mxu0
  %6289 = vmatprep.mubr.bf16.mxu0 0
  %6290 = vmatmul.mubr.bf16.gmra.mrb[0].mxu0 %v6231
  %v6291 = vpop.f32.mrb[0].mxu0
  %v6292 = vadd.f32 %v6207, %v6291
  %v6293 = vpop.f32.mrb[0].mxu0
  %v6294 = vpop.f32.mrb[0].mxu0
  %v6295 = vadd.f32 %v6207, %v6294
  %v6296 = vpop.f32.mrb[0].mxu0
  %6297 = vdwg.mxu0
  %v6298 = vmax.f32 %v6268, 0.0
  %v6299 = vmax.f32 %v6271, 0.0
  %v6300 = vmax.f32 %v6276, 0.0
  %v6301 = vmax.f32 %v6279, 0.0
  %v6302 = vmax.f32 %v6284, 0.0
  %v6303 = vmax.f32 %v6287, 0.0
  %v6304 = vmax.f32 %v6292, 0.0
  %v6305 = vmax.f32 %v6295, 0.0
  %v6306 = vpack.c.bf16 %v6299, %v6298
  %v6307 = vpack.c.bf16 %v6301, %v6300
  %v6308 = vpack.c.bf16 %v6303, %v6302
  %v6309 = vpack.c.bf16 %v6305, %v6304
  %s6310 = scalar_lea.vmem %s16, 32
  %v6311 = vld [vmem:[%s6310] sm:$0xf]
  %v6312 = vld [vmem:[%s6310 + $0x4] sm:$0xf]
  %v6313 = vld [vmem:[%s6310 + $0x8] sm:$0xf]
  %v6314 = vld [vmem:[%s6310 + $0xc] sm:$0xf]
  %v6315 = vld [vmem:[%s6310 + $0x10] sm:$0xf]
  %v6316 = vld [vmem:[%s6310 + $0x14] sm:$0xf]
  %v6317 = vld [vmem:[%s6310 + $0x18] sm:$0xf]
  %v6318 = vld [vmem:[%s6310 + $0x1c] sm:$0xf]
  %s6319 = scalar_lea.vmem %s17, 1
  %v6320 = vld [vmem:[%s6319] sm:$0x1]
  %v6322 = vlaneseq
  %v6323 = vshrl.u32 %v6322, 7
  %v6324 = vsub.s32 0, %v6323
  %v6325 = vrot.slane %v6320, %v6324
  %v6335 = vunpack.c.l.b16 %v6311
  %v6336 = vunpack.c.l.b16 %v6312
  %v6337 = vunpack.c.l.b16 %v6313
  %v6338 = vunpack.c.l.b16 %v6314
  %v6339 = vunpack.c.l.b16 %v6315
  %v6340 = vunpack.c.l.b16 %v6316
  %v6341 = vunpack.c.l.b16 %v6317
  %v6342 = vunpack.c.l.b16 %v6318
  %v6343 = vpack.c.b16 %v6336, %v6335
  %v6344 = vpack.c.b16 %v6338, %v6337
  %v6345 = vpack.c.b16 %v6340, %v6339
  %v6346 = vpack.c.b16 %v6342, %v6341
  %v6352 = vsel %vm209, %v6306, 0
  %v6355 = vsel %vm209, %v6307, 0
  %v6358 = vsel %vm209, %v6308, 0
  %v6361 = vsel %vm209, %v6309, 0
  %6363 = vmatprep.subr.bf16.mxu0 0
  %6364 = vmatpush1.bf16.msra.mxu0 %v6343
  %6365 = vmatprep.subr.bf16.mxu0 0
  %6366 = vmatpush1.bf16.msra.mxu0 %v6344
  %6367 = vmatprep.subr.bf16.mxu0 0
  %6368 = vmatpush1.bf16.msra.mxu0 %v6345
  %6369 = vmatprep.subr.bf16.mxu0 0
  %6370 = vmatpush1.bf16.msra.mxu0 %v6346
  %6371 = vmatprep.subr.bf16.mxu0 0
  %6372 = vmatpush1.bf16.msra.mxu0 0
  %6373 = vmatprep.subr.bf16.mxu0 0
  %6374 = vmatpush1.bf16.msra.mxu0 0
  %6375 = vmatprep.subr.bf16.mxu0 0
  %6376 = vmatpush1.bf16.msra.mxu0 0
  %6377 = vmatprep.subr.bf16.mxu0 0
  %6378 = vmatpush1.bf16.msra.mxu0 0
  %6379 = vmatprep.subr.bf16.mxu0 0
  %6380 = vmatpush1.bf16.msra.mxu0 0
  %6381 = vmatprep.subr.bf16.mxu0 0
  %6382 = vmatpush1.bf16.msra.mxu0 0
  %6383 = vmatprep.subr.bf16.mxu0 0
  %6384 = vmatpush1.bf16.msra.mxu0 0
  %6385 = vmatprep.subr.bf16.mxu0 0
  %6386 = vmatpush1.bf16.msra.mxu0 0
  %6387 = vmatprep.subr.bf16.mxu0 0
  %6388 = vmatpush1.bf16.msra.mxu0 0
  %6389 = vmatprep.subr.bf16.mxu0 0
  %6390 = vmatpush1.bf16.msra.mxu0 0
  %6391 = vmatprep.subr.bf16.mxu0 0
  %6392 = vmatpush1.bf16.msra.mxu0 0
  %6393 = vmatprep.subr.bf16.mxu0 0
  %6394 = vmatpush1.bf16.msra.mxu0 0
  %6395 = vmatprep.mubr.bf16.mxu0 0
  %6396 = vmatmul.mubr.bf16.gmra.mrb[0].mxu0 %v6352
  %v6397 = vpop.f32.mrb[0].mxu0
  %v6398 = vadd.f32 %v6325, %v6397
  %v6399 = vpop.f32.mrb[0].mxu0
  %v6400 = vpop.f32.mrb[0].mxu0
  %v6401 = vadd.f32 %v6325, %v6400
  %v6402 = vpop.f32.mrb[0].mxu0
  %6403 = vmatprep.mubr.bf16.mxu0 0
  %6404 = vmatmul.mubr.bf16.gmra.mrb[0].mxu0 %v6355
  %v6405 = vpop.f32.mrb[0].mxu0
  %v6406 = vadd.f32 %v6325, %v6405
  %v6407 = vpop.f32.mrb[0].mxu0
  %v6408 = vpop.f32.mrb[0].mxu0
  %v6409 = vadd.f32 %v6325, %v6408
  %v6410 = vpop.f32.mrb[0].mxu0
  %6411 = vmatprep.mubr.bf16.mxu0 0
  %6412 = vmatmul.mubr.bf16.gmra.mrb[0].mxu0 %v6358
  %v6413 = vpop.f32.mrb[0].mxu0
  %v6414 = vadd.f32 %v6325, %v6413
  %v6415 = vpop.f32.mrb[0].mxu0
  %v6416 = vpop.f32.mrb[0].mxu0
  %v6417 = vadd.f32 %v6325, %v6416
  %v6418 = vpop.f32.mrb[0].mxu0
  %6419 = vmatprep.mubr.bf16.mxu0 0
  %6420 = vmatmul.mubr.bf16.gmra.mrb[0].mxu0 %v6361
  %v6421 = vpop.f32.mrb[0].mxu0
  %v6422 = vadd.f32 %v6325, %v6421
  %v6423 = vpop.f32.mrb[0].mxu0
  %v6424 = vpop.f32.mrb[0].mxu0
  %v6425 = vadd.f32 %v6325, %v6424
  %v6426 = vpop.f32.mrb[0].mxu0
  %6427 = vdwg.mxu0
  %v6428 = vadd.f32 %v6184, %v6398
  %v6429 = vadd.f32 %v6185, %v6401
  %v6430 = vadd.f32 %v6186, %v6406
  %v6431 = vadd.f32 %v6187, %v6409
  %v6432 = vadd.f32 %v6188, %v6414
  %v6433 = vadd.f32 %v6189, %v6417
  %v6434 = vadd.f32 %v6190, %v6422
  %v6435 = vadd.f32 %v6191, %v6425
  %s6436 = scalar_lea.vmem %s18, 1
  %v6437 = vld [vmem:[%s6436] sm:$0x1]
  %s6438 = scalar_lea.vmem %s19, 1
  %v6439 = vld [vmem:[%s6438] sm:$0x1]
  %v6440 = vsel %vm315, %v6428, 0.0
  %6441 = vadd.xlane.f32.xlu0 %v6440
  %v6442 = vpop.xlane.xlu0 %6441
  %v6443 = vsel %vm315, %v6429, 0.0
  %6444 = vadd.xlane.f32.xlu0 %v6443
  %v6445 = vpop.xlane.xlu0 %6444
  %v6446 = vsel %vm315, %v6430, 0.0
  %6447 = vadd.xlane.f32.xlu0 %v6446
  %v6448 = vpop.xlane.xlu0 %6447
  %v6449 = vsel %vm315, %v6431, 0.0
  %6450 = vadd.xlane.f32.xlu0 %v6449
  %v6451 = vpop.xlane.xlu0 %6450
  %v6452 = vsel %vm315, %v6432, 0.0
  %6453 = vadd.xlane.f32.xlu0 %v6452
  %v6454 = vpop.xlane.xlu0 %6453
  %v6455 = vsel %vm315, %v6433, 0.0
  %6456 = vadd.xlane.f32.xlu0 %v6455
  %v6457 = vpop.xlane.xlu0 %6456
  %v6458 = vsel %vm315, %v6434, 0.0
  %6459 = vadd.xlane.f32.xlu0 %v6458
  %v6460 = vpop.xlane.xlu0 %6459
  %v6461 = vsel %vm315, %v6435, 0.0
  %6462 = vadd.xlane.f32.xlu0 %v6461
  %v6463 = vpop.xlane.xlu0 %6462
  %v6464 = vmul.f32 %v6442, %v3049
  %v6465 = vmul.f32 %v6445, %v3049
  %v6466 = vmul.f32 %v6448, %v3049
  %v6467 = vmul.f32 %v6451, %v3049
  %v6468 = vmul.f32 %v6454, %v3049
  %v6469 = vmul.f32 %v6457, %v3049
  %v6470 = vmul.f32 %v6460, %v3049
  %v6471 = vmul.f32 %v6463, %v3049
  %v6472 = vmul.f32 %v6428, %v6428
  %v6473 = vmul.f32 %v6429, %v6429
  %v6474 = vmul.f32 %v6430, %v6430
  %v6475 = vmul.f32 %v6431, %v6431
  %v6476 = vmul.f32 %v6432, %v6432
  %v6477 = vmul.f32 %v6433, %v6433
  %v6478 = vmul.f32 %v6434, %v6434
  %v6479 = vmul.f32 %v6435, %v6435
  %v6480 = vsel %vm315, %v6472, 0.0
  %6481 = vadd.xlane.f32.xlu0 %v6480
  %v6482 = vpop.xlane.xlu0 %6481
  %v6483 = vsel %vm315, %v6473, 0.0
  %6484 = vadd.xlane.f32.xlu0 %v6483
  %v6485 = vpop.xlane.xlu0 %6484
  %v6486 = vsel %vm315, %v6474, 0.0
  %6487 = vadd.xlane.f32.xlu0 %v6486
  %v6488 = vpop.xlane.xlu0 %6487
  %v6489 = vsel %vm315, %v6475, 0.0
  %6490 = vadd.xlane.f32.xlu0 %v6489
  %v6491 = vpop.xlane.xlu0 %6490
  %v6492 = vsel %vm315, %v6476, 0.0
  %6493 = vadd.xlane.f32.xlu0 %v6492
  %v6494 = vpop.xlane.xlu0 %6493
  %v6495 = vsel %vm315, %v6477, 0.0
  %6496 = vadd.xlane.f32.xlu0 %v6495
  %v6497 = vpop.xlane.xlu0 %6496
  %v6498 = vsel %vm315, %v6478, 0.0
  %6499 = vadd.xlane.f32.xlu0 %v6498
  %v6500 = vpop.xlane.xlu0 %6499
  %v6501 = vsel %vm315, %v6479, 0.0
  %6502 = vadd.xlane.f32.xlu0 %v6501
  %v6503 = vpop.xlane.xlu0 %6502
  %v6504 = vmul.f32 %v6482, %v3049
  %v6505 = vmul.f32 %v6485, %v3049
  %v6506 = vmul.f32 %v6488, %v3049
  %v6507 = vmul.f32 %v6491, %v3049
  %v6508 = vmul.f32 %v6494, %v3049
  %v6509 = vmul.f32 %v6497, %v3049
  %v6510 = vmul.f32 %v6500, %v3049
  %v6511 = vmul.f32 %v6503, %v3049
  %v6512 = vmul.f32 %v6464, %v6464
  %v6513 = vmul.f32 %v6465, %v6465
  %v6514 = vmul.f32 %v6466, %v6466
  %v6515 = vmul.f32 %v6467, %v6467
  %v6516 = vmul.f32 %v6468, %v6468
  %v6517 = vmul.f32 %v6469, %v6469
  %v6518 = vmul.f32 %v6470, %v6470
  %v6519 = vmul.f32 %v6471, %v6471
  %v6520 = vsub.f32 %v6504, %v6512
  %v6521 = vsub.f32 %v6505, %v6513
  %v6522 = vsub.f32 %v6506, %v6514
  %v6523 = vsub.f32 %v6507, %v6515
  %v6524 = vsub.f32 %v6508, %v6516
  %v6525 = vsub.f32 %v6509, %v6517
  %v6526 = vsub.f32 %v6510, %v6518
  %v6527 = vsub.f32 %v6511, %v6519
  %v6528 = vsub.f32 %v6428, %v6464
  %v6529 = vsub.f32 %v6429, %v6465
  %v6530 = vsub.f32 %v6430, %v6466
  %v6531 = vsub.f32 %v6431, %v6467
  %v6532 = vsub.f32 %v6432, %v6468
  %v6533 = vsub.f32 %v6433, %v6469
  %v6534 = vsub.f32 %v6434, %v6470
  %v6535 = vsub.f32 %v6435, %v6471
  %v6536 = vadd.f32 %v6520, 1e-05
  %v6537 = vadd.f32 %v6521, 1e-05
  %v6538 = vadd.f32 %v6522, 1e-05
  %v6539 = vadd.f32 %v6523, 1e-05
  %v6540 = vadd.f32 %v6524, 1e-05
  %v6541 = vadd.f32 %v6525, 1e-05
  %v6542 = vadd.f32 %v6526, 1e-05
  %v6543 = vadd.f32 %v6527, 1e-05
  %v6544 = vrsqrt.pop %v6536
  %v6545 = vrsqrt.pop %v6537
  %v6546 = vrsqrt.pop %v6538
  %v6547 = vrsqrt.pop %v6539
  %v6548 = vrsqrt.pop %v6540
  %v6549 = vrsqrt.pop %v6541
  %v6550 = vrsqrt.pop %v6542
  %v6551 = vrsqrt.pop %v6543
  %v6552 = vmul.f32 %v6528, %v6544
  %v6553 = vmul.f32 %v6529, %v6545
  %v6554 = vmul.f32 %v6530, %v6546
  %v6555 = vmul.f32 %v6531, %v6547
  %v6556 = vmul.f32 %v6532, %v6548
  %v6557 = vmul.f32 %v6533, %v6549
  %v6558 = vmul.f32 %v6534, %v6550
  %v6559 = vmul.f32 %v6535, %v6551
  %v6561 = vlaneseq
  %v6562 = vshrl.u32 %v6561, 7
  %v6563 = vsub.s32 0, %v6562
  %v6564 = vrot.slane %v6437, %v6563
  %v6566 = vmul.f32 %v6552, %v6564
  %v6567 = vmul.f32 %v6553, %v6564
  %v6568 = vmul.f32 %v6554, %v6564
  %v6569 = vmul.f32 %v6555, %v6564
  %v6570 = vmul.f32 %v6556, %v6564
  %v6571 = vmul.f32 %v6557, %v6564
  %v6572 = vmul.f32 %v6558, %v6564
  %v6573 = vmul.f32 %v6559, %v6564
  %v6575 = vlaneseq
  %v6576 = vshrl.u32 %v6575, 7
  %v6577 = vsub.s32 0, %v6576
  %v6578 = vrot.slane %v6439, %v6577
  %v6580 = vadd.f32 %v6566, %v6578
  %v6581 = vadd.f32 %v6567, %v6578
  %v6582 = vadd.f32 %v6568, %v6578
  %v6583 = vadd.f32 %v6569, %v6578
  %v6584 = vadd.f32 %v6570, %v6578
  %v6585 = vadd.f32 %v6571, %v6578
  %v6586 = vadd.f32 %v6572, %v6578
  %v6587 = vadd.f32 %v6573, %v6578
  %v6588 = vpack.c.bf16 %v6581, %v6580
  %v6589 = vpack.c.bf16 %v6583, %v6582
  %v6590 = vpack.c.bf16 %v6585, %v6584
  %v6591 = vpack.c.bf16 %v6587, %v6586
  %v6592 = vld [vmem:[%s20] sm:$0xf]
  %v6593 = vld [vmem:[%s20 + $0x4] sm:$0xf]
  %v6594 = vld [vmem:[%s20 + $0x8] sm:$0xf]
  %v6595 = vld [vmem:[%s20 + $0xc] sm:$0xf]
  %v6596 = vld [vmem:[%s21] sm:$0x1]
  %v6598 = vlaneseq
  %v6599 = vshrl.u32 %v6598, 7
  %v6600 = vsub.s32 0, %v6599
  %v6601 = vrot.slane %v6596, %v6600
  %v6607 = vunpack.c.l.b16 %v6592
  %v6608 = vunpack.c.l.b16 %v6593
  %v6609 = vunpack.c.l.b16 %v6594
  %v6610 = vunpack.c.l.b16 %v6595
  %v6611 = vpack.c.b16 %v6608, %v6607
  %v6612 = vpack.c.b16 %v6610, %v6609
  %v6616 = vsel %vm315, %v6588, 0
  %v6619 = vsel %vm315, %v6589, 0
  %v6622 = vsel %vm315, %v6590, 0
  %v6625 = vsel %vm315, %v6591, 0
  %6627 = vmatprep.subr.bf16.mxu0 0
  %6628 = vmatpush1.bf16.msra.mxu0 %v6611
  %6629 = vmatprep.subr.bf16.mxu0 0
  %6630 = vmatpush1.bf16.msra.mxu0 %v6612
  %6631 = vmatprep.subr.bf16.mxu0 0
  %6632 = vmatpush1.bf16.msra.mxu0 0
  %6633 = vmatprep.subr.bf16.mxu0 0
  %6634 = vmatpush1.bf16.msra.mxu0 0
  %6635 = vmatprep.subr.bf16.mxu0 0
  %6636 = vmatpush1.bf16.msra.mxu0 0
  %6637 = vmatprep.subr.bf16.mxu0 0
  %6638 = vmatpush1.bf16.msra.mxu0 0
  %6639 = vmatprep.subr.bf16.mxu0 0
  %6640 = vmatpush1.bf16.msra.mxu0 0
  %6641 = vmatprep.subr.bf16.mxu0 0
  %6642 = vmatpush1.bf16.msra.mxu0 0
  %6643 = vmatprep.subr.bf16.mxu0 0
  %6644 = vmatpush1.bf16.msra.mxu0 0
  %6645 = vmatprep.subr.bf16.mxu0 0
  %6646 = vmatpush1.bf16.msra.mxu0 0
  %6647 = vmatprep.subr.bf16.mxu0 0
  %6648 = vmatpush1.bf16.msra.mxu0 0
  %6649 = vmatprep.subr.bf16.mxu0 0
  %6650 = vmatpush1.bf16.msra.mxu0 0
  %6651 = vmatprep.subr.bf16.mxu0 0
  %6652 = vmatpush1.bf16.msra.mxu0 0
  %6653 = vmatprep.subr.bf16.mxu0 0
  %6654 = vmatpush1.bf16.msra.mxu0 0
  %6655 = vmatprep.subr.bf16.mxu0 0
  %6656 = vmatpush1.bf16.msra.mxu0 0
  %6657 = vmatprep.subr.bf16.mxu0 0
  %6658 = vmatpush1.bf16.msra.mxu0 0
  %6659 = vmatprep.mubr.bf16.mxu0 0
  %6660 = vmatmul.mubr.bf16.gmra.mrb[0].mxu0 %v6616
  %v6661 = vpop.f32.mrb[0].mxu0
  %v6662 = vadd.f32 %v6601, %v6661
  %v6663 = vpop.f32.mrb[0].mxu0
  %v6664 = vpop.f32.mrb[0].mxu0
  %v6665 = vadd.f32 %v6601, %v6664
  %v6666 = vpop.f32.mrb[0].mxu0
  %6667 = vmatprep.mubr.bf16.mxu0 0
  %6668 = vmatmul.mubr.bf16.gmra.mrb[0].mxu0 %v6619
  %v6669 = vpop.f32.mrb[0].mxu0
  %v6670 = vadd.f32 %v6601, %v6669
  %v6671 = vpop.f32.mrb[0].mxu0
  %v6672 = vpop.f32.mrb[0].mxu0
  %v6673 = vadd.f32 %v6601, %v6672
  %v6674 = vpop.f32.mrb[0].mxu0
  %6675 = vmatprep.mubr.bf16.mxu0 0
  %6676 = vmatmul.mubr.bf16.gmra.mrb[0].mxu0 %v6622
  %v6677 = vpop.f32.mrb[0].mxu0
  %v6678 = vadd.f32 %v6601, %v6677
  %v6679 = vpop.f32.mrb[0].mxu0
  %v6680 = vpop.f32.mrb[0].mxu0
  %v6681 = vadd.f32 %v6601, %v6680
  %v6682 = vpop.f32.mrb[0].mxu0
  %6683 = vmatprep.mubr.bf16.mxu0 0
  %6684 = vmatmul.mubr.bf16.gmra.mrb[0].mxu0 %v6625
  %v6685 = vpop.f32.mrb[0].mxu0
  %v6686 = vadd.f32 %v6601, %v6685
  %v6687 = vpop.f32.mrb[0].mxu0
  %v6688 = vpop.f32.mrb[0].mxu0
  %v6689 = vadd.f32 %v6601, %v6688
  %v6690 = vpop.f32.mrb[0].mxu0
  %6691 = vdwg.mxu0
  %6700 = vrot.lane.b32.xlu0 %v6662, 8
  %v6701 = vpop.permute.xlu0 %6700
  %6702 = vrot.lane.b32.xlu0 %v6665, 8
  %v6703 = vpop.permute.xlu0 %6702
  %6704 = vrot.lane.b32.xlu0 %v6670, 8
  %v6705 = vpop.permute.xlu0 %6704
  %6706 = vrot.lane.b32.xlu0 %v6673, 8
  %v6707 = vpop.permute.xlu0 %6706
  %6708 = vrot.lane.b32.xlu0 %v6678, 8
  %v6709 = vpop.permute.xlu0 %6708
  %6710 = vrot.lane.b32.xlu0 %v6681, 8
  %v6711 = vpop.permute.xlu0 %6710
  %6712 = vrot.lane.b32.xlu0 %v6686, 8
  %v6713 = vpop.permute.xlu0 %6712
  %6714 = vrot.lane.b32.xlu0 %v6689, 8
  %v6715 = vpop.permute.xlu0 %6714
  %v6724 = vsel %vm1569, %v439, %v6701
  %v6725 = vsel %vm1569, %v442, %v6703
  %v6726 = vsel %vm1569, %v447, %v6705
  %v6727 = vsel %vm1569, %v450, %v6707
  %v6728 = vsel %vm1569, %v455, %v6709
  %v6729 = vsel %vm1569, %v458, %v6711
  %v6730 = vsel %vm1569, %v463, %v6713
  %v6731 = vsel %vm1569, %v466, %v6715
  %6732 = vst.msk [vmem:[%s22] sm:$0xff] %vm100, %v6724
  %6733 = vst.msk [vmem:[%s22 + $0x8] sm:$0xff] %vm100, %v6725
  %6734 = vst.msk [vmem:[%s22 + $0x10] sm:$0xff] %vm100, %v6726
  %6735 = vst.msk [vmem:[%s22 + $0x18] sm:$0xff] %vm100, %v6727
  %6736 = vst.msk [vmem:[%s22 + $0x20] sm:$0xff] %vm100, %v6728
  %6737 = vst.msk [vmem:[%s22 + $0x28] sm:$0xff] %vm100, %v6729
  %6738 = vst.msk [vmem:[%s22 + $0x30] sm:$0xff] %vm100, %v6730
  %6739 = vst.msk [vmem:[%s22 + $0x38] sm:$0xff] %vm100, %v6731
  // Predicated region
  $region90: #{cobformer_forward.1} parent=0 // pred_check
    _
  $region91: #{cobformer_forward.1} parent=0 // pred_check_branch
    %6741 = sbr.rel (0) target = $region93
  $region92: #{cobformer_forward.1} parent=0 // pred_region
    _
  $region93: #{cobformer_forward.1} parent=0 // pred_fallthru
    _
  // Predicated region
  $region94: #{cobformer_forward.1} parent=0 // pred_check
    _
  $region95: #{cobformer_forward.1} parent=0 // pred_check_branch
    %6743 = sbr.rel (0) target = $region97
  $region96: #{cobformer_forward.1} parent=0 // pred_region
    _
  $region97: #{cobformer_forward.1} parent=0 // pred_fallthru
    _

</llo_original>
